<compile_context>
chip_gen: v6e
topology: v6e:2x2x1
jax: 0.10.0
libtpu: 0.0.40
codegen_flags: <defaults>
</compile_context>

<pallas_src>
import functools

import jax
import jax.numpy as jnp
from jax.experimental import pallas as pl
from jax.experimental.pallas import tpu as pltpu

EPS = 1e-5          # nn.InstanceNorm2d default
NEG_SLOPE = 0.01    # nn.LeakyReLU default


# ----------------------------------------------------------------------------
# Fused kernel: conv3x3(stride s)+IN+LReLU -> conv3x3(stride 1)+IN+LReLU
# One grid step per batch element (InstanceNorm is per (batch, channel)).
# ----------------------------------------------------------------------------
def _make_stacked_kernel(s, Hph, H1, W1, Cin, Cout):
    HW = H1 * W1

    def kernel(x_ref, w1_ref, w2_ref, aff_ref, o_ref, mid_ref):
        # x_ref  : (1, s*s*Hph, Wph, Cin) bf16  phase-decomposed padded input
        # w1_ref : (9, Cin, Cout)  bf16         w2_ref: (9, Cout, Cout) bf16
        # aff_ref: (6, Cout) f32   rows = [b1, gamma1, beta1, b2, gamma2, beta2]
        # o_ref  : (1, HW, Cout) f32
        # mid_ref: (H1+2, W1+2, Cout) f32 VMEM scratch (zero-halo intermediate)

        # ---- conv1: 9 shifted tap matmuls accumulated in f32 (no HBM im2col) --
        acc = jnp.zeros((HW, Cout), jnp.float32)
        for kh in range(3):
            for kw in range(3):
                t = kh * 3 + kw
                ph = (kh % s) * s + (kw % s)           # which phase slab
                r0 = ph * Hph + kh // s                # row offset inside slab
                c0 = kw // s
                tap = x_ref[0, r0:r0 + H1, c0:c0 + W1, :]      # (H1, W1, Cin)
                acc = acc + jnp.dot(tap.reshape(HW, Cin), w1_ref[t],
                                    preferred_element_type=jnp.float32)

        # ---- epilogue 1 (f32): bias + InstanceNorm(affine) + LeakyReLU --------
        y = acc + aff_ref[0:1, :]
        mean = jnp.mean(y, axis=0, keepdims=True)
        var = jnp.mean((y - mean) ** 2, axis=0, keepdims=True)
        y = (y - mean) * jax.lax.rsqrt(var + EPS)
        y = y * aff_ref[1:2, :] + aff_ref[2:3, :]
        y = jnp.where(y >= 0, y, NEG_SLOPE * y)

        # stage the intermediate in VMEM with a zero halo (= conv2's padding=1);
        # it never round-trips through HBM.
        mid_ref[...] = jnp.zeros((H1 + 2, W1 + 2, Cout), jnp.float32)
        mid_ref[1:H1 + 1, 1:W1 + 1, :] = y.reshape(H1, W1, Cout)

        # ---- conv2 (stride 1): 9 shifted tap matmuls from the VMEM scratch ----
        acc2 = jnp.zeros((HW, Cout), jnp.float32)
        for kh in range(3):
            for kw in range(3):
                t = kh * 3 + kw
                tap = mid_ref[kh:kh + H1, kw:kw + W1, :]        # (H1, W1, Cout)
                acc2 = acc2 + jnp.dot(
                    tap.reshape(HW, Cout).astype(jnp.bfloat16), w2_ref[t],
                    preferred_element_type=jnp.float32)

        # ---- epilogue 2 (f32) --------------------------------------------------
        z = acc2 + aff_ref[3:4, :]
        mean2 = jnp.mean(z, axis=0, keepdims=True)
        var2 = jnp.mean((z - mean2) ** 2, axis=0, keepdims=True)
        z = (z - mean2) * jax.lax.rsqrt(var2 + EPS)
        z = z * aff_ref[4:5, :] + aff_ref[5:6, :]
        o_ref[0] = jnp.where(z >= 0, z, NEG_SLOPE * z)

    return kernel


# ----------------------------------------------------------------------------
# Wrappers
# ----------------------------------------------------------------------------
def stacked_conv2d_nhwc(x, params, *, stride):
    """Fused StackedConvnd forward. x: (B, H, W, Cin) f32 -> (B, Ho, Wo, Cout)."""
    w1, w2 = params["w1"], params["w2"]
    B, H, W, Cin = x.shape
    Cout = w1.shape[-1]
    assert stride in (1, 2)
    assert H % stride == 0 and W % stride == 0
    s = stride
    H1 = (H + 2 - 3) // s + 1
    W1 = (W + 2 - 3) // s + 1
    HW = H1 * W1

    # pad=1, then phase-decompose so every in-kernel 3x3 tap is a contiguous
    # static slice even for stride 2 (each input element lands in exactly one
    # phase slab -> no read amplification, unlike the old HBM im2col).
    xp = jnp.pad(x.astype(jnp.bfloat16), ((0, 0), (1, 1), (1, 1), (0, 0)))
    Hp, Wp = H + 2, W + 2
    Hph = (Hp - 1) // s + 1
    Wph = (Wp - 1) // s + 1
    if s == 1:
        xph = xp[:, None]
    else:
        xph = jnp.stack([xp[:, di::s, dj::s, :]
                         for di in range(s) for dj in range(s)], axis=1)
    xph = xph.reshape(B, s * s * Hph, Wph, Cin)

    w1_t = w1.reshape(9, Cin, Cout).astype(jnp.bfloat16)       # tap-major
    w2_t = w2.reshape(9, Cout, Cout).astype(jnp.bfloat16)
    aff = jnp.stack([params["b1"], params["g1"], params["beta1"],
                     params["b2"], params["g2"], params["beta2"]]
                    ).astype(jnp.float32)                       # (6, Cout)

    flops = 2 * B * HW * 9 * (Cin * Cout + Cout * Cout)
    bytes_accessed = (xph.size * 2 + w1_t.size * 2 + w2_t.size * 2
                      + aff.size * 4 + B * HW * Cout * 4)
    cost = pl.CostEstimate(flops=flops, transcendentals=2 * B * Cout,
                           bytes_accessed=bytes_accessed)

    # TODO(synk): for large resolutions on v7x (64 MiB VMEM), add a spatially
    # tiled variant with a streaming two-pass InstanceNorm reduction instead of
    # keeping the whole per-sample spatial extent resident.
    kernel = _make_stacked_kernel(s, Hph, H1, W1, Cin, Cout)
    out = pl.pallas_call(
        kernel,
        out_shape=jax.ShapeDtypeStruct((B, HW, Cout), jnp.float32),
        grid=(B,),
        in_specs=[
            pl.BlockSpec((1, s * s * Hph, Wph, Cin), lambda b: (b, 0, 0, 0)),
            pl.BlockSpec((9, Cin, Cout), lambda b: (0, 0, 0)),
            pl.BlockSpec((9, Cout, Cout), lambda b: (0, 0, 0)),
            pl.BlockSpec((6, Cout), lambda b: (0, 0)),
        ],
        out_specs=pl.BlockSpec((1, HW, Cout), lambda b: (b, 0, 0)),
        scratch_shapes=[pltpu.VMEM((H1 + 2, W1 + 2, Cout), jnp.float32)],
        compiler_params=pltpu.CompilerParams(
            dimension_semantics=("parallel",)),
        cost_estimate=cost,
    )(xph, w1_t, w2_t, aff)
    return out.reshape(B, H1, W1, Cout)


def stacked_conv2d_nchw(x_nchw, params, *, stride):
    """PyTorch-convention boundary: NCHW in, NCHW out."""
    x = jnp.transpose(x_nchw, (0, 2, 3, 1))
    y = stacked_conv2d_nhwc(x, params, stride=stride)
    return jnp.transpose(y, (0, 3, 1, 2))


# ----------------------------------------------------------------------------
# Pure-JAX reference (f32, HIGHEST precision) for correctness checking
# ----------------------------------------------------------------------------
def _conv_in_lrelu_ref(x, w, b, gamma, beta, stride):
    y = jax.lax.conv_general_dilated(
        x, w, window_strides=(stride, stride), padding=((1, 1), (1, 1)),
        dimension_numbers=("NHWC", "HWIO", "NHWC"),
        precision=jax.lax.Precision.HIGHEST)
    y = y + b
    mean = jnp.mean(y, axis=(1, 2), keepdims=True)
    var = jnp.mean((y - mean) ** 2, axis=(1, 2), keepdims=True)
    y = (y - mean) * jax.lax.rsqrt(var + EPS)
    y = y * gamma + beta
    return jnp.where(y >= 0, y, NEG_SLOPE * y)


def stacked_conv2d_ref(x_nchw, params, *, stride):
    x = jnp.transpose(x_nchw, (0, 2, 3, 1))
    y = _conv_in_lrelu_ref(x, params["w1"], params["b1"], params["g1"],
                           params["beta1"], stride)
    y = _conv_in_lrelu_ref(y, params["w2"], params["b2"], params["g2"],
                           params["beta2"], 1)
    return jnp.transpose(y, (0, 3, 1, 2))


# ----------------------------------------------------------------------------
# Deterministic synthetic parameters
# ----------------------------------------------------------------------------
def init_params(key, cin, cout):
    ks = jax.random.split(key, 8)
    s1 = 1.0 / jnp.sqrt(9.0 * cin)
    s2 = 1.0 / jnp.sqrt(9.0 * cout)
    return {
        "w1": s1 * jax.random.normal(ks[0], (3, 3, cin, cout), jnp.float32),
        "b1": 0.05 * jax.random.normal(ks[1], (cout,), jnp.float32),
        "g1": 1.0 + 0.1 * jax.random.normal(ks[2], (cout,), jnp.float32),
        "beta1": 0.05 * jax.random.normal(ks[3], (cout,), jnp.float32),
        "w2": s2 * jax.random.normal(ks[4], (3, 3, cout, cout), jnp.float32),
        "b2": 0.05 * jax.random.normal(ks[5], (cout,), jnp.float32),
        "g2": 1.0 + 0.1 * jax.random.normal(ks[6], (cout,), jnp.float32),
        "beta2": 0.05 * jax.random.normal(ks[7], (cout,), jnp.float32),
    }


# ----------------------------------------------------------------------------
if __name__ == "__main__":
    key = jax.random.PRNGKey(0)
    B, Cin, H, W, Cout = 2, 4, 16, 16, 32   # StackedConvnd(2, Cin, Cout, stride)

    for first_stride in (1, 2):
        key, pkey, xkey = jax.random.split(key, 3)
        params = init_params(pkey, Cin, Cout)
        x = jax.random.normal(xkey, (B, Cin, H, W), jnp.float32)   # NCHW

        fwd = jax.jit(functools.partial(stacked_conv2d_nchw, stride=first_stride))
        out = jax.block_until_ready(fwd(x, params))

        Ho, Wo = H // first_stride, W // first_stride
        assert out.shape == (B, Cout, Ho, Wo), out.shape
        assert bool(jnp.all(jnp.isfinite(out)))

        ref = stacked_conv2d_ref(x, params, stride=first_stride)
        err = float(jnp.max(jnp.abs(out - ref)))
        assert err < 0.25, f"stride={first_stride}: max abs err {err}"

    print("KERNEL_OK")
</pallas_src>

<mosaic_0001>
module attributes {stable_mosaic.version = 11 : i64} {
  func.func @kernel(%arg0: i32, %arg1: memref<1x18x18x4xbf16, #tpu.memory_space<vmem>>, %arg2: memref<9x4x32xbf16, #tpu.memory_space<vmem>>, %arg3: memref<9x32x32xbf16, #tpu.memory_space<vmem>>, %arg4: memref<6x32xf32, #tpu.memory_space<vmem>>, %arg5: memref<1x256x32xf32, #tpu.memory_space<vmem>>, %arg6: memref<18x18x32xf32, #tpu.memory_space<vmem>>) attributes {dimension_semantics = [#tpu.dimension_semantics<parallel>], iteration_bounds = array<i64: 2>, scalar_prefetch = 0 : i64, scratch_operands = 1 : i64, tpu.core_type = #tpu.core_type<tc>, window_params = [{transform_indices = @transform_0, window_bounds = array<i64: 1, 18, 18, 4>}, {pipeline_mode = #tpu.pipeline_mode<synchronous>, transform_indices = @transform_1, window_bounds = array<i64: 9, 4, 32>}, {pipeline_mode = #tpu.pipeline_mode<synchronous>, transform_indices = @transform_2, window_bounds = array<i64: 9, 32, 32>}, {pipeline_mode = #tpu.pipeline_mode<synchronous>, transform_indices = @transform_3, window_bounds = array<i64: 6, 32>}, {transform_indices = @transform_4, window_bounds = array<i64: 1, 256, 32>}]} {
    %cst = arith.constant 0.000000e+00 : f32
    %0 = vector.broadcast %cst : f32 to vector<256x32xf32>
    %c0 = arith.constant 0 : index
    %c0_0 = arith.constant 0 : index
    %c0_1 = arith.constant 0 : index
    %c0_2 = arith.constant 0 : index
    %1 = vector.load %arg1[%c0, %c0_0, %c0_1, %c0_2] : memref<1x18x18x4xbf16, #tpu.memory_space<vmem>>, vector<1x16x16x4xbf16>
    %2 = vector.shape_cast %1 : vector<1x16x16x4xbf16> to vector<16x16x4xbf16>
    %3 = vector.shape_cast %2 : vector<16x16x4xbf16> to vector<256x4xbf16>
    %c0_3 = arith.constant 0 : index
    %c0_4 = arith.constant 0 : index
    %c0_5 = arith.constant 0 : index
    %4 = vector.load %arg2[%c0_3, %c0_4, %c0_5] : memref<9x4x32xbf16, #tpu.memory_space<vmem>>, vector<1x4x32xbf16>
    %5 = vector.shape_cast %4 : vector<1x4x32xbf16> to vector<4x32xbf16>
    %cst_6 = arith.constant dense<0.000000e+00> : vector<256x32xf32>
    %6 = tpu.matmul %3, %5, %cst_6 {dimension_numbers = #tpu.dot_dimension_numbers<[1], [0], [0], [1], [0, 0, 1, 1], [], []>} : vector<256x4xbf16>, vector<4x32xbf16>, vector<256x32xf32> -> vector<256x32xf32>
    %7 = arith.addf %0, %6 : vector<256x32xf32>
    %c0_7 = arith.constant 0 : index
    %c0_8 = arith.constant 0 : index
    %c1 = arith.constant 1 : index
    %c0_9 = arith.constant 0 : index
    %8 = vector.load %arg1[%c0_7, %c0_8, %c1, %c0_9] : memref<1x18x18x4xbf16, #tpu.memory_space<vmem>>, vector<1x16x16x4xbf16>
    %9 = vector.shape_cast %8 : vector<1x16x16x4xbf16> to vector<16x16x4xbf16>
    %10 = vector.shape_cast %9 : vector<16x16x4xbf16> to vector<256x4xbf16>
    %c1_10 = arith.constant 1 : index
    %c0_11 = arith.constant 0 : index
    %c0_12 = arith.constant 0 : index
    %11 = vector.load %arg2[%c1_10, %c0_11, %c0_12] : memref<9x4x32xbf16, #tpu.memory_space<vmem>>, vector<1x4x32xbf16>
    %12 = vector.shape_cast %11 : vector<1x4x32xbf16> to vector<4x32xbf16>
    %cst_13 = arith.constant dense<0.000000e+00> : vector<256x32xf32>
    %13 = tpu.matmul %10, %12, %cst_13 {dimension_numbers = #tpu.dot_dimension_numbers<[1], [0], [0], [1], [0, 0, 1, 1], [], []>} : vector<256x4xbf16>, vector<4x32xbf16>, vector<256x32xf32> -> vector<256x32xf32>
    %14 = arith.addf %7, %13 : vector<256x32xf32>
    %c0_14 = arith.constant 0 : index
    %c0_15 = arith.constant 0 : index
    %c2 = arith.constant 2 : index
    %c0_16 = arith.constant 0 : index
    %15 = vector.load %arg1[%c0_14, %c0_15, %c2, %c0_16] : memref<1x18x18x4xbf16, #tpu.memory_space<vmem>>, vector<1x16x16x4xbf16>
    %16 = vector.shape_cast %15 : vector<1x16x16x4xbf16> to vector<16x16x4xbf16>
    %17 = vector.shape_cast %16 : vector<16x16x4xbf16> to vector<256x4xbf16>
    %c2_17 = arith.constant 2 : index
    %c0_18 = arith.constant 0 : index
    %c0_19 = arith.constant 0 : index
    %18 = vector.load %arg2[%c2_17, %c0_18, %c0_19] : memref<9x4x32xbf16, #tpu.memory_space<vmem>>, vector<1x4x32xbf16>
    %19 = vector.shape_cast %18 : vector<1x4x32xbf16> to vector<4x32xbf16>
    %cst_20 = arith.constant dense<0.000000e+00> : vector<256x32xf32>
    %20 = tpu.matmul %17, %19, %cst_20 {dimension_numbers = #tpu.dot_dimension_numbers<[1], [0], [0], [1], [0, 0, 1, 1], [], []>} : vector<256x4xbf16>, vector<4x32xbf16>, vector<256x32xf32> -> vector<256x32xf32>
    %21 = arith.addf %14, %20 : vector<256x32xf32>
    %c0_21 = arith.constant 0 : index
    %c1_22 = arith.constant 1 : index
    %c0_23 = arith.constant 0 : index
    %c0_24 = arith.constant 0 : index
    %22 = vector.load %arg1[%c0_21, %c1_22, %c0_23, %c0_24] : memref<1x18x18x4xbf16, #tpu.memory_space<vmem>>, vector<1x16x16x4xbf16>
    %23 = vector.shape_cast %22 : vector<1x16x16x4xbf16> to vector<16x16x4xbf16>
    %24 = vector.shape_cast %23 : vector<16x16x4xbf16> to vector<256x4xbf16>
    %c3 = arith.constant 3 : index
    %c0_25 = arith.constant 0 : index
    %c0_26 = arith.constant 0 : index
    %25 = vector.load %arg2[%c3, %c0_25, %c0_26] : memref<9x4x32xbf16, #tpu.memory_space<vmem>>, vector<1x4x32xbf16>
    %26 = vector.shape_cast %25 : vector<1x4x32xbf16> to vector<4x32xbf16>
    %cst_27 = arith.constant dense<0.000000e+00> : vector<256x32xf32>
    %27 = tpu.matmul %24, %26, %cst_27 {dimension_numbers = #tpu.dot_dimension_numbers<[1], [0], [0], [1], [0, 0, 1, 1], [], []>} : vector<256x4xbf16>, vector<4x32xbf16>, vector<256x32xf32> -> vector<256x32xf32>
    %28 = arith.addf %21, %27 : vector<256x32xf32>
    %c0_28 = arith.constant 0 : index
    %c1_29 = arith.constant 1 : index
    %c1_30 = arith.constant 1 : index
    %c0_31 = arith.constant 0 : index
    %29 = vector.load %arg1[%c0_28, %c1_29, %c1_30, %c0_31] : memref<1x18x18x4xbf16, #tpu.memory_space<vmem>>, vector<1x16x16x4xbf16>
    %30 = vector.shape_cast %29 : vector<1x16x16x4xbf16> to vector<16x16x4xbf16>
    %31 = vector.shape_cast %30 : vector<16x16x4xbf16> to vector<256x4xbf16>
    %c4 = arith.constant 4 : index
    %c0_32 = arith.constant 0 : index
    %c0_33 = arith.constant 0 : index
    %32 = vector.load %arg2[%c4, %c0_32, %c0_33] : memref<9x4x32xbf16, #tpu.memory_space<vmem>>, vector<1x4x32xbf16>
    %33 = vector.shape_cast %32 : vector<1x4x32xbf16> to vector<4x32xbf16>
    %cst_34 = arith.constant dense<0.000000e+00> : vector<256x32xf32>
    %34 = tpu.matmul %31, %33, %cst_34 {dimension_numbers = #tpu.dot_dimension_numbers<[1], [0], [0], [1], [0, 0, 1, 1], [], []>} : vector<256x4xbf16>, vector<4x32xbf16>, vector<256x32xf32> -> vector<256x32xf32>
    %35 = arith.addf %28, %34 : vector<256x32xf32>
    %c0_35 = arith.constant 0 : index
    %c1_36 = arith.constant 1 : index
    %c2_37 = arith.constant 2 : index
    %c0_38 = arith.constant 0 : index
    %36 = vector.load %arg1[%c0_35, %c1_36, %c2_37, %c0_38] : memref<1x18x18x4xbf16, #tpu.memory_space<vmem>>, vector<1x16x16x4xbf16>
    %37 = vector.shape_cast %36 : vector<1x16x16x4xbf16> to vector<16x16x4xbf16>
    %38 = vector.shape_cast %37 : vector<16x16x4xbf16> to vector<256x4xbf16>
    %c5 = arith.constant 5 : index
    %c0_39 = arith.constant 0 : index
    %c0_40 = arith.constant 0 : index
    %39 = vector.load %arg2[%c5, %c0_39, %c0_40] : memref<9x4x32xbf16, #tpu.memory_space<vmem>>, vector<1x4x32xbf16>
    %40 = vector.shape_cast %39 : vector<1x4x32xbf16> to vector<4x32xbf16>
    %cst_41 = arith.constant dense<0.000000e+00> : vector<256x32xf32>
    %41 = tpu.matmul %38, %40, %cst_41 {dimension_numbers = #tpu.dot_dimension_numbers<[1], [0], [0], [1], [0, 0, 1, 1], [], []>} : vector<256x4xbf16>, vector<4x32xbf16>, vector<256x32xf32> -> vector<256x32xf32>
    %42 = arith.addf %35, %41 : vector<256x32xf32>
    %c0_42 = arith.constant 0 : index
    %c2_43 = arith.constant 2 : index
    %c0_44 = arith.constant 0 : index
    %c0_45 = arith.constant 0 : index
    %43 = vector.load %arg1[%c0_42, %c2_43, %c0_44, %c0_45] : memref<1x18x18x4xbf16, #tpu.memory_space<vmem>>, vector<1x16x16x4xbf16>
    %44 = vector.shape_cast %43 : vector<1x16x16x4xbf16> to vector<16x16x4xbf16>
    %45 = vector.shape_cast %44 : vector<16x16x4xbf16> to vector<256x4xbf16>
    %c6 = arith.constant 6 : index
    %c0_46 = arith.constant 0 : index
    %c0_47 = arith.constant 0 : index
    %46 = vector.load %arg2[%c6, %c0_46, %c0_47] : memref<9x4x32xbf16, #tpu.memory_space<vmem>>, vector<1x4x32xbf16>
    %47 = vector.shape_cast %46 : vector<1x4x32xbf16> to vector<4x32xbf16>
    %cst_48 = arith.constant dense<0.000000e+00> : vector<256x32xf32>
    %48 = tpu.matmul %45, %47, %cst_48 {dimension_numbers = #tpu.dot_dimension_numbers<[1], [0], [0], [1], [0, 0, 1, 1], [], []>} : vector<256x4xbf16>, vector<4x32xbf16>, vector<256x32xf32> -> vector<256x32xf32>
    %49 = arith.addf %42, %48 : vector<256x32xf32>
    %c0_49 = arith.constant 0 : index
    %c2_50 = arith.constant 2 : index
    %c1_51 = arith.constant 1 : index
    %c0_52 = arith.constant 0 : index
    %50 = vector.load %arg1[%c0_49, %c2_50, %c1_51, %c0_52] : memref<1x18x18x4xbf16, #tpu.memory_space<vmem>>, vector<1x16x16x4xbf16>
    %51 = vector.shape_cast %50 : vector<1x16x16x4xbf16> to vector<16x16x4xbf16>
    %52 = vector.shape_cast %51 : vector<16x16x4xbf16> to vector<256x4xbf16>
    %c7 = arith.constant 7 : index
    %c0_53 = arith.constant 0 : index
    %c0_54 = arith.constant 0 : index
    %53 = vector.load %arg2[%c7, %c0_53, %c0_54] : memref<9x4x32xbf16, #tpu.memory_space<vmem>>, vector<1x4x32xbf16>
    %54 = vector.shape_cast %53 : vector<1x4x32xbf16> to vector<4x32xbf16>
    %cst_55 = arith.constant dense<0.000000e+00> : vector<256x32xf32>
    %55 = tpu.matmul %52, %54, %cst_55 {dimension_numbers = #tpu.dot_dimension_numbers<[1], [0], [0], [1], [0, 0, 1, 1], [], []>} : vector<256x4xbf16>, vector<4x32xbf16>, vector<256x32xf32> -> vector<256x32xf32>
    %56 = arith.addf %49, %55 : vector<256x32xf32>
    %c0_56 = arith.constant 0 : index
    %c2_57 = arith.constant 2 : index
    %c2_58 = arith.constant 2 : index
    %c0_59 = arith.constant 0 : index
    %57 = vector.load %arg1[%c0_56, %c2_57, %c2_58, %c0_59] : memref<1x18x18x4xbf16, #tpu.memory_space<vmem>>, vector<1x16x16x4xbf16>
    %58 = vector.shape_cast %57 : vector<1x16x16x4xbf16> to vector<16x16x4xbf16>
    %59 = vector.shape_cast %58 : vector<16x16x4xbf16> to vector<256x4xbf16>
    %c8 = arith.constant 8 : index
    %c0_60 = arith.constant 0 : index
    %c0_61 = arith.constant 0 : index
    %60 = vector.load %arg2[%c8, %c0_60, %c0_61] : memref<9x4x32xbf16, #tpu.memory_space<vmem>>, vector<1x4x32xbf16>
    %61 = vector.shape_cast %60 : vector<1x4x32xbf16> to vector<4x32xbf16>
    %cst_62 = arith.constant dense<0.000000e+00> : vector<256x32xf32>
    %62 = tpu.matmul %59, %61, %cst_62 {dimension_numbers = #tpu.dot_dimension_numbers<[1], [0], [0], [1], [0, 0, 1, 1], [], []>} : vector<256x4xbf16>, vector<4x32xbf16>, vector<256x32xf32> -> vector<256x32xf32>
    %63 = arith.addf %56, %62 : vector<256x32xf32>
    %c0_63 = arith.constant 0 : index
    %c0_64 = arith.constant 0 : index
    %64 = vector.load %arg4[%c0_63, %c0_64] : memref<6x32xf32, #tpu.memory_space<vmem>>, vector<1x32xf32>
    %65 = vector.broadcast %64 : vector<1x32xf32> to vector<256x32xf32>
    %66 = arith.addf %63, %65 : vector<256x32xf32>
    %cst_65 = arith.constant dense<0.000000e+00> : vector<32xf32>
    %67 = vector.multi_reduction <add>, %66, %cst_65 [0] : vector<256x32xf32> to vector<32xf32>
    %68 = vector.shape_cast %67 : vector<32xf32> to vector<1x32xf32>
    %cst_66 = arith.constant 2.560000e+02 : f32
    %69 = vector.broadcast %cst_66 : f32 to vector<1x32xf32>
    %70 = arith.divf %68, %69 : vector<1x32xf32>
    %71 = vector.broadcast %70 : vector<1x32xf32> to vector<256x32xf32>
    %72 = arith.subf %66, %71 : vector<256x32xf32>
    %73 = arith.mulf %72, %72 : vector<256x32xf32>
    %cst_67 = arith.constant dense<0.000000e+00> : vector<32xf32>
    %74 = vector.multi_reduction <add>, %73, %cst_67 [0] : vector<256x32xf32> to vector<32xf32>
    %75 = vector.shape_cast %74 : vector<32xf32> to vector<1x32xf32>
    %cst_68 = arith.constant 2.560000e+02 : f32
    %76 = vector.broadcast %cst_68 : f32 to vector<1x32xf32>
    %77 = arith.divf %75, %76 : vector<1x32xf32>
    %78 = vector.broadcast %70 : vector<1x32xf32> to vector<256x32xf32>
    %79 = arith.subf %66, %78 : vector<256x32xf32>
    %cst_69 = arith.constant 9.99999974E-6 : f32
    %80 = vector.broadcast %cst_69 : f32 to vector<1x32xf32>
    %81 = arith.addf %77, %80 : vector<1x32xf32>
    %82 = math.rsqrt %81 : vector<1x32xf32>
    %83 = vector.broadcast %82 : vector<1x32xf32> to vector<256x32xf32>
    %84 = arith.mulf %79, %83 : vector<256x32xf32>
    %c1_70 = arith.constant 1 : index
    %c0_71 = arith.constant 0 : index
    %85 = vector.load %arg4[%c1_70, %c0_71] : memref<6x32xf32, #tpu.memory_space<vmem>>, vector<1x32xf32>
    %86 = vector.broadcast %85 : vector<1x32xf32> to vector<256x32xf32>
    %87 = arith.mulf %84, %86 : vector<256x32xf32>
    %c2_72 = arith.constant 2 : index
    %c0_73 = arith.constant 0 : index
    %88 = vector.load %arg4[%c2_72, %c0_73] : memref<6x32xf32, #tpu.memory_space<vmem>>, vector<1x32xf32>
    %89 = vector.broadcast %88 : vector<1x32xf32> to vector<256x32xf32>
    %90 = arith.addf %87, %89 : vector<256x32xf32>
    %cst_74 = arith.constant 0.000000e+00 : f32
    %91 = vector.broadcast %cst_74 : f32 to vector<256x32xf32>
    %92 = arith.cmpf oge, %90, %91 : vector<256x32xf32>
    %cst_75 = arith.constant 0.00999999977 : f32
    %93 = vector.broadcast %cst_75 : f32 to vector<256x32xf32>
    %94 = arith.mulf %93, %90 : vector<256x32xf32>
    %95 = arith.select %92, %90, %94 : vector<256x32xi1>, vector<256x32xf32>
    %cst_76 = arith.constant 0.000000e+00 : f32
    %96 = vector.broadcast %cst_76 : f32 to vector<18x18x32xf32>
    %c0_77 = arith.constant 0 : index
    %c0_78 = arith.constant 0 : index
    %c0_79 = arith.constant 0 : index
    %97 = vector.load %arg6[%c0_77, %c0_78, %c0_79] : memref<18x18x32xf32, #tpu.memory_space<vmem>>, vector<18x18x32xf32>
    tpu.vector_store %arg6[%c0_77, %c0_78, %c0_79], %96 {strides = array<i32>} : memref<18x18x32xf32, #tpu.memory_space<vmem>>, vector<18x18x32xf32>,
    %98 = vector.shape_cast %95 : vector<256x32xf32> to vector<16x16x32xf32>
    %c1_80 = arith.constant 1 : index
    %c1_81 = arith.constant 1 : index
    %c0_82 = arith.constant 0 : index
    %99 = vector.load %arg6[%c1_80, %c1_81, %c0_82] : memref<18x18x32xf32, #tpu.memory_space<vmem>>, vector<16x16x32xf32>
    tpu.vector_store %arg6[%c1_80, %c1_81, %c0_82], %98 {strides = array<i32>} : memref<18x18x32xf32, #tpu.memory_space<vmem>>, vector<16x16x32xf32>,
    %cst_83 = arith.constant 0.000000e+00 : f32
    %100 = vector.broadcast %cst_83 : f32 to vector<256x32xf32>
    %c0_84 = arith.constant 0 : index
    %c0_85 = arith.constant 0 : index
    %c0_86 = arith.constant 0 : index
    %101 = vector.load %arg6[%c0_84, %c0_85, %c0_86] : memref<18x18x32xf32, #tpu.memory_space<vmem>>, vector<16x16x32xf32>
    %102 = vector.shape_cast %101 : vector<16x16x32xf32> to vector<256x32xf32>
    %103 = arith.truncf %102 : vector<256x32xf32> to vector<256x32xbf16>
    %c0_87 = arith.constant 0 : index
    %c0_88 = arith.constant 0 : index
    %c0_89 = arith.constant 0 : index
    %104 = vector.load %arg3[%c0_87, %c0_88, %c0_89] : memref<9x32x32xbf16, #tpu.memory_space<vmem>>, vector<1x32x32xbf16>
    %105 = vector.shape_cast %104 : vector<1x32x32xbf16> to vector<32x32xbf16>
    %cst_90 = arith.constant dense<0.000000e+00> : vector<256x32xf32>
    %106 = tpu.matmul %103, %105, %cst_90 {dimension_numbers = #tpu.dot_dimension_numbers<[1], [0], [0], [1], [0, 0, 1, 1], [], []>} : vector<256x32xbf16>, vector<32x32xbf16>, vector<256x32xf32> -> vector<256x32xf32>
    %107 = arith.addf %100, %106 : vector<256x32xf32>
    %c0_91 = arith.constant 0 : index
    %c1_92 = arith.constant 1 : index
    %c0_93 = arith.constant 0 : index
    %108 = vector.load %arg6[%c0_91, %c1_92, %c0_93] : memref<18x18x32xf32, #tpu.memory_space<vmem>>, vector<16x16x32xf32>
    %109 = vector.shape_cast %108 : vector<16x16x32xf32> to vector<256x32xf32>
    %110 = arith.truncf %109 : vector<256x32xf32> to vector<256x32xbf16>
    %c1_94 = arith.constant 1 : index
    %c0_95 = arith.constant 0 : index
    %c0_96 = arith.constant 0 : index
    %111 = vector.load %arg3[%c1_94, %c0_95, %c0_96] : memref<9x32x32xbf16, #tpu.memory_space<vmem>>, vector<1x32x32xbf16>
    %112 = vector.shape_cast %111 : vector<1x32x32xbf16> to vector<32x32xbf16>
    %cst_97 = arith.constant dense<0.000000e+00> : vector<256x32xf32>
    %113 = tpu.matmul %110, %112, %cst_97 {dimension_numbers = #tpu.dot_dimension_numbers<[1], [0], [0], [1], [0, 0, 1, 1], [], []>} : vector<256x32xbf16>, vector<32x32xbf16>, vector<256x32xf32> -> vector<256x32xf32>
    %114 = arith.addf %107, %113 : vector<256x32xf32>
    %c0_98 = arith.constant 0 : index
    %c2_99 = arith.constant 2 : index
    %c0_100 = arith.constant 0 : index
    %115 = vector.load %arg6[%c0_98, %c2_99, %c0_100] : memref<18x18x32xf32, #tpu.memory_space<vmem>>, vector<16x16x32xf32>
    %116 = vector.shape_cast %115 : vector<16x16x32xf32> to vector<256x32xf32>
    %117 = arith.truncf %116 : vector<256x32xf32> to vector<256x32xbf16>
    %c2_101 = arith.constant 2 : index
    %c0_102 = arith.constant 0 : index
    %c0_103 = arith.constant 0 : index
    %118 = vector.load %arg3[%c2_101, %c0_102, %c0_103] : memref<9x32x32xbf16, #tpu.memory_space<vmem>>, vector<1x32x32xbf16>
    %119 = vector.shape_cast %118 : vector<1x32x32xbf16> to vector<32x32xbf16>
    %cst_104 = arith.constant dense<0.000000e+00> : vector<256x32xf32>
    %120 = tpu.matmul %117, %119, %cst_104 {dimension_numbers = #tpu.dot_dimension_numbers<[1], [0], [0], [1], [0, 0, 1, 1], [], []>} : vector<256x32xbf16>, vector<32x32xbf16>, vector<256x32xf32> -> vector<256x32xf32>
    %121 = arith.addf %114, %120 : vector<256x32xf32>
    %c1_105 = arith.constant 1 : index
    %c0_106 = arith.constant 0 : index
    %c0_107 = arith.constant 0 : index
    %122 = vector.load %arg6[%c1_105, %c0_106, %c0_107] : memref<18x18x32xf32, #tpu.memory_space<vmem>>, vector<16x16x32xf32>
    %123 = vector.shape_cast %122 : vector<16x16x32xf32> to vector<256x32xf32>
    %124 = arith.truncf %123 : vector<256x32xf32> to vector<256x32xbf16>
    %c3_108 = arith.constant 3 : index
    %c0_109 = arith.constant 0 : index
    %c0_110 = arith.constant 0 : index
    %125 = vector.load %arg3[%c3_108, %c0_109, %c0_110] : memref<9x32x32xbf16, #tpu.memory_space<vmem>>, vector<1x32x32xbf16>
    %126 = vector.shape_cast %125 : vector<1x32x32xbf16> to vector<32x32xbf16>
    %cst_111 = arith.constant dense<0.000000e+00> : vector<256x32xf32>
    %127 = tpu.matmul %124, %126, %cst_111 {dimension_numbers = #tpu.dot_dimension_numbers<[1], [0], [0], [1], [0, 0, 1, 1], [], []>} : vector<256x32xbf16>, vector<32x32xbf16>, vector<256x32xf32> -> vector<256x32xf32>
    %128 = arith.addf %121, %127 : vector<256x32xf32>
    %c1_112 = arith.constant 1 : index
    %c1_113 = arith.constant 1 : index
    %c0_114 = arith.constant 0 : index
    %129 = vector.load %arg6[%c1_112, %c1_113, %c0_114] : memref<18x18x32xf32, #tpu.memory_space<vmem>>, vector<16x16x32xf32>
    %130 = vector.shape_cast %129 : vector<16x16x32xf32> to vector<256x32xf32>
    %131 = arith.truncf %130 : vector<256x32xf32> to vector<256x32xbf16>
    %c4_115 = arith.constant 4 : index
    %c0_116 = arith.constant 0 : index
    %c0_117 = arith.constant 0 : index
    %132 = vector.load %arg3[%c4_115, %c0_116, %c0_117] : memref<9x32x32xbf16, #tpu.memory_space<vmem>>, vector<1x32x32xbf16>
    %133 = vector.shape_cast %132 : vector<1x32x32xbf16> to vector<32x32xbf16>
    %cst_118 = arith.constant dense<0.000000e+00> : vector<256x32xf32>
    %134 = tpu.matmul %131, %133, %cst_118 {dimension_numbers = #tpu.dot_dimension_numbers<[1], [0], [0], [1], [0, 0, 1, 1], [], []>} : vector<256x32xbf16>, vector<32x32xbf16>, vector<256x32xf32> -> vector<256x32xf32>
    %135 = arith.addf %128, %134 : vector<256x32xf32>
    %c1_119 = arith.constant 1 : index
    %c2_120 = arith.constant 2 : index
    %c0_121 = arith.constant 0 : index
    %136 = vector.load %arg6[%c1_119, %c2_120, %c0_121] : memref<18x18x32xf32, #tpu.memory_space<vmem>>, vector<16x16x32xf32>
    %137 = vector.shape_cast %136 : vector<16x16x32xf32> to vector<256x32xf32>
    %138 = arith.truncf %137 : vector<256x32xf32> to vector<256x32xbf16>
    %c5_122 = arith.constant 5 : index
    %c0_123 = arith.constant 0 : index
    %c0_124 = arith.constant 0 : index
    %139 = vector.load %arg3[%c5_122, %c0_123, %c0_124] : memref<9x32x32xbf16, #tpu.memory_space<vmem>>, vector<1x32x32xbf16>
    %140 = vector.shape_cast %139 : vector<1x32x32xbf16> to vector<32x32xbf16>
    %cst_125 = arith.constant dense<0.000000e+00> : vector<256x32xf32>
    %141 = tpu.matmul %138, %140, %cst_125 {dimension_numbers = #tpu.dot_dimension_numbers<[1], [0], [0], [1], [0, 0, 1, 1], [], []>} : vector<256x32xbf16>, vector<32x32xbf16>, vector<256x32xf32> -> vector<256x32xf32>
    %142 = arith.addf %135, %141 : vector<256x32xf32>
    %c2_126 = arith.constant 2 : index
    %c0_127 = arith.constant 0 : index
    %c0_128 = arith.constant 0 : index
    %143 = vector.load %arg6[%c2_126, %c0_127, %c0_128] : memref<18x18x32xf32, #tpu.memory_space<vmem>>, vector<16x16x32xf32>
    %144 = vector.shape_cast %143 : vector<16x16x32xf32> to vector<256x32xf32>
    %145 = arith.truncf %144 : vector<256x32xf32> to vector<256x32xbf16>
    %c6_129 = arith.constant 6 : index
    %c0_130 = arith.constant 0 : index
    %c0_131 = arith.constant 0 : index
    %146 = vector.load %arg3[%c6_129, %c0_130, %c0_131] : memref<9x32x32xbf16, #tpu.memory_space<vmem>>, vector<1x32x32xbf16>
    %147 = vector.shape_cast %146 : vector<1x32x32xbf16> to vector<32x32xbf16>
    %cst_132 = arith.constant dense<0.000000e+00> : vector<256x32xf32>
    %148 = tpu.matmul %145, %147, %cst_132 {dimension_numbers = #tpu.dot_dimension_numbers<[1], [0], [0], [1], [0, 0, 1, 1], [], []>} : vector<256x32xbf16>, vector<32x32xbf16>, vector<256x32xf32> -> vector<256x32xf32>
    %149 = arith.addf %142, %148 : vector<256x32xf32>
    %c2_133 = arith.constant 2 : index
    %c1_134 = arith.constant 1 : index
    %c0_135 = arith.constant 0 : index
    %150 = vector.load %arg6[%c2_133, %c1_134, %c0_135] : memref<18x18x32xf32, #tpu.memory_space<vmem>>, vector<16x16x32xf32>
    %151 = vector.shape_cast %150 : vector<16x16x32xf32> to vector<256x32xf32>
    %152 = arith.truncf %151 : vector<256x32xf32> to vector<256x32xbf16>
    %c7_136 = arith.constant 7 : index
    %c0_137 = arith.constant 0 : index
    %c0_138 = arith.constant 0 : index
    %153 = vector.load %arg3[%c7_136, %c0_137, %c0_138] : memref<9x32x32xbf16, #tpu.memory_space<vmem>>, vector<1x32x32xbf16>
    %154 = vector.shape_cast %153 : vector<1x32x32xbf16> to vector<32x32xbf16>
    %cst_139 = arith.constant dense<0.000000e+00> : vector<256x32xf32>
    %155 = tpu.matmul %152, %154, %cst_139 {dimension_numbers = #tpu.dot_dimension_numbers<[1], [0], [0], [1], [0, 0, 1, 1], [], []>} : vector<256x32xbf16>, vector<32x32xbf16>, vector<256x32xf32> -> vector<256x32xf32>
    %156 = arith.addf %149, %155 : vector<256x32xf32>
    %c2_140 = arith.constant 2 : index
    %c2_141 = arith.constant 2 : index
    %c0_142 = arith.constant 0 : index
    %157 = vector.load %arg6[%c2_140, %c2_141, %c0_142] : memref<18x18x32xf32, #tpu.memory_space<vmem>>, vector<16x16x32xf32>
    %158 = vector.shape_cast %157 : vector<16x16x32xf32> to vector<256x32xf32>
    %159 = arith.truncf %158 : vector<256x32xf32> to vector<256x32xbf16>
    %c8_143 = arith.constant 8 : index
    %c0_144 = arith.constant 0 : index
    %c0_145 = arith.constant 0 : index
    %160 = vector.load %arg3[%c8_143, %c0_144, %c0_145] : memref<9x32x32xbf16, #tpu.memory_space<vmem>>, vector<1x32x32xbf16>
    %161 = vector.shape_cast %160 : vector<1x32x32xbf16> to vector<32x32xbf16>
    %cst_146 = arith.constant dense<0.000000e+00> : vector<256x32xf32>
    %162 = tpu.matmul %159, %161, %cst_146 {dimension_numbers = #tpu.dot_dimension_numbers<[1], [0], [0], [1], [0, 0, 1, 1], [], []>} : vector<256x32xbf16>, vector<32x32xbf16>, vector<256x32xf32> -> vector<256x32xf32>
    %163 = arith.addf %156, %162 : vector<256x32xf32>
    %c3_147 = arith.constant 3 : index
    %c0_148 = arith.constant 0 : index
    %164 = vector.load %arg4[%c3_147, %c0_148] : memref<6x32xf32, #tpu.memory_space<vmem>>, vector<1x32xf32>
    %165 = vector.broadcast %164 : vector<1x32xf32> to vector<256x32xf32>
    %166 = arith.addf %163, %165 : vector<256x32xf32>
    %cst_149 = arith.constant dense<0.000000e+00> : vector<32xf32>
    %167 = vector.multi_reduction <add>, %166, %cst_149 [0] : vector<256x32xf32> to vector<32xf32>
    %168 = vector.shape_cast %167 : vector<32xf32> to vector<1x32xf32>
    %cst_150 = arith.constant 2.560000e+02 : f32
    %169 = vector.broadcast %cst_150 : f32 to vector<1x32xf32>
    %170 = arith.divf %168, %169 : vector<1x32xf32>
    %171 = vector.broadcast %170 : vector<1x32xf32> to vector<256x32xf32>
    %172 = arith.subf %166, %171 : vector<256x32xf32>
    %173 = arith.mulf %172, %172 : vector<256x32xf32>
    %cst_151 = arith.constant dense<0.000000e+00> : vector<32xf32>
    %174 = vector.multi_reduction <add>, %173, %cst_151 [0] : vector<256x32xf32> to vector<32xf32>
    %175 = vector.shape_cast %174 : vector<32xf32> to vector<1x32xf32>
    %cst_152 = arith.constant 2.560000e+02 : f32
    %176 = vector.broadcast %cst_152 : f32 to vector<1x32xf32>
    %177 = arith.divf %175, %176 : vector<1x32xf32>
    %178 = vector.broadcast %170 : vector<1x32xf32> to vector<256x32xf32>
    %179 = arith.subf %166, %178 : vector<256x32xf32>
    %cst_153 = arith.constant 9.99999974E-6 : f32
    %180 = vector.broadcast %cst_153 : f32 to vector<1x32xf32>
    %181 = arith.addf %177, %180 : vector<1x32xf32>
    %182 = math.rsqrt %181 : vector<1x32xf32>
    %183 = vector.broadcast %182 : vector<1x32xf32> to vector<256x32xf32>
    %184 = arith.mulf %179, %183 : vector<256x32xf32>
    %c4_154 = arith.constant 4 : index
    %c0_155 = arith.constant 0 : index
    %185 = vector.load %arg4[%c4_154, %c0_155] : memref<6x32xf32, #tpu.memory_space<vmem>>, vector<1x32xf32>
    %186 = vector.broadcast %185 : vector<1x32xf32> to vector<256x32xf32>
    %187 = arith.mulf %184, %186 : vector<256x32xf32>
    %c5_156 = arith.constant 5 : index
    %c0_157 = arith.constant 0 : index
    %188 = vector.load %arg4[%c5_156, %c0_157] : memref<6x32xf32, #tpu.memory_space<vmem>>, vector<1x32xf32>
    %189 = vector.broadcast %188 : vector<1x32xf32> to vector<256x32xf32>
    %190 = arith.addf %187, %189 : vector<256x32xf32>
    %cst_158 = arith.constant 0.000000e+00 : f32
    %191 = vector.broadcast %cst_158 : f32 to vector<256x32xf32>
    %192 = arith.cmpf oge, %190, %191 : vector<256x32xf32>
    %cst_159 = arith.constant 0.00999999977 : f32
    %193 = vector.broadcast %cst_159 : f32 to vector<256x32xf32>
    %194 = arith.mulf %193, %190 : vector<256x32xf32>
    %195 = arith.select %192, %190, %194 : vector<256x32xi1>, vector<256x32xf32>
    %c0_160 = arith.constant 0 : index
    %c0_161 = arith.constant 0 : index
    %c0_162 = arith.constant 0 : index
    %196 = vector.load %arg5[%c0_160, %c0_161, %c0_162] : memref<1x256x32xf32, #tpu.memory_space<vmem>>, vector<1x256x32xf32>
    %197 = vector.shape_cast %196 : vector<1x256x32xf32> to vector<256x32xf32>
    %198 = vector.shape_cast %195 : vector<256x32xf32> to vector<1x256x32xf32>
    tpu.vector_store %arg5[%c0_160, %c0_161, %c0_162], %198 {strides = array<i32>} : memref<1x256x32xf32, #tpu.memory_space<vmem>>, vector<1x256x32xf32>,
    return
  }
  func.func @transform_0(%arg0: i32) -> (i32, i32, i32, i32) {
    %c0_i32 = arith.constant 0 : i32
    %c0_i32_0 = arith.constant 0 : i32
    %c0_i32_1 = arith.constant 0 : i32
    %c0_i32_2 = arith.constant 0 : i32
    return %arg0, %c0_i32, %c0_i32_0, %c0_i32_1 : i32, i32, i32, i32
  }
  func.func @transform_1(%arg0: i32) -> (i32, i32, i32) {
    %c0_i32 = arith.constant 0 : i32
    %c0_i32_0 = arith.constant 0 : i32
    %c0_i32_1 = arith.constant 0 : i32
    %c0_i32_2 = arith.constant 0 : i32
    return %c0_i32, %c0_i32_0, %c0_i32_1 : i32, i32, i32
  }
  func.func @transform_2(%arg0: i32) -> (i32, i32, i32) {
    %c0_i32 = arith.constant 0 : i32
    %c0_i32_0 = arith.constant 0 : i32
    %c0_i32_1 = arith.constant 0 : i32
    %c0_i32_2 = arith.constant 0 : i32
    return %c0_i32, %c0_i32_0, %c0_i32_1 : i32, i32, i32
  }
  func.func @transform_3(%arg0: i32) -> (i32, i32) {
    %c0_i32 = arith.constant 0 : i32
    %c0_i32_0 = arith.constant 0 : i32
    %c0_i32_1 = arith.constant 0 : i32
    return %c0_i32, %c0_i32_0 : i32, i32
  }
  func.func @transform_4(%arg0: i32) -> (i32, i32, i32) {
    %c0_i32 = arith.constant 0 : i32
    %c0_i32_0 = arith.constant 0 : i32
    %c0_i32_1 = arith.constant 0 : i32
    return %arg0, %c0_i32, %c0_i32_0 : i32, i32, i32
  }
}

</mosaic_0001>

<llo_original>
// kernel: stacked_conv2d_nchw.1
$region0: #{stacked_conv2d_nchw.1}
  #allocation0 [shape = 'u32[]', space=smem, size = 0x4, offset = 0x4, fixed_abs, tag = 'smem constant byte address 0x4 - core index']
  #allocation1 [shape = 'u32[144,128]{1,0:T(1,128)}', space=vmem, size = 0x12000, scoped, tag = 'internal scratch']
  #allocation2 [shape = 'f32[18,18,32]{2,1,0:T(8,128)}', space=vmem, size = 0x36000, scoped, tag = 'scratch operand']
  %s0 = inlined_call_operand.vmem [shape: bf16[2,18,18,4], index: 0, kind: input, shape index: {}]
  %s1 = inlined_call_operand.vmem [shape: bf16[9,4,32], index: 1, kind: input, shape index: {}]
  %s2 = inlined_call_operand.vmem [shape: bf16[9,32,32], index: 2, kind: input, shape index: {}]
  %s3 = inlined_call_operand.vmem [shape: f32[6,32], index: 3, kind: input, shape index: {}]
  %s4 = inlined_call_operand.hbm [shape: f32[2,256,32], index: 4, kind: output, shape index: {}]
  %s5 = sld [smem:[#allocation0]]
  $region49: #{stacked_conv2d_nchw.1} parent=0
    _
  %s7 = ssub.s32 1, %s5
  %s8 = scalar_select 0, %s7, %s5
  $region1: #{stacked_conv2d_nchw.1} parent=0
    #allocation3 [shape = 'u8[262144]{0}', space=vmem, size = 0x40000, scoped, tag = 'output window, operand 0']
    #allocation4 [shape = 's32[2]{0}', space=sflag, size = 0x8, scoped, tag = 'scoped memory for stacked_conv2d_nchw.1']
    %9 = vsyncpa [#allocation4], 0
    %s10 = scalar_lea.sflag [#allocation4], 1
    %11 = vsyncpa %s10, 0
    loop: start=0, step=1, limit=4
    $region2: #{stacked_conv2d_nchw.1} parent=1 // loop_pre_header
      _
    $region3: #{stacked_conv2d_nchw.1} parent=1 // loop_header
      %s13 = sphi 0, %s17
      %p14 = scmp.ge.s32.totalorder %s13, 4
      %s23 = sphi 0, %s25
      %s26 = sphi 0, %s23
      %s27 = sphi 0, %s26
      %s43 = sphi 0, %s27
      %s47 = sphi 0, %s47
      %s49 = sphi 0, %s47
      %s50 = sphi 0, %s49
      %s64 = sphi 0, %s50
      %s68 = sphi 0, %s68
      %s70 = sphi 0, %s68
      %s71 = sphi 0, %s70
      %s85 = sphi 0, %s71
      %s89 = sphi 0, %s89
      %s91 = sphi 0, %s89
      %s92 = sphi 0, %s91
      %s106 = sphi 0, %s92
      %s112 = sphi 0, %s114
      %s115 = sphi 0, %s112
      %s116 = sphi 0, %s115
      %s132 = sphi 0, %s116
    $region4: #{stacked_conv2d_nchw.1} parent=1 // loop_header_branch
      %16 = sbr.rel (%p14) target = $region8
    $region5: #{stacked_conv2d_nchw.1} parent=1 // loop_body
      %s18 = ssub.s32 %s13, 1
      %s19 = ssub.s32 %s13, 2
      %s20 = sadd.s32 %s13, 1
      %s21 = ssub.s32 %s13, %s20
      %p22 = scmp.eq.s32.totalorder %s21, 0
      %s24 = sadd.s32 %s23, 1
      %s25 = scalar_select %p22, %s23, %s24
      %p28 = pneg %p22
      %p29 = scmp.eq.s32.totalorder %s13, 1
      %p30 = por %p28, %p29
      %p31 = scmp.ne.s32.totalorder %s23, %s26
      %p32 = scmp.eq.s32.totalorder %s13, 0
      %p33 = por %p31, %p32
      %p34 = scmp.ne.s32.totalorder %s23, %s26
      %p35 = scmp.eq.s32.totalorder %s18, 1
      %p36 = por %p34, %p35
      %p37 = scmp.ne.s32.totalorder %s26, %s27
      %p38 = scmp.eq.s32.totalorder %s18, 0
      %p39 = por %p37, %p38
      %p40 = scmp.ne.s32.totalorder %s26, %s27
      %p41 = scmp.eq.s32.totalorder %s19, 1
      %p42 = por %p40, %p41
      %p44 = scmp.ne.s32.totalorder %s27, %s43
      %p45 = scmp.eq.s32.totalorder %s19, 0
      %p46 = por %p44, %p45
      %s48 = sadd.s32 %s47, 1
      %p51 = scmp.eq.s32.totalorder %s13, 1
      %p52 = scmp.ne.s32.totalorder %s47, %s49
      %p53 = scmp.eq.s32.totalorder %s13, 0
      %p54 = por %p52, %p53
      %p55 = scmp.ne.s32.totalorder %s47, %s49
      %p56 = scmp.eq.s32.totalorder %s18, 1
      %p57 = por %p55, %p56
      %p58 = scmp.ne.s32.totalorder %s49, %s50
      %p59 = scmp.eq.s32.totalorder %s18, 0
      %p60 = por %p58, %p59
      %p61 = scmp.ne.s32.totalorder %s49, %s50
      %p62 = scmp.eq.s32.totalorder %s19, 1
      %p63 = por %p61, %p62
      %p65 = scmp.ne.s32.totalorder %s50, %s64
      %p66 = scmp.eq.s32.totalorder %s19, 0
      %p67 = por %p65, %p66
      %s69 = sadd.s32 %s68, 1
      %p72 = scmp.eq.s32.totalorder %s13, 1
      %p73 = scmp.ne.s32.totalorder %s68, %s70
      %p74 = scmp.eq.s32.totalorder %s13, 0
      %p75 = por %p73, %p74
      %p76 = scmp.ne.s32.totalorder %s68, %s70
      %p77 = scmp.eq.s32.totalorder %s18, 1
      %p78 = por %p76, %p77
      %p79 = scmp.ne.s32.totalorder %s70, %s71
      %p80 = scmp.eq.s32.totalorder %s18, 0
      %p81 = por %p79, %p80
      %p82 = scmp.ne.s32.totalorder %s70, %s71
      %p83 = scmp.eq.s32.totalorder %s19, 1
      %p84 = por %p82, %p83
      %p86 = scmp.ne.s32.totalorder %s71, %s85
      %p87 = scmp.eq.s32.totalorder %s19, 0
      %p88 = por %p86, %p87
      %s90 = sadd.s32 %s89, 1
      %p93 = scmp.eq.s32.totalorder %s13, 1
      %p94 = scmp.ne.s32.totalorder %s89, %s91
      %p95 = scmp.eq.s32.totalorder %s13, 0
      %p96 = por %p94, %p95
      %p97 = scmp.ne.s32.totalorder %s89, %s91
      %p98 = scmp.eq.s32.totalorder %s18, 1
      %p99 = por %p97, %p98
      %p100 = scmp.ne.s32.totalorder %s91, %s92
      %p101 = scmp.eq.s32.totalorder %s18, 0
      %p102 = por %p100, %p101
      %p103 = scmp.ne.s32.totalorder %s91, %s92
      %p104 = scmp.eq.s32.totalorder %s19, 1
      %p105 = por %p103, %p104
      %p107 = scmp.ne.s32.totalorder %s92, %s106
      %p108 = scmp.eq.s32.totalorder %s19, 0
      %p109 = por %p107, %p108
      %s110 = ssub.s32 %s13, %s20
      %p111 = scmp.eq.s32.totalorder %s110, 0
      %s113 = sadd.s32 %s112, 1
      %s114 = scalar_select %p111, %s112, %s113
      %p117 = pneg %p111
      %p118 = scmp.eq.s32.totalorder %s13, 1
      %p119 = por %p117, %p118
      %p120 = scmp.ne.s32.totalorder %s112, %s115
      %p121 = scmp.eq.s32.totalorder %s13, 0
      %p122 = por %p120, %p121
      %p123 = scmp.ne.s32.totalorder %s112, %s115
      %p124 = scmp.eq.s32.totalorder %s18, 1
      %p125 = por %p123, %p124
      %p126 = scmp.ne.s32.totalorder %s115, %s116
      %p127 = scmp.eq.s32.totalorder %s18, 0
      %p128 = por %p126, %p127
      %p129 = scmp.ne.s32.totalorder %s115, %s116
      %p130 = scmp.eq.s32.totalorder %s19, 1
      %p131 = por %p129, %p130
      %p133 = scmp.ne.s32.totalorder %s116, %s132
      %p134 = scmp.eq.s32.totalorder %s19, 0
      %p135 = por %p133, %p134
      %p136 = scmp.le.s32.totalorder 1, %s13
      %p137 = scmp.lt.s32.totalorder %s13, 3
      %p138 = pnand %p136, %p137
      %p139 = pneg %p138
      // Predicated region
      $region9: #{stacked_conv2d_nchw.1} parent=5 // pred_check
        _
      $region10: #{stacked_conv2d_nchw.1} parent=5 // pred_check_branch
        %141 = sbr.rel (%p138) target = $region12
      $region11: #{stacked_conv2d_nchw.1} parent=5 // pred_region
        %s142 = ssub.s32 %s13, 1
        // Predicated region
        $region13: #{stacked_conv2d_nchw.1} parent=11 // pred_check
          %p143 = pneg %p60
        $region14: #{stacked_conv2d_nchw.1} parent=11 // pred_check_branch
          %145 = sbr.rel (%p143) target = $region16
        $region15: #{stacked_conv2d_nchw.1} parent=11 // pred_region
          _
        $region16: #{stacked_conv2d_nchw.1} parent=11 // pred_fallthru
          _
        // Predicated region
        $region17: #{stacked_conv2d_nchw.1} parent=11 // pred_check
          %p146 = pneg %p81
        $region18: #{stacked_conv2d_nchw.1} parent=11 // pred_check_branch
          %148 = sbr.rel (%p146) target = $region20
        $region19: #{stacked_conv2d_nchw.1} parent=11 // pred_region
          _
        $region20: #{stacked_conv2d_nchw.1} parent=11 // pred_fallthru
          _
        // Predicated region
        $region21: #{stacked_conv2d_nchw.1} parent=11 // pred_check
          %p149 = pneg %p102
        $region22: #{stacked_conv2d_nchw.1} parent=11 // pred_check_branch
          %151 = sbr.rel (%p149) target = $region24
        $region23: #{stacked_conv2d_nchw.1} parent=11 // pred_region
          _
        $region24: #{stacked_conv2d_nchw.1} parent=11 // pred_fallthru
          _
      $region12: #{stacked_conv2d_nchw.1} parent=5 // pred_fallthru
        _
      %p152 = scmp.lt.s32.totalorder %s13, 2
      // Predicated region
      $region25: #{stacked_conv2d_nchw.1} parent=5 // pred_check
        %p153 = pneg %p152
      $region26: #{stacked_conv2d_nchw.1} parent=5 // pred_check_branch
        %155 = sbr.rel (%p153) target = $region28
      $region27: #{stacked_conv2d_nchw.1} parent=5 // pred_region
        // Predicated region
        $region29: #{stacked_conv2d_nchw.1} parent=27 // pred_check
          %p156 = pneg %p33
        $region30: #{stacked_conv2d_nchw.1} parent=27 // pred_check_branch
          %158 = sbr.rel (%p156) target = $region32
        $region31: #{stacked_conv2d_nchw.1} parent=27 // pred_region
          %p159 = scmp.lt.s32.totalorder %s13, 1
          %s160 = scalar_select %p159, %s13, 1
          %s161 = smul.addr %s160, 54
          %s162 = smul.addr %s161, 4
          %s163 = scalar_lea.vmem %s0, %s162
        $region32: #{stacked_conv2d_nchw.1} parent=27 // pred_fallthru
          _
      $region28: #{stacked_conv2d_nchw.1} parent=5 // pred_fallthru
        _
      %p164 = scmp.le.s32.totalorder 1, %s13
      %p165 = scmp.lt.s32.totalorder %s13, 3
      %p166 = pnand %p164, %p165
      %p167 = pneg %p166
      // Predicated region
      $region33: #{stacked_conv2d_nchw.1} parent=5 // pred_check
        _
      $region34: #{stacked_conv2d_nchw.1} parent=5 // pred_check_branch
        %169 = sbr.rel (%p166) target = $region36
      $region35: #{stacked_conv2d_nchw.1} parent=5 // pred_region
        %s170 = ssub.s32 %s13, 1
        %p171 = scmp.lt.s32.totalorder %s18, 1
        %s172 = scalar_select %p171, %s18, 1
        %s173 = smul.addr %s172, 54
        %s174 = smul.addr %s173, 4
        %s175 = scalar_lea.vmem %s0, %s174
        %p176 = pneg %p39
        %p177 = pneg %p36
        %p178 = pneg %p60
        %p179 = pneg %p57
        %p180 = pneg %p81
        %p181 = pneg %p78
        %p182 = pneg %p102
        %p183 = pneg %p99
        %p184 = pneg %p128
        %p185 = pneg %p125
        %s186 = sand.u32 %s115, 1
        %s187 = scalar_lea.sflag [#allocation4], %s186
        %s188 = sand.u32 %s115, 1
        %s189 = smul.addr %s188, 256
        %s190 = scalar_lea.vmem [#allocation3], %s189
        %p191 = scmp.lt.s32.totalorder %s18, 1
        %s192 = scalar_select %p191, %s18, 1
        %s193 = smul.addr %s192, 54
        %s194 = smul.addr %s193, 4
        %s195 = scalar_lea.vmem %s0, %s194
        %v197 = vld [vmem:[%s195] sm:$0xf]
        %v198 = vld [vmem:[%s195 + $0x4] sm:$0xf]
        %v199 = vld [vmem:[%s195 + $0xc] sm:$0xf]
        %v200 = vld [vmem:[%s195 + $0x10] sm:$0xf]
        %v201 = vld [vmem:[%s195 + $0x18] sm:$0xf]
        %v202 = vld [vmem:[%s195 + $0x1c] sm:$0xf]
        %v203 = vld [vmem:[%s195 + $0x24] sm:$0xf]
        %v204 = vld [vmem:[%s195 + $0x28] sm:$0xf]
        %v205 = vld [vmem:[%s195 + $0x30] sm:$0xf]
        %v206 = vld [vmem:[%s195 + $0x34] sm:$0xf]
        %v207 = vld [vmem:[%s195 + $0x3c] sm:$0xf]
        %v208 = vld [vmem:[%s195 + $0x40] sm:$0xf]
        %v209 = vld [vmem:[%s195 + $0x48] sm:$0xf]
        %v210 = vld [vmem:[%s195 + $0x4c] sm:$0xf]
        %v211 = vld [vmem:[%s195 + $0x54] sm:$0xf]
        %v212 = vld [vmem:[%s195 + $0x58] sm:$0xf]
        %v213 = vld [vmem:[%s195 + $0x60] sm:$0xf]
        %v214 = vld [vmem:[%s195 + $0x64] sm:$0xf]
        %v215 = vld [vmem:[%s195 + $0x6c] sm:$0xf]
        %v216 = vld [vmem:[%s195 + $0x70] sm:$0xf]
        %v217 = vld [vmem:[%s195 + $0x78] sm:$0xf]
        %v218 = vld [vmem:[%s195 + $0x7c] sm:$0xf]
        %v219 = vld [vmem:[%s195 + $0x84] sm:$0xf]
        %v220 = vld [vmem:[%s195 + $0x88] sm:$0xf]
        %v221 = vld [vmem:[%s195 + $0x90] sm:$0xf]
        %v222 = vld [vmem:[%s195 + $0x94] sm:$0xf]
        %v223 = vld [vmem:[%s195 + $0x9c] sm:$0xf]
        %v224 = vld [vmem:[%s195 + $0xa0] sm:$0xf]
        %v225 = vld [vmem:[%s195 + $0xa8] sm:$0xf]
        %v226 = vld [vmem:[%s195 + $0xac] sm:$0xf]
        %v227 = vld [vmem:[%s195 + $0xb4] sm:$0xf]
        %v228 = vld [vmem:[%s195 + $0xb8] sm:$0xf]
        %v229 = vld [vmem:[%s1] sm:$0x3]
        %v230 = vld [vmem:[%s195 + $0x8] sm:$0x1]
        %v231 = vld [vmem:[%s195 + $0x14] sm:$0x1]
        %v232 = vld [vmem:[%s195 + $0x20] sm:$0x1]
        %v233 = vld [vmem:[%s195 + $0x2c] sm:$0x1]
        %v234 = vld [vmem:[%s195 + $0x38] sm:$0x1]
        %v235 = vld [vmem:[%s195 + $0x44] sm:$0x1]
        %v236 = vld [vmem:[%s195 + $0x50] sm:$0x1]
        %v237 = vld [vmem:[%s195 + $0x5c] sm:$0x1]
        %v238 = vld [vmem:[%s195 + $0x68] sm:$0x1]
        %v239 = vld [vmem:[%s195 + $0x74] sm:$0x1]
        %v240 = vld [vmem:[%s195 + $0x80] sm:$0x1]
        %v241 = vld [vmem:[%s195 + $0x8c] sm:$0x1]
        %v242 = vld [vmem:[%s195 + $0x98] sm:$0x1]
        %v243 = vld [vmem:[%s195 + $0xa4] sm:$0x1]
        %v244 = vld [vmem:[%s195 + $0xb0] sm:$0x1]
        %v245 = vld [vmem:[%s195 + $0xbc] sm:$0x1]
        %vm246 = vsmask.f32 3328
        %vm247 = vsmask.f32 7440
        %vm248 = vmor %vm246, %vm247
        %v250 = vshrl.u32 %v197, 16
        %v252 = vrot.slane %v250, 4
        %v253 = vshll.u32 %v197, 16
        %v255 = vrot.slane %v253, 5
        %v256 = vor.u32 %v252, %v255
        %v257 = vrot.slane %v256, 4
        %v259 = vshll.u32 %v198, 16
        %v261 = vrot.slane %v259, 5
        %v262 = vsel %vm248, %v257, %v261
        %v263 = vshrl.u32 %v198, 16
        %v265 = vrot.slane %v263, 4
        %v266 = vor.u32 %v265, %v261
        %v267 = vrot.slane %v266, 4
        %v269 = vshll.u32 %v230, 16
        %v271 = vrot.slane %v269, 5
        %v272 = vsel %vm248, %v267, %v271
        %v274 = vshrl.u32 %v199, 16
        %v276 = vrot.slane %v274, 4
        %v277 = vshll.u32 %v199, 16
        %v279 = vrot.slane %v277, 5
        %v280 = vor.u32 %v276, %v279
        %v281 = vrot.slane %v280, 4
        %v283 = vshll.u32 %v200, 16
        %v285 = vrot.slane %v283, 5
        %v286 = vsel %vm248, %v281, %v285
        %v287 = vshrl.u32 %v200, 16
        %v289 = vrot.slane %v287, 4
        %v290 = vor.u32 %v289, %v285
        %v291 = vrot.slane %v290, 4
        %v293 = vshll.u32 %v231, 16
        %v295 = vrot.slane %v293, 5
        %v296 = vsel %vm248, %v291, %v295
        %v298 = vshrl.u32 %v201, 16
        %v300 = vrot.slane %v298, 4
        %v301 = vshll.u32 %v201, 16
        %v303 = vrot.slane %v301, 5
        %v304 = vor.u32 %v300, %v303
        %v305 = vrot.slane %v304, 4
        %v307 = vshll.u32 %v202, 16
        %v309 = vrot.slane %v307, 5
        %v310 = vsel %vm248, %v305, %v309
        %v311 = vshrl.u32 %v202, 16
        %v313 = vrot.slane %v311, 4
        %v314 = vor.u32 %v313, %v309
        %v315 = vrot.slane %v314, 4
        %v317 = vshll.u32 %v232, 16
        %v319 = vrot.slane %v317, 5
        %v320 = vsel %vm248, %v315, %v319
        %v322 = vshrl.u32 %v203, 16
        %v324 = vrot.slane %v322, 4
        %v325 = vshll.u32 %v203, 16
        %v327 = vrot.slane %v325, 5
        %v328 = vor.u32 %v324, %v327
        %v329 = vrot.slane %v328, 4
        %v331 = vshll.u32 %v204, 16
        %v333 = vrot.slane %v331, 5
        %v334 = vsel %vm248, %v329, %v333
        %v335 = vshrl.u32 %v204, 16
        %v337 = vrot.slane %v335, 4
        %v338 = vor.u32 %v337, %v333
        %v339 = vrot.slane %v338, 4
        %v341 = vshll.u32 %v233, 16
        %v343 = vrot.slane %v341, 5
        %v344 = vsel %vm248, %v339, %v343
        %v346 = vshrl.u32 %v205, 16
        %v348 = vrot.slane %v346, 4
        %v349 = vshll.u32 %v205, 16
        %v351 = vrot.slane %v349, 5
        %v352 = vor.u32 %v348, %v351
        %v353 = vrot.slane %v352, 4
        %v355 = vshll.u32 %v206, 16
        %v357 = vrot.slane %v355, 5
        %v358 = vsel %vm248, %v353, %v357
        %v359 = vshrl.u32 %v206, 16
        %v361 = vrot.slane %v359, 4
        %v362 = vor.u32 %v361, %v357
        %v363 = vrot.slane %v362, 4
        %v365 = vshll.u32 %v234, 16
        %v367 = vrot.slane %v365, 5
        %v368 = vsel %vm248, %v363, %v367
        %v370 = vshrl.u32 %v207, 16
        %v372 = vrot.slane %v370, 4
        %v373 = vshll.u32 %v207, 16
        %v375 = vrot.slane %v373, 5
        %v376 = vor.u32 %v372, %v375
        %v377 = vrot.slane %v376, 4
        %v379 = vshll.u32 %v208, 16
        %v381 = vrot.slane %v379, 5
        %v382 = vsel %vm248, %v377, %v381
        %v383 = vshrl.u32 %v208, 16
        %v385 = vrot.slane %v383, 4
        %v386 = vor.u32 %v385, %v381
        %v387 = vrot.slane %v386, 4
        %v389 = vshll.u32 %v235, 16
        %v391 = vrot.slane %v389, 5
        %v392 = vsel %vm248, %v387, %v391
        %v394 = vshrl.u32 %v209, 16
        %v396 = vrot.slane %v394, 4
        %v397 = vshll.u32 %v209, 16
        %v399 = vrot.slane %v397, 5
        %v400 = vor.u32 %v396, %v399
        %v401 = vrot.slane %v400, 4
        %v403 = vshll.u32 %v210, 16
        %v405 = vrot.slane %v403, 5
        %v406 = vsel %vm248, %v401, %v405
        %v407 = vshrl.u32 %v210, 16
        %v409 = vrot.slane %v407, 4
        %v410 = vor.u32 %v409, %v405
        %v411 = vrot.slane %v410, 4
        %v413 = vshll.u32 %v236, 16
        %v415 = vrot.slane %v413, 5
        %v416 = vsel %vm248, %v411, %v415
        %v418 = vshrl.u32 %v211, 16
        %v420 = vrot.slane %v418, 4
        %v421 = vshll.u32 %v211, 16
        %v423 = vrot.slane %v421, 5
        %v424 = vor.u32 %v420, %v423
        %v425 = vrot.slane %v424, 4
        %v427 = vshll.u32 %v212, 16
        %v429 = vrot.slane %v427, 5
        %v430 = vsel %vm248, %v425, %v429
        %v431 = vshrl.u32 %v212, 16
        %v433 = vrot.slane %v431, 4
        %v434 = vor.u32 %v433, %v429
        %v435 = vrot.slane %v434, 4
        %v437 = vshll.u32 %v237, 16
        %v439 = vrot.slane %v437, 5
        %v440 = vsel %vm248, %v435, %v439
        %v442 = vshrl.u32 %v213, 16
        %v444 = vrot.slane %v442, 4
        %v445 = vshll.u32 %v213, 16
        %v447 = vrot.slane %v445, 5
        %v448 = vor.u32 %v444, %v447
        %v449 = vrot.slane %v448, 4
        %v451 = vshll.u32 %v214, 16
        %v453 = vrot.slane %v451, 5
        %v454 = vsel %vm248, %v449, %v453
        %v455 = vshrl.u32 %v214, 16
        %v457 = vrot.slane %v455, 4
        %v458 = vor.u32 %v457, %v453
        %v459 = vrot.slane %v458, 4
        %v461 = vshll.u32 %v238, 16
        %v463 = vrot.slane %v461, 5
        %v464 = vsel %vm248, %v459, %v463
        %v466 = vshrl.u32 %v215, 16
        %v468 = vrot.slane %v466, 4
        %v469 = vshll.u32 %v215, 16
        %v471 = vrot.slane %v469, 5
        %v472 = vor.u32 %v468, %v471
        %v473 = vrot.slane %v472, 4
        %v475 = vshll.u32 %v216, 16
        %v477 = vrot.slane %v475, 5
        %v478 = vsel %vm248, %v473, %v477
        %v479 = vshrl.u32 %v216, 16
        %v481 = vrot.slane %v479, 4
        %v482 = vor.u32 %v481, %v477
        %v483 = vrot.slane %v482, 4
        %v485 = vshll.u32 %v239, 16
        %v487 = vrot.slane %v485, 5
        %v488 = vsel %vm248, %v483, %v487
        %v490 = vshrl.u32 %v217, 16
        %v492 = vrot.slane %v490, 4
        %v493 = vshll.u32 %v217, 16
        %v495 = vrot.slane %v493, 5
        %v496 = vor.u32 %v492, %v495
        %v497 = vrot.slane %v496, 4
        %v499 = vshll.u32 %v218, 16
        %v501 = vrot.slane %v499, 5
        %v502 = vsel %vm248, %v497, %v501
        %v503 = vshrl.u32 %v218, 16
        %v505 = vrot.slane %v503, 4
        %v506 = vor.u32 %v505, %v501
        %v507 = vrot.slane %v506, 4
        %v509 = vshll.u32 %v240, 16
        %v511 = vrot.slane %v509, 5
        %v512 = vsel %vm248, %v507, %v511
        %v514 = vshrl.u32 %v219, 16
        %v516 = vrot.slane %v514, 4
        %v517 = vshll.u32 %v219, 16
        %v519 = vrot.slane %v517, 5
        %v520 = vor.u32 %v516, %v519
        %v521 = vrot.slane %v520, 4
        %v523 = vshll.u32 %v220, 16
        %v525 = vrot.slane %v523, 5
        %v526 = vsel %vm248, %v521, %v525
        %v527 = vshrl.u32 %v220, 16
        %v529 = vrot.slane %v527, 4
        %v530 = vor.u32 %v529, %v525
        %v531 = vrot.slane %v530, 4
        %v533 = vshll.u32 %v241, 16
        %v535 = vrot.slane %v533, 5
        %v536 = vsel %vm248, %v531, %v535
        %v538 = vshrl.u32 %v221, 16
        %v540 = vrot.slane %v538, 4
        %v541 = vshll.u32 %v221, 16
        %v543 = vrot.slane %v541, 5
        %v544 = vor.u32 %v540, %v543
        %v545 = vrot.slane %v544, 4
        %v547 = vshll.u32 %v222, 16
        %v549 = vrot.slane %v547, 5
        %v550 = vsel %vm248, %v545, %v549
        %v551 = vshrl.u32 %v222, 16
        %v553 = vrot.slane %v551, 4
        %v554 = vor.u32 %v553, %v549
        %v555 = vrot.slane %v554, 4
        %v557 = vshll.u32 %v242, 16
        %v559 = vrot.slane %v557, 5
        %v560 = vsel %vm248, %v555, %v559
        %v562 = vshrl.u32 %v223, 16
        %v564 = vrot.slane %v562, 4
        %v565 = vshll.u32 %v223, 16
        %v567 = vrot.slane %v565, 5
        %v568 = vor.u32 %v564, %v567
        %v569 = vrot.slane %v568, 4
        %v571 = vshll.u32 %v224, 16
        %v573 = vrot.slane %v571, 5
        %v574 = vsel %vm248, %v569, %v573
        %v575 = vshrl.u32 %v224, 16
        %v577 = vrot.slane %v575, 4
        %v578 = vor.u32 %v577, %v573
        %v579 = vrot.slane %v578, 4
        %v581 = vshll.u32 %v243, 16
        %v583 = vrot.slane %v581, 5
        %v584 = vsel %vm248, %v579, %v583
        %v586 = vshrl.u32 %v225, 16
        %v588 = vrot.slane %v586, 4
        %v589 = vshll.u32 %v225, 16
        %v591 = vrot.slane %v589, 5
        %v592 = vor.u32 %v588, %v591
        %v593 = vrot.slane %v592, 4
        %v595 = vshll.u32 %v226, 16
        %v597 = vrot.slane %v595, 5
        %v598 = vsel %vm248, %v593, %v597
        %v599 = vshrl.u32 %v226, 16
        %v601 = vrot.slane %v599, 4
        %v602 = vor.u32 %v601, %v597
        %v603 = vrot.slane %v602, 4
        %v605 = vshll.u32 %v244, 16
        %v607 = vrot.slane %v605, 5
        %v608 = vsel %vm248, %v603, %v607
        %v610 = vshrl.u32 %v227, 16
        %v612 = vrot.slane %v610, 4
        %v613 = vshll.u32 %v227, 16
        %v615 = vrot.slane %v613, 5
        %v616 = vor.u32 %v612, %v615
        %v617 = vrot.slane %v616, 4
        %v619 = vshll.u32 %v228, 16
        %v621 = vrot.slane %v619, 5
        %v622 = vsel %vm248, %v617, %v621
        %v623 = vshrl.u32 %v228, 16
        %v625 = vrot.slane %v623, 4
        %v626 = vor.u32 %v625, %v621
        %v627 = vrot.slane %v626, 4
        %v629 = vshll.u32 %v245, 16
        %v631 = vrot.slane %v629, 5
        %v632 = vsel %vm248, %v627, %v631
        %s633 = scalar_lea.vmem %s1, 2
        %v634 = vld [vmem:[%s633] sm:$0x3]
        %v635 = vunpack.c.l.b16 %v262
        %v636 = vunpack.c.l.b16 %v272
        %v637 = vunpack.c.l.b16 %v286
        %v638 = vunpack.c.l.b16 %v296
        %v639 = vunpack.c.l.b16 %v310
        %v640 = vunpack.c.l.b16 %v320
        %v641 = vunpack.c.l.b16 %v334
        %v642 = vunpack.c.l.b16 %v344
        %v643 = vunpack.c.l.b16 %v358
        %v644 = vunpack.c.l.b16 %v368
        %v645 = vunpack.c.l.b16 %v382
        %v646 = vunpack.c.l.b16 %v392
        %v647 = vunpack.c.l.b16 %v406
        %v648 = vunpack.c.l.b16 %v416
        %v649 = vunpack.c.l.b16 %v430
        %v650 = vunpack.c.l.b16 %v440
        %v651 = vunpack.c.l.b16 %v454
        %v652 = vunpack.c.l.b16 %v464
        %v653 = vunpack.c.l.b16 %v478
        %v654 = vunpack.c.l.b16 %v488
        %v655 = vunpack.c.l.b16 %v502
        %v656 = vunpack.c.l.b16 %v512
        %v657 = vunpack.c.l.b16 %v526
        %v658 = vunpack.c.l.b16 %v536
        %v659 = vunpack.c.l.b16 %v550
        %v660 = vunpack.c.l.b16 %v560
        %v661 = vunpack.c.l.b16 %v574
        %v662 = vunpack.c.l.b16 %v584
        %v663 = vunpack.c.l.b16 %v598
        %v664 = vunpack.c.l.b16 %v608
        %v665 = vunpack.c.l.b16 %v622
        %v666 = vunpack.c.l.b16 %v632
        %v667 = vpack.c.b16 %v636, %v635
        %v668 = vpack.c.b16 %v638, %v637
        %v669 = vpack.c.b16 %v640, %v639
        %v670 = vpack.c.b16 %v642, %v641
        %v671 = vpack.c.b16 %v644, %v643
        %v672 = vpack.c.b16 %v646, %v645
        %v673 = vpack.c.b16 %v648, %v647
        %v674 = vpack.c.b16 %v650, %v649
        %v675 = vpack.c.b16 %v652, %v651
        %v676 = vpack.c.b16 %v654, %v653
        %v677 = vpack.c.b16 %v656, %v655
        %v678 = vpack.c.b16 %v658, %v657
        %v679 = vpack.c.b16 %v660, %v659
        %v680 = vpack.c.b16 %v662, %v661
        %v681 = vpack.c.b16 %v664, %v663
        %v682 = vpack.c.b16 %v666, %v665
        %vm683 = vcmask 31744
        %v685 = vsel %vm683, %v667, 0
        %v688 = vsel %vm683, %v668, 0
        %v691 = vsel %vm683, %v669, 0
        %v694 = vsel %vm683, %v670, 0
        %v697 = vsel %vm683, %v671, 0
        %v700 = vsel %vm683, %v672, 0
        %v703 = vsel %vm683, %v673, 0
        %v706 = vsel %vm683, %v674, 0
        %v709 = vsel %vm683, %v675, 0
        %v712 = vsel %vm683, %v676, 0
        %v715 = vsel %vm683, %v677, 0
        %v718 = vsel %vm683, %v678, 0
        %v721 = vsel %vm683, %v679, 0
        %v724 = vsel %vm683, %v680, 0
        %v727 = vsel %vm683, %v681, 0
        %v730 = vsel %vm683, %v682, 0
        %vm732 = vcmask 1041408
        %v734 = vsel %vm732, %v634, 0
        %736 = vmatprep.subr.bf16.mxu0 0
        %737 = vmatpush1.bf16.msra.mxu0 0
        %738 = vmatprep.subr.bf16.mxu0 0
        %739 = vmatpush1.bf16.msra.mxu0 0
        %740 = vmatprep.subr.bf16.mxu0 0
        %741 = vmatpush1.bf16.msra.mxu0 0
        %742 = vmatprep.subr.bf16.mxu0 0
        %743 = vmatpush1.bf16.msra.mxu0 0
        %744 = vmatprep.subr.bf16.mxu0 0
        %745 = vmatpush1.bf16.msra.mxu0 0
        %746 = vmatprep.subr.bf16.mxu0 0
        %747 = vmatpush1.bf16.msra.mxu0 0
        %748 = vmatprep.subr.bf16.mxu0 0
        %749 = vmatpush1.bf16.msra.mxu0 0
        %750 = vmatprep.subr.bf16.mxu0 0
        %751 = vmatpush1.bf16.msra.mxu0 %v734
        %752 = vmatprep.subr.bf16.mxu0 0
        %753 = vmatpush2.bf16.msra.mxu0 0
        %754 = vmatprep.subr.bf16.mxu0 0
        %755 = vmatpush2.bf16.msra.mxu0 0
        %756 = vmatprep.subr.bf16.mxu0 0
        %757 = vmatpush2.bf16.msra.mxu0 0
        %758 = vmatprep.subr.bf16.mxu0 0
        %759 = vmatpush2.bf16.msra.mxu0 0
        %760 = vmatprep.subr.bf16.mxu0 0
        %761 = vmatpush2.bf16.msra.mxu0 0
        %762 = vmatprep.subr.bf16.mxu0 0
        %763 = vmatpush2.bf16.msra.mxu0 0
        %764 = vmatprep.subr.bf16.mxu0 0
        %765 = vmatpush2.bf16.msra.mxu0 0
        %766 = vmatprep.subr.bf16.mxu0 0
        %767 = vmatpush2.bf16.msra.mxu0 0
        %768 = vmatprep.mubr.bf16.mxu0 0
        %769 = vmatmul.mubr.bf16.gmra.mxu0 %v685
        %v770 = vpop.f32.mrf.mxu0
        %v771 = vadd.f32 0.0, %v770
        %v772 = vpop.f32.mrf.mxu0
        %v773 = vpop.f32.mrf.mxu0
        %v774 = vadd.f32 0.0, %v773
        %v775 = vpop.f32.mrf.mxu0
        %776 = vmatprep.mubr.bf16.mxu0 0
        %777 = vmatmul.mubr.bf16.gmra.mxu0 %v688
        %v778 = vpop.f32.mrf.mxu0
        %v779 = vadd.f32 0.0, %v778
        %v780 = vpop.f32.mrf.mxu0
        %v781 = vpop.f32.mrf.mxu0
        %v782 = vadd.f32 0.0, %v781
        %v783 = vpop.f32.mrf.mxu0
        %784 = vmatprep.mubr.bf16.mxu0 0
        %785 = vmatmul.mubr.bf16.gmra.mxu0 %v691
        %v786 = vpop.f32.mrf.mxu0
        %v787 = vadd.f32 0.0, %v786
        %v788 = vpop.f32.mrf.mxu0
        %v789 = vpop.f32.mrf.mxu0
        %v790 = vadd.f32 0.0, %v789
        %v791 = vpop.f32.mrf.mxu0
        %792 = vmatprep.mubr.bf16.mxu0 0
        %793 = vmatmul.mubr.bf16.gmra.mxu0 %v694
        %v794 = vpop.f32.mrf.mxu0
        %v795 = vadd.f32 0.0, %v794
        %v796 = vpop.f32.mrf.mxu0
        %v797 = vpop.f32.mrf.mxu0
        %v798 = vadd.f32 0.0, %v797
        %v799 = vpop.f32.mrf.mxu0
        %800 = vmatprep.mubr.bf16.mxu0 0
        %801 = vmatmul.mubr.bf16.gmra.mxu0 %v697
        %v802 = vpop.f32.mrf.mxu0
        %v803 = vadd.f32 0.0, %v802
        %v804 = vpop.f32.mrf.mxu0
        %v805 = vpop.f32.mrf.mxu0
        %v806 = vadd.f32 0.0, %v805
        %v807 = vpop.f32.mrf.mxu0
        %808 = vmatprep.mubr.bf16.mxu0 0
        %809 = vmatmul.mubr.bf16.gmra.mxu0 %v700
        %v810 = vpop.f32.mrf.mxu0
        %v811 = vadd.f32 0.0, %v810
        %v812 = vpop.f32.mrf.mxu0
        %v813 = vpop.f32.mrf.mxu0
        %v814 = vadd.f32 0.0, %v813
        %v815 = vpop.f32.mrf.mxu0
        %816 = vmatprep.mubr.bf16.mxu0 0
        %817 = vmatmul.mubr.bf16.gmra.mxu0 %v703
        %v818 = vpop.f32.mrf.mxu0
        %v819 = vadd.f32 0.0, %v818
        %v820 = vpop.f32.mrf.mxu0
        %v821 = vpop.f32.mrf.mxu0
        %v822 = vadd.f32 0.0, %v821
        %v823 = vpop.f32.mrf.mxu0
        %824 = vmatprep.mubr.bf16.mxu0 0
        %825 = vmatmul.mubr.bf16.gmra.mxu0 %v706
        %v826 = vpop.f32.mrf.mxu0
        %v827 = vadd.f32 0.0, %v826
        %v828 = vpop.f32.mrf.mxu0
        %v829 = vpop.f32.mrf.mxu0
        %v830 = vadd.f32 0.0, %v829
        %v831 = vpop.f32.mrf.mxu0
        %832 = vmatprep.mubr.bf16.mxu0 0
        %833 = vmatmul.mubr.bf16.gmra.mxu0 %v709
        %v834 = vpop.f32.mrf.mxu0
        %v835 = vadd.f32 0.0, %v834
        %v836 = vpop.f32.mrf.mxu0
        %v837 = vpop.f32.mrf.mxu0
        %v838 = vadd.f32 0.0, %v837
        %v839 = vpop.f32.mrf.mxu0
        %840 = vmatprep.mubr.bf16.mxu0 0
        %841 = vmatmul.mubr.bf16.gmra.mxu0 %v712
        %v842 = vpop.f32.mrf.mxu0
        %v843 = vadd.f32 0.0, %v842
        %v844 = vpop.f32.mrf.mxu0
        %v845 = vpop.f32.mrf.mxu0
        %v846 = vadd.f32 0.0, %v845
        %v847 = vpop.f32.mrf.mxu0
        %848 = vmatprep.mubr.bf16.mxu0 0
        %849 = vmatmul.mubr.bf16.gmra.mxu0 %v715
        %v850 = vpop.f32.mrf.mxu0
        %v851 = vadd.f32 0.0, %v850
        %v852 = vpop.f32.mrf.mxu0
        %v853 = vpop.f32.mrf.mxu0
        %v854 = vadd.f32 0.0, %v853
        %v855 = vpop.f32.mrf.mxu0
        %856 = vmatprep.mubr.bf16.mxu0 0
        %857 = vmatmul.mubr.bf16.gmra.mxu0 %v718
        %v858 = vpop.f32.mrf.mxu0
        %v859 = vadd.f32 0.0, %v858
        %v860 = vpop.f32.mrf.mxu0
        %v861 = vpop.f32.mrf.mxu0
        %v862 = vadd.f32 0.0, %v861
        %v863 = vpop.f32.mrf.mxu0
        %864 = vmatprep.mubr.bf16.mxu0 0
        %865 = vmatmul.mubr.bf16.gmra.mxu0 %v721
        %v866 = vpop.f32.mrf.mxu0
        %v867 = vadd.f32 0.0, %v866
        %v868 = vpop.f32.mrf.mxu0
        %v869 = vpop.f32.mrf.mxu0
        %v870 = vadd.f32 0.0, %v869
        %v871 = vpop.f32.mrf.mxu0
        %872 = vmatprep.mubr.bf16.mxu0 0
        %873 = vmatmul.mubr.bf16.gmra.mxu0 %v724
        %v874 = vpop.f32.mrf.mxu0
        %v875 = vadd.f32 0.0, %v874
        %v876 = vpop.f32.mrf.mxu0
        %v877 = vpop.f32.mrf.mxu0
        %v878 = vadd.f32 0.0, %v877
        %v879 = vpop.f32.mrf.mxu0
        %880 = vmatprep.mubr.bf16.mxu0 0
        %881 = vmatmul.mubr.bf16.gmra.mxu0 %v727
        %v882 = vpop.f32.mrf.mxu0
        %v883 = vadd.f32 0.0, %v882
        %v884 = vpop.f32.mrf.mxu0
        %v885 = vpop.f32.mrf.mxu0
        %v886 = vadd.f32 0.0, %v885
        %v887 = vpop.f32.mrf.mxu0
        %888 = vmatprep.mubr.bf16.mxu0 0
        %889 = vmatmul.mubr.bf16.gmra.mxu0 %v730
        %v890 = vpop.f32.mrf.mxu0
        %v891 = vadd.f32 0.0, %v890
        %v892 = vpop.f32.mrf.mxu0
        %v893 = vpop.f32.mrf.mxu0
        %v894 = vadd.f32 0.0, %v893
        %v895 = vpop.f32.mrf.mxu0
        %896 = vdwg.mxu0
        %v929 = vunpack.c.l.b16 %v197
        %v930 = vunpack.c.l.b16 %v198
        %v931 = vunpack.c.l.b16 %v199
        %v932 = vunpack.c.l.b16 %v200
        %v933 = vunpack.c.l.b16 %v201
        %v934 = vunpack.c.l.b16 %v202
        %v935 = vunpack.c.l.b16 %v203
        %v936 = vunpack.c.l.b16 %v204
        %v937 = vunpack.c.l.b16 %v205
        %v938 = vunpack.c.l.b16 %v206
        %v939 = vunpack.c.l.b16 %v207
        %v940 = vunpack.c.l.b16 %v208
        %v941 = vunpack.c.l.b16 %v209
        %v942 = vunpack.c.l.b16 %v210
        %v943 = vunpack.c.l.b16 %v211
        %v944 = vunpack.c.l.b16 %v212
        %v945 = vunpack.c.l.b16 %v213
        %v946 = vunpack.c.l.b16 %v214
        %v947 = vunpack.c.l.b16 %v215
        %v948 = vunpack.c.l.b16 %v216
        %v949 = vunpack.c.l.b16 %v217
        %v950 = vunpack.c.l.b16 %v218
        %v951 = vunpack.c.l.b16 %v219
        %v952 = vunpack.c.l.b16 %v220
        %v953 = vunpack.c.l.b16 %v221
        %v954 = vunpack.c.l.b16 %v222
        %v955 = vunpack.c.l.b16 %v223
        %v956 = vunpack.c.l.b16 %v224
        %v957 = vunpack.c.l.b16 %v225
        %v958 = vunpack.c.l.b16 %v226
        %v959 = vunpack.c.l.b16 %v227
        %v960 = vunpack.c.l.b16 %v228
        %v961 = vpack.c.b16 %v930, %v929
        %v962 = vpack.c.b16 %v932, %v931
        %v963 = vpack.c.b16 %v934, %v933
        %v964 = vpack.c.b16 %v936, %v935
        %v965 = vpack.c.b16 %v938, %v937
        %v966 = vpack.c.b16 %v940, %v939
        %v967 = vpack.c.b16 %v942, %v941
        %v968 = vpack.c.b16 %v944, %v943
        %v969 = vpack.c.b16 %v946, %v945
        %v970 = vpack.c.b16 %v948, %v947
        %v971 = vpack.c.b16 %v950, %v949
        %v972 = vpack.c.b16 %v952, %v951
        %v973 = vpack.c.b16 %v954, %v953
        %v974 = vpack.c.b16 %v956, %v955
        %v975 = vpack.c.b16 %v958, %v957
        %v976 = vpack.c.b16 %v960, %v959
        %v978 = vsel %vm683, %v961, 0
        %v981 = vsel %vm683, %v962, 0
        %v984 = vsel %vm683, %v963, 0
        %v987 = vsel %vm683, %v964, 0
        %v990 = vsel %vm683, %v965, 0
        %v993 = vsel %vm683, %v966, 0
        %v996 = vsel %vm683, %v967, 0
        %v999 = vsel %vm683, %v968, 0
        %v1002 = vsel %vm683, %v969, 0
        %v1005 = vsel %vm683, %v970, 0
        %v1008 = vsel %vm683, %v971, 0
        %v1011 = vsel %vm683, %v972, 0
        %v1014 = vsel %vm683, %v973, 0
        %v1017 = vsel %vm683, %v974, 0
        %v1020 = vsel %vm683, %v975, 0
        %v1023 = vsel %vm683, %v976, 0
        %v1026 = vsel %vm732, %v229, 0
        %1028 = vmatprep.subr.bf16.mxu0 0
        %1029 = vmatpush1.bf16.msra.mxu0 0
        %1030 = vmatprep.subr.bf16.mxu0 0
        %1031 = vmatpush1.bf16.msra.mxu0 0
        %1032 = vmatprep.subr.bf16.mxu0 0
        %1033 = vmatpush1.bf16.msra.mxu0 0
        %1034 = vmatprep.subr.bf16.mxu0 0
        %1035 = vmatpush1.bf16.msra.mxu0 0
        %1036 = vmatprep.subr.bf16.mxu0 0
        %1037 = vmatpush1.bf16.msra.mxu0 0
        %1038 = vmatprep.subr.bf16.mxu0 0
        %1039 = vmatpush1.bf16.msra.mxu0 0
        %1040 = vmatprep.subr.bf16.mxu0 0
        %1041 = vmatpush1.bf16.msra.mxu0 0
        %1042 = vmatprep.subr.bf16.mxu0 0
        %1043 = vmatpush1.bf16.msra.mxu0 %v1026
        %1044 = vmatprep.subr.bf16.mxu0 0
        %1045 = vmatpush2.bf16.msra.mxu0 0
        %1046 = vmatprep.subr.bf16.mxu0 0
        %1047 = vmatpush2.bf16.msra.mxu0 0
        %1048 = vmatprep.subr.bf16.mxu0 0
        %1049 = vmatpush2.bf16.msra.mxu0 0
        %1050 = vmatprep.subr.bf16.mxu0 0
        %1051 = vmatpush2.bf16.msra.mxu0 0
        %1052 = vmatprep.subr.bf16.mxu0 0
        %1053 = vmatpush2.bf16.msra.mxu0 0
        %1054 = vmatprep.subr.bf16.mxu0 0
        %1055 = vmatpush2.bf16.msra.mxu0 0
        %1056 = vmatprep.subr.bf16.mxu0 0
        %1057 = vmatpush2.bf16.msra.mxu0 0
        %1058 = vmatprep.subr.bf16.mxu0 0
        %1059 = vmatpush2.bf16.msra.mxu0 0
        %1060 = vmatprep.mubr.bf16.mxu0 0
        %1061 = vmatmul.mubr.bf16.gmra.mxu0 %v978
        %v1062 = vpop.f32.mrf.mxu0
        %v1063 = vadd.f32 %v771, %v1062
        %v1064 = vpop.f32.mrf.mxu0
        %v1065 = vpop.f32.mrf.mxu0
        %v1066 = vadd.f32 %v774, %v1065
        %v1067 = vpop.f32.mrf.mxu0
        %1068 = vmatprep.mubr.bf16.mxu0 0
        %1069 = vmatmul.mubr.bf16.gmra.mxu0 %v981
        %v1070 = vpop.f32.mrf.mxu0
        %v1071 = vadd.f32 %v779, %v1070
        %v1072 = vpop.f32.mrf.mxu0
        %v1073 = vpop.f32.mrf.mxu0
        %v1074 = vadd.f32 %v782, %v1073
        %v1075 = vpop.f32.mrf.mxu0
        %1076 = vmatprep.mubr.bf16.mxu0 0
        %1077 = vmatmul.mubr.bf16.gmra.mxu0 %v984
        %v1078 = vpop.f32.mrf.mxu0
        %v1079 = vadd.f32 %v787, %v1078
        %v1080 = vpop.f32.mrf.mxu0
        %v1081 = vpop.f32.mrf.mxu0
        %v1082 = vadd.f32 %v790, %v1081
        %v1083 = vpop.f32.mrf.mxu0
        %1084 = vmatprep.mubr.bf16.mxu0 0
        %1085 = vmatmul.mubr.bf16.gmra.mxu0 %v987
        %v1086 = vpop.f32.mrf.mxu0
        %v1087 = vadd.f32 %v795, %v1086
        %v1088 = vpop.f32.mrf.mxu0
        %v1089 = vpop.f32.mrf.mxu0
        %v1090 = vadd.f32 %v798, %v1089
        %v1091 = vpop.f32.mrf.mxu0
        %1092 = vmatprep.mubr.bf16.mxu0 0
        %1093 = vmatmul.mubr.bf16.gmra.mxu0 %v990
        %v1094 = vpop.f32.mrf.mxu0
        %v1095 = vadd.f32 %v803, %v1094
        %v1096 = vpop.f32.mrf.mxu0
        %v1097 = vpop.f32.mrf.mxu0
        %v1098 = vadd.f32 %v806, %v1097
        %v1099 = vpop.f32.mrf.mxu0
        %1100 = vmatprep.mubr.bf16.mxu0 0
        %1101 = vmatmul.mubr.bf16.gmra.mxu0 %v993
        %v1102 = vpop.f32.mrf.mxu0
        %v1103 = vadd.f32 %v811, %v1102
        %v1104 = vpop.f32.mrf.mxu0
        %v1105 = vpop.f32.mrf.mxu0
        %v1106 = vadd.f32 %v814, %v1105
        %v1107 = vpop.f32.mrf.mxu0
        %1108 = vmatprep.mubr.bf16.mxu0 0
        %1109 = vmatmul.mubr.bf16.gmra.mxu0 %v996
        %v1110 = vpop.f32.mrf.mxu0
        %v1111 = vadd.f32 %v819, %v1110
        %v1112 = vpop.f32.mrf.mxu0
        %v1113 = vpop.f32.mrf.mxu0
        %v1114 = vadd.f32 %v822, %v1113
        %v1115 = vpop.f32.mrf.mxu0
        %1116 = vmatprep.mubr.bf16.mxu0 0
        %1117 = vmatmul.mubr.bf16.gmra.mxu0 %v999
        %v1118 = vpop.f32.mrf.mxu0
        %v1119 = vadd.f32 %v827, %v1118
        %v1120 = vpop.f32.mrf.mxu0
        %v1121 = vpop.f32.mrf.mxu0
        %v1122 = vadd.f32 %v830, %v1121
        %v1123 = vpop.f32.mrf.mxu0
        %1124 = vmatprep.mubr.bf16.mxu0 0
        %1125 = vmatmul.mubr.bf16.gmra.mxu0 %v1002
        %v1126 = vpop.f32.mrf.mxu0
        %v1127 = vadd.f32 %v835, %v1126
        %v1128 = vpop.f32.mrf.mxu0
        %v1129 = vpop.f32.mrf.mxu0
        %v1130 = vadd.f32 %v838, %v1129
        %v1131 = vpop.f32.mrf.mxu0
        %1132 = vmatprep.mubr.bf16.mxu0 0
        %1133 = vmatmul.mubr.bf16.gmra.mxu0 %v1005
        %v1134 = vpop.f32.mrf.mxu0
        %v1135 = vadd.f32 %v843, %v1134
        %v1136 = vpop.f32.mrf.mxu0
        %v1137 = vpop.f32.mrf.mxu0
        %v1138 = vadd.f32 %v846, %v1137
        %v1139 = vpop.f32.mrf.mxu0
        %1140 = vmatprep.mubr.bf16.mxu0 0
        %1141 = vmatmul.mubr.bf16.gmra.mxu0 %v1008
        %v1142 = vpop.f32.mrf.mxu0
        %v1143 = vadd.f32 %v851, %v1142
        %v1144 = vpop.f32.mrf.mxu0
        %v1145 = vpop.f32.mrf.mxu0
        %v1146 = vadd.f32 %v854, %v1145
        %v1147 = vpop.f32.mrf.mxu0
        %1148 = vmatprep.mubr.bf16.mxu0 0
        %1149 = vmatmul.mubr.bf16.gmra.mxu0 %v1011
        %v1150 = vpop.f32.mrf.mxu0
        %v1151 = vadd.f32 %v859, %v1150
        %v1152 = vpop.f32.mrf.mxu0
        %v1153 = vpop.f32.mrf.mxu0
        %v1154 = vadd.f32 %v862, %v1153
        %v1155 = vpop.f32.mrf.mxu0
        %1156 = vmatprep.mubr.bf16.mxu0 0
        %1157 = vmatmul.mubr.bf16.gmra.mxu0 %v1014
        %v1158 = vpop.f32.mrf.mxu0
        %v1159 = vadd.f32 %v867, %v1158
        %v1160 = vpop.f32.mrf.mxu0
        %v1161 = vpop.f32.mrf.mxu0
        %v1162 = vadd.f32 %v870, %v1161
        %v1163 = vpop.f32.mrf.mxu0
        %1164 = vmatprep.mubr.bf16.mxu0 0
        %1165 = vmatmul.mubr.bf16.gmra.mxu0 %v1017
        %v1166 = vpop.f32.mrf.mxu0
        %v1167 = vadd.f32 %v875, %v1166
        %v1168 = vpop.f32.mrf.mxu0
        %v1169 = vpop.f32.mrf.mxu0
        %v1170 = vadd.f32 %v878, %v1169
        %v1171 = vpop.f32.mrf.mxu0
        %1172 = vmatprep.mubr.bf16.mxu0 0
        %1173 = vmatmul.mubr.bf16.gmra.mxu0 %v1020
        %v1174 = vpop.f32.mrf.mxu0
        %v1175 = vadd.f32 %v883, %v1174
        %v1176 = vpop.f32.mrf.mxu0
        %v1177 = vpop.f32.mrf.mxu0
        %v1178 = vadd.f32 %v886, %v1177
        %v1179 = vpop.f32.mrf.mxu0
        %1180 = vmatprep.mubr.bf16.mxu0 0
        %1181 = vmatmul.mubr.bf16.gmra.mxu0 %v1023
        %v1182 = vpop.f32.mrf.mxu0
        %v1183 = vadd.f32 %v891, %v1182
        %v1184 = vpop.f32.mrf.mxu0
        %v1185 = vpop.f32.mrf.mxu0
        %v1186 = vadd.f32 %v894, %v1185
        %v1187 = vpop.f32.mrf.mxu0
        %1188 = vdwg.mxu0
        %v1189 = vld [vmem:[%s195] sm:$0xe]
        %v1190 = vld [vmem:[%s195 + $0xc] sm:$0xe]
        %v1191 = vld [vmem:[%s195 + $0x18] sm:$0xe]
        %v1192 = vld [vmem:[%s195 + $0x24] sm:$0xe]
        %v1193 = vld [vmem:[%s195 + $0x30] sm:$0xe]
        %v1194 = vld [vmem:[%s195 + $0x3c] sm:$0xe]
        %v1195 = vld [vmem:[%s195 + $0x48] sm:$0xe]
        %v1196 = vld [vmem:[%s195 + $0x54] sm:$0xe]
        %v1197 = vld [vmem:[%s195 + $0x60] sm:$0xe]
        %v1198 = vld [vmem:[%s195 + $0x6c] sm:$0xe]
        %v1199 = vld [vmem:[%s195 + $0x78] sm:$0xe]
        %v1200 = vld [vmem:[%s195 + $0x84] sm:$0xe]
        %v1201 = vld [vmem:[%s195 + $0x90] sm:$0xe]
        %v1202 = vld [vmem:[%s195 + $0x9c] sm:$0xe]
        %v1203 = vld [vmem:[%s195 + $0xa8] sm:$0xe]
        %v1204 = vld [vmem:[%s195 + $0xb4] sm:$0xe]
        %vm1237 = vcmask 1042432
        %vm1238 = vcmask 1046532
        %vm1239 = vmor %vm1237, %vm1238
        %v1240 = vrot.slane %v1189, 5
        %v1241 = vrot.slane %v1240, 4
        %v1242 = vrot.slane %v198, 5
        %v1243 = vsel %vm1239, %v1241, %v1242
        %v1244 = vrot.slane %v1242, 4
        %v1245 = vrot.slane %v230, 5
        %v1246 = vsel %vm1239, %v1244, %v1245
        %v1247 = vrot.slane %v1190, 5
        %v1248 = vrot.slane %v1247, 4
        %v1249 = vrot.slane %v200, 5
        %v1250 = vsel %vm1239, %v1248, %v1249
        %v1251 = vrot.slane %v1249, 4
        %v1252 = vrot.slane %v231, 5
        %v1253 = vsel %vm1239, %v1251, %v1252
        %v1254 = vrot.slane %v1191, 5
        %v1255 = vrot.slane %v1254, 4
        %v1256 = vrot.slane %v202, 5
        %v1257 = vsel %vm1239, %v1255, %v1256
        %v1258 = vrot.slane %v1256, 4
        %v1259 = vrot.slane %v232, 5
        %v1260 = vsel %vm1239, %v1258, %v1259
        %v1261 = vrot.slane %v1192, 5
        %v1262 = vrot.slane %v1261, 4
        %v1263 = vrot.slane %v204, 5
        %v1264 = vsel %vm1239, %v1262, %v1263
        %v1265 = vrot.slane %v1263, 4
        %v1266 = vrot.slane %v233, 5
        %v1267 = vsel %vm1239, %v1265, %v1266
        %v1268 = vrot.slane %v1193, 5
        %v1269 = vrot.slane %v1268, 4
        %v1270 = vrot.slane %v206, 5
        %v1271 = vsel %vm1239, %v1269, %v1270
        %v1272 = vrot.slane %v1270, 4
        %v1273 = vrot.slane %v234, 5
        %v1274 = vsel %vm1239, %v1272, %v1273
        %v1275 = vrot.slane %v1194, 5
        %v1276 = vrot.slane %v1275, 4
        %v1277 = vrot.slane %v208, 5
        %v1278 = vsel %vm1239, %v1276, %v1277
        %v1279 = vrot.slane %v1277, 4
        %v1280 = vrot.slane %v235, 5
        %v1281 = vsel %vm1239, %v1279, %v1280
        %v1282 = vrot.slane %v1195, 5
        %v1283 = vrot.slane %v1282, 4
        %v1284 = vrot.slane %v210, 5
        %v1285 = vsel %vm1239, %v1283, %v1284
        %v1286 = vrot.slane %v1284, 4
        %v1287 = vrot.slane %v236, 5
        %v1288 = vsel %vm1239, %v1286, %v1287
        %v1289 = vrot.slane %v1196, 5
        %v1290 = vrot.slane %v1289, 4
        %v1291 = vrot.slane %v212, 5
        %v1292 = vsel %vm1239, %v1290, %v1291
        %v1293 = vrot.slane %v1291, 4
        %v1294 = vrot.slane %v237, 5
        %v1295 = vsel %vm1239, %v1293, %v1294
        %v1296 = vrot.slane %v1197, 5
        %v1297 = vrot.slane %v1296, 4
        %v1298 = vrot.slane %v214, 5
        %v1299 = vsel %vm1239, %v1297, %v1298
        %v1300 = vrot.slane %v1298, 4
        %v1301 = vrot.slane %v238, 5
        %v1302 = vsel %vm1239, %v1300, %v1301
        %v1303 = vrot.slane %v1198, 5
        %v1304 = vrot.slane %v1303, 4
        %v1305 = vrot.slane %v216, 5
        %v1306 = vsel %vm1239, %v1304, %v1305
        %v1307 = vrot.slane %v1305, 4
        %v1308 = vrot.slane %v239, 5
        %v1309 = vsel %vm1239, %v1307, %v1308
        %v1310 = vrot.slane %v1199, 5
        %v1311 = vrot.slane %v1310, 4
        %v1312 = vrot.slane %v218, 5
        %v1313 = vsel %vm1239, %v1311, %v1312
        %v1314 = vrot.slane %v1312, 4
        %v1315 = vrot.slane %v240, 5
        %v1316 = vsel %vm1239, %v1314, %v1315
        %v1317 = vrot.slane %v1200, 5
        %v1318 = vrot.slane %v1317, 4
        %v1319 = vrot.slane %v220, 5
        %v1320 = vsel %vm1239, %v1318, %v1319
        %v1321 = vrot.slane %v1319, 4
        %v1322 = vrot.slane %v241, 5
        %v1323 = vsel %vm1239, %v1321, %v1322
        %v1324 = vrot.slane %v1201, 5
        %v1325 = vrot.slane %v1324, 4
        %v1326 = vrot.slane %v222, 5
        %v1327 = vsel %vm1239, %v1325, %v1326
        %v1328 = vrot.slane %v1326, 4
        %v1329 = vrot.slane %v242, 5
        %v1330 = vsel %vm1239, %v1328, %v1329
        %v1331 = vrot.slane %v1202, 5
        %v1332 = vrot.slane %v1331, 4
        %v1333 = vrot.slane %v224, 5
        %v1334 = vsel %vm1239, %v1332, %v1333
        %v1335 = vrot.slane %v1333, 4
        %v1336 = vrot.slane %v243, 5
        %v1337 = vsel %vm1239, %v1335, %v1336
        %v1338 = vrot.slane %v1203, 5
        %v1339 = vrot.slane %v1338, 4
        %v1340 = vrot.slane %v226, 5
        %v1341 = vsel %vm1239, %v1339, %v1340
        %v1342 = vrot.slane %v1340, 4
        %v1343 = vrot.slane %v244, 5
        %v1344 = vsel %vm1239, %v1342, %v1343
        %v1345 = vrot.slane %v1204, 5
        %v1346 = vrot.slane %v1345, 4
        %v1347 = vrot.slane %v228, 5
        %v1348 = vsel %vm1239, %v1346, %v1347
        %v1349 = vrot.slane %v1347, 4
        %v1350 = vrot.slane %v245, 5
        %v1351 = vsel %vm1239, %v1349, %v1350
        %s1352 = scalar_lea.vmem %s1, 4
        %v1353 = vld [vmem:[%s1352] sm:$0x3]
        %v1354 = vunpack.c.l.b16 %v1243
        %v1355 = vunpack.c.l.b16 %v1246
        %v1356 = vunpack.c.l.b16 %v1250
        %v1357 = vunpack.c.l.b16 %v1253
        %v1358 = vunpack.c.l.b16 %v1257
        %v1359 = vunpack.c.l.b16 %v1260
        %v1360 = vunpack.c.l.b16 %v1264
        %v1361 = vunpack.c.l.b16 %v1267
        %v1362 = vunpack.c.l.b16 %v1271
        %v1363 = vunpack.c.l.b16 %v1274
        %v1364 = vunpack.c.l.b16 %v1278
        %v1365 = vunpack.c.l.b16 %v1281
        %v1366 = vunpack.c.l.b16 %v1285
        %v1367 = vunpack.c.l.b16 %v1288
        %v1368 = vunpack.c.l.b16 %v1292
        %v1369 = vunpack.c.l.b16 %v1295
        %v1370 = vunpack.c.l.b16 %v1299
        %v1371 = vunpack.c.l.b16 %v1302
        %v1372 = vunpack.c.l.b16 %v1306
        %v1373 = vunpack.c.l.b16 %v1309
        %v1374 = vunpack.c.l.b16 %v1313
        %v1375 = vunpack.c.l.b16 %v1316
        %v1376 = vunpack.c.l.b16 %v1320
        %v1377 = vunpack.c.l.b16 %v1323
        %v1378 = vunpack.c.l.b16 %v1327
        %v1379 = vunpack.c.l.b16 %v1330
        %v1380 = vunpack.c.l.b16 %v1334
        %v1381 = vunpack.c.l.b16 %v1337
        %v1382 = vunpack.c.l.b16 %v1341
        %v1383 = vunpack.c.l.b16 %v1344
        %v1384 = vunpack.c.l.b16 %v1348
        %v1385 = vunpack.c.l.b16 %v1351
        %v1386 = vpack.c.b16 %v1355, %v1354
        %v1387 = vpack.c.b16 %v1357, %v1356
        %v1388 = vpack.c.b16 %v1359, %v1358
        %v1389 = vpack.c.b16 %v1361, %v1360
        %v1390 = vpack.c.b16 %v1363, %v1362
        %v1391 = vpack.c.b16 %v1365, %v1364
        %v1392 = vpack.c.b16 %v1367, %v1366
        %v1393 = vpack.c.b16 %v1369, %v1368
        %v1394 = vpack.c.b16 %v1371, %v1370
        %v1395 = vpack.c.b16 %v1373, %v1372
        %v1396 = vpack.c.b16 %v1375, %v1374
        %v1397 = vpack.c.b16 %v1377, %v1376
        %v1398 = vpack.c.b16 %v1379, %v1378
        %v1399 = vpack.c.b16 %v1381, %v1380
        %v1400 = vpack.c.b16 %v1383, %v1382
        %v1401 = vpack.c.b16 %v1385, %v1384
        %v1403 = vsel %vm683, %v1386, 0
        %v1406 = vsel %vm683, %v1387, 0
        %v1409 = vsel %vm683, %v1388, 0
        %v1412 = vsel %vm683, %v1389, 0
        %v1415 = vsel %vm683, %v1390, 0
        %v1418 = vsel %vm683, %v1391, 0
        %v1421 = vsel %vm683, %v1392, 0
        %v1424 = vsel %vm683, %v1393, 0
        %v1427 = vsel %vm683, %v1394, 0
        %v1430 = vsel %vm683, %v1395, 0
        %v1433 = vsel %vm683, %v1396, 0
        %v1436 = vsel %vm683, %v1397, 0
        %v1439 = vsel %vm683, %v1398, 0
        %v1442 = vsel %vm683, %v1399, 0
        %v1445 = vsel %vm683, %v1400, 0
        %v1448 = vsel %vm683, %v1401, 0
        %v1451 = vsel %vm732, %v1353, 0
        %1453 = vmatprep.subr.bf16.mxu0 0
        %1454 = vmatpush1.bf16.msra.mxu0 0
        %1455 = vmatprep.subr.bf16.mxu0 0
        %1456 = vmatpush1.bf16.msra.mxu0 0
        %1457 = vmatprep.subr.bf16.mxu0 0
        %1458 = vmatpush1.bf16.msra.mxu0 0
        %1459 = vmatprep.subr.bf16.mxu0 0
        %1460 = vmatpush1.bf16.msra.mxu0 0
        %1461 = vmatprep.subr.bf16.mxu0 0
        %1462 = vmatpush1.bf16.msra.mxu0 0
        %1463 = vmatprep.subr.bf16.mxu0 0
        %1464 = vmatpush1.bf16.msra.mxu0 0
        %1465 = vmatprep.subr.bf16.mxu0 0
        %1466 = vmatpush1.bf16.msra.mxu0 0
        %1467 = vmatprep.subr.bf16.mxu0 0
        %1468 = vmatpush1.bf16.msra.mxu0 %v1451
        %1469 = vmatprep.subr.bf16.mxu0 0
        %1470 = vmatpush2.bf16.msra.mxu0 0
        %1471 = vmatprep.subr.bf16.mxu0 0
        %1472 = vmatpush2.bf16.msra.mxu0 0
        %1473 = vmatprep.subr.bf16.mxu0 0
        %1474 = vmatpush2.bf16.msra.mxu0 0
        %1475 = vmatprep.subr.bf16.mxu0 0
        %1476 = vmatpush2.bf16.msra.mxu0 0
        %1477 = vmatprep.subr.bf16.mxu0 0
        %1478 = vmatpush2.bf16.msra.mxu0 0
        %1479 = vmatprep.subr.bf16.mxu0 0
        %1480 = vmatpush2.bf16.msra.mxu0 0
        %1481 = vmatprep.subr.bf16.mxu0 0
        %1482 = vmatpush2.bf16.msra.mxu0 0
        %1483 = vmatprep.subr.bf16.mxu0 0
        %1484 = vmatpush2.bf16.msra.mxu0 0
        %1485 = vmatprep.mubr.bf16.mxu0 0
        %1486 = vmatmul.mubr.bf16.gmra.mxu0 %v1403
        %v1487 = vpop.f32.mrf.mxu0
        %v1488 = vadd.f32 0.0, %v1487
        %v1489 = vpop.f32.mrf.mxu0
        %v1490 = vpop.f32.mrf.mxu0
        %v1491 = vadd.f32 0.0, %v1490
        %v1492 = vpop.f32.mrf.mxu0
        %1493 = vmatprep.mubr.bf16.mxu0 0
        %1494 = vmatmul.mubr.bf16.gmra.mxu0 %v1406
        %v1495 = vpop.f32.mrf.mxu0
        %v1496 = vadd.f32 0.0, %v1495
        %v1497 = vpop.f32.mrf.mxu0
        %v1498 = vpop.f32.mrf.mxu0
        %v1499 = vadd.f32 0.0, %v1498
        %v1500 = vpop.f32.mrf.mxu0
        %1501 = vmatprep.mubr.bf16.mxu0 0
        %1502 = vmatmul.mubr.bf16.gmra.mxu0 %v1409
        %v1503 = vpop.f32.mrf.mxu0
        %v1504 = vadd.f32 0.0, %v1503
        %v1505 = vpop.f32.mrf.mxu0
        %v1506 = vpop.f32.mrf.mxu0
        %v1507 = vadd.f32 0.0, %v1506
        %v1508 = vpop.f32.mrf.mxu0
        %1509 = vmatprep.mubr.bf16.mxu0 0
        %1510 = vmatmul.mubr.bf16.gmra.mxu0 %v1412
        %v1511 = vpop.f32.mrf.mxu0
        %v1512 = vadd.f32 0.0, %v1511
        %v1513 = vpop.f32.mrf.mxu0
        %v1514 = vpop.f32.mrf.mxu0
        %v1515 = vadd.f32 0.0, %v1514
        %v1516 = vpop.f32.mrf.mxu0
        %1517 = vmatprep.mubr.bf16.mxu0 0
        %1518 = vmatmul.mubr.bf16.gmra.mxu0 %v1415
        %v1519 = vpop.f32.mrf.mxu0
        %v1520 = vadd.f32 0.0, %v1519
        %v1521 = vpop.f32.mrf.mxu0
        %v1522 = vpop.f32.mrf.mxu0
        %v1523 = vadd.f32 0.0, %v1522
        %v1524 = vpop.f32.mrf.mxu0
        %1525 = vmatprep.mubr.bf16.mxu0 0
        %1526 = vmatmul.mubr.bf16.gmra.mxu0 %v1418
        %v1527 = vpop.f32.mrf.mxu0
        %v1528 = vadd.f32 0.0, %v1527
        %v1529 = vpop.f32.mrf.mxu0
        %v1530 = vpop.f32.mrf.mxu0
        %v1531 = vadd.f32 0.0, %v1530
        %v1532 = vpop.f32.mrf.mxu0
        %1533 = vmatprep.mubr.bf16.mxu0 0
        %1534 = vmatmul.mubr.bf16.gmra.mxu0 %v1421
        %v1535 = vpop.f32.mrf.mxu0
        %v1536 = vadd.f32 0.0, %v1535
        %v1537 = vpop.f32.mrf.mxu0
        %v1538 = vpop.f32.mrf.mxu0
        %v1539 = vadd.f32 0.0, %v1538
        %v1540 = vpop.f32.mrf.mxu0
        %1541 = vmatprep.mubr.bf16.mxu0 0
        %1542 = vmatmul.mubr.bf16.gmra.mxu0 %v1424
        %v1543 = vpop.f32.mrf.mxu0
        %v1544 = vadd.f32 0.0, %v1543
        %v1545 = vpop.f32.mrf.mxu0
        %v1546 = vpop.f32.mrf.mxu0
        %v1547 = vadd.f32 0.0, %v1546
        %v1548 = vpop.f32.mrf.mxu0
        %1549 = vmatprep.mubr.bf16.mxu0 0
        %1550 = vmatmul.mubr.bf16.gmra.mxu0 %v1427
        %v1551 = vpop.f32.mrf.mxu0
        %v1552 = vadd.f32 0.0, %v1551
        %v1553 = vpop.f32.mrf.mxu0
        %v1554 = vpop.f32.mrf.mxu0
        %v1555 = vadd.f32 0.0, %v1554
        %v1556 = vpop.f32.mrf.mxu0
        %1557 = vmatprep.mubr.bf16.mxu0 0
        %1558 = vmatmul.mubr.bf16.gmra.mxu0 %v1430
        %v1559 = vpop.f32.mrf.mxu0
        %v1560 = vadd.f32 0.0, %v1559
        %v1561 = vpop.f32.mrf.mxu0
        %v1562 = vpop.f32.mrf.mxu0
        %v1563 = vadd.f32 0.0, %v1562
        %v1564 = vpop.f32.mrf.mxu0
        %1565 = vmatprep.mubr.bf16.mxu0 0
        %1566 = vmatmul.mubr.bf16.gmra.mxu0 %v1433
        %v1567 = vpop.f32.mrf.mxu0
        %v1568 = vadd.f32 0.0, %v1567
        %v1569 = vpop.f32.mrf.mxu0
        %v1570 = vpop.f32.mrf.mxu0
        %v1571 = vadd.f32 0.0, %v1570
        %v1572 = vpop.f32.mrf.mxu0
        %1573 = vmatprep.mubr.bf16.mxu0 0
        %1574 = vmatmul.mubr.bf16.gmra.mxu0 %v1436
        %v1575 = vpop.f32.mrf.mxu0
        %v1576 = vadd.f32 0.0, %v1575
        %v1577 = vpop.f32.mrf.mxu0
        %v1578 = vpop.f32.mrf.mxu0
        %v1579 = vadd.f32 0.0, %v1578
        %v1580 = vpop.f32.mrf.mxu0
        %1581 = vmatprep.mubr.bf16.mxu0 0
        %1582 = vmatmul.mubr.bf16.gmra.mxu0 %v1439
        %v1583 = vpop.f32.mrf.mxu0
        %v1584 = vadd.f32 0.0, %v1583
        %v1585 = vpop.f32.mrf.mxu0
        %v1586 = vpop.f32.mrf.mxu0
        %v1587 = vadd.f32 0.0, %v1586
        %v1588 = vpop.f32.mrf.mxu0
        %1589 = vmatprep.mubr.bf16.mxu0 0
        %1590 = vmatmul.mubr.bf16.gmra.mxu0 %v1442
        %v1591 = vpop.f32.mrf.mxu0
        %v1592 = vadd.f32 0.0, %v1591
        %v1593 = vpop.f32.mrf.mxu0
        %v1594 = vpop.f32.mrf.mxu0
        %v1595 = vadd.f32 0.0, %v1594
        %v1596 = vpop.f32.mrf.mxu0
        %1597 = vmatprep.mubr.bf16.mxu0 0
        %1598 = vmatmul.mubr.bf16.gmra.mxu0 %v1445
        %v1599 = vpop.f32.mrf.mxu0
        %v1600 = vadd.f32 0.0, %v1599
        %v1601 = vpop.f32.mrf.mxu0
        %v1602 = vpop.f32.mrf.mxu0
        %v1603 = vadd.f32 0.0, %v1602
        %v1604 = vpop.f32.mrf.mxu0
        %1605 = vmatprep.mubr.bf16.mxu0 0
        %1606 = vmatmul.mubr.bf16.gmra.mxu0 %v1448
        %v1607 = vpop.f32.mrf.mxu0
        %v1608 = vadd.f32 0.0, %v1607
        %v1609 = vpop.f32.mrf.mxu0
        %v1610 = vpop.f32.mrf.mxu0
        %v1611 = vadd.f32 0.0, %v1610
        %v1612 = vpop.f32.mrf.mxu0
        %1613 = vdwg.mxu0
        %v1614 = vadd.f32 %v1063, %v1488
        %v1615 = vadd.f32 %v1066, %v1491
        %v1616 = vadd.f32 %v1071, %v1496
        %v1617 = vadd.f32 %v1074, %v1499
        %v1618 = vadd.f32 %v1079, %v1504
        %v1619 = vadd.f32 %v1082, %v1507
        %v1620 = vadd.f32 %v1087, %v1512
        %v1621 = vadd.f32 %v1090, %v1515
        %v1622 = vadd.f32 %v1095, %v1520
        %v1623 = vadd.f32 %v1098, %v1523
        %v1624 = vadd.f32 %v1103, %v1528
        %v1625 = vadd.f32 %v1106, %v1531
        %v1626 = vadd.f32 %v1111, %v1536
        %v1627 = vadd.f32 %v1114, %v1539
        %v1628 = vadd.f32 %v1119, %v1544
        %v1629 = vadd.f32 %v1122, %v1547
        %v1630 = vadd.f32 %v1127, %v1552
        %v1631 = vadd.f32 %v1130, %v1555
        %v1632 = vadd.f32 %v1135, %v1560
        %v1633 = vadd.f32 %v1138, %v1563
        %v1634 = vadd.f32 %v1143, %v1568
        %v1635 = vadd.f32 %v1146, %v1571
        %v1636 = vadd.f32 %v1151, %v1576
        %v1637 = vadd.f32 %v1154, %v1579
        %v1638 = vadd.f32 %v1159, %v1584
        %v1639 = vadd.f32 %v1162, %v1587
        %v1640 = vadd.f32 %v1167, %v1592
        %v1641 = vadd.f32 %v1170, %v1595
        %v1642 = vadd.f32 %v1175, %v1600
        %v1643 = vadd.f32 %v1178, %v1603
        %v1644 = vadd.f32 %v1183, %v1608
        %v1645 = vadd.f32 %v1186, %v1611
        %s1646 = scalar_lea.vmem %s195, 12
        %v1647 = vld [vmem:[%s1646] sm:$0xf]
        %v1648 = vld [vmem:[%s1646 + $0x4] sm:$0xf]
        %v1649 = vld [vmem:[%s1646 + $0xc] sm:$0xf]
        %v1650 = vld [vmem:[%s1646 + $0x10] sm:$0xf]
        %v1651 = vld [vmem:[%s1646 + $0x18] sm:$0xf]
        %v1652 = vld [vmem:[%s1646 + $0x1c] sm:$0xf]
        %v1653 = vld [vmem:[%s1646 + $0x24] sm:$0xf]
        %v1654 = vld [vmem:[%s1646 + $0x28] sm:$0xf]
        %v1655 = vld [vmem:[%s1646 + $0x30] sm:$0xf]
        %v1656 = vld [vmem:[%s1646 + $0x34] sm:$0xf]
        %v1657 = vld [vmem:[%s1646 + $0x3c] sm:$0xf]
        %v1658 = vld [vmem:[%s1646 + $0x40] sm:$0xf]
        %v1659 = vld [vmem:[%s1646 + $0x48] sm:$0xf]
        %v1660 = vld [vmem:[%s1646 + $0x4c] sm:$0xf]
        %v1661 = vld [vmem:[%s1646 + $0x54] sm:$0xf]
        %v1662 = vld [vmem:[%s1646 + $0x58] sm:$0xf]
        %v1663 = vld [vmem:[%s1646 + $0x60] sm:$0xf]
        %v1664 = vld [vmem:[%s1646 + $0x64] sm:$0xf]
        %v1665 = vld [vmem:[%s1646 + $0x6c] sm:$0xf]
        %v1666 = vld [vmem:[%s1646 + $0x70] sm:$0xf]
        %v1667 = vld [vmem:[%s1646 + $0x78] sm:$0xf]
        %v1668 = vld [vmem:[%s1646 + $0x7c] sm:$0xf]
        %v1669 = vld [vmem:[%s1646 + $0x84] sm:$0xf]
        %v1670 = vld [vmem:[%s1646 + $0x88] sm:$0xf]
        %v1671 = vld [vmem:[%s1646 + $0x90] sm:$0xf]
        %v1672 = vld [vmem:[%s1646 + $0x94] sm:$0xf]
        %v1673 = vld [vmem:[%s1646 + $0x9c] sm:$0xf]
        %v1674 = vld [vmem:[%s1646 + $0xa0] sm:$0xf]
        %v1675 = vld [vmem:[%s1646 + $0xa8] sm:$0xf]
        %v1676 = vld [vmem:[%s1646 + $0xac] sm:$0xf]
        %v1677 = vld [vmem:[%s1646 + $0xb4] sm:$0xf]
        %v1678 = vld [vmem:[%s1646 + $0xb8] sm:$0xf]
        %s1679 = scalar_lea.vmem %s1, 6
        %v1680 = vld [vmem:[%s1679] sm:$0x3]
        %v1713 = vunpack.c.l.b16 %v1647
        %v1714 = vunpack.c.l.b16 %v1648
        %v1715 = vunpack.c.l.b16 %v1649
        %v1716 = vunpack.c.l.b16 %v1650
        %v1717 = vunpack.c.l.b16 %v1651
        %v1718 = vunpack.c.l.b16 %v1652
        %v1719 = vunpack.c.l.b16 %v1653
        %v1720 = vunpack.c.l.b16 %v1654
        %v1721 = vunpack.c.l.b16 %v1655
        %v1722 = vunpack.c.l.b16 %v1656
        %v1723 = vunpack.c.l.b16 %v1657
        %v1724 = vunpack.c.l.b16 %v1658
        %v1725 = vunpack.c.l.b16 %v1659
        %v1726 = vunpack.c.l.b16 %v1660
        %v1727 = vunpack.c.l.b16 %v1661
        %v1728 = vunpack.c.l.b16 %v1662
        %v1729 = vunpack.c.l.b16 %v1663
        %v1730 = vunpack.c.l.b16 %v1664
        %v1731 = vunpack.c.l.b16 %v1665
        %v1732 = vunpack.c.l.b16 %v1666
        %v1733 = vunpack.c.l.b16 %v1667
        %v1734 = vunpack.c.l.b16 %v1668
        %v1735 = vunpack.c.l.b16 %v1669
        %v1736 = vunpack.c.l.b16 %v1670
        %v1737 = vunpack.c.l.b16 %v1671
        %v1738 = vunpack.c.l.b16 %v1672
        %v1739 = vunpack.c.l.b16 %v1673
        %v1740 = vunpack.c.l.b16 %v1674
        %v1741 = vunpack.c.l.b16 %v1675
        %v1742 = vunpack.c.l.b16 %v1676
        %v1743 = vunpack.c.l.b16 %v1677
        %v1744 = vunpack.c.l.b16 %v1678
        %v1745 = vpack.c.b16 %v1714, %v1713
        %v1746 = vpack.c.b16 %v1716, %v1715
        %v1747 = vpack.c.b16 %v1718, %v1717
        %v1748 = vpack.c.b16 %v1720, %v1719
        %v1749 = vpack.c.b16 %v1722, %v1721
        %v1750 = vpack.c.b16 %v1724, %v1723
        %v1751 = vpack.c.b16 %v1726, %v1725
        %v1752 = vpack.c.b16 %v1728, %v1727
        %v1753 = vpack.c.b16 %v1730, %v1729
        %v1754 = vpack.c.b16 %v1732, %v1731
        %v1755 = vpack.c.b16 %v1734, %v1733
        %v1756 = vpack.c.b16 %v1736, %v1735
        %v1757 = vpack.c.b16 %v1738, %v1737
        %v1758 = vpack.c.b16 %v1740, %v1739
        %v1759 = vpack.c.b16 %v1742, %v1741
        %v1760 = vpack.c.b16 %v1744, %v1743
        %v1762 = vsel %vm683, %v1745, 0
        %v1765 = vsel %vm683, %v1746, 0
        %v1768 = vsel %vm683, %v1747, 0
        %v1771 = vsel %vm683, %v1748, 0
        %v1774 = vsel %vm683, %v1749, 0
        %v1777 = vsel %vm683, %v1750, 0
        %v1780 = vsel %vm683, %v1751, 0
        %v1783 = vsel %vm683, %v1752, 0
        %v1786 = vsel %vm683, %v1753, 0
        %v1789 = vsel %vm683, %v1754, 0
        %v1792 = vsel %vm683, %v1755, 0
        %v1795 = vsel %vm683, %v1756, 0
        %v1798 = vsel %vm683, %v1757, 0
        %v1801 = vsel %vm683, %v1758, 0
        %v1804 = vsel %vm683, %v1759, 0
        %v1807 = vsel %vm683, %v1760, 0
        %v1810 = vsel %vm732, %v1680, 0
        %1812 = vmatprep.subr.bf16.mxu0 0
        %1813 = vmatpush1.bf16.msra.mxu0 0
        %1814 = vmatprep.subr.bf16.mxu0 0
        %1815 = vmatpush1.bf16.msra.mxu0 0
        %1816 = vmatprep.subr.bf16.mxu0 0
        %1817 = vmatpush1.bf16.msra.mxu0 0
        %1818 = vmatprep.subr.bf16.mxu0 0
        %1819 = vmatpush1.bf16.msra.mxu0 0
        %1820 = vmatprep.subr.bf16.mxu0 0
        %1821 = vmatpush1.bf16.msra.mxu0 0
        %1822 = vmatprep.subr.bf16.mxu0 0
        %1823 = vmatpush1.bf16.msra.mxu0 0
        %1824 = vmatprep.subr.bf16.mxu0 0
        %1825 = vmatpush1.bf16.msra.mxu0 0
        %1826 = vmatprep.subr.bf16.mxu0 0
        %1827 = vmatpush1.bf16.msra.mxu0 %v1810
        %1828 = vmatprep.subr.bf16.mxu0 0
        %1829 = vmatpush2.bf16.msra.mxu0 0
        %1830 = vmatprep.subr.bf16.mxu0 0
        %1831 = vmatpush2.bf16.msra.mxu0 0
        %1832 = vmatprep.subr.bf16.mxu0 0
        %1833 = vmatpush2.bf16.msra.mxu0 0
        %1834 = vmatprep.subr.bf16.mxu0 0
        %1835 = vmatpush2.bf16.msra.mxu0 0
        %1836 = vmatprep.subr.bf16.mxu0 0
        %1837 = vmatpush2.bf16.msra.mxu0 0
        %1838 = vmatprep.subr.bf16.mxu0 0
        %1839 = vmatpush2.bf16.msra.mxu0 0
        %1840 = vmatprep.subr.bf16.mxu0 0
        %1841 = vmatpush2.bf16.msra.mxu0 0
        %1842 = vmatprep.subr.bf16.mxu0 0
        %1843 = vmatpush2.bf16.msra.mxu0 0
        %1844 = vmatprep.mubr.bf16.mxu0 0
        %1845 = vmatmul.mubr.bf16.gmra.mxu0 %v1762
        %v1846 = vpop.f32.mrf.mxu0
        %v1847 = vadd.f32 0.0, %v1846
        %v1848 = vpop.f32.mrf.mxu0
        %v1849 = vpop.f32.mrf.mxu0
        %v1850 = vadd.f32 0.0, %v1849
        %v1851 = vpop.f32.mrf.mxu0
        %1852 = vmatprep.mubr.bf16.mxu0 0
        %1853 = vmatmul.mubr.bf16.gmra.mxu0 %v1765
        %v1854 = vpop.f32.mrf.mxu0
        %v1855 = vadd.f32 0.0, %v1854
        %v1856 = vpop.f32.mrf.mxu0
        %v1857 = vpop.f32.mrf.mxu0
        %v1858 = vadd.f32 0.0, %v1857
        %v1859 = vpop.f32.mrf.mxu0
        %1860 = vmatprep.mubr.bf16.mxu0 0
        %1861 = vmatmul.mubr.bf16.gmra.mxu0 %v1768
        %v1862 = vpop.f32.mrf.mxu0
        %v1863 = vadd.f32 0.0, %v1862
        %v1864 = vpop.f32.mrf.mxu0
        %v1865 = vpop.f32.mrf.mxu0
        %v1866 = vadd.f32 0.0, %v1865
        %v1867 = vpop.f32.mrf.mxu0
        %1868 = vmatprep.mubr.bf16.mxu0 0
        %1869 = vmatmul.mubr.bf16.gmra.mxu0 %v1771
        %v1870 = vpop.f32.mrf.mxu0
        %v1871 = vadd.f32 0.0, %v1870
        %v1872 = vpop.f32.mrf.mxu0
        %v1873 = vpop.f32.mrf.mxu0
        %v1874 = vadd.f32 0.0, %v1873
        %v1875 = vpop.f32.mrf.mxu0
        %1876 = vmatprep.mubr.bf16.mxu0 0
        %1877 = vmatmul.mubr.bf16.gmra.mxu0 %v1774
        %v1878 = vpop.f32.mrf.mxu0
        %v1879 = vadd.f32 0.0, %v1878
        %v1880 = vpop.f32.mrf.mxu0
        %v1881 = vpop.f32.mrf.mxu0
        %v1882 = vadd.f32 0.0, %v1881
        %v1883 = vpop.f32.mrf.mxu0
        %1884 = vmatprep.mubr.bf16.mxu0 0
        %1885 = vmatmul.mubr.bf16.gmra.mxu0 %v1777
        %v1886 = vpop.f32.mrf.mxu0
        %v1887 = vadd.f32 0.0, %v1886
        %v1888 = vpop.f32.mrf.mxu0
        %v1889 = vpop.f32.mrf.mxu0
        %v1890 = vadd.f32 0.0, %v1889
        %v1891 = vpop.f32.mrf.mxu0
        %1892 = vmatprep.mubr.bf16.mxu0 0
        %1893 = vmatmul.mubr.bf16.gmra.mxu0 %v1780
        %v1894 = vpop.f32.mrf.mxu0
        %v1895 = vadd.f32 0.0, %v1894
        %v1896 = vpop.f32.mrf.mxu0
        %v1897 = vpop.f32.mrf.mxu0
        %v1898 = vadd.f32 0.0, %v1897
        %v1899 = vpop.f32.mrf.mxu0
        %1900 = vmatprep.mubr.bf16.mxu0 0
        %1901 = vmatmul.mubr.bf16.gmra.mxu0 %v1783
        %v1902 = vpop.f32.mrf.mxu0
        %v1903 = vadd.f32 0.0, %v1902
        %v1904 = vpop.f32.mrf.mxu0
        %v1905 = vpop.f32.mrf.mxu0
        %v1906 = vadd.f32 0.0, %v1905
        %v1907 = vpop.f32.mrf.mxu0
        %1908 = vmatprep.mubr.bf16.mxu0 0
        %1909 = vmatmul.mubr.bf16.gmra.mxu0 %v1786
        %v1910 = vpop.f32.mrf.mxu0
        %v1911 = vadd.f32 0.0, %v1910
        %v1912 = vpop.f32.mrf.mxu0
        %v1913 = vpop.f32.mrf.mxu0
        %v1914 = vadd.f32 0.0, %v1913
        %v1915 = vpop.f32.mrf.mxu0
        %1916 = vmatprep.mubr.bf16.mxu0 0
        %1917 = vmatmul.mubr.bf16.gmra.mxu0 %v1789
        %v1918 = vpop.f32.mrf.mxu0
        %v1919 = vadd.f32 0.0, %v1918
        %v1920 = vpop.f32.mrf.mxu0
        %v1921 = vpop.f32.mrf.mxu0
        %v1922 = vadd.f32 0.0, %v1921
        %v1923 = vpop.f32.mrf.mxu0
        %1924 = vmatprep.mubr.bf16.mxu0 0
        %1925 = vmatmul.mubr.bf16.gmra.mxu0 %v1792
        %v1926 = vpop.f32.mrf.mxu0
        %v1927 = vadd.f32 0.0, %v1926
        %v1928 = vpop.f32.mrf.mxu0
        %v1929 = vpop.f32.mrf.mxu0
        %v1930 = vadd.f32 0.0, %v1929
        %v1931 = vpop.f32.mrf.mxu0
        %1932 = vmatprep.mubr.bf16.mxu0 0
        %1933 = vmatmul.mubr.bf16.gmra.mxu0 %v1795
        %v1934 = vpop.f32.mrf.mxu0
        %v1935 = vadd.f32 0.0, %v1934
        %v1936 = vpop.f32.mrf.mxu0
        %v1937 = vpop.f32.mrf.mxu0
        %v1938 = vadd.f32 0.0, %v1937
        %v1939 = vpop.f32.mrf.mxu0
        %1940 = vmatprep.mubr.bf16.mxu0 0
        %1941 = vmatmul.mubr.bf16.gmra.mxu0 %v1798
        %v1942 = vpop.f32.mrf.mxu0
        %v1943 = vadd.f32 0.0, %v1942
        %v1944 = vpop.f32.mrf.mxu0
        %v1945 = vpop.f32.mrf.mxu0
        %v1946 = vadd.f32 0.0, %v1945
        %v1947 = vpop.f32.mrf.mxu0
        %1948 = vmatprep.mubr.bf16.mxu0 0
        %1949 = vmatmul.mubr.bf16.gmra.mxu0 %v1801
        %v1950 = vpop.f32.mrf.mxu0
        %v1951 = vadd.f32 0.0, %v1950
        %v1952 = vpop.f32.mrf.mxu0
        %v1953 = vpop.f32.mrf.mxu0
        %v1954 = vadd.f32 0.0, %v1953
        %v1955 = vpop.f32.mrf.mxu0
        %1956 = vmatprep.mubr.bf16.mxu0 0
        %1957 = vmatmul.mubr.bf16.gmra.mxu0 %v1804
        %v1958 = vpop.f32.mrf.mxu0
        %v1959 = vadd.f32 0.0, %v1958
        %v1960 = vpop.f32.mrf.mxu0
        %v1961 = vpop.f32.mrf.mxu0
        %v1962 = vadd.f32 0.0, %v1961
        %v1963 = vpop.f32.mrf.mxu0
        %1964 = vmatprep.mubr.bf16.mxu0 0
        %1965 = vmatmul.mubr.bf16.gmra.mxu0 %v1807
        %v1966 = vpop.f32.mrf.mxu0
        %v1967 = vadd.f32 0.0, %v1966
        %v1968 = vpop.f32.mrf.mxu0
        %v1969 = vpop.f32.mrf.mxu0
        %v1970 = vadd.f32 0.0, %v1969
        %v1971 = vpop.f32.mrf.mxu0
        %1972 = vdwg.mxu0
        %v1973 = vadd.f32 %v1614, %v1847
        %v1974 = vadd.f32 %v1615, %v1850
        %v1975 = vadd.f32 %v1616, %v1855
        %v1976 = vadd.f32 %v1617, %v1858
        %v1977 = vadd.f32 %v1618, %v1863
        %v1978 = vadd.f32 %v1619, %v1866
        %v1979 = vadd.f32 %v1620, %v1871
        %v1980 = vadd.f32 %v1621, %v1874
        %v1981 = vadd.f32 %v1622, %v1879
        %v1982 = vadd.f32 %v1623, %v1882
        %v1983 = vadd.f32 %v1624, %v1887
        %v1984 = vadd.f32 %v1625, %v1890
        %v1985 = vadd.f32 %v1626, %v1895
        %v1986 = vadd.f32 %v1627, %v1898
        %v1987 = vadd.f32 %v1628, %v1903
        %v1988 = vadd.f32 %v1629, %v1906
        %v1989 = vadd.f32 %v1630, %v1911
        %v1990 = vadd.f32 %v1631, %v1914
        %v1991 = vadd.f32 %v1632, %v1919
        %v1992 = vadd.f32 %v1633, %v1922
        %v1993 = vadd.f32 %v1634, %v1927
        %v1994 = vadd.f32 %v1635, %v1930
        %v1995 = vadd.f32 %v1636, %v1935
        %v1996 = vadd.f32 %v1637, %v1938
        %v1997 = vadd.f32 %v1638, %v1943
        %v1998 = vadd.f32 %v1639, %v1946
        %v1999 = vadd.f32 %v1640, %v1951
        %v2000 = vadd.f32 %v1641, %v1954
        %v2001 = vadd.f32 %v1642, %v1959
        %v2002 = vadd.f32 %v1643, %v1962
        %v2003 = vadd.f32 %v1644, %v1967
        %v2004 = vadd.f32 %v1645, %v1970
        %v2005 = vld [vmem:[%s1646] sm:$0xf]
        %v2006 = vld [vmem:[%s1646 + $0x4] sm:$0xf]
        %v2007 = vld [vmem:[%s1646 + $0x8] sm:$0x1]
        %v2008 = vld [vmem:[%s1646 + $0xc] sm:$0xf]
        %v2009 = vld [vmem:[%s1646 + $0x10] sm:$0xf]
        %v2010 = vld [vmem:[%s1646 + $0x14] sm:$0x1]
        %v2011 = vld [vmem:[%s1646 + $0x18] sm:$0xf]
        %v2012 = vld [vmem:[%s1646 + $0x1c] sm:$0xf]
        %v2013 = vld [vmem:[%s1646 + $0x20] sm:$0x1]
        %v2014 = vld [vmem:[%s1646 + $0x24] sm:$0xf]
        %v2015 = vld [vmem:[%s1646 + $0x28] sm:$0xf]
        %v2016 = vld [vmem:[%s1646 + $0x2c] sm:$0x1]
        %v2017 = vld [vmem:[%s1646 + $0x30] sm:$0xf]
        %v2018 = vld [vmem:[%s1646 + $0x34] sm:$0xf]
        %v2019 = vld [vmem:[%s1646 + $0x38] sm:$0x1]
        %v2020 = vld [vmem:[%s1646 + $0x3c] sm:$0xf]
        %v2021 = vld [vmem:[%s1646 + $0x40] sm:$0xf]
        %v2022 = vld [vmem:[%s1646 + $0x44] sm:$0x1]
        %v2023 = vld [vmem:[%s1646 + $0x48] sm:$0xf]
        %v2024 = vld [vmem:[%s1646 + $0x4c] sm:$0xf]
        %v2025 = vld [vmem:[%s1646 + $0x50] sm:$0x1]
        %v2026 = vld [vmem:[%s1646 + $0x54] sm:$0xf]
        %v2027 = vld [vmem:[%s1646 + $0x58] sm:$0xf]
        %v2028 = vld [vmem:[%s1646 + $0x5c] sm:$0x1]
        %v2029 = vld [vmem:[%s1646 + $0x60] sm:$0xf]
        %v2030 = vld [vmem:[%s1646 + $0x64] sm:$0xf]
        %v2031 = vld [vmem:[%s1646 + $0x68] sm:$0x1]
        %v2032 = vld [vmem:[%s1646 + $0x6c] sm:$0xf]
        %v2033 = vld [vmem:[%s1646 + $0x70] sm:$0xf]
        %v2034 = vld [vmem:[%s1646 + $0x74] sm:$0x1]
        %v2035 = vld [vmem:[%s1646 + $0x78] sm:$0xf]
        %v2036 = vld [vmem:[%s1646 + $0x7c] sm:$0xf]
        %v2037 = vld [vmem:[%s1646 + $0x80] sm:$0x1]
        %v2038 = vld [vmem:[%s1646 + $0x84] sm:$0xf]
        %v2039 = vld [vmem:[%s1646 + $0x88] sm:$0xf]
        %v2040 = vld [vmem:[%s1646 + $0x8c] sm:$0x1]
        %v2041 = vld [vmem:[%s1646 + $0x90] sm:$0xf]
        %v2042 = vld [vmem:[%s1646 + $0x94] sm:$0xf]
        %v2043 = vld [vmem:[%s1646 + $0x98] sm:$0x1]
        %v2044 = vld [vmem:[%s1646 + $0x9c] sm:$0xf]
        %v2045 = vld [vmem:[%s1646 + $0xa0] sm:$0xf]
        %v2046 = vld [vmem:[%s1646 + $0xa4] sm:$0x1]
        %v2047 = vld [vmem:[%s1646 + $0xa8] sm:$0xf]
        %v2048 = vld [vmem:[%s1646 + $0xac] sm:$0xf]
        %v2049 = vld [vmem:[%s1646 + $0xb0] sm:$0x1]
        %v2050 = vld [vmem:[%s1646 + $0xb4] sm:$0xf]
        %v2051 = vld [vmem:[%s1646 + $0xb8] sm:$0xf]
        %v2052 = vld [vmem:[%s1646 + $0xbc] sm:$0x1]
        %v2054 = vshrl.u32 %v2005, 16
        %v2056 = vrot.slane %v2054, 4
        %v2057 = vshll.u32 %v2005, 16
        %v2059 = vrot.slane %v2057, 5
        %v2060 = vor.u32 %v2056, %v2059
        %v2061 = vrot.slane %v2060, 4
        %v2063 = vshll.u32 %v2006, 16
        %v2065 = vrot.slane %v2063, 5
        %v2066 = vsel %vm248, %v2061, %v2065
        %v2067 = vshrl.u32 %v2006, 16
        %v2069 = vrot.slane %v2067, 4
        %v2070 = vor.u32 %v2069, %v2065
        %v2071 = vrot.slane %v2070, 4
        %v2073 = vshll.u32 %v2007, 16
        %v2075 = vrot.slane %v2073, 5
        %v2076 = vsel %vm248, %v2071, %v2075
        %v2078 = vshrl.u32 %v2008, 16
        %v2080 = vrot.slane %v2078, 4
        %v2081 = vshll.u32 %v2008, 16
        %v2083 = vrot.slane %v2081, 5
        %v2084 = vor.u32 %v2080, %v2083
        %v2085 = vrot.slane %v2084, 4
        %v2087 = vshll.u32 %v2009, 16
        %v2089 = vrot.slane %v2087, 5
        %v2090 = vsel %vm248, %v2085, %v2089
        %v2091 = vshrl.u32 %v2009, 16
        %v2093 = vrot.slane %v2091, 4
        %v2094 = vor.u32 %v2093, %v2089
        %v2095 = vrot.slane %v2094, 4
        %v2097 = vshll.u32 %v2010, 16
        %v2099 = vrot.slane %v2097, 5
        %v2100 = vsel %vm248, %v2095, %v2099
        %v2102 = vshrl.u32 %v2011, 16
        %v2104 = vrot.slane %v2102, 4
        %v2105 = vshll.u32 %v2011, 16
        %v2107 = vrot.slane %v2105, 5
        %v2108 = vor.u32 %v2104, %v2107
        %v2109 = vrot.slane %v2108, 4
        %v2111 = vshll.u32 %v2012, 16
        %v2113 = vrot.slane %v2111, 5
        %v2114 = vsel %vm248, %v2109, %v2113
        %v2115 = vshrl.u32 %v2012, 16
        %v2117 = vrot.slane %v2115, 4
        %v2118 = vor.u32 %v2117, %v2113
        %v2119 = vrot.slane %v2118, 4
        %v2121 = vshll.u32 %v2013, 16
        %v2123 = vrot.slane %v2121, 5
        %v2124 = vsel %vm248, %v2119, %v2123
        %v2126 = vshrl.u32 %v2014, 16
        %v2128 = vrot.slane %v2126, 4
        %v2129 = vshll.u32 %v2014, 16
        %v2131 = vrot.slane %v2129, 5
        %v2132 = vor.u32 %v2128, %v2131
        %v2133 = vrot.slane %v2132, 4
        %v2135 = vshll.u32 %v2015, 16
        %v2137 = vrot.slane %v2135, 5
        %v2138 = vsel %vm248, %v2133, %v2137
        %v2139 = vshrl.u32 %v2015, 16
        %v2141 = vrot.slane %v2139, 4
        %v2142 = vor.u32 %v2141, %v2137
        %v2143 = vrot.slane %v2142, 4
        %v2145 = vshll.u32 %v2016, 16
        %v2147 = vrot.slane %v2145, 5
        %v2148 = vsel %vm248, %v2143, %v2147
        %v2150 = vshrl.u32 %v2017, 16
        %v2152 = vrot.slane %v2150, 4
        %v2153 = vshll.u32 %v2017, 16
        %v2155 = vrot.slane %v2153, 5
        %v2156 = vor.u32 %v2152, %v2155
        %v2157 = vrot.slane %v2156, 4
        %v2159 = vshll.u32 %v2018, 16
        %v2161 = vrot.slane %v2159, 5
        %v2162 = vsel %vm248, %v2157, %v2161
        %v2163 = vshrl.u32 %v2018, 16
        %v2165 = vrot.slane %v2163, 4
        %v2166 = vor.u32 %v2165, %v2161
        %v2167 = vrot.slane %v2166, 4
        %v2169 = vshll.u32 %v2019, 16
        %v2171 = vrot.slane %v2169, 5
        %v2172 = vsel %vm248, %v2167, %v2171
        %v2174 = vshrl.u32 %v2020, 16
        %v2176 = vrot.slane %v2174, 4
        %v2177 = vshll.u32 %v2020, 16
        %v2179 = vrot.slane %v2177, 5
        %v2180 = vor.u32 %v2176, %v2179
        %v2181 = vrot.slane %v2180, 4
        %v2183 = vshll.u32 %v2021, 16
        %v2185 = vrot.slane %v2183, 5
        %v2186 = vsel %vm248, %v2181, %v2185
        %v2187 = vshrl.u32 %v2021, 16
        %v2189 = vrot.slane %v2187, 4
        %v2190 = vor.u32 %v2189, %v2185
        %v2191 = vrot.slane %v2190, 4
        %v2193 = vshll.u32 %v2022, 16
        %v2195 = vrot.slane %v2193, 5
        %v2196 = vsel %vm248, %v2191, %v2195
        %v2198 = vshrl.u32 %v2023, 16
        %v2200 = vrot.slane %v2198, 4
        %v2201 = vshll.u32 %v2023, 16
        %v2203 = vrot.slane %v2201, 5
        %v2204 = vor.u32 %v2200, %v2203
        %v2205 = vrot.slane %v2204, 4
        %v2207 = vshll.u32 %v2024, 16
        %v2209 = vrot.slane %v2207, 5
        %v2210 = vsel %vm248, %v2205, %v2209
        %v2211 = vshrl.u32 %v2024, 16
        %v2213 = vrot.slane %v2211, 4
        %v2214 = vor.u32 %v2213, %v2209
        %v2215 = vrot.slane %v2214, 4
        %v2217 = vshll.u32 %v2025, 16
        %v2219 = vrot.slane %v2217, 5
        %v2220 = vsel %vm248, %v2215, %v2219
        %v2222 = vshrl.u32 %v2026, 16
        %v2224 = vrot.slane %v2222, 4
        %v2225 = vshll.u32 %v2026, 16
        %v2227 = vrot.slane %v2225, 5
        %v2228 = vor.u32 %v2224, %v2227
        %v2229 = vrot.slane %v2228, 4
        %v2231 = vshll.u32 %v2027, 16
        %v2233 = vrot.slane %v2231, 5
        %v2234 = vsel %vm248, %v2229, %v2233
        %v2235 = vshrl.u32 %v2027, 16
        %v2237 = vrot.slane %v2235, 4
        %v2238 = vor.u32 %v2237, %v2233
        %v2239 = vrot.slane %v2238, 4
        %v2241 = vshll.u32 %v2028, 16
        %v2243 = vrot.slane %v2241, 5
        %v2244 = vsel %vm248, %v2239, %v2243
        %v2246 = vshrl.u32 %v2029, 16
        %v2248 = vrot.slane %v2246, 4
        %v2249 = vshll.u32 %v2029, 16
        %v2251 = vrot.slane %v2249, 5
        %v2252 = vor.u32 %v2248, %v2251
        %v2253 = vrot.slane %v2252, 4
        %v2255 = vshll.u32 %v2030, 16
        %v2257 = vrot.slane %v2255, 5
        %v2258 = vsel %vm248, %v2253, %v2257
        %v2259 = vshrl.u32 %v2030, 16
        %v2261 = vrot.slane %v2259, 4
        %v2262 = vor.u32 %v2261, %v2257
        %v2263 = vrot.slane %v2262, 4
        %v2265 = vshll.u32 %v2031, 16
        %v2267 = vrot.slane %v2265, 5
        %v2268 = vsel %vm248, %v2263, %v2267
        %v2270 = vshrl.u32 %v2032, 16
        %v2272 = vrot.slane %v2270, 4
        %v2273 = vshll.u32 %v2032, 16
        %v2275 = vrot.slane %v2273, 5
        %v2276 = vor.u32 %v2272, %v2275
        %v2277 = vrot.slane %v2276, 4
        %v2279 = vshll.u32 %v2033, 16
        %v2281 = vrot.slane %v2279, 5
        %v2282 = vsel %vm248, %v2277, %v2281
        %v2283 = vshrl.u32 %v2033, 16
        %v2285 = vrot.slane %v2283, 4
        %v2286 = vor.u32 %v2285, %v2281
        %v2287 = vrot.slane %v2286, 4
        %v2289 = vshll.u32 %v2034, 16
        %v2291 = vrot.slane %v2289, 5
        %v2292 = vsel %vm248, %v2287, %v2291
        %v2294 = vshrl.u32 %v2035, 16
        %v2296 = vrot.slane %v2294, 4
        %v2297 = vshll.u32 %v2035, 16
        %v2299 = vrot.slane %v2297, 5
        %v2300 = vor.u32 %v2296, %v2299
        %v2301 = vrot.slane %v2300, 4
        %v2303 = vshll.u32 %v2036, 16
        %v2305 = vrot.slane %v2303, 5
        %v2306 = vsel %vm248, %v2301, %v2305
        %v2307 = vshrl.u32 %v2036, 16
        %v2309 = vrot.slane %v2307, 4
        %v2310 = vor.u32 %v2309, %v2305
        %v2311 = vrot.slane %v2310, 4
        %v2313 = vshll.u32 %v2037, 16
        %v2315 = vrot.slane %v2313, 5
        %v2316 = vsel %vm248, %v2311, %v2315
        %v2318 = vshrl.u32 %v2038, 16
        %v2320 = vrot.slane %v2318, 4
        %v2321 = vshll.u32 %v2038, 16
        %v2323 = vrot.slane %v2321, 5
        %v2324 = vor.u32 %v2320, %v2323
        %v2325 = vrot.slane %v2324, 4
        %v2327 = vshll.u32 %v2039, 16
        %v2329 = vrot.slane %v2327, 5
        %v2330 = vsel %vm248, %v2325, %v2329
        %v2331 = vshrl.u32 %v2039, 16
        %v2333 = vrot.slane %v2331, 4
        %v2334 = vor.u32 %v2333, %v2329
        %v2335 = vrot.slane %v2334, 4
        %v2337 = vshll.u32 %v2040, 16
        %v2339 = vrot.slane %v2337, 5
        %v2340 = vsel %vm248, %v2335, %v2339
        %v2342 = vshrl.u32 %v2041, 16
        %v2344 = vrot.slane %v2342, 4
        %v2345 = vshll.u32 %v2041, 16
        %v2347 = vrot.slane %v2345, 5
        %v2348 = vor.u32 %v2344, %v2347
        %v2349 = vrot.slane %v2348, 4
        %v2351 = vshll.u32 %v2042, 16
        %v2353 = vrot.slane %v2351, 5
        %v2354 = vsel %vm248, %v2349, %v2353
        %v2355 = vshrl.u32 %v2042, 16
        %v2357 = vrot.slane %v2355, 4
        %v2358 = vor.u32 %v2357, %v2353
        %v2359 = vrot.slane %v2358, 4
        %v2361 = vshll.u32 %v2043, 16
        %v2363 = vrot.slane %v2361, 5
        %v2364 = vsel %vm248, %v2359, %v2363
        %v2366 = vshrl.u32 %v2044, 16
        %v2368 = vrot.slane %v2366, 4
        %v2369 = vshll.u32 %v2044, 16
        %v2371 = vrot.slane %v2369, 5
        %v2372 = vor.u32 %v2368, %v2371
        %v2373 = vrot.slane %v2372, 4
        %v2375 = vshll.u32 %v2045, 16
        %v2377 = vrot.slane %v2375, 5
        %v2378 = vsel %vm248, %v2373, %v2377
        %v2379 = vshrl.u32 %v2045, 16
        %v2381 = vrot.slane %v2379, 4
        %v2382 = vor.u32 %v2381, %v2377
        %v2383 = vrot.slane %v2382, 4
        %v2385 = vshll.u32 %v2046, 16
        %v2387 = vrot.slane %v2385, 5
        %v2388 = vsel %vm248, %v2383, %v2387
        %v2390 = vshrl.u32 %v2047, 16
        %v2392 = vrot.slane %v2390, 4
        %v2393 = vshll.u32 %v2047, 16
        %v2395 = vrot.slane %v2393, 5
        %v2396 = vor.u32 %v2392, %v2395
        %v2397 = vrot.slane %v2396, 4
        %v2399 = vshll.u32 %v2048, 16
        %v2401 = vrot.slane %v2399, 5
        %v2402 = vsel %vm248, %v2397, %v2401
        %v2403 = vshrl.u32 %v2048, 16
        %v2405 = vrot.slane %v2403, 4
        %v2406 = vor.u32 %v2405, %v2401
        %v2407 = vrot.slane %v2406, 4
        %v2409 = vshll.u32 %v2049, 16
        %v2411 = vrot.slane %v2409, 5
        %v2412 = vsel %vm248, %v2407, %v2411
        %v2414 = vshrl.u32 %v2050, 16
        %v2416 = vrot.slane %v2414, 4
        %v2417 = vshll.u32 %v2050, 16
        %v2419 = vrot.slane %v2417, 5
        %v2420 = vor.u32 %v2416, %v2419
        %v2421 = vrot.slane %v2420, 4
        %v2423 = vshll.u32 %v2051, 16
        %v2425 = vrot.slane %v2423, 5
        %v2426 = vsel %vm248, %v2421, %v2425
        %v2427 = vshrl.u32 %v2051, 16
        %v2429 = vrot.slane %v2427, 4
        %v2430 = vor.u32 %v2429, %v2425
        %v2431 = vrot.slane %v2430, 4
        %v2433 = vshll.u32 %v2052, 16
        %v2435 = vrot.slane %v2433, 5
        %v2436 = vsel %vm248, %v2431, %v2435
        %s2437 = scalar_lea.vmem %s1, 8
        %v2438 = vld [vmem:[%s2437] sm:$0x3]
        %v2439 = vunpack.c.l.b16 %v2066
        %v2440 = vunpack.c.l.b16 %v2076
        %v2441 = vunpack.c.l.b16 %v2090
        %v2442 = vunpack.c.l.b16 %v2100
        %v2443 = vunpack.c.l.b16 %v2114
        %v2444 = vunpack.c.l.b16 %v2124
        %v2445 = vunpack.c.l.b16 %v2138
        %v2446 = vunpack.c.l.b16 %v2148
        %v2447 = vunpack.c.l.b16 %v2162
        %v2448 = vunpack.c.l.b16 %v2172
        %v2449 = vunpack.c.l.b16 %v2186
        %v2450 = vunpack.c.l.b16 %v2196
        %v2451 = vunpack.c.l.b16 %v2210
        %v2452 = vunpack.c.l.b16 %v2220
        %v2453 = vunpack.c.l.b16 %v2234
        %v2454 = vunpack.c.l.b16 %v2244
        %v2455 = vunpack.c.l.b16 %v2258
        %v2456 = vunpack.c.l.b16 %v2268
        %v2457 = vunpack.c.l.b16 %v2282
        %v2458 = vunpack.c.l.b16 %v2292
        %v2459 = vunpack.c.l.b16 %v2306
        %v2460 = vunpack.c.l.b16 %v2316
        %v2461 = vunpack.c.l.b16 %v2330
        %v2462 = vunpack.c.l.b16 %v2340
        %v2463 = vunpack.c.l.b16 %v2354
        %v2464 = vunpack.c.l.b16 %v2364
        %v2465 = vunpack.c.l.b16 %v2378
        %v2466 = vunpack.c.l.b16 %v2388
        %v2467 = vunpack.c.l.b16 %v2402
        %v2468 = vunpack.c.l.b16 %v2412
        %v2469 = vunpack.c.l.b16 %v2426
        %v2470 = vunpack.c.l.b16 %v2436
        %v2471 = vpack.c.b16 %v2440, %v2439
        %v2472 = vpack.c.b16 %v2442, %v2441
        %v2473 = vpack.c.b16 %v2444, %v2443
        %v2474 = vpack.c.b16 %v2446, %v2445
        %v2475 = vpack.c.b16 %v2448, %v2447
        %v2476 = vpack.c.b16 %v2450, %v2449
        %v2477 = vpack.c.b16 %v2452, %v2451
        %v2478 = vpack.c.b16 %v2454, %v2453
        %v2479 = vpack.c.b16 %v2456, %v2455
        %v2480 = vpack.c.b16 %v2458, %v2457
        %v2481 = vpack.c.b16 %v2460, %v2459
        %v2482 = vpack.c.b16 %v2462, %v2461
        %v2483 = vpack.c.b16 %v2464, %v2463
        %v2484 = vpack.c.b16 %v2466, %v2465
        %v2485 = vpack.c.b16 %v2468, %v2467
        %v2486 = vpack.c.b16 %v2470, %v2469
        %v2488 = vsel %vm683, %v2471, 0
        %v2491 = vsel %vm683, %v2472, 0
        %v2494 = vsel %vm683, %v2473, 0
        %v2497 = vsel %vm683, %v2474, 0
        %v2500 = vsel %vm683, %v2475, 0
        %v2503 = vsel %vm683, %v2476, 0
        %v2506 = vsel %vm683, %v2477, 0
        %v2509 = vsel %vm683, %v2478, 0
        %v2512 = vsel %vm683, %v2479, 0
        %v2515 = vsel %vm683, %v2480, 0
        %v2518 = vsel %vm683, %v2481, 0
        %v2521 = vsel %vm683, %v2482, 0
        %v2524 = vsel %vm683, %v2483, 0
        %v2527 = vsel %vm683, %v2484, 0
        %v2530 = vsel %vm683, %v2485, 0
        %v2533 = vsel %vm683, %v2486, 0
        %v2536 = vsel %vm732, %v2438, 0
        %2538 = vmatprep.subr.bf16.mxu0 0
        %2539 = vmatpush1.bf16.msra.mxu0 0
        %2540 = vmatprep.subr.bf16.mxu0 0
        %2541 = vmatpush1.bf16.msra.mxu0 0
        %2542 = vmatprep.subr.bf16.mxu0 0
        %2543 = vmatpush1.bf16.msra.mxu0 0
        %2544 = vmatprep.subr.bf16.mxu0 0
        %2545 = vmatpush1.bf16.msra.mxu0 0
        %2546 = vmatprep.subr.bf16.mxu0 0
        %2547 = vmatpush1.bf16.msra.mxu0 0
        %2548 = vmatprep.subr.bf16.mxu0 0
        %2549 = vmatpush1.bf16.msra.mxu0 0
        %2550 = vmatprep.subr.bf16.mxu0 0
        %2551 = vmatpush1.bf16.msra.mxu0 0
        %2552 = vmatprep.subr.bf16.mxu0 0
        %2553 = vmatpush1.bf16.msra.mxu0 %v2536
        %2554 = vmatprep.subr.bf16.mxu0 0
        %2555 = vmatpush2.bf16.msra.mxu0 0
        %2556 = vmatprep.subr.bf16.mxu0 0
        %2557 = vmatpush2.bf16.msra.mxu0 0
        %2558 = vmatprep.subr.bf16.mxu0 0
        %2559 = vmatpush2.bf16.msra.mxu0 0
        %2560 = vmatprep.subr.bf16.mxu0 0
        %2561 = vmatpush2.bf16.msra.mxu0 0
        %2562 = vmatprep.subr.bf16.mxu0 0
        %2563 = vmatpush2.bf16.msra.mxu0 0
        %2564 = vmatprep.subr.bf16.mxu0 0
        %2565 = vmatpush2.bf16.msra.mxu0 0
        %2566 = vmatprep.subr.bf16.mxu0 0
        %2567 = vmatpush2.bf16.msra.mxu0 0
        %2568 = vmatprep.subr.bf16.mxu0 0
        %2569 = vmatpush2.bf16.msra.mxu0 0
        %2570 = vmatprep.mubr.bf16.mxu0 0
        %2571 = vmatmul.mubr.bf16.gmra.mxu0 %v2488
        %v2572 = vpop.f32.mrf.mxu0
        %v2573 = vadd.f32 0.0, %v2572
        %v2574 = vpop.f32.mrf.mxu0
        %v2575 = vpop.f32.mrf.mxu0
        %v2576 = vadd.f32 0.0, %v2575
        %v2577 = vpop.f32.mrf.mxu0
        %2578 = vmatprep.mubr.bf16.mxu0 0
        %2579 = vmatmul.mubr.bf16.gmra.mxu0 %v2491
        %v2580 = vpop.f32.mrf.mxu0
        %v2581 = vadd.f32 0.0, %v2580
        %v2582 = vpop.f32.mrf.mxu0
        %v2583 = vpop.f32.mrf.mxu0
        %v2584 = vadd.f32 0.0, %v2583
        %v2585 = vpop.f32.mrf.mxu0
        %2586 = vmatprep.mubr.bf16.mxu0 0
        %2587 = vmatmul.mubr.bf16.gmra.mxu0 %v2494
        %v2588 = vpop.f32.mrf.mxu0
        %v2589 = vadd.f32 0.0, %v2588
        %v2590 = vpop.f32.mrf.mxu0
        %v2591 = vpop.f32.mrf.mxu0
        %v2592 = vadd.f32 0.0, %v2591
        %v2593 = vpop.f32.mrf.mxu0
        %2594 = vmatprep.mubr.bf16.mxu0 0
        %2595 = vmatmul.mubr.bf16.gmra.mxu0 %v2497
        %v2596 = vpop.f32.mrf.mxu0
        %v2597 = vadd.f32 0.0, %v2596
        %v2598 = vpop.f32.mrf.mxu0
        %v2599 = vpop.f32.mrf.mxu0
        %v2600 = vadd.f32 0.0, %v2599
        %v2601 = vpop.f32.mrf.mxu0
        %2602 = vmatprep.mubr.bf16.mxu0 0
        %2603 = vmatmul.mubr.bf16.gmra.mxu0 %v2500
        %v2604 = vpop.f32.mrf.mxu0
        %v2605 = vadd.f32 0.0, %v2604
        %v2606 = vpop.f32.mrf.mxu0
        %v2607 = vpop.f32.mrf.mxu0
        %v2608 = vadd.f32 0.0, %v2607
        %v2609 = vpop.f32.mrf.mxu0
        %2610 = vmatprep.mubr.bf16.mxu0 0
        %2611 = vmatmul.mubr.bf16.gmra.mxu0 %v2503
        %v2612 = vpop.f32.mrf.mxu0
        %v2613 = vadd.f32 0.0, %v2612
        %v2614 = vpop.f32.mrf.mxu0
        %v2615 = vpop.f32.mrf.mxu0
        %v2616 = vadd.f32 0.0, %v2615
        %v2617 = vpop.f32.mrf.mxu0
        %2618 = vmatprep.mubr.bf16.mxu0 0
        %2619 = vmatmul.mubr.bf16.gmra.mxu0 %v2506
        %v2620 = vpop.f32.mrf.mxu0
        %v2621 = vadd.f32 0.0, %v2620
        %v2622 = vpop.f32.mrf.mxu0
        %v2623 = vpop.f32.mrf.mxu0
        %v2624 = vadd.f32 0.0, %v2623
        %v2625 = vpop.f32.mrf.mxu0
        %2626 = vmatprep.mubr.bf16.mxu0 0
        %2627 = vmatmul.mubr.bf16.gmra.mxu0 %v2509
        %v2628 = vpop.f32.mrf.mxu0
        %v2629 = vadd.f32 0.0, %v2628
        %v2630 = vpop.f32.mrf.mxu0
        %v2631 = vpop.f32.mrf.mxu0
        %v2632 = vadd.f32 0.0, %v2631
        %v2633 = vpop.f32.mrf.mxu0
        %2634 = vmatprep.mubr.bf16.mxu0 0
        %2635 = vmatmul.mubr.bf16.gmra.mxu0 %v2512
        %v2636 = vpop.f32.mrf.mxu0
        %v2637 = vadd.f32 0.0, %v2636
        %v2638 = vpop.f32.mrf.mxu0
        %v2639 = vpop.f32.mrf.mxu0
        %v2640 = vadd.f32 0.0, %v2639
        %v2641 = vpop.f32.mrf.mxu0
        %2642 = vmatprep.mubr.bf16.mxu0 0
        %2643 = vmatmul.mubr.bf16.gmra.mxu0 %v2515
        %v2644 = vpop.f32.mrf.mxu0
        %v2645 = vadd.f32 0.0, %v2644
        %v2646 = vpop.f32.mrf.mxu0
        %v2647 = vpop.f32.mrf.mxu0
        %v2648 = vadd.f32 0.0, %v2647
        %v2649 = vpop.f32.mrf.mxu0
        %2650 = vmatprep.mubr.bf16.mxu0 0
        %2651 = vmatmul.mubr.bf16.gmra.mxu0 %v2518
        %v2652 = vpop.f32.mrf.mxu0
        %v2653 = vadd.f32 0.0, %v2652
        %v2654 = vpop.f32.mrf.mxu0
        %v2655 = vpop.f32.mrf.mxu0
        %v2656 = vadd.f32 0.0, %v2655
        %v2657 = vpop.f32.mrf.mxu0
        %2658 = vmatprep.mubr.bf16.mxu0 0
        %2659 = vmatmul.mubr.bf16.gmra.mxu0 %v2521
        %v2660 = vpop.f32.mrf.mxu0
        %v2661 = vadd.f32 0.0, %v2660
        %v2662 = vpop.f32.mrf.mxu0
        %v2663 = vpop.f32.mrf.mxu0
        %v2664 = vadd.f32 0.0, %v2663
        %v2665 = vpop.f32.mrf.mxu0
        %2666 = vmatprep.mubr.bf16.mxu0 0
        %2667 = vmatmul.mubr.bf16.gmra.mxu0 %v2524
        %v2668 = vpop.f32.mrf.mxu0
        %v2669 = vadd.f32 0.0, %v2668
        %v2670 = vpop.f32.mrf.mxu0
        %v2671 = vpop.f32.mrf.mxu0
        %v2672 = vadd.f32 0.0, %v2671
        %v2673 = vpop.f32.mrf.mxu0
        %2674 = vmatprep.mubr.bf16.mxu0 0
        %2675 = vmatmul.mubr.bf16.gmra.mxu0 %v2527
        %v2676 = vpop.f32.mrf.mxu0
        %v2677 = vadd.f32 0.0, %v2676
        %v2678 = vpop.f32.mrf.mxu0
        %v2679 = vpop.f32.mrf.mxu0
        %v2680 = vadd.f32 0.0, %v2679
        %v2681 = vpop.f32.mrf.mxu0
        %2682 = vmatprep.mubr.bf16.mxu0 0
        %2683 = vmatmul.mubr.bf16.gmra.mxu0 %v2530
        %v2684 = vpop.f32.mrf.mxu0
        %v2685 = vadd.f32 0.0, %v2684
        %v2686 = vpop.f32.mrf.mxu0
        %v2687 = vpop.f32.mrf.mxu0
        %v2688 = vadd.f32 0.0, %v2687
        %v2689 = vpop.f32.mrf.mxu0
        %2690 = vmatprep.mubr.bf16.mxu0 0
        %2691 = vmatmul.mubr.bf16.gmra.mxu0 %v2533
        %v2692 = vpop.f32.mrf.mxu0
        %v2693 = vadd.f32 0.0, %v2692
        %v2694 = vpop.f32.mrf.mxu0
        %v2695 = vpop.f32.mrf.mxu0
        %v2696 = vadd.f32 0.0, %v2695
        %v2697 = vpop.f32.mrf.mxu0
        %2698 = vdwg.mxu0
        %v2699 = vadd.f32 %v1973, %v2573
        %v2700 = vadd.f32 %v1974, %v2576
        %v2701 = vadd.f32 %v1975, %v2581
        %v2702 = vadd.f32 %v1976, %v2584
        %v2703 = vadd.f32 %v1977, %v2589
        %v2704 = vadd.f32 %v1978, %v2592
        %v2705 = vadd.f32 %v1979, %v2597
        %v2706 = vadd.f32 %v1980, %v2600
        %v2707 = vadd.f32 %v1981, %v2605
        %v2708 = vadd.f32 %v1982, %v2608
        %v2709 = vadd.f32 %v1983, %v2613
        %v2710 = vadd.f32 %v1984, %v2616
        %v2711 = vadd.f32 %v1985, %v2621
        %v2712 = vadd.f32 %v1986, %v2624
        %v2713 = vadd.f32 %v1987, %v2629
        %v2714 = vadd.f32 %v1988, %v2632
        %v2715 = vadd.f32 %v1989, %v2637
        %v2716 = vadd.f32 %v1990, %v2640
        %v2717 = vadd.f32 %v1991, %v2645
        %v2718 = vadd.f32 %v1992, %v2648
        %v2719 = vadd.f32 %v1993, %v2653
        %v2720 = vadd.f32 %v1994, %v2656
        %v2721 = vadd.f32 %v1995, %v2661
        %v2722 = vadd.f32 %v1996, %v2664
        %v2723 = vadd.f32 %v1997, %v2669
        %v2724 = vadd.f32 %v1998, %v2672
        %v2725 = vadd.f32 %v1999, %v2677
        %v2726 = vadd.f32 %v2000, %v2680
        %v2727 = vadd.f32 %v2001, %v2685
        %v2728 = vadd.f32 %v2002, %v2688
        %v2729 = vadd.f32 %v2003, %v2693
        %v2730 = vadd.f32 %v2004, %v2696
        %v2731 = vld [vmem:[%s1646] sm:$0xe]
        %v2732 = vld [vmem:[%s1646 + $0xc] sm:$0xe]
        %v2733 = vld [vmem:[%s1646 + $0x18] sm:$0xe]
        %v2734 = vld [vmem:[%s1646 + $0x24] sm:$0xe]
        %v2735 = vld [vmem:[%s1646 + $0x30] sm:$0xe]
        %v2736 = vld [vmem:[%s1646 + $0x3c] sm:$0xe]
        %v2737 = vld [vmem:[%s1646 + $0x48] sm:$0xe]
        %v2738 = vld [vmem:[%s1646 + $0x54] sm:$0xe]
        %v2739 = vld [vmem:[%s1646 + $0x60] sm:$0xe]
        %v2740 = vld [vmem:[%s1646 + $0x6c] sm:$0xe]
        %v2741 = vld [vmem:[%s1646 + $0x78] sm:$0xe]
        %v2742 = vld [vmem:[%s1646 + $0x84] sm:$0xe]
        %v2743 = vld [vmem:[%s1646 + $0x90] sm:$0xe]
        %v2744 = vld [vmem:[%s1646 + $0x9c] sm:$0xe]
        %v2745 = vld [vmem:[%s1646 + $0xa8] sm:$0xe]
        %v2746 = vld [vmem:[%s1646 + $0xb4] sm:$0xe]
        %v2795 = vrot.slane %v2731, 5
        %v2796 = vrot.slane %v2795, 4
        %v2797 = vrot.slane %v2006, 5
        %v2798 = vsel %vm1239, %v2796, %v2797
        %v2799 = vrot.slane %v2797, 4
        %v2800 = vrot.slane %v2007, 5
        %v2801 = vsel %vm1239, %v2799, %v2800
        %v2802 = vrot.slane %v2732, 5
        %v2803 = vrot.slane %v2802, 4
        %v2804 = vrot.slane %v2009, 5
        %v2805 = vsel %vm1239, %v2803, %v2804
        %v2806 = vrot.slane %v2804, 4
        %v2807 = vrot.slane %v2010, 5
        %v2808 = vsel %vm1239, %v2806, %v2807
        %v2809 = vrot.slane %v2733, 5
        %v2810 = vrot.slane %v2809, 4
        %v2811 = vrot.slane %v2012, 5
        %v2812 = vsel %vm1239, %v2810, %v2811
        %v2813 = vrot.slane %v2811, 4
        %v2814 = vrot.slane %v2013, 5
        %v2815 = vsel %vm1239, %v2813, %v2814
        %v2816 = vrot.slane %v2734, 5
        %v2817 = vrot.slane %v2816, 4
        %v2818 = vrot.slane %v2015, 5
        %v2819 = vsel %vm1239, %v2817, %v2818
        %v2820 = vrot.slane %v2818, 4
        %v2821 = vrot.slane %v2016, 5
        %v2822 = vsel %vm1239, %v2820, %v2821
        %v2823 = vrot.slane %v2735, 5
        %v2824 = vrot.slane %v2823, 4
        %v2825 = vrot.slane %v2018, 5
        %v2826 = vsel %vm1239, %v2824, %v2825
        %v2827 = vrot.slane %v2825, 4
        %v2828 = vrot.slane %v2019, 5
        %v2829 = vsel %vm1239, %v2827, %v2828
        %v2830 = vrot.slane %v2736, 5
        %v2831 = vrot.slane %v2830, 4
        %v2832 = vrot.slane %v2021, 5
        %v2833 = vsel %vm1239, %v2831, %v2832
        %v2834 = vrot.slane %v2832, 4
        %v2835 = vrot.slane %v2022, 5
        %v2836 = vsel %vm1239, %v2834, %v2835
        %v2837 = vrot.slane %v2737, 5
        %v2838 = vrot.slane %v2837, 4
        %v2839 = vrot.slane %v2024, 5
        %v2840 = vsel %vm1239, %v2838, %v2839
        %v2841 = vrot.slane %v2839, 4
        %v2842 = vrot.slane %v2025, 5
        %v2843 = vsel %vm1239, %v2841, %v2842
        %v2844 = vrot.slane %v2738, 5
        %v2845 = vrot.slane %v2844, 4
        %v2846 = vrot.slane %v2027, 5
        %v2847 = vsel %vm1239, %v2845, %v2846
        %v2848 = vrot.slane %v2846, 4
        %v2849 = vrot.slane %v2028, 5
        %v2850 = vsel %vm1239, %v2848, %v2849
        %v2851 = vrot.slane %v2739, 5
        %v2852 = vrot.slane %v2851, 4
        %v2853 = vrot.slane %v2030, 5
        %v2854 = vsel %vm1239, %v2852, %v2853
        %v2855 = vrot.slane %v2853, 4
        %v2856 = vrot.slane %v2031, 5
        %v2857 = vsel %vm1239, %v2855, %v2856
        %v2858 = vrot.slane %v2740, 5
        %v2859 = vrot.slane %v2858, 4
        %v2860 = vrot.slane %v2033, 5
        %v2861 = vsel %vm1239, %v2859, %v2860
        %v2862 = vrot.slane %v2860, 4
        %v2863 = vrot.slane %v2034, 5
        %v2864 = vsel %vm1239, %v2862, %v2863
        %v2865 = vrot.slane %v2741, 5
        %v2866 = vrot.slane %v2865, 4
        %v2867 = vrot.slane %v2036, 5
        %v2868 = vsel %vm1239, %v2866, %v2867
        %v2869 = vrot.slane %v2867, 4
        %v2870 = vrot.slane %v2037, 5
        %v2871 = vsel %vm1239, %v2869, %v2870
        %v2872 = vrot.slane %v2742, 5
        %v2873 = vrot.slane %v2872, 4
        %v2874 = vrot.slane %v2039, 5
        %v2875 = vsel %vm1239, %v2873, %v2874
        %v2876 = vrot.slane %v2874, 4
        %v2877 = vrot.slane %v2040, 5
        %v2878 = vsel %vm1239, %v2876, %v2877
        %v2879 = vrot.slane %v2743, 5
        %v2880 = vrot.slane %v2879, 4
        %v2881 = vrot.slane %v2042, 5
        %v2882 = vsel %vm1239, %v2880, %v2881
        %v2883 = vrot.slane %v2881, 4
        %v2884 = vrot.slane %v2043, 5
        %v2885 = vsel %vm1239, %v2883, %v2884
        %v2886 = vrot.slane %v2744, 5
        %v2887 = vrot.slane %v2886, 4
        %v2888 = vrot.slane %v2045, 5
        %v2889 = vsel %vm1239, %v2887, %v2888
        %v2890 = vrot.slane %v2888, 4
        %v2891 = vrot.slane %v2046, 5
        %v2892 = vsel %vm1239, %v2890, %v2891
        %v2893 = vrot.slane %v2745, 5
        %v2894 = vrot.slane %v2893, 4
        %v2895 = vrot.slane %v2048, 5
        %v2896 = vsel %vm1239, %v2894, %v2895
        %v2897 = vrot.slane %v2895, 4
        %v2898 = vrot.slane %v2049, 5
        %v2899 = vsel %vm1239, %v2897, %v2898
        %v2900 = vrot.slane %v2746, 5
        %v2901 = vrot.slane %v2900, 4
        %v2902 = vrot.slane %v2051, 5
        %v2903 = vsel %vm1239, %v2901, %v2902
        %v2904 = vrot.slane %v2902, 4
        %v2905 = vrot.slane %v2052, 5
        %v2906 = vsel %vm1239, %v2904, %v2905
        %s2907 = scalar_lea.vmem %s1, 10
        %v2908 = vld [vmem:[%s2907] sm:$0x3]
        %v2909 = vunpack.c.l.b16 %v2798
        %v2910 = vunpack.c.l.b16 %v2801
        %v2911 = vunpack.c.l.b16 %v2805
        %v2912 = vunpack.c.l.b16 %v2808
        %v2913 = vunpack.c.l.b16 %v2812
        %v2914 = vunpack.c.l.b16 %v2815
        %v2915 = vunpack.c.l.b16 %v2819
        %v2916 = vunpack.c.l.b16 %v2822
        %v2917 = vunpack.c.l.b16 %v2826
        %v2918 = vunpack.c.l.b16 %v2829
        %v2919 = vunpack.c.l.b16 %v2833
        %v2920 = vunpack.c.l.b16 %v2836
        %v2921 = vunpack.c.l.b16 %v2840
        %v2922 = vunpack.c.l.b16 %v2843
        %v2923 = vunpack.c.l.b16 %v2847
        %v2924 = vunpack.c.l.b16 %v2850
        %v2925 = vunpack.c.l.b16 %v2854
        %v2926 = vunpack.c.l.b16 %v2857
        %v2927 = vunpack.c.l.b16 %v2861
        %v2928 = vunpack.c.l.b16 %v2864
        %v2929 = vunpack.c.l.b16 %v2868
        %v2930 = vunpack.c.l.b16 %v2871
        %v2931 = vunpack.c.l.b16 %v2875
        %v2932 = vunpack.c.l.b16 %v2878
        %v2933 = vunpack.c.l.b16 %v2882
        %v2934 = vunpack.c.l.b16 %v2885
        %v2935 = vunpack.c.l.b16 %v2889
        %v2936 = vunpack.c.l.b16 %v2892
        %v2937 = vunpack.c.l.b16 %v2896
        %v2938 = vunpack.c.l.b16 %v2899
        %v2939 = vunpack.c.l.b16 %v2903
        %v2940 = vunpack.c.l.b16 %v2906
        %v2941 = vpack.c.b16 %v2910, %v2909
        %v2942 = vpack.c.b16 %v2912, %v2911
        %v2943 = vpack.c.b16 %v2914, %v2913
        %v2944 = vpack.c.b16 %v2916, %v2915
        %v2945 = vpack.c.b16 %v2918, %v2917
        %v2946 = vpack.c.b16 %v2920, %v2919
        %v2947 = vpack.c.b16 %v2922, %v2921
        %v2948 = vpack.c.b16 %v2924, %v2923
        %v2949 = vpack.c.b16 %v2926, %v2925
        %v2950 = vpack.c.b16 %v2928, %v2927
        %v2951 = vpack.c.b16 %v2930, %v2929
        %v2952 = vpack.c.b16 %v2932, %v2931
        %v2953 = vpack.c.b16 %v2934, %v2933
        %v2954 = vpack.c.b16 %v2936, %v2935
        %v2955 = vpack.c.b16 %v2938, %v2937
        %v2956 = vpack.c.b16 %v2940, %v2939
        %v2958 = vsel %vm683, %v2941, 0
        %v2961 = vsel %vm683, %v2942, 0
        %v2964 = vsel %vm683, %v2943, 0
        %v2967 = vsel %vm683, %v2944, 0
        %v2970 = vsel %vm683, %v2945, 0
        %v2973 = vsel %vm683, %v2946, 0
        %v2976 = vsel %vm683, %v2947, 0
        %v2979 = vsel %vm683, %v2948, 0
        %v2982 = vsel %vm683, %v2949, 0
        %v2985 = vsel %vm683, %v2950, 0
        %v2988 = vsel %vm683, %v2951, 0
        %v2991 = vsel %vm683, %v2952, 0
        %v2994 = vsel %vm683, %v2953, 0
        %v2997 = vsel %vm683, %v2954, 0
        %v3000 = vsel %vm683, %v2955, 0
        %v3003 = vsel %vm683, %v2956, 0
        %v3006 = vsel %vm732, %v2908, 0
        %3008 = vmatprep.subr.bf16.mxu0 0
        %3009 = vmatpush1.bf16.msra.mxu0 0
        %3010 = vmatprep.subr.bf16.mxu0 0
        %3011 = vmatpush1.bf16.msra.mxu0 0
        %3012 = vmatprep.subr.bf16.mxu0 0
        %3013 = vmatpush1.bf16.msra.mxu0 0
        %3014 = vmatprep.subr.bf16.mxu0 0
        %3015 = vmatpush1.bf16.msra.mxu0 0
        %3016 = vmatprep.subr.bf16.mxu0 0
        %3017 = vmatpush1.bf16.msra.mxu0 0
        %3018 = vmatprep.subr.bf16.mxu0 0
        %3019 = vmatpush1.bf16.msra.mxu0 0
        %3020 = vmatprep.subr.bf16.mxu0 0
        %3021 = vmatpush1.bf16.msra.mxu0 0
        %3022 = vmatprep.subr.bf16.mxu0 0
        %3023 = vmatpush1.bf16.msra.mxu0 %v3006
        %3024 = vmatprep.subr.bf16.mxu0 0
        %3025 = vmatpush2.bf16.msra.mxu0 0
        %3026 = vmatprep.subr.bf16.mxu0 0
        %3027 = vmatpush2.bf16.msra.mxu0 0
        %3028 = vmatprep.subr.bf16.mxu0 0
        %3029 = vmatpush2.bf16.msra.mxu0 0
        %3030 = vmatprep.subr.bf16.mxu0 0
        %3031 = vmatpush2.bf16.msra.mxu0 0
        %3032 = vmatprep.subr.bf16.mxu0 0
        %3033 = vmatpush2.bf16.msra.mxu0 0
        %3034 = vmatprep.subr.bf16.mxu0 0
        %3035 = vmatpush2.bf16.msra.mxu0 0
        %3036 = vmatprep.subr.bf16.mxu0 0
        %3037 = vmatpush2.bf16.msra.mxu0 0
        %3038 = vmatprep.subr.bf16.mxu0 0
        %3039 = vmatpush2.bf16.msra.mxu0 0
        %3040 = vmatprep.mubr.bf16.mxu0 0
        %3041 = vmatmul.mubr.bf16.gmra.mxu0 %v2958
        %v3042 = vpop.f32.mrf.mxu0
        %v3043 = vadd.f32 0.0, %v3042
        %v3044 = vpop.f32.mrf.mxu0
        %v3045 = vpop.f32.mrf.mxu0
        %v3046 = vadd.f32 0.0, %v3045
        %v3047 = vpop.f32.mrf.mxu0
        %3048 = vmatprep.mubr.bf16.mxu0 0
        %3049 = vmatmul.mubr.bf16.gmra.mxu0 %v2961
        %v3050 = vpop.f32.mrf.mxu0
        %v3051 = vadd.f32 0.0, %v3050
        %v3052 = vpop.f32.mrf.mxu0
        %v3053 = vpop.f32.mrf.mxu0
        %v3054 = vadd.f32 0.0, %v3053
        %v3055 = vpop.f32.mrf.mxu0
        %3056 = vmatprep.mubr.bf16.mxu0 0
        %3057 = vmatmul.mubr.bf16.gmra.mxu0 %v2964
        %v3058 = vpop.f32.mrf.mxu0
        %v3059 = vadd.f32 0.0, %v3058
        %v3060 = vpop.f32.mrf.mxu0
        %v3061 = vpop.f32.mrf.mxu0
        %v3062 = vadd.f32 0.0, %v3061
        %v3063 = vpop.f32.mrf.mxu0
        %3064 = vmatprep.mubr.bf16.mxu0 0
        %3065 = vmatmul.mubr.bf16.gmra.mxu0 %v2967
        %v3066 = vpop.f32.mrf.mxu0
        %v3067 = vadd.f32 0.0, %v3066
        %v3068 = vpop.f32.mrf.mxu0
        %v3069 = vpop.f32.mrf.mxu0
        %v3070 = vadd.f32 0.0, %v3069
        %v3071 = vpop.f32.mrf.mxu0
        %3072 = vmatprep.mubr.bf16.mxu0 0
        %3073 = vmatmul.mubr.bf16.gmra.mxu0 %v2970
        %v3074 = vpop.f32.mrf.mxu0
        %v3075 = vadd.f32 0.0, %v3074
        %v3076 = vpop.f32.mrf.mxu0
        %v3077 = vpop.f32.mrf.mxu0
        %v3078 = vadd.f32 0.0, %v3077
        %v3079 = vpop.f32.mrf.mxu0
        %3080 = vmatprep.mubr.bf16.mxu0 0
        %3081 = vmatmul.mubr.bf16.gmra.mxu0 %v2973
        %v3082 = vpop.f32.mrf.mxu0
        %v3083 = vadd.f32 0.0, %v3082
        %v3084 = vpop.f32.mrf.mxu0
        %v3085 = vpop.f32.mrf.mxu0
        %v3086 = vadd.f32 0.0, %v3085
        %v3087 = vpop.f32.mrf.mxu0
        %3088 = vmatprep.mubr.bf16.mxu0 0
        %3089 = vmatmul.mubr.bf16.gmra.mxu0 %v2976
        %v3090 = vpop.f32.mrf.mxu0
        %v3091 = vadd.f32 0.0, %v3090
        %v3092 = vpop.f32.mrf.mxu0
        %v3093 = vpop.f32.mrf.mxu0
        %v3094 = vadd.f32 0.0, %v3093
        %v3095 = vpop.f32.mrf.mxu0
        %3096 = vmatprep.mubr.bf16.mxu0 0
        %3097 = vmatmul.mubr.bf16.gmra.mxu0 %v2979
        %v3098 = vpop.f32.mrf.mxu0
        %v3099 = vadd.f32 0.0, %v3098
        %v3100 = vpop.f32.mrf.mxu0
        %v3101 = vpop.f32.mrf.mxu0
        %v3102 = vadd.f32 0.0, %v3101
        %v3103 = vpop.f32.mrf.mxu0
        %3104 = vmatprep.mubr.bf16.mxu0 0
        %3105 = vmatmul.mubr.bf16.gmra.mxu0 %v2982
        %v3106 = vpop.f32.mrf.mxu0
        %v3107 = vadd.f32 0.0, %v3106
        %v3108 = vpop.f32.mrf.mxu0
        %v3109 = vpop.f32.mrf.mxu0
        %v3110 = vadd.f32 0.0, %v3109
        %v3111 = vpop.f32.mrf.mxu0
        %3112 = vmatprep.mubr.bf16.mxu0 0
        %3113 = vmatmul.mubr.bf16.gmra.mxu0 %v2985
        %v3114 = vpop.f32.mrf.mxu0
        %v3115 = vadd.f32 0.0, %v3114
        %v3116 = vpop.f32.mrf.mxu0
        %v3117 = vpop.f32.mrf.mxu0
        %v3118 = vadd.f32 0.0, %v3117
        %v3119 = vpop.f32.mrf.mxu0
        %3120 = vmatprep.mubr.bf16.mxu0 0
        %3121 = vmatmul.mubr.bf16.gmra.mxu0 %v2988
        %v3122 = vpop.f32.mrf.mxu0
        %v3123 = vadd.f32 0.0, %v3122
        %v3124 = vpop.f32.mrf.mxu0
        %v3125 = vpop.f32.mrf.mxu0
        %v3126 = vadd.f32 0.0, %v3125
        %v3127 = vpop.f32.mrf.mxu0
        %3128 = vmatprep.mubr.bf16.mxu0 0
        %3129 = vmatmul.mubr.bf16.gmra.mxu0 %v2991
        %v3130 = vpop.f32.mrf.mxu0
        %v3131 = vadd.f32 0.0, %v3130
        %v3132 = vpop.f32.mrf.mxu0
        %v3133 = vpop.f32.mrf.mxu0
        %v3134 = vadd.f32 0.0, %v3133
        %v3135 = vpop.f32.mrf.mxu0
        %3136 = vmatprep.mubr.bf16.mxu0 0
        %3137 = vmatmul.mubr.bf16.gmra.mxu0 %v2994
        %v3138 = vpop.f32.mrf.mxu0
        %v3139 = vadd.f32 0.0, %v3138
        %v3140 = vpop.f32.mrf.mxu0
        %v3141 = vpop.f32.mrf.mxu0
        %v3142 = vadd.f32 0.0, %v3141
        %v3143 = vpop.f32.mrf.mxu0
        %3144 = vmatprep.mubr.bf16.mxu0 0
        %3145 = vmatmul.mubr.bf16.gmra.mxu0 %v2997
        %v3146 = vpop.f32.mrf.mxu0
        %v3147 = vadd.f32 0.0, %v3146
        %v3148 = vpop.f32.mrf.mxu0
        %v3149 = vpop.f32.mrf.mxu0
        %v3150 = vadd.f32 0.0, %v3149
        %v3151 = vpop.f32.mrf.mxu0
        %3152 = vmatprep.mubr.bf16.mxu0 0
        %3153 = vmatmul.mubr.bf16.gmra.mxu0 %v3000
        %v3154 = vpop.f32.mrf.mxu0
        %v3155 = vadd.f32 0.0, %v3154
        %v3156 = vpop.f32.mrf.mxu0
        %v3157 = vpop.f32.mrf.mxu0
        %v3158 = vadd.f32 0.0, %v3157
        %v3159 = vpop.f32.mrf.mxu0
        %3160 = vmatprep.mubr.bf16.mxu0 0
        %3161 = vmatmul.mubr.bf16.gmra.mxu0 %v3003
        %v3162 = vpop.f32.mrf.mxu0
        %v3163 = vadd.f32 0.0, %v3162
        %v3164 = vpop.f32.mrf.mxu0
        %v3165 = vpop.f32.mrf.mxu0
        %v3166 = vadd.f32 0.0, %v3165
        %v3167 = vpop.f32.mrf.mxu0
        %3168 = vdwg.mxu0
        %v3169 = vadd.f32 %v2699, %v3043
        %v3170 = vadd.f32 %v2700, %v3046
        %v3171 = vadd.f32 %v2701, %v3051
        %v3172 = vadd.f32 %v2702, %v3054
        %v3173 = vadd.f32 %v2703, %v3059
        %v3174 = vadd.f32 %v2704, %v3062
        %v3175 = vadd.f32 %v2705, %v3067
        %v3176 = vadd.f32 %v2706, %v3070
        %v3177 = vadd.f32 %v2707, %v3075
        %v3178 = vadd.f32 %v2708, %v3078
        %v3179 = vadd.f32 %v2709, %v3083
        %v3180 = vadd.f32 %v2710, %v3086
        %v3181 = vadd.f32 %v2711, %v3091
        %v3182 = vadd.f32 %v2712, %v3094
        %v3183 = vadd.f32 %v2713, %v3099
        %v3184 = vadd.f32 %v2714, %v3102
        %v3185 = vadd.f32 %v2715, %v3107
        %v3186 = vadd.f32 %v2716, %v3110
        %v3187 = vadd.f32 %v2717, %v3115
        %v3188 = vadd.f32 %v2718, %v3118
        %v3189 = vadd.f32 %v2719, %v3123
        %v3190 = vadd.f32 %v2720, %v3126
        %v3191 = vadd.f32 %v2721, %v3131
        %v3192 = vadd.f32 %v2722, %v3134
        %v3193 = vadd.f32 %v2723, %v3139
        %v3194 = vadd.f32 %v2724, %v3142
        %v3195 = vadd.f32 %v2725, %v3147
        %v3196 = vadd.f32 %v2726, %v3150
        %v3197 = vadd.f32 %v2727, %v3155
        %v3198 = vadd.f32 %v2728, %v3158
        %v3199 = vadd.f32 %v2729, %v3163
        %v3200 = vadd.f32 %v2730, %v3166
        %s3201 = scalar_lea.vmem %s195, 24
        %v3202 = vld [vmem:[%s3201] sm:$0xf]
        %v3203 = vld [vmem:[%s3201 + $0x4] sm:$0xf]
        %v3204 = vld [vmem:[%s3201 + $0xc] sm:$0xf]
        %v3205 = vld [vmem:[%s3201 + $0x10] sm:$0xf]
        %v3206 = vld [vmem:[%s3201 + $0x18] sm:$0xf]
        %v3207 = vld [vmem:[%s3201 + $0x1c] sm:$0xf]
        %v3208 = vld [vmem:[%s3201 + $0x24] sm:$0xf]
        %v3209 = vld [vmem:[%s3201 + $0x28] sm:$0xf]
        %v3210 = vld [vmem:[%s3201 + $0x30] sm:$0xf]
        %v3211 = vld [vmem:[%s3201 + $0x34] sm:$0xf]
        %v3212 = vld [vmem:[%s3201 + $0x3c] sm:$0xf]
        %v3213 = vld [vmem:[%s3201 + $0x40] sm:$0xf]
        %v3214 = vld [vmem:[%s3201 + $0x48] sm:$0xf]
        %v3215 = vld [vmem:[%s3201 + $0x4c] sm:$0xf]
        %v3216 = vld [vmem:[%s3201 + $0x54] sm:$0xf]
        %v3217 = vld [vmem:[%s3201 + $0x58] sm:$0xf]
        %v3218 = vld [vmem:[%s3201 + $0x60] sm:$0xf]
        %v3219 = vld [vmem:[%s3201 + $0x64] sm:$0xf]
        %v3220 = vld [vmem:[%s3201 + $0x6c] sm:$0xf]
        %v3221 = vld [vmem:[%s3201 + $0x70] sm:$0xf]
        %v3222 = vld [vmem:[%s3201 + $0x78] sm:$0xf]
        %v3223 = vld [vmem:[%s3201 + $0x7c] sm:$0xf]
        %v3224 = vld [vmem:[%s3201 + $0x84] sm:$0xf]
        %v3225 = vld [vmem:[%s3201 + $0x88] sm:$0xf]
        %v3226 = vld [vmem:[%s3201 + $0x90] sm:$0xf]
        %v3227 = vld [vmem:[%s3201 + $0x94] sm:$0xf]
        %v3228 = vld [vmem:[%s3201 + $0x9c] sm:$0xf]
        %v3229 = vld [vmem:[%s3201 + $0xa0] sm:$0xf]
        %v3230 = vld [vmem:[%s3201 + $0xa8] sm:$0xf]
        %v3231 = vld [vmem:[%s3201 + $0xac] sm:$0xf]
        %v3232 = vld [vmem:[%s3201 + $0xb4] sm:$0xf]
        %v3233 = vld [vmem:[%s3201 + $0xb8] sm:$0xf]
        %s3234 = scalar_lea.vmem %s1, 12
        %v3235 = vld [vmem:[%s3234] sm:$0x3]
        %v3268 = vunpack.c.l.b16 %v3202
        %v3269 = vunpack.c.l.b16 %v3203
        %v3270 = vunpack.c.l.b16 %v3204
        %v3271 = vunpack.c.l.b16 %v3205
        %v3272 = vunpack.c.l.b16 %v3206
        %v3273 = vunpack.c.l.b16 %v3207
        %v3274 = vunpack.c.l.b16 %v3208
        %v3275 = vunpack.c.l.b16 %v3209
        %v3276 = vunpack.c.l.b16 %v3210
        %v3277 = vunpack.c.l.b16 %v3211
        %v3278 = vunpack.c.l.b16 %v3212
        %v3279 = vunpack.c.l.b16 %v3213
        %v3280 = vunpack.c.l.b16 %v3214
        %v3281 = vunpack.c.l.b16 %v3215
        %v3282 = vunpack.c.l.b16 %v3216
        %v3283 = vunpack.c.l.b16 %v3217
        %v3284 = vunpack.c.l.b16 %v3218
        %v3285 = vunpack.c.l.b16 %v3219
        %v3286 = vunpack.c.l.b16 %v3220
        %v3287 = vunpack.c.l.b16 %v3221
        %v3288 = vunpack.c.l.b16 %v3222
        %v3289 = vunpack.c.l.b16 %v3223
        %v3290 = vunpack.c.l.b16 %v3224
        %v3291 = vunpack.c.l.b16 %v3225
        %v3292 = vunpack.c.l.b16 %v3226
        %v3293 = vunpack.c.l.b16 %v3227
        %v3294 = vunpack.c.l.b16 %v3228
        %v3295 = vunpack.c.l.b16 %v3229
        %v3296 = vunpack.c.l.b16 %v3230
        %v3297 = vunpack.c.l.b16 %v3231
        %v3298 = vunpack.c.l.b16 %v3232
        %v3299 = vunpack.c.l.b16 %v3233
        %v3300 = vpack.c.b16 %v3269, %v3268
        %v3301 = vpack.c.b16 %v3271, %v3270
        %v3302 = vpack.c.b16 %v3273, %v3272
        %v3303 = vpack.c.b16 %v3275, %v3274
        %v3304 = vpack.c.b16 %v3277, %v3276
        %v3305 = vpack.c.b16 %v3279, %v3278
        %v3306 = vpack.c.b16 %v3281, %v3280
        %v3307 = vpack.c.b16 %v3283, %v3282
        %v3308 = vpack.c.b16 %v3285, %v3284
        %v3309 = vpack.c.b16 %v3287, %v3286
        %v3310 = vpack.c.b16 %v3289, %v3288
        %v3311 = vpack.c.b16 %v3291, %v3290
        %v3312 = vpack.c.b16 %v3293, %v3292
        %v3313 = vpack.c.b16 %v3295, %v3294
        %v3314 = vpack.c.b16 %v3297, %v3296
        %v3315 = vpack.c.b16 %v3299, %v3298
        %v3317 = vsel %vm683, %v3300, 0
        %v3320 = vsel %vm683, %v3301, 0
        %v3323 = vsel %vm683, %v3302, 0
        %v3326 = vsel %vm683, %v3303, 0
        %v3329 = vsel %vm683, %v3304, 0
        %v3332 = vsel %vm683, %v3305, 0
        %v3335 = vsel %vm683, %v3306, 0
        %v3338 = vsel %vm683, %v3307, 0
        %v3341 = vsel %vm683, %v3308, 0
        %v3344 = vsel %vm683, %v3309, 0
        %v3347 = vsel %vm683, %v3310, 0
        %v3350 = vsel %vm683, %v3311, 0
        %v3353 = vsel %vm683, %v3312, 0
        %v3356 = vsel %vm683, %v3313, 0
        %v3359 = vsel %vm683, %v3314, 0
        %v3362 = vsel %vm683, %v3315, 0
        %v3365 = vsel %vm732, %v3235, 0
        %3367 = vmatprep.subr.bf16.mxu0 0
        %3368 = vmatpush1.bf16.msra.mxu0 0
        %3369 = vmatprep.subr.bf16.mxu0 0
        %3370 = vmatpush1.bf16.msra.mxu0 0
        %3371 = vmatprep.subr.bf16.mxu0 0
        %3372 = vmatpush1.bf16.msra.mxu0 0
        %3373 = vmatprep.subr.bf16.mxu0 0
        %3374 = vmatpush1.bf16.msra.mxu0 0
        %3375 = vmatprep.subr.bf16.mxu0 0
        %3376 = vmatpush1.bf16.msra.mxu0 0
        %3377 = vmatprep.subr.bf16.mxu0 0
        %3378 = vmatpush1.bf16.msra.mxu0 0
        %3379 = vmatprep.subr.bf16.mxu0 0
        %3380 = vmatpush1.bf16.msra.mxu0 0
        %3381 = vmatprep.subr.bf16.mxu0 0
        %3382 = vmatpush1.bf16.msra.mxu0 %v3365
        %3383 = vmatprep.subr.bf16.mxu0 0
        %3384 = vmatpush2.bf16.msra.mxu0 0
        %3385 = vmatprep.subr.bf16.mxu0 0
        %3386 = vmatpush2.bf16.msra.mxu0 0
        %3387 = vmatprep.subr.bf16.mxu0 0
        %3388 = vmatpush2.bf16.msra.mxu0 0
        %3389 = vmatprep.subr.bf16.mxu0 0
        %3390 = vmatpush2.bf16.msra.mxu0 0
        %3391 = vmatprep.subr.bf16.mxu0 0
        %3392 = vmatpush2.bf16.msra.mxu0 0
        %3393 = vmatprep.subr.bf16.mxu0 0
        %3394 = vmatpush2.bf16.msra.mxu0 0
        %3395 = vmatprep.subr.bf16.mxu0 0
        %3396 = vmatpush2.bf16.msra.mxu0 0
        %3397 = vmatprep.subr.bf16.mxu0 0
        %3398 = vmatpush2.bf16.msra.mxu0 0
        %3399 = vmatprep.mubr.bf16.mxu0 0
        %3400 = vmatmul.mubr.bf16.gmra.mxu0 %v3317
        %v3401 = vpop.f32.mrf.mxu0
        %v3402 = vadd.f32 0.0, %v3401
        %v3403 = vpop.f32.mrf.mxu0
        %v3404 = vpop.f32.mrf.mxu0
        %v3405 = vadd.f32 0.0, %v3404
        %v3406 = vpop.f32.mrf.mxu0
        %3407 = vmatprep.mubr.bf16.mxu0 0
        %3408 = vmatmul.mubr.bf16.gmra.mxu0 %v3320
        %v3409 = vpop.f32.mrf.mxu0
        %v3410 = vadd.f32 0.0, %v3409
        %v3411 = vpop.f32.mrf.mxu0
        %v3412 = vpop.f32.mrf.mxu0
        %v3413 = vadd.f32 0.0, %v3412
        %v3414 = vpop.f32.mrf.mxu0
        %3415 = vmatprep.mubr.bf16.mxu0 0
        %3416 = vmatmul.mubr.bf16.gmra.mxu0 %v3323
        %v3417 = vpop.f32.mrf.mxu0
        %v3418 = vadd.f32 0.0, %v3417
        %v3419 = vpop.f32.mrf.mxu0
        %v3420 = vpop.f32.mrf.mxu0
        %v3421 = vadd.f32 0.0, %v3420
        %v3422 = vpop.f32.mrf.mxu0
        %3423 = vmatprep.mubr.bf16.mxu0 0
        %3424 = vmatmul.mubr.bf16.gmra.mxu0 %v3326
        %v3425 = vpop.f32.mrf.mxu0
        %v3426 = vadd.f32 0.0, %v3425
        %v3427 = vpop.f32.mrf.mxu0
        %v3428 = vpop.f32.mrf.mxu0
        %v3429 = vadd.f32 0.0, %v3428
        %v3430 = vpop.f32.mrf.mxu0
        %3431 = vmatprep.mubr.bf16.mxu0 0
        %3432 = vmatmul.mubr.bf16.gmra.mxu0 %v3329
        %v3433 = vpop.f32.mrf.mxu0
        %v3434 = vadd.f32 0.0, %v3433
        %v3435 = vpop.f32.mrf.mxu0
        %v3436 = vpop.f32.mrf.mxu0
        %v3437 = vadd.f32 0.0, %v3436
        %v3438 = vpop.f32.mrf.mxu0
        %3439 = vmatprep.mubr.bf16.mxu0 0
        %3440 = vmatmul.mubr.bf16.gmra.mxu0 %v3332
        %v3441 = vpop.f32.mrf.mxu0
        %v3442 = vadd.f32 0.0, %v3441
        %v3443 = vpop.f32.mrf.mxu0
        %v3444 = vpop.f32.mrf.mxu0
        %v3445 = vadd.f32 0.0, %v3444
        %v3446 = vpop.f32.mrf.mxu0
        %3447 = vmatprep.mubr.bf16.mxu0 0
        %3448 = vmatmul.mubr.bf16.gmra.mxu0 %v3335
        %v3449 = vpop.f32.mrf.mxu0
        %v3450 = vadd.f32 0.0, %v3449
        %v3451 = vpop.f32.mrf.mxu0
        %v3452 = vpop.f32.mrf.mxu0
        %v3453 = vadd.f32 0.0, %v3452
        %v3454 = vpop.f32.mrf.mxu0
        %3455 = vmatprep.mubr.bf16.mxu0 0
        %3456 = vmatmul.mubr.bf16.gmra.mxu0 %v3338
        %v3457 = vpop.f32.mrf.mxu0
        %v3458 = vadd.f32 0.0, %v3457
        %v3459 = vpop.f32.mrf.mxu0
        %v3460 = vpop.f32.mrf.mxu0
        %v3461 = vadd.f32 0.0, %v3460
        %v3462 = vpop.f32.mrf.mxu0
        %3463 = vmatprep.mubr.bf16.mxu0 0
        %3464 = vmatmul.mubr.bf16.gmra.mxu0 %v3341
        %v3465 = vpop.f32.mrf.mxu0
        %v3466 = vadd.f32 0.0, %v3465
        %v3467 = vpop.f32.mrf.mxu0
        %v3468 = vpop.f32.mrf.mxu0
        %v3469 = vadd.f32 0.0, %v3468
        %v3470 = vpop.f32.mrf.mxu0
        %3471 = vmatprep.mubr.bf16.mxu0 0
        %3472 = vmatmul.mubr.bf16.gmra.mxu0 %v3344
        %v3473 = vpop.f32.mrf.mxu0
        %v3474 = vadd.f32 0.0, %v3473
        %v3475 = vpop.f32.mrf.mxu0
        %v3476 = vpop.f32.mrf.mxu0
        %v3477 = vadd.f32 0.0, %v3476
        %v3478 = vpop.f32.mrf.mxu0
        %3479 = vmatprep.mubr.bf16.mxu0 0
        %3480 = vmatmul.mubr.bf16.gmra.mxu0 %v3347
        %v3481 = vpop.f32.mrf.mxu0
        %v3482 = vadd.f32 0.0, %v3481
        %v3483 = vpop.f32.mrf.mxu0
        %v3484 = vpop.f32.mrf.mxu0
        %v3485 = vadd.f32 0.0, %v3484
        %v3486 = vpop.f32.mrf.mxu0
        %3487 = vmatprep.mubr.bf16.mxu0 0
        %3488 = vmatmul.mubr.bf16.gmra.mxu0 %v3350
        %v3489 = vpop.f32.mrf.mxu0
        %v3490 = vadd.f32 0.0, %v3489
        %v3491 = vpop.f32.mrf.mxu0
        %v3492 = vpop.f32.mrf.mxu0
        %v3493 = vadd.f32 0.0, %v3492
        %v3494 = vpop.f32.mrf.mxu0
        %3495 = vmatprep.mubr.bf16.mxu0 0
        %3496 = vmatmul.mubr.bf16.gmra.mxu0 %v3353
        %v3497 = vpop.f32.mrf.mxu0
        %v3498 = vadd.f32 0.0, %v3497
        %v3499 = vpop.f32.mrf.mxu0
        %v3500 = vpop.f32.mrf.mxu0
        %v3501 = vadd.f32 0.0, %v3500
        %v3502 = vpop.f32.mrf.mxu0
        %3503 = vmatprep.mubr.bf16.mxu0 0
        %3504 = vmatmul.mubr.bf16.gmra.mxu0 %v3356
        %v3505 = vpop.f32.mrf.mxu0
        %v3506 = vadd.f32 0.0, %v3505
        %v3507 = vpop.f32.mrf.mxu0
        %v3508 = vpop.f32.mrf.mxu0
        %v3509 = vadd.f32 0.0, %v3508
        %v3510 = vpop.f32.mrf.mxu0
        %3511 = vmatprep.mubr.bf16.mxu0 0
        %3512 = vmatmul.mubr.bf16.gmra.mxu0 %v3359
        %v3513 = vpop.f32.mrf.mxu0
        %v3514 = vadd.f32 0.0, %v3513
        %v3515 = vpop.f32.mrf.mxu0
        %v3516 = vpop.f32.mrf.mxu0
        %v3517 = vadd.f32 0.0, %v3516
        %v3518 = vpop.f32.mrf.mxu0
        %3519 = vmatprep.mubr.bf16.mxu0 0
        %3520 = vmatmul.mubr.bf16.gmra.mxu0 %v3362
        %v3521 = vpop.f32.mrf.mxu0
        %v3522 = vadd.f32 0.0, %v3521
        %v3523 = vpop.f32.mrf.mxu0
        %v3524 = vpop.f32.mrf.mxu0
        %v3525 = vadd.f32 0.0, %v3524
        %v3526 = vpop.f32.mrf.mxu0
        %3527 = vdwg.mxu0
        %v3528 = vadd.f32 %v3169, %v3402
        %v3529 = vadd.f32 %v3170, %v3405
        %v3530 = vadd.f32 %v3171, %v3410
        %v3531 = vadd.f32 %v3172, %v3413
        %v3532 = vadd.f32 %v3173, %v3418
        %v3533 = vadd.f32 %v3174, %v3421
        %v3534 = vadd.f32 %v3175, %v3426
        %v3535 = vadd.f32 %v3176, %v3429
        %v3536 = vadd.f32 %v3177, %v3434
        %v3537 = vadd.f32 %v3178, %v3437
        %v3538 = vadd.f32 %v3179, %v3442
        %v3539 = vadd.f32 %v3180, %v3445
        %v3540 = vadd.f32 %v3181, %v3450
        %v3541 = vadd.f32 %v3182, %v3453
        %v3542 = vadd.f32 %v3183, %v3458
        %v3543 = vadd.f32 %v3184, %v3461
        %v3544 = vadd.f32 %v3185, %v3466
        %v3545 = vadd.f32 %v3186, %v3469
        %v3546 = vadd.f32 %v3187, %v3474
        %v3547 = vadd.f32 %v3188, %v3477
        %v3548 = vadd.f32 %v3189, %v3482
        %v3549 = vadd.f32 %v3190, %v3485
        %v3550 = vadd.f32 %v3191, %v3490
        %v3551 = vadd.f32 %v3192, %v3493
        %v3552 = vadd.f32 %v3193, %v3498
        %v3553 = vadd.f32 %v3194, %v3501
        %v3554 = vadd.f32 %v3195, %v3506
        %v3555 = vadd.f32 %v3196, %v3509
        %v3556 = vadd.f32 %v3197, %v3514
        %v3557 = vadd.f32 %v3198, %v3517
        %v3558 = vadd.f32 %v3199, %v3522
        %v3559 = vadd.f32 %v3200, %v3525
        %v3560 = vld [vmem:[%s3201] sm:$0xf]
        %v3561 = vld [vmem:[%s3201 + $0x4] sm:$0xf]
        %v3562 = vld [vmem:[%s3201 + $0x8] sm:$0x1]
        %v3563 = vld [vmem:[%s3201 + $0xc] sm:$0xf]
        %v3564 = vld [vmem:[%s3201 + $0x10] sm:$0xf]
        %v3565 = vld [vmem:[%s3201 + $0x14] sm:$0x1]
        %v3566 = vld [vmem:[%s3201 + $0x18] sm:$0xf]
        %v3567 = vld [vmem:[%s3201 + $0x1c] sm:$0xf]
        %v3568 = vld [vmem:[%s3201 + $0x20] sm:$0x1]
        %v3569 = vld [vmem:[%s3201 + $0x24] sm:$0xf]
        %v3570 = vld [vmem:[%s3201 + $0x28] sm:$0xf]
        %v3571 = vld [vmem:[%s3201 + $0x2c] sm:$0x1]
        %v3572 = vld [vmem:[%s3201 + $0x30] sm:$0xf]
        %v3573 = vld [vmem:[%s3201 + $0x34] sm:$0xf]
        %v3574 = vld [vmem:[%s3201 + $0x38] sm:$0x1]
        %v3575 = vld [vmem:[%s3201 + $0x3c] sm:$0xf]
        %v3576 = vld [vmem:[%s3201 + $0x40] sm:$0xf]
        %v3577 = vld [vmem:[%s3201 + $0x44] sm:$0x1]
        %v3578 = vld [vmem:[%s3201 + $0x48] sm:$0xf]
        %v3579 = vld [vmem:[%s3201 + $0x4c] sm:$0xf]
        %v3580 = vld [vmem:[%s3201 + $0x50] sm:$0x1]
        %v3581 = vld [vmem:[%s3201 + $0x54] sm:$0xf]
        %v3582 = vld [vmem:[%s3201 + $0x58] sm:$0xf]
        %v3583 = vld [vmem:[%s3201 + $0x5c] sm:$0x1]
        %v3584 = vld [vmem:[%s3201 + $0x60] sm:$0xf]
        %v3585 = vld [vmem:[%s3201 + $0x64] sm:$0xf]
        %v3586 = vld [vmem:[%s3201 + $0x68] sm:$0x1]
        %v3587 = vld [vmem:[%s3201 + $0x6c] sm:$0xf]
        %v3588 = vld [vmem:[%s3201 + $0x70] sm:$0xf]
        %v3589 = vld [vmem:[%s3201 + $0x74] sm:$0x1]
        %v3590 = vld [vmem:[%s3201 + $0x78] sm:$0xf]
        %v3591 = vld [vmem:[%s3201 + $0x7c] sm:$0xf]
        %v3592 = vld [vmem:[%s3201 + $0x80] sm:$0x1]
        %v3593 = vld [vmem:[%s3201 + $0x84] sm:$0xf]
        %v3594 = vld [vmem:[%s3201 + $0x88] sm:$0xf]
        %v3595 = vld [vmem:[%s3201 + $0x8c] sm:$0x1]
        %v3596 = vld [vmem:[%s3201 + $0x90] sm:$0xf]
        %v3597 = vld [vmem:[%s3201 + $0x94] sm:$0xf]
        %v3598 = vld [vmem:[%s3201 + $0x98] sm:$0x1]
        %v3599 = vld [vmem:[%s3201 + $0x9c] sm:$0xf]
        %v3600 = vld [vmem:[%s3201 + $0xa0] sm:$0xf]
        %v3601 = vld [vmem:[%s3201 + $0xa4] sm:$0x1]
        %v3602 = vld [vmem:[%s3201 + $0xa8] sm:$0xf]
        %v3603 = vld [vmem:[%s3201 + $0xac] sm:$0xf]
        %v3604 = vld [vmem:[%s3201 + $0xb0] sm:$0x1]
        %v3605 = vld [vmem:[%s3201 + $0xb4] sm:$0xf]
        %v3606 = vld [vmem:[%s3201 + $0xb8] sm:$0xf]
        %v3607 = vld [vmem:[%s3201 + $0xbc] sm:$0x1]
        %v3609 = vshrl.u32 %v3560, 16
        %v3611 = vrot.slane %v3609, 4
        %v3612 = vshll.u32 %v3560, 16
        %v3614 = vrot.slane %v3612, 5
        %v3615 = vor.u32 %v3611, %v3614
        %v3616 = vrot.slane %v3615, 4
        %v3618 = vshll.u32 %v3561, 16
        %v3620 = vrot.slane %v3618, 5
        %v3621 = vsel %vm248, %v3616, %v3620
        %v3622 = vshrl.u32 %v3561, 16
        %v3624 = vrot.slane %v3622, 4
        %v3625 = vor.u32 %v3624, %v3620
        %v3626 = vrot.slane %v3625, 4
        %v3628 = vshll.u32 %v3562, 16
        %v3630 = vrot.slane %v3628, 5
        %v3631 = vsel %vm248, %v3626, %v3630
        %v3633 = vshrl.u32 %v3563, 16
        %v3635 = vrot.slane %v3633, 4
        %v3636 = vshll.u32 %v3563, 16
        %v3638 = vrot.slane %v3636, 5
        %v3639 = vor.u32 %v3635, %v3638
        %v3640 = vrot.slane %v3639, 4
        %v3642 = vshll.u32 %v3564, 16
        %v3644 = vrot.slane %v3642, 5
        %v3645 = vsel %vm248, %v3640, %v3644
        %v3646 = vshrl.u32 %v3564, 16
        %v3648 = vrot.slane %v3646, 4
        %v3649 = vor.u32 %v3648, %v3644
        %v3650 = vrot.slane %v3649, 4
        %v3652 = vshll.u32 %v3565, 16
        %v3654 = vrot.slane %v3652, 5
        %v3655 = vsel %vm248, %v3650, %v3654
        %v3657 = vshrl.u32 %v3566, 16
        %v3659 = vrot.slane %v3657, 4
        %v3660 = vshll.u32 %v3566, 16
        %v3662 = vrot.slane %v3660, 5
        %v3663 = vor.u32 %v3659, %v3662
        %v3664 = vrot.slane %v3663, 4
        %v3666 = vshll.u32 %v3567, 16
        %v3668 = vrot.slane %v3666, 5
        %v3669 = vsel %vm248, %v3664, %v3668
        %v3670 = vshrl.u32 %v3567, 16
        %v3672 = vrot.slane %v3670, 4
        %v3673 = vor.u32 %v3672, %v3668
        %v3674 = vrot.slane %v3673, 4
        %v3676 = vshll.u32 %v3568, 16
        %v3678 = vrot.slane %v3676, 5
        %v3679 = vsel %vm248, %v3674, %v3678
        %v3681 = vshrl.u32 %v3569, 16
        %v3683 = vrot.slane %v3681, 4
        %v3684 = vshll.u32 %v3569, 16
        %v3686 = vrot.slane %v3684, 5
        %v3687 = vor.u32 %v3683, %v3686
        %v3688 = vrot.slane %v3687, 4
        %v3690 = vshll.u32 %v3570, 16
        %v3692 = vrot.slane %v3690, 5
        %v3693 = vsel %vm248, %v3688, %v3692
        %v3694 = vshrl.u32 %v3570, 16
        %v3696 = vrot.slane %v3694, 4
        %v3697 = vor.u32 %v3696, %v3692
        %v3698 = vrot.slane %v3697, 4
        %v3700 = vshll.u32 %v3571, 16
        %v3702 = vrot.slane %v3700, 5
        %v3703 = vsel %vm248, %v3698, %v3702
        %v3705 = vshrl.u32 %v3572, 16
        %v3707 = vrot.slane %v3705, 4
        %v3708 = vshll.u32 %v3572, 16
        %v3710 = vrot.slane %v3708, 5
        %v3711 = vor.u32 %v3707, %v3710
        %v3712 = vrot.slane %v3711, 4
        %v3714 = vshll.u32 %v3573, 16
        %v3716 = vrot.slane %v3714, 5
        %v3717 = vsel %vm248, %v3712, %v3716
        %v3718 = vshrl.u32 %v3573, 16
        %v3720 = vrot.slane %v3718, 4
        %v3721 = vor.u32 %v3720, %v3716
        %v3722 = vrot.slane %v3721, 4
        %v3724 = vshll.u32 %v3574, 16
        %v3726 = vrot.slane %v3724, 5
        %v3727 = vsel %vm248, %v3722, %v3726
        %v3729 = vshrl.u32 %v3575, 16
        %v3731 = vrot.slane %v3729, 4
        %v3732 = vshll.u32 %v3575, 16
        %v3734 = vrot.slane %v3732, 5
        %v3735 = vor.u32 %v3731, %v3734
        %v3736 = vrot.slane %v3735, 4
        %v3738 = vshll.u32 %v3576, 16
        %v3740 = vrot.slane %v3738, 5
        %v3741 = vsel %vm248, %v3736, %v3740
        %v3742 = vshrl.u32 %v3576, 16
        %v3744 = vrot.slane %v3742, 4
        %v3745 = vor.u32 %v3744, %v3740
        %v3746 = vrot.slane %v3745, 4
        %v3748 = vshll.u32 %v3577, 16
        %v3750 = vrot.slane %v3748, 5
        %v3751 = vsel %vm248, %v3746, %v3750
        %v3753 = vshrl.u32 %v3578, 16
        %v3755 = vrot.slane %v3753, 4
        %v3756 = vshll.u32 %v3578, 16
        %v3758 = vrot.slane %v3756, 5
        %v3759 = vor.u32 %v3755, %v3758
        %v3760 = vrot.slane %v3759, 4
        %v3762 = vshll.u32 %v3579, 16
        %v3764 = vrot.slane %v3762, 5
        %v3765 = vsel %vm248, %v3760, %v3764
        %v3766 = vshrl.u32 %v3579, 16
        %v3768 = vrot.slane %v3766, 4
        %v3769 = vor.u32 %v3768, %v3764
        %v3770 = vrot.slane %v3769, 4
        %v3772 = vshll.u32 %v3580, 16
        %v3774 = vrot.slane %v3772, 5
        %v3775 = vsel %vm248, %v3770, %v3774
        %v3777 = vshrl.u32 %v3581, 16
        %v3779 = vrot.slane %v3777, 4
        %v3780 = vshll.u32 %v3581, 16
        %v3782 = vrot.slane %v3780, 5
        %v3783 = vor.u32 %v3779, %v3782
        %v3784 = vrot.slane %v3783, 4
        %v3786 = vshll.u32 %v3582, 16
        %v3788 = vrot.slane %v3786, 5
        %v3789 = vsel %vm248, %v3784, %v3788
        %v3790 = vshrl.u32 %v3582, 16
        %v3792 = vrot.slane %v3790, 4
        %v3793 = vor.u32 %v3792, %v3788
        %v3794 = vrot.slane %v3793, 4
        %v3796 = vshll.u32 %v3583, 16
        %v3798 = vrot.slane %v3796, 5
        %v3799 = vsel %vm248, %v3794, %v3798
        %v3801 = vshrl.u32 %v3584, 16
        %v3803 = vrot.slane %v3801, 4
        %v3804 = vshll.u32 %v3584, 16
        %v3806 = vrot.slane %v3804, 5
        %v3807 = vor.u32 %v3803, %v3806
        %v3808 = vrot.slane %v3807, 4
        %v3810 = vshll.u32 %v3585, 16
        %v3812 = vrot.slane %v3810, 5
        %v3813 = vsel %vm248, %v3808, %v3812
        %v3814 = vshrl.u32 %v3585, 16
        %v3816 = vrot.slane %v3814, 4
        %v3817 = vor.u32 %v3816, %v3812
        %v3818 = vrot.slane %v3817, 4
        %v3820 = vshll.u32 %v3586, 16
        %v3822 = vrot.slane %v3820, 5
        %v3823 = vsel %vm248, %v3818, %v3822
        %v3825 = vshrl.u32 %v3587, 16
        %v3827 = vrot.slane %v3825, 4
        %v3828 = vshll.u32 %v3587, 16
        %v3830 = vrot.slane %v3828, 5
        %v3831 = vor.u32 %v3827, %v3830
        %v3832 = vrot.slane %v3831, 4
        %v3834 = vshll.u32 %v3588, 16
        %v3836 = vrot.slane %v3834, 5
        %v3837 = vsel %vm248, %v3832, %v3836
        %v3838 = vshrl.u32 %v3588, 16
        %v3840 = vrot.slane %v3838, 4
        %v3841 = vor.u32 %v3840, %v3836
        %v3842 = vrot.slane %v3841, 4
        %v3844 = vshll.u32 %v3589, 16
        %v3846 = vrot.slane %v3844, 5
        %v3847 = vsel %vm248, %v3842, %v3846
        %v3849 = vshrl.u32 %v3590, 16
        %v3851 = vrot.slane %v3849, 4
        %v3852 = vshll.u32 %v3590, 16
        %v3854 = vrot.slane %v3852, 5
        %v3855 = vor.u32 %v3851, %v3854
        %v3856 = vrot.slane %v3855, 4
        %v3858 = vshll.u32 %v3591, 16
        %v3860 = vrot.slane %v3858, 5
        %v3861 = vsel %vm248, %v3856, %v3860
        %v3862 = vshrl.u32 %v3591, 16
        %v3864 = vrot.slane %v3862, 4
        %v3865 = vor.u32 %v3864, %v3860
        %v3866 = vrot.slane %v3865, 4
        %v3868 = vshll.u32 %v3592, 16
        %v3870 = vrot.slane %v3868, 5
        %v3871 = vsel %vm248, %v3866, %v3870
        %v3873 = vshrl.u32 %v3593, 16
        %v3875 = vrot.slane %v3873, 4
        %v3876 = vshll.u32 %v3593, 16
        %v3878 = vrot.slane %v3876, 5
        %v3879 = vor.u32 %v3875, %v3878
        %v3880 = vrot.slane %v3879, 4
        %v3882 = vshll.u32 %v3594, 16
        %v3884 = vrot.slane %v3882, 5
        %v3885 = vsel %vm248, %v3880, %v3884
        %v3886 = vshrl.u32 %v3594, 16
        %v3888 = vrot.slane %v3886, 4
        %v3889 = vor.u32 %v3888, %v3884
        %v3890 = vrot.slane %v3889, 4
        %v3892 = vshll.u32 %v3595, 16
        %v3894 = vrot.slane %v3892, 5
        %v3895 = vsel %vm248, %v3890, %v3894
        %v3897 = vshrl.u32 %v3596, 16
        %v3899 = vrot.slane %v3897, 4
        %v3900 = vshll.u32 %v3596, 16
        %v3902 = vrot.slane %v3900, 5
        %v3903 = vor.u32 %v3899, %v3902
        %v3904 = vrot.slane %v3903, 4
        %v3906 = vshll.u32 %v3597, 16
        %v3908 = vrot.slane %v3906, 5
        %v3909 = vsel %vm248, %v3904, %v3908
        %v3910 = vshrl.u32 %v3597, 16
        %v3912 = vrot.slane %v3910, 4
        %v3913 = vor.u32 %v3912, %v3908
        %v3914 = vrot.slane %v3913, 4
        %v3916 = vshll.u32 %v3598, 16
        %v3918 = vrot.slane %v3916, 5
        %v3919 = vsel %vm248, %v3914, %v3918
        %v3921 = vshrl.u32 %v3599, 16
        %v3923 = vrot.slane %v3921, 4
        %v3924 = vshll.u32 %v3599, 16
        %v3926 = vrot.slane %v3924, 5
        %v3927 = vor.u32 %v3923, %v3926
        %v3928 = vrot.slane %v3927, 4
        %v3930 = vshll.u32 %v3600, 16
        %v3932 = vrot.slane %v3930, 5
        %v3933 = vsel %vm248, %v3928, %v3932
        %v3934 = vshrl.u32 %v3600, 16
        %v3936 = vrot.slane %v3934, 4
        %v3937 = vor.u32 %v3936, %v3932
        %v3938 = vrot.slane %v3937, 4
        %v3940 = vshll.u32 %v3601, 16
        %v3942 = vrot.slane %v3940, 5
        %v3943 = vsel %vm248, %v3938, %v3942
        %v3945 = vshrl.u32 %v3602, 16
        %v3947 = vrot.slane %v3945, 4
        %v3948 = vshll.u32 %v3602, 16
        %v3950 = vrot.slane %v3948, 5
        %v3951 = vor.u32 %v3947, %v3950
        %v3952 = vrot.slane %v3951, 4
        %v3954 = vshll.u32 %v3603, 16
        %v3956 = vrot.slane %v3954, 5
        %v3957 = vsel %vm248, %v3952, %v3956
        %v3958 = vshrl.u32 %v3603, 16
        %v3960 = vrot.slane %v3958, 4
        %v3961 = vor.u32 %v3960, %v3956
        %v3962 = vrot.slane %v3961, 4
        %v3964 = vshll.u32 %v3604, 16
        %v3966 = vrot.slane %v3964, 5
        %v3967 = vsel %vm248, %v3962, %v3966
        %v3969 = vshrl.u32 %v3605, 16
        %v3971 = vrot.slane %v3969, 4
        %v3972 = vshll.u32 %v3605, 16
        %v3974 = vrot.slane %v3972, 5
        %v3975 = vor.u32 %v3971, %v3974
        %v3976 = vrot.slane %v3975, 4
        %v3978 = vshll.u32 %v3606, 16
        %v3980 = vrot.slane %v3978, 5
        %v3981 = vsel %vm248, %v3976, %v3980
        %v3982 = vshrl.u32 %v3606, 16
        %v3984 = vrot.slane %v3982, 4
        %v3985 = vor.u32 %v3984, %v3980
        %v3986 = vrot.slane %v3985, 4
        %v3988 = vshll.u32 %v3607, 16
        %v3990 = vrot.slane %v3988, 5
        %v3991 = vsel %vm248, %v3986, %v3990
        %s3992 = scalar_lea.vmem %s1, 14
        %v3993 = vld [vmem:[%s3992] sm:$0x3]
        %v3994 = vunpack.c.l.b16 %v3621
        %v3995 = vunpack.c.l.b16 %v3631
        %v3996 = vunpack.c.l.b16 %v3645
        %v3997 = vunpack.c.l.b16 %v3655
        %v3998 = vunpack.c.l.b16 %v3669
        %v3999 = vunpack.c.l.b16 %v3679
        %v4000 = vunpack.c.l.b16 %v3693
        %v4001 = vunpack.c.l.b16 %v3703
        %v4002 = vunpack.c.l.b16 %v3717
        %v4003 = vunpack.c.l.b16 %v3727
        %v4004 = vunpack.c.l.b16 %v3741
        %v4005 = vunpack.c.l.b16 %v3751
        %v4006 = vunpack.c.l.b16 %v3765
        %v4007 = vunpack.c.l.b16 %v3775
        %v4008 = vunpack.c.l.b16 %v3789
        %v4009 = vunpack.c.l.b16 %v3799
        %v4010 = vunpack.c.l.b16 %v3813
        %v4011 = vunpack.c.l.b16 %v3823
        %v4012 = vunpack.c.l.b16 %v3837
        %v4013 = vunpack.c.l.b16 %v3847
        %v4014 = vunpack.c.l.b16 %v3861
        %v4015 = vunpack.c.l.b16 %v3871
        %v4016 = vunpack.c.l.b16 %v3885
        %v4017 = vunpack.c.l.b16 %v3895
        %v4018 = vunpack.c.l.b16 %v3909
        %v4019 = vunpack.c.l.b16 %v3919
        %v4020 = vunpack.c.l.b16 %v3933
        %v4021 = vunpack.c.l.b16 %v3943
        %v4022 = vunpack.c.l.b16 %v3957
        %v4023 = vunpack.c.l.b16 %v3967
        %v4024 = vunpack.c.l.b16 %v3981
        %v4025 = vunpack.c.l.b16 %v3991
        %v4026 = vpack.c.b16 %v3995, %v3994
        %v4027 = vpack.c.b16 %v3997, %v3996
        %v4028 = vpack.c.b16 %v3999, %v3998
        %v4029 = vpack.c.b16 %v4001, %v4000
        %v4030 = vpack.c.b16 %v4003, %v4002
        %v4031 = vpack.c.b16 %v4005, %v4004
        %v4032 = vpack.c.b16 %v4007, %v4006
        %v4033 = vpack.c.b16 %v4009, %v4008
        %v4034 = vpack.c.b16 %v4011, %v4010
        %v4035 = vpack.c.b16 %v4013, %v4012
        %v4036 = vpack.c.b16 %v4015, %v4014
        %v4037 = vpack.c.b16 %v4017, %v4016
        %v4038 = vpack.c.b16 %v4019, %v4018
        %v4039 = vpack.c.b16 %v4021, %v4020
        %v4040 = vpack.c.b16 %v4023, %v4022
        %v4041 = vpack.c.b16 %v4025, %v4024
        %v4043 = vsel %vm683, %v4026, 0
        %v4046 = vsel %vm683, %v4027, 0
        %v4049 = vsel %vm683, %v4028, 0
        %v4052 = vsel %vm683, %v4029, 0
        %v4055 = vsel %vm683, %v4030, 0
        %v4058 = vsel %vm683, %v4031, 0
        %v4061 = vsel %vm683, %v4032, 0
        %v4064 = vsel %vm683, %v4033, 0
        %v4067 = vsel %vm683, %v4034, 0
        %v4070 = vsel %vm683, %v4035, 0
        %v4073 = vsel %vm683, %v4036, 0
        %v4076 = vsel %vm683, %v4037, 0
        %v4079 = vsel %vm683, %v4038, 0
        %v4082 = vsel %vm683, %v4039, 0
        %v4085 = vsel %vm683, %v4040, 0
        %v4088 = vsel %vm683, %v4041, 0
        %v4091 = vsel %vm732, %v3993, 0
        %4093 = vmatprep.subr.bf16.mxu0 0
        %4094 = vmatpush1.bf16.msra.mxu0 0
        %4095 = vmatprep.subr.bf16.mxu0 0
        %4096 = vmatpush1.bf16.msra.mxu0 0
        %4097 = vmatprep.subr.bf16.mxu0 0
        %4098 = vmatpush1.bf16.msra.mxu0 0
        %4099 = vmatprep.subr.bf16.mxu0 0
        %4100 = vmatpush1.bf16.msra.mxu0 0
        %4101 = vmatprep.subr.bf16.mxu0 0
        %4102 = vmatpush1.bf16.msra.mxu0 0
        %4103 = vmatprep.subr.bf16.mxu0 0
        %4104 = vmatpush1.bf16.msra.mxu0 0
        %4105 = vmatprep.subr.bf16.mxu0 0
        %4106 = vmatpush1.bf16.msra.mxu0 0
        %4107 = vmatprep.subr.bf16.mxu0 0
        %4108 = vmatpush1.bf16.msra.mxu0 %v4091
        %4109 = vmatprep.subr.bf16.mxu0 0
        %4110 = vmatpush2.bf16.msra.mxu0 0
        %4111 = vmatprep.subr.bf16.mxu0 0
        %4112 = vmatpush2.bf16.msra.mxu0 0
        %4113 = vmatprep.subr.bf16.mxu0 0
        %4114 = vmatpush2.bf16.msra.mxu0 0
        %4115 = vmatprep.subr.bf16.mxu0 0
        %4116 = vmatpush2.bf16.msra.mxu0 0
        %4117 = vmatprep.subr.bf16.mxu0 0
        %4118 = vmatpush2.bf16.msra.mxu0 0
        %4119 = vmatprep.subr.bf16.mxu0 0
        %4120 = vmatpush2.bf16.msra.mxu0 0
        %4121 = vmatprep.subr.bf16.mxu0 0
        %4122 = vmatpush2.bf16.msra.mxu0 0
        %4123 = vmatprep.subr.bf16.mxu0 0
        %4124 = vmatpush2.bf16.msra.mxu0 0
        %4125 = vmatprep.mubr.bf16.mxu0 0
        %4126 = vmatmul.mubr.bf16.gmra.mxu0 %v4043
        %v4127 = vpop.f32.mrf.mxu0
        %v4128 = vadd.f32 0.0, %v4127
        %v4129 = vpop.f32.mrf.mxu0
        %v4130 = vpop.f32.mrf.mxu0
        %v4131 = vadd.f32 0.0, %v4130
        %v4132 = vpop.f32.mrf.mxu0
        %4133 = vmatprep.mubr.bf16.mxu0 0
        %4134 = vmatmul.mubr.bf16.gmra.mxu0 %v4046
        %v4135 = vpop.f32.mrf.mxu0
        %v4136 = vadd.f32 0.0, %v4135
        %v4137 = vpop.f32.mrf.mxu0
        %v4138 = vpop.f32.mrf.mxu0
        %v4139 = vadd.f32 0.0, %v4138
        %v4140 = vpop.f32.mrf.mxu0
        %4141 = vmatprep.mubr.bf16.mxu0 0
        %4142 = vmatmul.mubr.bf16.gmra.mxu0 %v4049
        %v4143 = vpop.f32.mrf.mxu0
        %v4144 = vadd.f32 0.0, %v4143
        %v4145 = vpop.f32.mrf.mxu0
        %v4146 = vpop.f32.mrf.mxu0
        %v4147 = vadd.f32 0.0, %v4146
        %v4148 = vpop.f32.mrf.mxu0
        %4149 = vmatprep.mubr.bf16.mxu0 0
        %4150 = vmatmul.mubr.bf16.gmra.mxu0 %v4052
        %v4151 = vpop.f32.mrf.mxu0
        %v4152 = vadd.f32 0.0, %v4151
        %v4153 = vpop.f32.mrf.mxu0
        %v4154 = vpop.f32.mrf.mxu0
        %v4155 = vadd.f32 0.0, %v4154
        %v4156 = vpop.f32.mrf.mxu0
        %4157 = vmatprep.mubr.bf16.mxu0 0
        %4158 = vmatmul.mubr.bf16.gmra.mxu0 %v4055
        %v4159 = vpop.f32.mrf.mxu0
        %v4160 = vadd.f32 0.0, %v4159
        %v4161 = vpop.f32.mrf.mxu0
        %v4162 = vpop.f32.mrf.mxu0
        %v4163 = vadd.f32 0.0, %v4162
        %v4164 = vpop.f32.mrf.mxu0
        %4165 = vmatprep.mubr.bf16.mxu0 0
        %4166 = vmatmul.mubr.bf16.gmra.mxu0 %v4058
        %v4167 = vpop.f32.mrf.mxu0
        %v4168 = vadd.f32 0.0, %v4167
        %v4169 = vpop.f32.mrf.mxu0
        %v4170 = vpop.f32.mrf.mxu0
        %v4171 = vadd.f32 0.0, %v4170
        %v4172 = vpop.f32.mrf.mxu0
        %4173 = vmatprep.mubr.bf16.mxu0 0
        %4174 = vmatmul.mubr.bf16.gmra.mxu0 %v4061
        %v4175 = vpop.f32.mrf.mxu0
        %v4176 = vadd.f32 0.0, %v4175
        %v4177 = vpop.f32.mrf.mxu0
        %v4178 = vpop.f32.mrf.mxu0
        %v4179 = vadd.f32 0.0, %v4178
        %v4180 = vpop.f32.mrf.mxu0
        %4181 = vmatprep.mubr.bf16.mxu0 0
        %4182 = vmatmul.mubr.bf16.gmra.mxu0 %v4064
        %v4183 = vpop.f32.mrf.mxu0
        %v4184 = vadd.f32 0.0, %v4183
        %v4185 = vpop.f32.mrf.mxu0
        %v4186 = vpop.f32.mrf.mxu0
        %v4187 = vadd.f32 0.0, %v4186
        %v4188 = vpop.f32.mrf.mxu0
        %4189 = vmatprep.mubr.bf16.mxu0 0
        %4190 = vmatmul.mubr.bf16.gmra.mxu0 %v4067
        %v4191 = vpop.f32.mrf.mxu0
        %v4192 = vadd.f32 0.0, %v4191
        %v4193 = vpop.f32.mrf.mxu0
        %v4194 = vpop.f32.mrf.mxu0
        %v4195 = vadd.f32 0.0, %v4194
        %v4196 = vpop.f32.mrf.mxu0
        %4197 = vmatprep.mubr.bf16.mxu0 0
        %4198 = vmatmul.mubr.bf16.gmra.mxu0 %v4070
        %v4199 = vpop.f32.mrf.mxu0
        %v4200 = vadd.f32 0.0, %v4199
        %v4201 = vpop.f32.mrf.mxu0
        %v4202 = vpop.f32.mrf.mxu0
        %v4203 = vadd.f32 0.0, %v4202
        %v4204 = vpop.f32.mrf.mxu0
        %4205 = vmatprep.mubr.bf16.mxu0 0
        %4206 = vmatmul.mubr.bf16.gmra.mxu0 %v4073
        %v4207 = vpop.f32.mrf.mxu0
        %v4208 = vadd.f32 0.0, %v4207
        %v4209 = vpop.f32.mrf.mxu0
        %v4210 = vpop.f32.mrf.mxu0
        %v4211 = vadd.f32 0.0, %v4210
        %v4212 = vpop.f32.mrf.mxu0
        %4213 = vmatprep.mubr.bf16.mxu0 0
        %4214 = vmatmul.mubr.bf16.gmra.mxu0 %v4076
        %v4215 = vpop.f32.mrf.mxu0
        %v4216 = vadd.f32 0.0, %v4215
        %v4217 = vpop.f32.mrf.mxu0
        %v4218 = vpop.f32.mrf.mxu0
        %v4219 = vadd.f32 0.0, %v4218
        %v4220 = vpop.f32.mrf.mxu0
        %4221 = vmatprep.mubr.bf16.mxu0 0
        %4222 = vmatmul.mubr.bf16.gmra.mxu0 %v4079
        %v4223 = vpop.f32.mrf.mxu0
        %v4224 = vadd.f32 0.0, %v4223
        %v4225 = vpop.f32.mrf.mxu0
        %v4226 = vpop.f32.mrf.mxu0
        %v4227 = vadd.f32 0.0, %v4226
        %v4228 = vpop.f32.mrf.mxu0
        %4229 = vmatprep.mubr.bf16.mxu0 0
        %4230 = vmatmul.mubr.bf16.gmra.mxu0 %v4082
        %v4231 = vpop.f32.mrf.mxu0
        %v4232 = vadd.f32 0.0, %v4231
        %v4233 = vpop.f32.mrf.mxu0
        %v4234 = vpop.f32.mrf.mxu0
        %v4235 = vadd.f32 0.0, %v4234
        %v4236 = vpop.f32.mrf.mxu0
        %4237 = vmatprep.mubr.bf16.mxu0 0
        %4238 = vmatmul.mubr.bf16.gmra.mxu0 %v4085
        %v4239 = vpop.f32.mrf.mxu0
        %v4240 = vadd.f32 0.0, %v4239
        %v4241 = vpop.f32.mrf.mxu0
        %v4242 = vpop.f32.mrf.mxu0
        %v4243 = vadd.f32 0.0, %v4242
        %v4244 = vpop.f32.mrf.mxu0
        %4245 = vmatprep.mubr.bf16.mxu0 0
        %4246 = vmatmul.mubr.bf16.gmra.mxu0 %v4088
        %v4247 = vpop.f32.mrf.mxu0
        %v4248 = vadd.f32 0.0, %v4247
        %v4249 = vpop.f32.mrf.mxu0
        %v4250 = vpop.f32.mrf.mxu0
        %v4251 = vadd.f32 0.0, %v4250
        %v4252 = vpop.f32.mrf.mxu0
        %4253 = vdwg.mxu0
        %v4254 = vadd.f32 %v3528, %v4128
        %v4255 = vadd.f32 %v3529, %v4131
        %v4256 = vadd.f32 %v3530, %v4136
        %v4257 = vadd.f32 %v3531, %v4139
        %v4258 = vadd.f32 %v3532, %v4144
        %v4259 = vadd.f32 %v3533, %v4147
        %v4260 = vadd.f32 %v3534, %v4152
        %v4261 = vadd.f32 %v3535, %v4155
        %v4262 = vadd.f32 %v3536, %v4160
        %v4263 = vadd.f32 %v3537, %v4163
        %v4264 = vadd.f32 %v3538, %v4168
        %v4265 = vadd.f32 %v3539, %v4171
        %v4266 = vadd.f32 %v3540, %v4176
        %v4267 = vadd.f32 %v3541, %v4179
        %v4268 = vadd.f32 %v3542, %v4184
        %v4269 = vadd.f32 %v3543, %v4187
        %v4270 = vadd.f32 %v3544, %v4192
        %v4271 = vadd.f32 %v3545, %v4195
        %v4272 = vadd.f32 %v3546, %v4200
        %v4273 = vadd.f32 %v3547, %v4203
        %v4274 = vadd.f32 %v3548, %v4208
        %v4275 = vadd.f32 %v3549, %v4211
        %v4276 = vadd.f32 %v3550, %v4216
        %v4277 = vadd.f32 %v3551, %v4219
        %v4278 = vadd.f32 %v3552, %v4224
        %v4279 = vadd.f32 %v3553, %v4227
        %v4280 = vadd.f32 %v3554, %v4232
        %v4281 = vadd.f32 %v3555, %v4235
        %v4282 = vadd.f32 %v3556, %v4240
        %v4283 = vadd.f32 %v3557, %v4243
        %v4284 = vadd.f32 %v3558, %v4248
        %v4285 = vadd.f32 %v3559, %v4251
        %v4286 = vld [vmem:[%s3201] sm:$0xe]
        %v4287 = vld [vmem:[%s3201 + $0xc] sm:$0xe]
        %v4288 = vld [vmem:[%s3201 + $0x18] sm:$0xe]
        %v4289 = vld [vmem:[%s3201 + $0x24] sm:$0xe]
        %v4290 = vld [vmem:[%s3201 + $0x30] sm:$0xe]
        %v4291 = vld [vmem:[%s3201 + $0x3c] sm:$0xe]
        %v4292 = vld [vmem:[%s3201 + $0x48] sm:$0xe]
        %v4293 = vld [vmem:[%s3201 + $0x54] sm:$0xe]
        %v4294 = vld [vmem:[%s3201 + $0x60] sm:$0xe]
        %v4295 = vld [vmem:[%s3201 + $0x6c] sm:$0xe]
        %v4296 = vld [vmem:[%s3201 + $0x78] sm:$0xe]
        %v4297 = vld [vmem:[%s3201 + $0x84] sm:$0xe]
        %v4298 = vld [vmem:[%s3201 + $0x90] sm:$0xe]
        %v4299 = vld [vmem:[%s3201 + $0x9c] sm:$0xe]
        %v4300 = vld [vmem:[%s3201 + $0xa8] sm:$0xe]
        %v4301 = vld [vmem:[%s3201 + $0xb4] sm:$0xe]
        %v4350 = vrot.slane %v4286, 5
        %v4351 = vrot.slane %v4350, 4
        %v4352 = vrot.slane %v3561, 5
        %v4353 = vsel %vm1239, %v4351, %v4352
        %v4354 = vrot.slane %v4352, 4
        %v4355 = vrot.slane %v3562, 5
        %v4356 = vsel %vm1239, %v4354, %v4355
        %v4357 = vrot.slane %v4287, 5
        %v4358 = vrot.slane %v4357, 4
        %v4359 = vrot.slane %v3564, 5
        %v4360 = vsel %vm1239, %v4358, %v4359
        %v4361 = vrot.slane %v4359, 4
        %v4362 = vrot.slane %v3565, 5
        %v4363 = vsel %vm1239, %v4361, %v4362
        %v4364 = vrot.slane %v4288, 5
        %v4365 = vrot.slane %v4364, 4
        %v4366 = vrot.slane %v3567, 5
        %v4367 = vsel %vm1239, %v4365, %v4366
        %v4368 = vrot.slane %v4366, 4
        %v4369 = vrot.slane %v3568, 5
        %v4370 = vsel %vm1239, %v4368, %v4369
        %v4371 = vrot.slane %v4289, 5
        %v4372 = vrot.slane %v4371, 4
        %v4373 = vrot.slane %v3570, 5
        %v4374 = vsel %vm1239, %v4372, %v4373
        %v4375 = vrot.slane %v4373, 4
        %v4376 = vrot.slane %v3571, 5
        %v4377 = vsel %vm1239, %v4375, %v4376
        %v4378 = vrot.slane %v4290, 5
        %v4379 = vrot.slane %v4378, 4
        %v4380 = vrot.slane %v3573, 5
        %v4381 = vsel %vm1239, %v4379, %v4380
        %v4382 = vrot.slane %v4380, 4
        %v4383 = vrot.slane %v3574, 5
        %v4384 = vsel %vm1239, %v4382, %v4383
        %v4385 = vrot.slane %v4291, 5
        %v4386 = vrot.slane %v4385, 4
        %v4387 = vrot.slane %v3576, 5
        %v4388 = vsel %vm1239, %v4386, %v4387
        %v4389 = vrot.slane %v4387, 4
        %v4390 = vrot.slane %v3577, 5
        %v4391 = vsel %vm1239, %v4389, %v4390
        %v4392 = vrot.slane %v4292, 5
        %v4393 = vrot.slane %v4392, 4
        %v4394 = vrot.slane %v3579, 5
        %v4395 = vsel %vm1239, %v4393, %v4394
        %v4396 = vrot.slane %v4394, 4
        %v4397 = vrot.slane %v3580, 5
        %v4398 = vsel %vm1239, %v4396, %v4397
        %v4399 = vrot.slane %v4293, 5
        %v4400 = vrot.slane %v4399, 4
        %v4401 = vrot.slane %v3582, 5
        %v4402 = vsel %vm1239, %v4400, %v4401
        %v4403 = vrot.slane %v4401, 4
        %v4404 = vrot.slane %v3583, 5
        %v4405 = vsel %vm1239, %v4403, %v4404
        %v4406 = vrot.slane %v4294, 5
        %v4407 = vrot.slane %v4406, 4
        %v4408 = vrot.slane %v3585, 5
        %v4409 = vsel %vm1239, %v4407, %v4408
        %v4410 = vrot.slane %v4408, 4
        %v4411 = vrot.slane %v3586, 5
        %v4412 = vsel %vm1239, %v4410, %v4411
        %v4413 = vrot.slane %v4295, 5
        %v4414 = vrot.slane %v4413, 4
        %v4415 = vrot.slane %v3588, 5
        %v4416 = vsel %vm1239, %v4414, %v4415
        %v4417 = vrot.slane %v4415, 4
        %v4418 = vrot.slane %v3589, 5
        %v4419 = vsel %vm1239, %v4417, %v4418
        %v4420 = vrot.slane %v4296, 5
        %v4421 = vrot.slane %v4420, 4
        %v4422 = vrot.slane %v3591, 5
        %v4423 = vsel %vm1239, %v4421, %v4422
        %v4424 = vrot.slane %v4422, 4
        %v4425 = vrot.slane %v3592, 5
        %v4426 = vsel %vm1239, %v4424, %v4425
        %v4427 = vrot.slane %v4297, 5
        %v4428 = vrot.slane %v4427, 4
        %v4429 = vrot.slane %v3594, 5
        %v4430 = vsel %vm1239, %v4428, %v4429
        %v4431 = vrot.slane %v4429, 4
        %v4432 = vrot.slane %v3595, 5
        %v4433 = vsel %vm1239, %v4431, %v4432
        %v4434 = vrot.slane %v4298, 5
        %v4435 = vrot.slane %v4434, 4
        %v4436 = vrot.slane %v3597, 5
        %v4437 = vsel %vm1239, %v4435, %v4436
        %v4438 = vrot.slane %v4436, 4
        %v4439 = vrot.slane %v3598, 5
        %v4440 = vsel %vm1239, %v4438, %v4439
        %v4441 = vrot.slane %v4299, 5
        %v4442 = vrot.slane %v4441, 4
        %v4443 = vrot.slane %v3600, 5
        %v4444 = vsel %vm1239, %v4442, %v4443
        %v4445 = vrot.slane %v4443, 4
        %v4446 = vrot.slane %v3601, 5
        %v4447 = vsel %vm1239, %v4445, %v4446
        %v4448 = vrot.slane %v4300, 5
        %v4449 = vrot.slane %v4448, 4
        %v4450 = vrot.slane %v3603, 5
        %v4451 = vsel %vm1239, %v4449, %v4450
        %v4452 = vrot.slane %v4450, 4
        %v4453 = vrot.slane %v3604, 5
        %v4454 = vsel %vm1239, %v4452, %v4453
        %v4455 = vrot.slane %v4301, 5
        %v4456 = vrot.slane %v4455, 4
        %v4457 = vrot.slane %v3606, 5
        %v4458 = vsel %vm1239, %v4456, %v4457
        %v4459 = vrot.slane %v4457, 4
        %v4460 = vrot.slane %v3607, 5
        %v4461 = vsel %vm1239, %v4459, %v4460
        %s4462 = scalar_lea.vmem %s1, 16
        %v4463 = vld [vmem:[%s4462] sm:$0x3]
        %v4464 = vunpack.c.l.b16 %v4353
        %v4465 = vunpack.c.l.b16 %v4356
        %v4466 = vunpack.c.l.b16 %v4360
        %v4467 = vunpack.c.l.b16 %v4363
        %v4468 = vunpack.c.l.b16 %v4367
        %v4469 = vunpack.c.l.b16 %v4370
        %v4470 = vunpack.c.l.b16 %v4374
        %v4471 = vunpack.c.l.b16 %v4377
        %v4472 = vunpack.c.l.b16 %v4381
        %v4473 = vunpack.c.l.b16 %v4384
        %v4474 = vunpack.c.l.b16 %v4388
        %v4475 = vunpack.c.l.b16 %v4391
        %v4476 = vunpack.c.l.b16 %v4395
        %v4477 = vunpack.c.l.b16 %v4398
        %v4478 = vunpack.c.l.b16 %v4402
        %v4479 = vunpack.c.l.b16 %v4405
        %v4480 = vunpack.c.l.b16 %v4409
        %v4481 = vunpack.c.l.b16 %v4412
        %v4482 = vunpack.c.l.b16 %v4416
        %v4483 = vunpack.c.l.b16 %v4419
        %v4484 = vunpack.c.l.b16 %v4423
        %v4485 = vunpack.c.l.b16 %v4426
        %v4486 = vunpack.c.l.b16 %v4430
        %v4487 = vunpack.c.l.b16 %v4433
        %v4488 = vunpack.c.l.b16 %v4437
        %v4489 = vunpack.c.l.b16 %v4440
        %v4490 = vunpack.c.l.b16 %v4444
        %v4491 = vunpack.c.l.b16 %v4447
        %v4492 = vunpack.c.l.b16 %v4451
        %v4493 = vunpack.c.l.b16 %v4454
        %v4494 = vunpack.c.l.b16 %v4458
        %v4495 = vunpack.c.l.b16 %v4461
        %v4496 = vpack.c.b16 %v4465, %v4464
        %v4497 = vpack.c.b16 %v4467, %v4466
        %v4498 = vpack.c.b16 %v4469, %v4468
        %v4499 = vpack.c.b16 %v4471, %v4470
        %v4500 = vpack.c.b16 %v4473, %v4472
        %v4501 = vpack.c.b16 %v4475, %v4474
        %v4502 = vpack.c.b16 %v4477, %v4476
        %v4503 = vpack.c.b16 %v4479, %v4478
        %v4504 = vpack.c.b16 %v4481, %v4480
        %v4505 = vpack.c.b16 %v4483, %v4482
        %v4506 = vpack.c.b16 %v4485, %v4484
        %v4507 = vpack.c.b16 %v4487, %v4486
        %v4508 = vpack.c.b16 %v4489, %v4488
        %v4509 = vpack.c.b16 %v4491, %v4490
        %v4510 = vpack.c.b16 %v4493, %v4492
        %v4511 = vpack.c.b16 %v4495, %v4494
        %v4513 = vsel %vm683, %v4496, 0
        %v4516 = vsel %vm683, %v4497, 0
        %v4519 = vsel %vm683, %v4498, 0
        %v4522 = vsel %vm683, %v4499, 0
        %v4525 = vsel %vm683, %v4500, 0
        %v4528 = vsel %vm683, %v4501, 0
        %v4531 = vsel %vm683, %v4502, 0
        %v4534 = vsel %vm683, %v4503, 0
        %v4537 = vsel %vm683, %v4504, 0
        %v4540 = vsel %vm683, %v4505, 0
        %v4543 = vsel %vm683, %v4506, 0
        %v4546 = vsel %vm683, %v4507, 0
        %v4549 = vsel %vm683, %v4508, 0
        %v4552 = vsel %vm683, %v4509, 0
        %v4555 = vsel %vm683, %v4510, 0
        %v4558 = vsel %vm683, %v4511, 0
        %v4561 = vsel %vm732, %v4463, 0
        %4563 = vmatprep.subr.bf16.mxu0 0
        %4564 = vmatpush1.bf16.msra.mxu0 0
        %4565 = vmatprep.subr.bf16.mxu0 0
        %4566 = vmatpush1.bf16.msra.mxu0 0
        %4567 = vmatprep.subr.bf16.mxu0 0
        %4568 = vmatpush1.bf16.msra.mxu0 0
        %4569 = vmatprep.subr.bf16.mxu0 0
        %4570 = vmatpush1.bf16.msra.mxu0 0
        %4571 = vmatprep.subr.bf16.mxu0 0
        %4572 = vmatpush1.bf16.msra.mxu0 0
        %4573 = vmatprep.subr.bf16.mxu0 0
        %4574 = vmatpush1.bf16.msra.mxu0 0
        %4575 = vmatprep.subr.bf16.mxu0 0
        %4576 = vmatpush1.bf16.msra.mxu0 0
        %4577 = vmatprep.subr.bf16.mxu0 0
        %4578 = vmatpush1.bf16.msra.mxu0 %v4561
        %4579 = vmatprep.subr.bf16.mxu0 0
        %4580 = vmatpush2.bf16.msra.mxu0 0
        %4581 = vmatprep.subr.bf16.mxu0 0
        %4582 = vmatpush2.bf16.msra.mxu0 0
        %4583 = vmatprep.subr.bf16.mxu0 0
        %4584 = vmatpush2.bf16.msra.mxu0 0
        %4585 = vmatprep.subr.bf16.mxu0 0
        %4586 = vmatpush2.bf16.msra.mxu0 0
        %4587 = vmatprep.subr.bf16.mxu0 0
        %4588 = vmatpush2.bf16.msra.mxu0 0
        %4589 = vmatprep.subr.bf16.mxu0 0
        %4590 = vmatpush2.bf16.msra.mxu0 0
        %4591 = vmatprep.subr.bf16.mxu0 0
        %4592 = vmatpush2.bf16.msra.mxu0 0
        %4593 = vmatprep.subr.bf16.mxu0 0
        %4594 = vmatpush2.bf16.msra.mxu0 0
        %4595 = vmatprep.mubr.bf16.mxu0 0
        %4596 = vmatmul.mubr.bf16.gmra.mxu0 %v4513
        %v4597 = vpop.f32.mrf.mxu0
        %v4598 = vadd.f32 0.0, %v4597
        %v4599 = vpop.f32.mrf.mxu0
        %v4600 = vpop.f32.mrf.mxu0
        %v4601 = vadd.f32 0.0, %v4600
        %v4602 = vpop.f32.mrf.mxu0
        %4603 = vmatprep.mubr.bf16.mxu0 0
        %4604 = vmatmul.mubr.bf16.gmra.mxu0 %v4516
        %v4605 = vpop.f32.mrf.mxu0
        %v4606 = vadd.f32 0.0, %v4605
        %v4607 = vpop.f32.mrf.mxu0
        %v4608 = vpop.f32.mrf.mxu0
        %v4609 = vadd.f32 0.0, %v4608
        %v4610 = vpop.f32.mrf.mxu0
        %4611 = vmatprep.mubr.bf16.mxu0 0
        %4612 = vmatmul.mubr.bf16.gmra.mxu0 %v4519
        %v4613 = vpop.f32.mrf.mxu0
        %v4614 = vadd.f32 0.0, %v4613
        %v4615 = vpop.f32.mrf.mxu0
        %v4616 = vpop.f32.mrf.mxu0
        %v4617 = vadd.f32 0.0, %v4616
        %v4618 = vpop.f32.mrf.mxu0
        %4619 = vmatprep.mubr.bf16.mxu0 0
        %4620 = vmatmul.mubr.bf16.gmra.mxu0 %v4522
        %v4621 = vpop.f32.mrf.mxu0
        %v4622 = vadd.f32 0.0, %v4621
        %v4623 = vpop.f32.mrf.mxu0
        %v4624 = vpop.f32.mrf.mxu0
        %v4625 = vadd.f32 0.0, %v4624
        %v4626 = vpop.f32.mrf.mxu0
        %4627 = vmatprep.mubr.bf16.mxu0 0
        %4628 = vmatmul.mubr.bf16.gmra.mxu0 %v4525
        %v4629 = vpop.f32.mrf.mxu0
        %v4630 = vadd.f32 0.0, %v4629
        %v4631 = vpop.f32.mrf.mxu0
        %v4632 = vpop.f32.mrf.mxu0
        %v4633 = vadd.f32 0.0, %v4632
        %v4634 = vpop.f32.mrf.mxu0
        %4635 = vmatprep.mubr.bf16.mxu0 0
        %4636 = vmatmul.mubr.bf16.gmra.mxu0 %v4528
        %v4637 = vpop.f32.mrf.mxu0
        %v4638 = vadd.f32 0.0, %v4637
        %v4639 = vpop.f32.mrf.mxu0
        %v4640 = vpop.f32.mrf.mxu0
        %v4641 = vadd.f32 0.0, %v4640
        %v4642 = vpop.f32.mrf.mxu0
        %4643 = vmatprep.mubr.bf16.mxu0 0
        %4644 = vmatmul.mubr.bf16.gmra.mxu0 %v4531
        %v4645 = vpop.f32.mrf.mxu0
        %v4646 = vadd.f32 0.0, %v4645
        %v4647 = vpop.f32.mrf.mxu0
        %v4648 = vpop.f32.mrf.mxu0
        %v4649 = vadd.f32 0.0, %v4648
        %v4650 = vpop.f32.mrf.mxu0
        %4651 = vmatprep.mubr.bf16.mxu0 0
        %4652 = vmatmul.mubr.bf16.gmra.mxu0 %v4534
        %v4653 = vpop.f32.mrf.mxu0
        %v4654 = vadd.f32 0.0, %v4653
        %v4655 = vpop.f32.mrf.mxu0
        %v4656 = vpop.f32.mrf.mxu0
        %v4657 = vadd.f32 0.0, %v4656
        %v4658 = vpop.f32.mrf.mxu0
        %4659 = vmatprep.mubr.bf16.mxu0 0
        %4660 = vmatmul.mubr.bf16.gmra.mxu0 %v4537
        %v4661 = vpop.f32.mrf.mxu0
        %v4662 = vadd.f32 0.0, %v4661
        %v4663 = vpop.f32.mrf.mxu0
        %v4664 = vpop.f32.mrf.mxu0
        %v4665 = vadd.f32 0.0, %v4664
        %v4666 = vpop.f32.mrf.mxu0
        %4667 = vmatprep.mubr.bf16.mxu0 0
        %4668 = vmatmul.mubr.bf16.gmra.mxu0 %v4540
        %v4669 = vpop.f32.mrf.mxu0
        %v4670 = vadd.f32 0.0, %v4669
        %v4671 = vpop.f32.mrf.mxu0
        %v4672 = vpop.f32.mrf.mxu0
        %v4673 = vadd.f32 0.0, %v4672
        %v4674 = vpop.f32.mrf.mxu0
        %4675 = vmatprep.mubr.bf16.mxu0 0
        %4676 = vmatmul.mubr.bf16.gmra.mxu0 %v4543
        %v4677 = vpop.f32.mrf.mxu0
        %v4678 = vadd.f32 0.0, %v4677
        %v4679 = vpop.f32.mrf.mxu0
        %v4680 = vpop.f32.mrf.mxu0
        %v4681 = vadd.f32 0.0, %v4680
        %v4682 = vpop.f32.mrf.mxu0
        %4683 = vmatprep.mubr.bf16.mxu0 0
        %4684 = vmatmul.mubr.bf16.gmra.mxu0 %v4546
        %v4685 = vpop.f32.mrf.mxu0
        %v4686 = vadd.f32 0.0, %v4685
        %v4687 = vpop.f32.mrf.mxu0
        %v4688 = vpop.f32.mrf.mxu0
        %v4689 = vadd.f32 0.0, %v4688
        %v4690 = vpop.f32.mrf.mxu0
        %4691 = vmatprep.mubr.bf16.mxu0 0
        %4692 = vmatmul.mubr.bf16.gmra.mxu0 %v4549
        %v4693 = vpop.f32.mrf.mxu0
        %v4694 = vadd.f32 0.0, %v4693
        %v4695 = vpop.f32.mrf.mxu0
        %v4696 = vpop.f32.mrf.mxu0
        %v4697 = vadd.f32 0.0, %v4696
        %v4698 = vpop.f32.mrf.mxu0
        %4699 = vmatprep.mubr.bf16.mxu0 0
        %4700 = vmatmul.mubr.bf16.gmra.mxu0 %v4552
        %v4701 = vpop.f32.mrf.mxu0
        %v4702 = vadd.f32 0.0, %v4701
        %v4703 = vpop.f32.mrf.mxu0
        %v4704 = vpop.f32.mrf.mxu0
        %v4705 = vadd.f32 0.0, %v4704
        %v4706 = vpop.f32.mrf.mxu0
        %4707 = vmatprep.mubr.bf16.mxu0 0
        %4708 = vmatmul.mubr.bf16.gmra.mxu0 %v4555
        %v4709 = vpop.f32.mrf.mxu0
        %v4710 = vadd.f32 0.0, %v4709
        %v4711 = vpop.f32.mrf.mxu0
        %v4712 = vpop.f32.mrf.mxu0
        %v4713 = vadd.f32 0.0, %v4712
        %v4714 = vpop.f32.mrf.mxu0
        %4715 = vmatprep.mubr.bf16.mxu0 0
        %4716 = vmatmul.mubr.bf16.gmra.mxu0 %v4558
        %v4717 = vpop.f32.mrf.mxu0
        %v4718 = vadd.f32 0.0, %v4717
        %v4719 = vpop.f32.mrf.mxu0
        %v4720 = vpop.f32.mrf.mxu0
        %v4721 = vadd.f32 0.0, %v4720
        %v4722 = vpop.f32.mrf.mxu0
        %4723 = vdwg.mxu0
        %v4724 = vadd.f32 %v4254, %v4598
        %v4725 = vadd.f32 %v4255, %v4601
        %v4726 = vadd.f32 %v4256, %v4606
        %v4727 = vadd.f32 %v4257, %v4609
        %v4728 = vadd.f32 %v4258, %v4614
        %v4729 = vadd.f32 %v4259, %v4617
        %v4730 = vadd.f32 %v4260, %v4622
        %v4731 = vadd.f32 %v4261, %v4625
        %v4732 = vadd.f32 %v4262, %v4630
        %v4733 = vadd.f32 %v4263, %v4633
        %v4734 = vadd.f32 %v4264, %v4638
        %v4735 = vadd.f32 %v4265, %v4641
        %v4736 = vadd.f32 %v4266, %v4646
        %v4737 = vadd.f32 %v4267, %v4649
        %v4738 = vadd.f32 %v4268, %v4654
        %v4739 = vadd.f32 %v4269, %v4657
        %v4740 = vadd.f32 %v4270, %v4662
        %v4741 = vadd.f32 %v4271, %v4665
        %v4742 = vadd.f32 %v4272, %v4670
        %v4743 = vadd.f32 %v4273, %v4673
        %v4744 = vadd.f32 %v4274, %v4678
        %v4745 = vadd.f32 %v4275, %v4681
        %v4746 = vadd.f32 %v4276, %v4686
        %v4747 = vadd.f32 %v4277, %v4689
        %v4748 = vadd.f32 %v4278, %v4694
        %v4749 = vadd.f32 %v4279, %v4697
        %v4750 = vadd.f32 %v4280, %v4702
        %v4751 = vadd.f32 %v4281, %v4705
        %v4752 = vadd.f32 %v4282, %v4710
        %v4753 = vadd.f32 %v4283, %v4713
        %v4754 = vadd.f32 %v4284, %v4718
        %v4755 = vadd.f32 %v4285, %v4721
        %v4756 = vld [vmem:[%s3] sm:$0x1]
        %v4757 = vlaneseq
        %v4758 = vshrl.u32 %v4757, 7
        %v4759 = vsub.s32 0, %v4758
        %v4760 = vrot.slane %v4756, %v4759
        %v4761 = vadd.f32 %v4724, %v4760
        %v4762 = vadd.f32 %v4725, %v4760
        %v4763 = vadd.f32 %v4726, %v4760
        %v4764 = vadd.f32 %v4727, %v4760
        %v4765 = vadd.f32 %v4728, %v4760
        %v4766 = vadd.f32 %v4729, %v4760
        %v4767 = vadd.f32 %v4730, %v4760
        %v4768 = vadd.f32 %v4731, %v4760
        %v4769 = vadd.f32 %v4732, %v4760
        %v4770 = vadd.f32 %v4733, %v4760
        %v4771 = vadd.f32 %v4734, %v4760
        %v4772 = vadd.f32 %v4735, %v4760
        %v4773 = vadd.f32 %v4736, %v4760
        %v4774 = vadd.f32 %v4737, %v4760
        %v4775 = vadd.f32 %v4738, %v4760
        %v4776 = vadd.f32 %v4739, %v4760
        %v4777 = vadd.f32 %v4740, %v4760
        %v4778 = vadd.f32 %v4741, %v4760
        %v4779 = vadd.f32 %v4742, %v4760
        %v4780 = vadd.f32 %v4743, %v4760
        %v4781 = vadd.f32 %v4744, %v4760
        %v4782 = vadd.f32 %v4745, %v4760
        %v4783 = vadd.f32 %v4746, %v4760
        %v4784 = vadd.f32 %v4747, %v4760
        %v4785 = vadd.f32 %v4748, %v4760
        %v4786 = vadd.f32 %v4749, %v4760
        %v4787 = vadd.f32 %v4750, %v4760
        %v4788 = vadd.f32 %v4751, %v4760
        %v4789 = vadd.f32 %v4752, %v4760
        %v4790 = vadd.f32 %v4753, %v4760
        %v4791 = vadd.f32 %v4754, %v4760
        %v4792 = vadd.f32 %v4755, %v4760
        %vm4793 = vcmask 261120
        %v4794 = vsel %vm4793, %v4761, 0.0
        %v4795 = vsel %vm4793, %v4762, 0.0
        %v4796 = vadd.f32 %v4794, %v4795
        %v4797 = vsel %vm4793, %v4763, 0.0
        %v4798 = vadd.f32 %v4796, %v4797
        %v4799 = vsel %vm4793, %v4764, 0.0
        %v4800 = vadd.f32 %v4798, %v4799
        %v4801 = vsel %vm4793, %v4765, 0.0
        %v4802 = vadd.f32 %v4800, %v4801
        %v4803 = vsel %vm4793, %v4766, 0.0
        %v4804 = vadd.f32 %v4802, %v4803
        %v4805 = vsel %vm4793, %v4767, 0.0
        %v4806 = vadd.f32 %v4804, %v4805
        %v4807 = vsel %vm4793, %v4768, 0.0
        %v4808 = vadd.f32 %v4806, %v4807
        %v4809 = vsel %vm4793, %v4769, 0.0
        %v4810 = vadd.f32 %v4808, %v4809
        %v4811 = vsel %vm4793, %v4770, 0.0
        %v4812 = vadd.f32 %v4810, %v4811
        %v4813 = vsel %vm4793, %v4771, 0.0
        %v4814 = vadd.f32 %v4812, %v4813
        %v4815 = vsel %vm4793, %v4772, 0.0
        %v4816 = vadd.f32 %v4814, %v4815
        %v4817 = vsel %vm4793, %v4773, 0.0
        %v4818 = vadd.f32 %v4816, %v4817
        %v4819 = vsel %vm4793, %v4774, 0.0
        %v4820 = vadd.f32 %v4818, %v4819
        %v4821 = vsel %vm4793, %v4775, 0.0
        %v4822 = vadd.f32 %v4820, %v4821
        %v4823 = vsel %vm4793, %v4776, 0.0
        %v4824 = vadd.f32 %v4822, %v4823
        %v4825 = vsel %vm4793, %v4777, 0.0
        %v4826 = vadd.f32 %v4824, %v4825
        %v4827 = vsel %vm4793, %v4778, 0.0
        %v4828 = vadd.f32 %v4826, %v4827
        %v4829 = vsel %vm4793, %v4779, 0.0
        %v4830 = vadd.f32 %v4828, %v4829
        %v4831 = vsel %vm4793, %v4780, 0.0
        %v4832 = vadd.f32 %v4830, %v4831
        %v4833 = vsel %vm4793, %v4781, 0.0
        %v4834 = vadd.f32 %v4832, %v4833
        %v4835 = vsel %vm4793, %v4782, 0.0
        %v4836 = vadd.f32 %v4834, %v4835
        %v4837 = vsel %vm4793, %v4783, 0.0
        %v4838 = vadd.f32 %v4836, %v4837
        %v4839 = vsel %vm4793, %v4784, 0.0
        %v4840 = vadd.f32 %v4838, %v4839
        %v4841 = vsel %vm4793, %v4785, 0.0
        %v4842 = vadd.f32 %v4840, %v4841
        %v4843 = vsel %vm4793, %v4786, 0.0
        %v4844 = vadd.f32 %v4842, %v4843
        %v4845 = vsel %vm4793, %v4787, 0.0
        %v4846 = vadd.f32 %v4844, %v4845
        %v4847 = vsel %vm4793, %v4788, 0.0
        %v4848 = vadd.f32 %v4846, %v4847
        %v4849 = vsel %vm4793, %v4789, 0.0
        %v4850 = vadd.f32 %v4848, %v4849
        %v4851 = vsel %vm4793, %v4790, 0.0
        %v4852 = vadd.f32 %v4850, %v4851
        %v4853 = vsel %vm4793, %v4791, 0.0
        %v4854 = vadd.f32 %v4852, %v4853
        %v4855 = vsel %vm4793, %v4792, 0.0
        %v4856 = vadd.f32 %v4854, %v4855
        %v4857 = vrot.slane %v4856, 4
        %v4858 = vadd.f32 %v4856, %v4857
        %v4859 = vrot.slane %v4858, 2
        %v4860 = vadd.f32 %v4858, %v4859
        %v4861 = vrot.slane %v4860, 1
        %v4862 = vadd.f32 %v4860, %v4861
        %v4863 = vrcp.pop 256.0
        %v4864 = vmul.f32 %v4862, %v4863
        %v4865 = vsub.f32 %v4761, %v4864
        %v4866 = vsub.f32 %v4762, %v4864
        %v4867 = vsub.f32 %v4763, %v4864
        %v4868 = vsub.f32 %v4764, %v4864
        %v4869 = vsub.f32 %v4765, %v4864
        %v4870 = vsub.f32 %v4766, %v4864
        %v4871 = vsub.f32 %v4767, %v4864
        %v4872 = vsub.f32 %v4768, %v4864
        %v4873 = vsub.f32 %v4769, %v4864
        %v4874 = vsub.f32 %v4770, %v4864
        %v4875 = vsub.f32 %v4771, %v4864
        %v4876 = vsub.f32 %v4772, %v4864
        %v4877 = vsub.f32 %v4773, %v4864
        %v4878 = vsub.f32 %v4774, %v4864
        %v4879 = vsub.f32 %v4775, %v4864
        %v4880 = vsub.f32 %v4776, %v4864
        %v4881 = vsub.f32 %v4777, %v4864
        %v4882 = vsub.f32 %v4778, %v4864
        %v4883 = vsub.f32 %v4779, %v4864
        %v4884 = vsub.f32 %v4780, %v4864
        %v4885 = vsub.f32 %v4781, %v4864
        %v4886 = vsub.f32 %v4782, %v4864
        %v4887 = vsub.f32 %v4783, %v4864
        %v4888 = vsub.f32 %v4784, %v4864
        %v4889 = vsub.f32 %v4785, %v4864
        %v4890 = vsub.f32 %v4786, %v4864
        %v4891 = vsub.f32 %v4787, %v4864
        %v4892 = vsub.f32 %v4788, %v4864
        %v4893 = vsub.f32 %v4789, %v4864
        %v4894 = vsub.f32 %v4790, %v4864
        %v4895 = vsub.f32 %v4791, %v4864
        %v4896 = vsub.f32 %v4792, %v4864
        %v4897 = vmul.f32 %v4865, %v4865
        %v4898 = vmul.f32 %v4866, %v4866
        %v4899 = vmul.f32 %v4867, %v4867
        %v4900 = vmul.f32 %v4868, %v4868
        %v4901 = vmul.f32 %v4869, %v4869
        %v4902 = vmul.f32 %v4870, %v4870
        %v4903 = vmul.f32 %v4871, %v4871
        %v4904 = vmul.f32 %v4872, %v4872
        %v4905 = vmul.f32 %v4873, %v4873
        %v4906 = vmul.f32 %v4874, %v4874
        %v4907 = vmul.f32 %v4875, %v4875
        %v4908 = vmul.f32 %v4876, %v4876
        %v4909 = vmul.f32 %v4877, %v4877
        %v4910 = vmul.f32 %v4878, %v4878
        %v4911 = vmul.f32 %v4879, %v4879
        %v4912 = vmul.f32 %v4880, %v4880
        %v4913 = vmul.f32 %v4881, %v4881
        %v4914 = vmul.f32 %v4882, %v4882
        %v4915 = vmul.f32 %v4883, %v4883
        %v4916 = vmul.f32 %v4884, %v4884
        %v4917 = vmul.f32 %v4885, %v4885
        %v4918 = vmul.f32 %v4886, %v4886
        %v4919 = vmul.f32 %v4887, %v4887
        %v4920 = vmul.f32 %v4888, %v4888
        %v4921 = vmul.f32 %v4889, %v4889
        %v4922 = vmul.f32 %v4890, %v4890
        %v4923 = vmul.f32 %v4891, %v4891
        %v4924 = vmul.f32 %v4892, %v4892
        %v4925 = vmul.f32 %v4893, %v4893
        %v4926 = vmul.f32 %v4894, %v4894
        %v4927 = vmul.f32 %v4895, %v4895
        %v4928 = vmul.f32 %v4896, %v4896
        %v4929 = vsel %vm4793, %v4897, 0.0
        %v4930 = vsel %vm4793, %v4898, 0.0
        %v4931 = vadd.f32 %v4929, %v4930
        %v4932 = vsel %vm4793, %v4899, 0.0
        %v4933 = vadd.f32 %v4931, %v4932
        %v4934 = vsel %vm4793, %v4900, 0.0
        %v4935 = vadd.f32 %v4933, %v4934
        %v4936 = vsel %vm4793, %v4901, 0.0
        %v4937 = vadd.f32 %v4935, %v4936
        %v4938 = vsel %vm4793, %v4902, 0.0
        %v4939 = vadd.f32 %v4937, %v4938
        %v4940 = vsel %vm4793, %v4903, 0.0
        %v4941 = vadd.f32 %v4939, %v4940
        %v4942 = vsel %vm4793, %v4904, 0.0
        %v4943 = vadd.f32 %v4941, %v4942
        %v4944 = vsel %vm4793, %v4905, 0.0
        %v4945 = vadd.f32 %v4943, %v4944
        %v4946 = vsel %vm4793, %v4906, 0.0
        %v4947 = vadd.f32 %v4945, %v4946
        %v4948 = vsel %vm4793, %v4907, 0.0
        %v4949 = vadd.f32 %v4947, %v4948
        %v4950 = vsel %vm4793, %v4908, 0.0
        %v4951 = vadd.f32 %v4949, %v4950
        %v4952 = vsel %vm4793, %v4909, 0.0
        %v4953 = vadd.f32 %v4951, %v4952
        %v4954 = vsel %vm4793, %v4910, 0.0
        %v4955 = vadd.f32 %v4953, %v4954
        %v4956 = vsel %vm4793, %v4911, 0.0
        %v4957 = vadd.f32 %v4955, %v4956
        %v4958 = vsel %vm4793, %v4912, 0.0
        %v4959 = vadd.f32 %v4957, %v4958
        %v4960 = vsel %vm4793, %v4913, 0.0
        %v4961 = vadd.f32 %v4959, %v4960
        %v4962 = vsel %vm4793, %v4914, 0.0
        %v4963 = vadd.f32 %v4961, %v4962
        %v4964 = vsel %vm4793, %v4915, 0.0
        %v4965 = vadd.f32 %v4963, %v4964
        %v4966 = vsel %vm4793, %v4916, 0.0
        %v4967 = vadd.f32 %v4965, %v4966
        %v4968 = vsel %vm4793, %v4917, 0.0
        %v4969 = vadd.f32 %v4967, %v4968
        %v4970 = vsel %vm4793, %v4918, 0.0
        %v4971 = vadd.f32 %v4969, %v4970
        %v4972 = vsel %vm4793, %v4919, 0.0
        %v4973 = vadd.f32 %v4971, %v4972
        %v4974 = vsel %vm4793, %v4920, 0.0
        %v4975 = vadd.f32 %v4973, %v4974
        %v4976 = vsel %vm4793, %v4921, 0.0
        %v4977 = vadd.f32 %v4975, %v4976
        %v4978 = vsel %vm4793, %v4922, 0.0
        %v4979 = vadd.f32 %v4977, %v4978
        %v4980 = vsel %vm4793, %v4923, 0.0
        %v4981 = vadd.f32 %v4979, %v4980
        %v4982 = vsel %vm4793, %v4924, 0.0
        %v4983 = vadd.f32 %v4981, %v4982
        %v4984 = vsel %vm4793, %v4925, 0.0
        %v4985 = vadd.f32 %v4983, %v4984
        %v4986 = vsel %vm4793, %v4926, 0.0
        %v4987 = vadd.f32 %v4985, %v4986
        %v4988 = vsel %vm4793, %v4927, 0.0
        %v4989 = vadd.f32 %v4987, %v4988
        %v4990 = vsel %vm4793, %v4928, 0.0
        %v4991 = vadd.f32 %v4989, %v4990
        %v4992 = vrot.slane %v4991, 4
        %v4993 = vadd.f32 %v4991, %v4992
        %v4994 = vrot.slane %v4993, 2
        %v4995 = vadd.f32 %v4993, %v4994
        %v4996 = vrot.slane %v4995, 1
        %v4997 = vadd.f32 %v4995, %v4996
        %v4998 = vmul.f32 %v4997, %v4863
        %v4999 = vadd.f32 %v4998, 1e-05
        %v5000 = vrsqrt.pop %v4999
        %v5001 = vmul.f32 %v4865, %v5000
        %v5002 = vmul.f32 %v4866, %v5000
        %v5003 = vmul.f32 %v4867, %v5000
        %v5004 = vmul.f32 %v4868, %v5000
        %v5005 = vmul.f32 %v4869, %v5000
        %v5006 = vmul.f32 %v4870, %v5000
        %v5007 = vmul.f32 %v4871, %v5000
        %v5008 = vmul.f32 %v4872, %v5000
        %v5009 = vmul.f32 %v4873, %v5000
        %v5010 = vmul.f32 %v4874, %v5000
        %v5011 = vmul.f32 %v4875, %v5000
        %v5012 = vmul.f32 %v4876, %v5000
        %v5013 = vmul.f32 %v4877, %v5000
        %v5014 = vmul.f32 %v4878, %v5000
        %v5015 = vmul.f32 %v4879, %v5000
        %v5016 = vmul.f32 %v4880, %v5000
        %v5017 = vmul.f32 %v4881, %v5000
        %v5018 = vmul.f32 %v4882, %v5000
        %v5019 = vmul.f32 %v4883, %v5000
        %v5020 = vmul.f32 %v4884, %v5000
        %v5021 = vmul.f32 %v4885, %v5000
        %v5022 = vmul.f32 %v4886, %v5000
        %v5023 = vmul.f32 %v4887, %v5000
        %v5024 = vmul.f32 %v4888, %v5000
        %v5025 = vmul.f32 %v4889, %v5000
        %v5026 = vmul.f32 %v4890, %v5000
        %v5027 = vmul.f32 %v4891, %v5000
        %v5028 = vmul.f32 %v4892, %v5000
        %v5029 = vmul.f32 %v4893, %v5000
        %v5030 = vmul.f32 %v4894, %v5000
        %v5031 = vmul.f32 %v4895, %v5000
        %v5032 = vmul.f32 %v4896, %v5000
        %v5033 = vld [vmem:[%s3 + $0x1] sm:$0x1]
        %v5034 = vlaneseq
        %v5035 = vshrl.u32 %v5034, 7
        %v5036 = vsub.s32 0, %v5035
        %v5037 = vrot.slane %v5033, %v5036
        %v5038 = vmul.f32 %v5001, %v5037
        %v5039 = vmul.f32 %v5002, %v5037
        %v5040 = vmul.f32 %v5003, %v5037
        %v5041 = vmul.f32 %v5004, %v5037
        %v5042 = vmul.f32 %v5005, %v5037
        %v5043 = vmul.f32 %v5006, %v5037
        %v5044 = vmul.f32 %v5007, %v5037
        %v5045 = vmul.f32 %v5008, %v5037
        %v5046 = vmul.f32 %v5009, %v5037
        %v5047 = vmul.f32 %v5010, %v5037
        %v5048 = vmul.f32 %v5011, %v5037
        %v5049 = vmul.f32 %v5012, %v5037
        %v5050 = vmul.f32 %v5013, %v5037
        %v5051 = vmul.f32 %v5014, %v5037
        %v5052 = vmul.f32 %v5015, %v5037
        %v5053 = vmul.f32 %v5016, %v5037
        %v5054 = vmul.f32 %v5017, %v5037
        %v5055 = vmul.f32 %v5018, %v5037
        %v5056 = vmul.f32 %v5019, %v5037
        %v5057 = vmul.f32 %v5020, %v5037
        %v5058 = vmul.f32 %v5021, %v5037
        %v5059 = vmul.f32 %v5022, %v5037
        %v5060 = vmul.f32 %v5023, %v5037
        %v5061 = vmul.f32 %v5024, %v5037
        %v5062 = vmul.f32 %v5025, %v5037
        %v5063 = vmul.f32 %v5026, %v5037
        %v5064 = vmul.f32 %v5027, %v5037
        %v5065 = vmul.f32 %v5028, %v5037
        %v5066 = vmul.f32 %v5029, %v5037
        %v5067 = vmul.f32 %v5030, %v5037
        %v5068 = vmul.f32 %v5031, %v5037
        %v5069 = vmul.f32 %v5032, %v5037
        %v5070 = vld [vmem:[%s3 + $0x2] sm:$0x1]
        %v5071 = vlaneseq
        %v5072 = vshrl.u32 %v5071, 7
        %v5073 = vsub.s32 0, %v5072
        %v5074 = vrot.slane %v5070, %v5073
        %v5075 = vadd.f32 %v5038, %v5074
        %v5076 = vadd.f32 %v5039, %v5074
        %v5077 = vadd.f32 %v5040, %v5074
        %v5078 = vadd.f32 %v5041, %v5074
        %v5079 = vadd.f32 %v5042, %v5074
        %v5080 = vadd.f32 %v5043, %v5074
        %v5081 = vadd.f32 %v5044, %v5074
        %v5082 = vadd.f32 %v5045, %v5074
        %v5083 = vadd.f32 %v5046, %v5074
        %v5084 = vadd.f32 %v5047, %v5074
        %v5085 = vadd.f32 %v5048, %v5074
        %v5086 = vadd.f32 %v5049, %v5074
        %v5087 = vadd.f32 %v5050, %v5074
        %v5088 = vadd.f32 %v5051, %v5074
        %v5089 = vadd.f32 %v5052, %v5074
        %v5090 = vadd.f32 %v5053, %v5074
        %v5091 = vadd.f32 %v5054, %v5074
        %v5092 = vadd.f32 %v5055, %v5074
        %v5093 = vadd.f32 %v5056, %v5074
        %v5094 = vadd.f32 %v5057, %v5074
        %v5095 = vadd.f32 %v5058, %v5074
        %v5096 = vadd.f32 %v5059, %v5074
        %v5097 = vadd.f32 %v5060, %v5074
        %v5098 = vadd.f32 %v5061, %v5074
        %v5099 = vadd.f32 %v5062, %v5074
        %v5100 = vadd.f32 %v5063, %v5074
        %v5101 = vadd.f32 %v5064, %v5074
        %v5102 = vadd.f32 %v5065, %v5074
        %v5103 = vadd.f32 %v5066, %v5074
        %v5104 = vadd.f32 %v5067, %v5074
        %v5105 = vadd.f32 %v5068, %v5074
        %v5106 = vadd.f32 %v5069, %v5074
        %vm5107 = vcmp.ge.f32.partialorder %v5075, 0.0
        %vm5108 = vcmp.ge.f32.partialorder %v5076, 0.0
        %vm5109 = vcmp.ge.f32.partialorder %v5077, 0.0
        %vm5110 = vcmp.ge.f32.partialorder %v5078, 0.0
        %vm5111 = vcmp.ge.f32.partialorder %v5079, 0.0
        %vm5112 = vcmp.ge.f32.partialorder %v5080, 0.0
        %vm5113 = vcmp.ge.f32.partialorder %v5081, 0.0
        %vm5114 = vcmp.ge.f32.partialorder %v5082, 0.0
        %vm5115 = vcmp.ge.f32.partialorder %v5083, 0.0
        %vm5116 = vcmp.ge.f32.partialorder %v5084, 0.0
        %vm5117 = vcmp.ge.f32.partialorder %v5085, 0.0
        %vm5118 = vcmp.ge.f32.partialorder %v5086, 0.0
        %vm5119 = vcmp.ge.f32.partialorder %v5087, 0.0
        %vm5120 = vcmp.ge.f32.partialorder %v5088, 0.0
        %vm5121 = vcmp.ge.f32.partialorder %v5089, 0.0
        %vm5122 = vcmp.ge.f32.partialorder %v5090, 0.0
        %vm5123 = vcmp.ge.f32.partialorder %v5091, 0.0
        %vm5124 = vcmp.ge.f32.partialorder %v5092, 0.0
        %vm5125 = vcmp.ge.f32.partialorder %v5093, 0.0
        %vm5126 = vcmp.ge.f32.partialorder %v5094, 0.0
        %vm5127 = vcmp.ge.f32.partialorder %v5095, 0.0
        %vm5128 = vcmp.ge.f32.partialorder %v5096, 0.0
        %vm5129 = vcmp.ge.f32.partialorder %v5097, 0.0
        %vm5130 = vcmp.ge.f32.partialorder %v5098, 0.0
        %vm5131 = vcmp.ge.f32.partialorder %v5099, 0.0
        %vm5132 = vcmp.ge.f32.partialorder %v5100, 0.0
        %vm5133 = vcmp.ge.f32.partialorder %v5101, 0.0
        %vm5134 = vcmp.ge.f32.partialorder %v5102, 0.0
        %vm5135 = vcmp.ge.f32.partialorder %v5103, 0.0
        %vm5136 = vcmp.ge.f32.partialorder %v5104, 0.0
        %vm5137 = vcmp.ge.f32.partialorder %v5105, 0.0
        %vm5138 = vcmp.ge.f32.partialorder %v5106, 0.0
        %v5139 = vmul.f32 %v5075, 0.01
        %v5140 = vmul.f32 %v5076, 0.01
        %v5141 = vmul.f32 %v5077, 0.01
        %v5142 = vmul.f32 %v5078, 0.01
        %v5143 = vmul.f32 %v5079, 0.01
        %v5144 = vmul.f32 %v5080, 0.01
        %v5145 = vmul.f32 %v5081, 0.01
        %v5146 = vmul.f32 %v5082, 0.01
        %v5147 = vmul.f32 %v5083, 0.01
        %v5148 = vmul.f32 %v5084, 0.01
        %v5149 = vmul.f32 %v5085, 0.01
        %v5150 = vmul.f32 %v5086, 0.01
        %v5151 = vmul.f32 %v5087, 0.01
        %v5152 = vmul.f32 %v5088, 0.01
        %v5153 = vmul.f32 %v5089, 0.01
        %v5154 = vmul.f32 %v5090, 0.01
        %v5155 = vmul.f32 %v5091, 0.01
        %v5156 = vmul.f32 %v5092, 0.01
        %v5157 = vmul.f32 %v5093, 0.01
        %v5158 = vmul.f32 %v5094, 0.01
        %v5159 = vmul.f32 %v5095, 0.01
        %v5160 = vmul.f32 %v5096, 0.01
        %v5161 = vmul.f32 %v5097, 0.01
        %v5162 = vmul.f32 %v5098, 0.01
        %v5163 = vmul.f32 %v5099, 0.01
        %v5164 = vmul.f32 %v5100, 0.01
        %v5165 = vmul.f32 %v5101, 0.01
        %v5166 = vmul.f32 %v5102, 0.01
        %v5167 = vmul.f32 %v5103, 0.01
        %v5168 = vmul.f32 %v5104, 0.01
        %v5169 = vmul.f32 %v5105, 0.01
        %v5170 = vmul.f32 %v5106, 0.01
        %v5171 = vsel %vm5107, %v5075, %v5139
        %v5172 = vsel %vm5108, %v5076, %v5140
        %v5173 = vsel %vm5109, %v5077, %v5141
        %v5174 = vsel %vm5110, %v5078, %v5142
        %v5175 = vsel %vm5111, %v5079, %v5143
        %v5176 = vsel %vm5112, %v5080, %v5144
        %v5177 = vsel %vm5113, %v5081, %v5145
        %v5178 = vsel %vm5114, %v5082, %v5146
        %v5179 = vsel %vm5115, %v5083, %v5147
        %v5180 = vsel %vm5116, %v5084, %v5148
        %v5181 = vsel %vm5117, %v5085, %v5149
        %v5182 = vsel %vm5118, %v5086, %v5150
        %v5183 = vsel %vm5119, %v5087, %v5151
        %v5184 = vsel %vm5120, %v5088, %v5152
        %v5185 = vsel %vm5121, %v5089, %v5153
        %v5186 = vsel %vm5122, %v5090, %v5154
        %v5187 = vsel %vm5123, %v5091, %v5155
        %v5188 = vsel %vm5124, %v5092, %v5156
        %v5189 = vsel %vm5125, %v5093, %v5157
        %v5190 = vsel %vm5126, %v5094, %v5158
        %v5191 = vsel %vm5127, %v5095, %v5159
        %v5192 = vsel %vm5128, %v5096, %v5160
        %v5193 = vsel %vm5129, %v5097, %v5161
        %v5194 = vsel %vm5130, %v5098, %v5162
        %v5195 = vsel %vm5131, %v5099, %v5163
        %v5196 = vsel %vm5132, %v5100, %v5164
        %v5197 = vsel %vm5133, %v5101, %v5165
        %v5198 = vsel %vm5134, %v5102, %v5166
        %v5199 = vsel %vm5135, %v5103, %v5167
        %v5200 = vsel %vm5136, %v5104, %v5168
        %v5201 = vsel %vm5137, %v5105, %v5169
        %v5202 = vsel %vm5138, %v5106, %v5170
        %5203 = vst.msk [vmem:[#allocation2] sm:$0xff] %vm4793, 0.0
        %5204 = vst.msk [vmem:[#allocation2 + $0x8] sm:$0xff] %vm4793, 0.0
        %vm5205 = vcmask 254976
        %5206 = vst.msk [vmem:[#allocation2 + $0x10] sm:$0x3] %vm5205, 0.0
        %5207 = vst.msk [vmem:[#allocation2 + $0x18] sm:$0xff] %vm4793, 0.0
        %5208 = vst.msk [vmem:[#allocation2 + $0x20] sm:$0xff] %vm4793, 0.0
        %5209 = vst.msk [vmem:[#allocation2 + $0x28] sm:$0x3] %vm5205, 0.0
        %5210 = vst.msk [vmem:[#allocation2 + $0x30] sm:$0xff] %vm4793, 0.0
        %5211 = vst.msk [vmem:[#allocation2 + $0x38] sm:$0xff] %vm4793, 0.0
        %5212 = vst.msk [vmem:[#allocation2 + $0x40] sm:$0x3] %vm5205, 0.0
        %5213 = vst.msk [vmem:[#allocation2 + $0x48] sm:$0xff] %vm4793, 0.0
        %5214 = vst.msk [vmem:[#allocation2 + $0x50] sm:$0xff] %vm4793, 0.0
        %5215 = vst.msk [vmem:[#allocation2 + $0x58] sm:$0x3] %vm5205, 0.0
        %5216 = vst.msk [vmem:[#allocation2 + $0x60] sm:$0xff] %vm4793, 0.0
        %5217 = vst.msk [vmem:[#allocation2 + $0x68] sm:$0xff] %vm4793, 0.0
        %5218 = vst.msk [vmem:[#allocation2 + $0x70] sm:$0x3] %vm5205, 0.0
        %5219 = vst.msk [vmem:[#allocation2 + $0x78] sm:$0xff] %vm4793, 0.0
        %5220 = vst.msk [vmem:[#allocation2 + $0x80] sm:$0xff] %vm4793, 0.0
        %5221 = vst.msk [vmem:[#allocation2 + $0x88] sm:$0x3] %vm5205, 0.0
        %5222 = vst.msk [vmem:[#allocation2 + $0x90] sm:$0xff] %vm4793, 0.0
        %5223 = vst.msk [vmem:[#allocation2 + $0x98] sm:$0xff] %vm4793, 0.0
        %5224 = vst.msk [vmem:[#allocation2 + $0xa0] sm:$0x3] %vm5205, 0.0
        %5225 = vst.msk [vmem:[#allocation2 + $0xa8] sm:$0xff] %vm4793, 0.0
        %5226 = vst.msk [vmem:[#allocation2 + $0xb0] sm:$0xff] %vm4793, 0.0
        %5227 = vst.msk [vmem:[#allocation2 + $0xb8] sm:$0x3] %vm5205, 0.0
        %5228 = vst.msk [vmem:[#allocation2 + $0xc0] sm:$0xff] %vm4793, 0.0
        %5229 = vst.msk [vmem:[#allocation2 + $0xc8] sm:$0xff] %vm4793, 0.0
        %5230 = vst.msk [vmem:[#allocation2 + $0xd0] sm:$0x3] %vm5205, 0.0
        %5231 = vst.msk [vmem:[#allocation2 + $0xd8] sm:$0xff] %vm4793, 0.0
        %5232 = vst.msk [vmem:[#allocation2 + $0xe0] sm:$0xff] %vm4793, 0.0
        %5233 = vst.msk [vmem:[#allocation2 + $0xe8] sm:$0x3] %vm5205, 0.0
        %5234 = vst.msk [vmem:[#allocation2 + $0xf0] sm:$0xff] %vm4793, 0.0
        %5235 = vst.msk [vmem:[#allocation2 + $0xf8] sm:$0xff] %vm4793, 0.0
        %5236 = vst.msk [vmem:[#allocation2 + $0x100] sm:$0x3] %vm5205, 0.0
        %5237 = vst.msk [vmem:[#allocation2 + $0x108] sm:$0xff] %vm4793, 0.0
        %5238 = vst.msk [vmem:[#allocation2 + $0x110] sm:$0xff] %vm4793, 0.0
        %5239 = vst.msk [vmem:[#allocation2 + $0x118] sm:$0x3] %vm5205, 0.0
        %5240 = vst.msk [vmem:[#allocation2 + $0x120] sm:$0xff] %vm4793, 0.0
        %5241 = vst.msk [vmem:[#allocation2 + $0x128] sm:$0xff] %vm4793, 0.0
        %5242 = vst.msk [vmem:[#allocation2 + $0x130] sm:$0x3] %vm5205, 0.0
        %5243 = vst.msk [vmem:[#allocation2 + $0x138] sm:$0xff] %vm4793, 0.0
        %5244 = vst.msk [vmem:[#allocation2 + $0x140] sm:$0xff] %vm4793, 0.0
        %5245 = vst.msk [vmem:[#allocation2 + $0x148] sm:$0x3] %vm5205, 0.0
        %5246 = vst.msk [vmem:[#allocation2 + $0x150] sm:$0xff] %vm4793, 0.0
        %5247 = vst.msk [vmem:[#allocation2 + $0x158] sm:$0xff] %vm4793, 0.0
        %5248 = vst.msk [vmem:[#allocation2 + $0x160] sm:$0x3] %vm5205, 0.0
        %5249 = vst.msk [vmem:[#allocation2 + $0x168] sm:$0xff] %vm4793, 0.0
        %5250 = vst.msk [vmem:[#allocation2 + $0x170] sm:$0xff] %vm4793, 0.0
        %5251 = vst.msk [vmem:[#allocation2 + $0x178] sm:$0x3] %vm5205, 0.0
        %5252 = vst.msk [vmem:[#allocation2 + $0x180] sm:$0xff] %vm4793, 0.0
        %5253 = vst.msk [vmem:[#allocation2 + $0x188] sm:$0xff] %vm4793, 0.0
        %5254 = vst.msk [vmem:[#allocation2 + $0x190] sm:$0x3] %vm5205, 0.0
        %5255 = vst.msk [vmem:[#allocation2 + $0x198] sm:$0xff] %vm4793, 0.0
        %5256 = vst.msk [vmem:[#allocation2 + $0x1a0] sm:$0xff] %vm4793, 0.0
        %5257 = vst.msk [vmem:[#allocation2 + $0x1a8] sm:$0x3] %vm5205, 0.0
        %s5258 = scalar_lea.vmem [#allocation2], 24
        %5259 = vst.msk [vmem:[%s5258 + $0x1] sm:$0xff] %vm4793, %v5171
        %5260 = vst.msk [vmem:[%s5258 + $0x9] sm:$0xff] %vm4793, %v5172
        %5261 = vst.msk [vmem:[%s5258 + $0x19] sm:$0xff] %vm4793, %v5173
        %5262 = vst.msk [vmem:[%s5258 + $0x21] sm:$0xff] %vm4793, %v5174
        %5263 = vst.msk [vmem:[%s5258 + $0x31] sm:$0xff] %vm4793, %v5175
        %5264 = vst.msk [vmem:[%s5258 + $0x39] sm:$0xff] %vm4793, %v5176
        %5265 = vst.msk [vmem:[%s5258 + $0x49] sm:$0xff] %vm4793, %v5177
        %5266 = vst.msk [vmem:[%s5258 + $0x51] sm:$0xff] %vm4793, %v5178
        %5267 = vst.msk [vmem:[%s5258 + $0x61] sm:$0xff] %vm4793, %v5179
        %5268 = vst.msk [vmem:[%s5258 + $0x69] sm:$0xff] %vm4793, %v5180
        %5269 = vst.msk [vmem:[%s5258 + $0x79] sm:$0xff] %vm4793, %v5181
        %5270 = vst.msk [vmem:[%s5258 + $0x81] sm:$0xff] %vm4793, %v5182
        %5271 = vst.msk [vmem:[%s5258 + $0x91] sm:$0xff] %vm4793, %v5183
        %5272 = vst.msk [vmem:[%s5258 + $0x99] sm:$0xff] %vm4793, %v5184
        %5273 = vst.msk [vmem:[%s5258 + $0xa9] sm:$0xff] %vm4793, %v5185
        %5274 = vst.msk [vmem:[%s5258 + $0xb1] sm:$0xff] %vm4793, %v5186
        %5275 = vst.msk [vmem:[%s5258 + $0xc1] sm:$0xff] %vm4793, %v5187
        %5276 = vst.msk [vmem:[%s5258 + $0xc9] sm:$0xff] %vm4793, %v5188
        %5277 = vst.msk [vmem:[%s5258 + $0xd9] sm:$0xff] %vm4793, %v5189
        %5278 = vst.msk [vmem:[%s5258 + $0xe1] sm:$0xff] %vm4793, %v5190
        %5279 = vst.msk [vmem:[%s5258 + $0xf1] sm:$0xff] %vm4793, %v5191
        %5280 = vst.msk [vmem:[%s5258 + $0xf9] sm:$0xff] %vm4793, %v5192
        %5281 = vst.msk [vmem:[%s5258 + $0x109] sm:$0xff] %vm4793, %v5193
        %5282 = vst.msk [vmem:[%s5258 + $0x111] sm:$0xff] %vm4793, %v5194
        %5283 = vst.msk [vmem:[%s5258 + $0x121] sm:$0xff] %vm4793, %v5195
        %5284 = vst.msk [vmem:[%s5258 + $0x129] sm:$0xff] %vm4793, %v5196
        %5285 = vst.msk [vmem:[%s5258 + $0x139] sm:$0xff] %vm4793, %v5197
        %5286 = vst.msk [vmem:[%s5258 + $0x141] sm:$0xff] %vm4793, %v5198
        %5287 = vst.msk [vmem:[%s5258 + $0x151] sm:$0xff] %vm4793, %v5199
        %5288 = vst.msk [vmem:[%s5258 + $0x159] sm:$0xff] %vm4793, %v5200
        %5289 = vst.msk [vmem:[%s5258 + $0x169] sm:$0xff] %vm4793, %v5201
        %5290 = vst.msk [vmem:[%s5258 + $0x171] sm:$0xff] %vm4793, %v5202
        %v5291 = vld [vmem:[#allocation2] sm:$0xff]
        %v5292 = vld [vmem:[#allocation2 + $0x8] sm:$0xff]
        %v5293 = vld [vmem:[#allocation2 + $0x18] sm:$0xff]
        %v5294 = vld [vmem:[#allocation2 + $0x20] sm:$0xff]
        %v5295 = vld [vmem:[#allocation2 + $0x30] sm:$0xff]
        %v5296 = vld [vmem:[#allocation2 + $0x38] sm:$0xff]
        %v5297 = vld [vmem:[#allocation2 + $0x48] sm:$0xff]
        %v5298 = vld [vmem:[#allocation2 + $0x50] sm:$0xff]
        %v5299 = vld [vmem:[#allocation2 + $0x60] sm:$0xff]
        %v5300 = vld [vmem:[#allocation2 + $0x68] sm:$0xff]
        %v5301 = vld [vmem:[#allocation2 + $0x78] sm:$0xff]
        %v5302 = vld [vmem:[#allocation2 + $0x80] sm:$0xff]
        %v5303 = vld [vmem:[#allocation2 + $0x90] sm:$0xff]
        %v5304 = vld [vmem:[#allocation2 + $0x98] sm:$0xff]
        %v5305 = vld [vmem:[#allocation2 + $0xa8] sm:$0xff]
        %v5306 = vld [vmem:[#allocation2 + $0xb0] sm:$0xff]
        %v5307 = vld [vmem:[#allocation2 + $0xc0] sm:$0xff]
        %v5308 = vld [vmem:[#allocation2 + $0xc8] sm:$0xff]
        %v5309 = vld [vmem:[#allocation2 + $0xd8] sm:$0xff]
        %v5310 = vld [vmem:[#allocation2 + $0xe0] sm:$0xff]
        %v5311 = vld [vmem:[#allocation2 + $0xf0] sm:$0xff]
        %v5312 = vld [vmem:[#allocation2 + $0xf8] sm:$0xff]
        %v5313 = vld [vmem:[#allocation2 + $0x108] sm:$0xff]
        %v5314 = vld [vmem:[#allocation2 + $0x110] sm:$0xff]
        %v5315 = vld [vmem:[#allocation2 + $0x120] sm:$0xff]
        %v5316 = vld [vmem:[#allocation2 + $0x128] sm:$0xff]
        %v5317 = vld [vmem:[#allocation2 + $0x138] sm:$0xff]
        %v5318 = vld [vmem:[#allocation2 + $0x140] sm:$0xff]
        %v5319 = vld [vmem:[#allocation2 + $0x150] sm:$0xff]
        %v5320 = vld [vmem:[#allocation2 + $0x158] sm:$0xff]
        %v5321 = vld [vmem:[#allocation2 + $0x168] sm:$0xff]
        %v5322 = vld [vmem:[#allocation2 + $0x170] sm:$0xff]
        %v5323 = vpack.c.bf16 %v5292, %v5291
        %v5324 = vpack.c.bf16 %v5294, %v5293
        %v5325 = vpack.c.bf16 %v5296, %v5295
        %v5326 = vpack.c.bf16 %v5298, %v5297
        %v5327 = vpack.c.bf16 %v5300, %v5299
        %v5328 = vpack.c.bf16 %v5302, %v5301
        %v5329 = vpack.c.bf16 %v5304, %v5303
        %v5330 = vpack.c.bf16 %v5306, %v5305
        %v5331 = vpack.c.bf16 %v5308, %v5307
        %v5332 = vpack.c.bf16 %v5310, %v5309
        %v5333 = vpack.c.bf16 %v5312, %v5311
        %v5334 = vpack.c.bf16 %v5314, %v5313
        %v5335 = vpack.c.bf16 %v5316, %v5315
        %v5336 = vpack.c.bf16 %v5318, %v5317
        %v5337 = vpack.c.bf16 %v5320, %v5319
        %v5338 = vpack.c.bf16 %v5322, %v5321
        %v5339 = vld [vmem:[%s2] sm:$0xf]
        %v5340 = vld [vmem:[%s2 + $0x4] sm:$0xf]
        %v5341 = vld [vmem:[%s2 + $0x8] sm:$0xf]
        %v5342 = vld [vmem:[%s2 + $0xc] sm:$0xf]
        %v5343 = vld [vmem:[#allocation2 + $0x1] sm:$0xff]
        %v5344 = vld [vmem:[#allocation2 + $0x9] sm:$0xff]
        %v5345 = vld [vmem:[#allocation2 + $0x19] sm:$0xff]
        %v5346 = vld [vmem:[#allocation2 + $0x21] sm:$0xff]
        %v5347 = vld [vmem:[#allocation2 + $0x31] sm:$0xff]
        %v5348 = vld [vmem:[#allocation2 + $0x39] sm:$0xff]
        %v5349 = vld [vmem:[#allocation2 + $0x49] sm:$0xff]
        %v5350 = vld [vmem:[#allocation2 + $0x51] sm:$0xff]
        %v5351 = vld [vmem:[#allocation2 + $0x61] sm:$0xff]
        %v5352 = vld [vmem:[#allocation2 + $0x69] sm:$0xff]
        %v5353 = vld [vmem:[#allocation2 + $0x79] sm:$0xff]
        %v5354 = vld [vmem:[#allocation2 + $0x81] sm:$0xff]
        %v5355 = vld [vmem:[#allocation2 + $0x91] sm:$0xff]
        %v5356 = vld [vmem:[#allocation2 + $0x99] sm:$0xff]
        %v5357 = vld [vmem:[#allocation2 + $0xa9] sm:$0xff]
        %v5358 = vld [vmem:[#allocation2 + $0xb1] sm:$0xff]
        %v5359 = vld [vmem:[#allocation2 + $0xc1] sm:$0xff]
        %v5360 = vld [vmem:[#allocation2 + $0xc9] sm:$0xff]
        %v5361 = vld [vmem:[#allocation2 + $0xd9] sm:$0xff]
        %v5362 = vld [vmem:[#allocation2 + $0xe1] sm:$0xff]
        %v5363 = vld [vmem:[#allocation2 + $0xf1] sm:$0xff]
        %v5364 = vld [vmem:[#allocation2 + $0xf9] sm:$0xff]
        %v5365 = vld [vmem:[#allocation2 + $0x109] sm:$0xff]
        %v5366 = vld [vmem:[#allocation2 + $0x111] sm:$0xff]
        %v5367 = vld [vmem:[#allocation2 + $0x121] sm:$0xff]
        %v5368 = vld [vmem:[#allocation2 + $0x129] sm:$0xff]
        %v5369 = vld [vmem:[#allocation2 + $0x139] sm:$0xff]
        %v5370 = vld [vmem:[#allocation2 + $0x141] sm:$0xff]
        %v5371 = vld [vmem:[#allocation2 + $0x151] sm:$0xff]
        %v5372 = vld [vmem:[#allocation2 + $0x159] sm:$0xff]
        %v5373 = vld [vmem:[#allocation2 + $0x169] sm:$0xff]
        %v5374 = vld [vmem:[#allocation2 + $0x171] sm:$0xff]
        %v5375 = vpack.c.bf16 %v5344, %v5343
        %v5376 = vpack.c.bf16 %v5346, %v5345
        %v5377 = vpack.c.bf16 %v5348, %v5347
        %v5378 = vpack.c.bf16 %v5350, %v5349
        %v5379 = vpack.c.bf16 %v5352, %v5351
        %v5380 = vpack.c.bf16 %v5354, %v5353
        %v5381 = vpack.c.bf16 %v5356, %v5355
        %v5382 = vpack.c.bf16 %v5358, %v5357
        %v5383 = vpack.c.bf16 %v5360, %v5359
        %v5384 = vpack.c.bf16 %v5362, %v5361
        %v5385 = vpack.c.bf16 %v5364, %v5363
        %v5386 = vpack.c.bf16 %v5366, %v5365
        %v5387 = vpack.c.bf16 %v5368, %v5367
        %v5388 = vpack.c.bf16 %v5370, %v5369
        %v5389 = vpack.c.bf16 %v5372, %v5371
        %v5390 = vpack.c.bf16 %v5374, %v5373
        %s5391 = scalar_lea.vmem %s2, 16
        %v5392 = vld [vmem:[%s5391] sm:$0xf]
        %v5393 = vld [vmem:[%s5391 + $0x4] sm:$0xf]
        %v5394 = vld [vmem:[%s5391 + $0x8] sm:$0xf]
        %v5395 = vld [vmem:[%s5391 + $0xc] sm:$0xf]
        %v5400 = vunpack.c.l.b16 %v5392
        %v5401 = vunpack.c.l.b16 %v5393
        %v5402 = vunpack.c.l.b16 %v5394
        %v5403 = vunpack.c.l.b16 %v5395
        %v5404 = vpack.c.b16 %v5401, %v5400
        %v5405 = vpack.c.b16 %v5403, %v5402
        %v5409 = vsel %vm4793, %v5375, 0
        %v5412 = vsel %vm4793, %v5376, 0
        %v5415 = vsel %vm4793, %v5377, 0
        %v5418 = vsel %vm4793, %v5378, 0
        %v5421 = vsel %vm4793, %v5379, 0
        %v5424 = vsel %vm4793, %v5380, 0
        %v5427 = vsel %vm4793, %v5381, 0
        %v5430 = vsel %vm4793, %v5382, 0
        %v5433 = vsel %vm4793, %v5383, 0
        %v5436 = vsel %vm4793, %v5384, 0
        %v5439 = vsel %vm4793, %v5385, 0
        %v5442 = vsel %vm4793, %v5386, 0
        %v5445 = vsel %vm4793, %v5387, 0
        %v5448 = vsel %vm4793, %v5388, 0
        %v5451 = vsel %vm4793, %v5389, 0
        %v5454 = vsel %vm4793, %v5390, 0
        %5456 = vmatprep.subr.bf16.mxu0 0
        %5457 = vmatpush1.bf16.msra.mxu0 0
        %5458 = vmatprep.subr.bf16.mxu0 0
        %5459 = vmatpush1.bf16.msra.mxu0 0
        %5460 = vmatprep.subr.bf16.mxu0 0
        %5461 = vmatpush1.bf16.msra.mxu0 0
        %5462 = vmatprep.subr.bf16.mxu0 0
        %5463 = vmatpush1.bf16.msra.mxu0 0
        %5464 = vmatprep.subr.bf16.mxu0 0
        %5465 = vmatpush1.bf16.msra.mxu0 0
        %5466 = vmatprep.subr.bf16.mxu0 0
        %5467 = vmatpush1.bf16.msra.mxu0 0
        %5468 = vmatprep.subr.bf16.mxu0 0
        %5469 = vmatpush1.bf16.msra.mxu0 %v5405
        %5470 = vmatprep.subr.bf16.mxu0 0
        %5471 = vmatpush1.bf16.msra.mxu0 %v5404
        %5472 = vmatprep.subr.bf16.mxu0 0
        %5473 = vmatpush2.bf16.msra.mxu0 0
        %5474 = vmatprep.subr.bf16.mxu0 0
        %5475 = vmatpush2.bf16.msra.mxu0 0
        %5476 = vmatprep.subr.bf16.mxu0 0
        %5477 = vmatpush2.bf16.msra.mxu0 0
        %5478 = vmatprep.subr.bf16.mxu0 0
        %5479 = vmatpush2.bf16.msra.mxu0 0
        %5480 = vmatprep.subr.bf16.mxu0 0
        %5481 = vmatpush2.bf16.msra.mxu0 0
        %5482 = vmatprep.subr.bf16.mxu0 0
        %5483 = vmatpush2.bf16.msra.mxu0 0
        %5484 = vmatprep.subr.bf16.mxu0 0
        %5485 = vmatpush2.bf16.msra.mxu0 0
        %5486 = vmatprep.subr.bf16.mxu0 0
        %5487 = vmatpush2.bf16.msra.mxu0 0
        %5488 = vmatprep.mubr.bf16.mxu0 0
        %5489 = vmatmul.mubr.bf16.gmra.mxu0 %v5409
        %v5490 = vpop.f32.mrf.mxu0
        %v5491 = vadd.f32 0.0, %v5490
        %v5492 = vpop.f32.mrf.mxu0
        %v5493 = vpop.f32.mrf.mxu0
        %v5494 = vadd.f32 0.0, %v5493
        %v5495 = vpop.f32.mrf.mxu0
        %5496 = vmatprep.mubr.bf16.mxu0 0
        %5497 = vmatmul.mubr.bf16.gmra.mxu0 %v5412
        %v5498 = vpop.f32.mrf.mxu0
        %v5499 = vadd.f32 0.0, %v5498
        %v5500 = vpop.f32.mrf.mxu0
        %v5501 = vpop.f32.mrf.mxu0
        %v5502 = vadd.f32 0.0, %v5501
        %v5503 = vpop.f32.mrf.mxu0
        %5504 = vmatprep.mubr.bf16.mxu0 0
        %5505 = vmatmul.mubr.bf16.gmra.mxu0 %v5415
        %v5506 = vpop.f32.mrf.mxu0
        %v5507 = vadd.f32 0.0, %v5506
        %v5508 = vpop.f32.mrf.mxu0
        %v5509 = vpop.f32.mrf.mxu0
        %v5510 = vadd.f32 0.0, %v5509
        %v5511 = vpop.f32.mrf.mxu0
        %5512 = vmatprep.mubr.bf16.mxu0 0
        %5513 = vmatmul.mubr.bf16.gmra.mxu0 %v5418
        %v5514 = vpop.f32.mrf.mxu0
        %v5515 = vadd.f32 0.0, %v5514
        %v5516 = vpop.f32.mrf.mxu0
        %v5517 = vpop.f32.mrf.mxu0
        %v5518 = vadd.f32 0.0, %v5517
        %v5519 = vpop.f32.mrf.mxu0
        %5520 = vmatprep.mubr.bf16.mxu0 0
        %5521 = vmatmul.mubr.bf16.gmra.mxu0 %v5421
        %v5522 = vpop.f32.mrf.mxu0
        %v5523 = vadd.f32 0.0, %v5522
        %v5524 = vpop.f32.mrf.mxu0
        %v5525 = vpop.f32.mrf.mxu0
        %v5526 = vadd.f32 0.0, %v5525
        %v5527 = vpop.f32.mrf.mxu0
        %5528 = vmatprep.mubr.bf16.mxu0 0
        %5529 = vmatmul.mubr.bf16.gmra.mxu0 %v5424
        %v5530 = vpop.f32.mrf.mxu0
        %v5531 = vadd.f32 0.0, %v5530
        %v5532 = vpop.f32.mrf.mxu0
        %v5533 = vpop.f32.mrf.mxu0
        %v5534 = vadd.f32 0.0, %v5533
        %v5535 = vpop.f32.mrf.mxu0
        %5536 = vmatprep.mubr.bf16.mxu0 0
        %5537 = vmatmul.mubr.bf16.gmra.mxu0 %v5427
        %v5538 = vpop.f32.mrf.mxu0
        %v5539 = vadd.f32 0.0, %v5538
        %v5540 = vpop.f32.mrf.mxu0
        %v5541 = vpop.f32.mrf.mxu0
        %v5542 = vadd.f32 0.0, %v5541
        %v5543 = vpop.f32.mrf.mxu0
        %5544 = vmatprep.mubr.bf16.mxu0 0
        %5545 = vmatmul.mubr.bf16.gmra.mxu0 %v5430
        %v5546 = vpop.f32.mrf.mxu0
        %v5547 = vadd.f32 0.0, %v5546
        %v5548 = vpop.f32.mrf.mxu0
        %v5549 = vpop.f32.mrf.mxu0
        %v5550 = vadd.f32 0.0, %v5549
        %v5551 = vpop.f32.mrf.mxu0
        %5552 = vmatprep.mubr.bf16.mxu0 0
        %5553 = vmatmul.mubr.bf16.gmra.mxu0 %v5433
        %v5554 = vpop.f32.mrf.mxu0
        %v5555 = vadd.f32 0.0, %v5554
        %v5556 = vpop.f32.mrf.mxu0
        %v5557 = vpop.f32.mrf.mxu0
        %v5558 = vadd.f32 0.0, %v5557
        %v5559 = vpop.f32.mrf.mxu0
        %5560 = vmatprep.mubr.bf16.mxu0 0
        %5561 = vmatmul.mubr.bf16.gmra.mxu0 %v5436
        %v5562 = vpop.f32.mrf.mxu0
        %v5563 = vadd.f32 0.0, %v5562
        %v5564 = vpop.f32.mrf.mxu0
        %v5565 = vpop.f32.mrf.mxu0
        %v5566 = vadd.f32 0.0, %v5565
        %v5567 = vpop.f32.mrf.mxu0
        %5568 = vmatprep.mubr.bf16.mxu0 0
        %5569 = vmatmul.mubr.bf16.gmra.mxu0 %v5439
        %v5570 = vpop.f32.mrf.mxu0
        %v5571 = vadd.f32 0.0, %v5570
        %v5572 = vpop.f32.mrf.mxu0
        %v5573 = vpop.f32.mrf.mxu0
        %v5574 = vadd.f32 0.0, %v5573
        %v5575 = vpop.f32.mrf.mxu0
        %5576 = vmatprep.mubr.bf16.mxu0 0
        %5577 = vmatmul.mubr.bf16.gmra.mxu0 %v5442
        %v5578 = vpop.f32.mrf.mxu0
        %v5579 = vadd.f32 0.0, %v5578
        %v5580 = vpop.f32.mrf.mxu0
        %v5581 = vpop.f32.mrf.mxu0
        %v5582 = vadd.f32 0.0, %v5581
        %v5583 = vpop.f32.mrf.mxu0
        %5584 = vmatprep.mubr.bf16.mxu0 0
        %5585 = vmatmul.mubr.bf16.gmra.mxu0 %v5445
        %v5586 = vpop.f32.mrf.mxu0
        %v5587 = vadd.f32 0.0, %v5586
        %v5588 = vpop.f32.mrf.mxu0
        %v5589 = vpop.f32.mrf.mxu0
        %v5590 = vadd.f32 0.0, %v5589
        %v5591 = vpop.f32.mrf.mxu0
        %5592 = vmatprep.mubr.bf16.mxu0 0
        %5593 = vmatmul.mubr.bf16.gmra.mxu0 %v5448
        %v5594 = vpop.f32.mrf.mxu0
        %v5595 = vadd.f32 0.0, %v5594
        %v5596 = vpop.f32.mrf.mxu0
        %v5597 = vpop.f32.mrf.mxu0
        %v5598 = vadd.f32 0.0, %v5597
        %v5599 = vpop.f32.mrf.mxu0
        %5600 = vmatprep.mubr.bf16.mxu0 0
        %5601 = vmatmul.mubr.bf16.gmra.mxu0 %v5451
        %v5602 = vpop.f32.mrf.mxu0
        %v5603 = vadd.f32 0.0, %v5602
        %v5604 = vpop.f32.mrf.mxu0
        %v5605 = vpop.f32.mrf.mxu0
        %v5606 = vadd.f32 0.0, %v5605
        %v5607 = vpop.f32.mrf.mxu0
        %5608 = vmatprep.mubr.bf16.mxu0 0
        %5609 = vmatmul.mubr.bf16.gmra.mxu0 %v5454
        %v5610 = vpop.f32.mrf.mxu0
        %v5611 = vadd.f32 0.0, %v5610
        %v5612 = vpop.f32.mrf.mxu0
        %v5613 = vpop.f32.mrf.mxu0
        %v5614 = vadd.f32 0.0, %v5613
        %v5615 = vpop.f32.mrf.mxu0
        %5616 = vdwg.mxu0
        %v5621 = vunpack.c.l.b16 %v5339
        %v5622 = vunpack.c.l.b16 %v5340
        %v5623 = vunpack.c.l.b16 %v5341
        %v5624 = vunpack.c.l.b16 %v5342
        %v5625 = vpack.c.b16 %v5622, %v5621
        %v5626 = vpack.c.b16 %v5624, %v5623
        %v5630 = vsel %vm4793, %v5323, 0
        %v5633 = vsel %vm4793, %v5324, 0
        %v5636 = vsel %vm4793, %v5325, 0
        %v5639 = vsel %vm4793, %v5326, 0
        %v5642 = vsel %vm4793, %v5327, 0
        %v5645 = vsel %vm4793, %v5328, 0
        %v5648 = vsel %vm4793, %v5329, 0
        %v5651 = vsel %vm4793, %v5330, 0
        %v5654 = vsel %vm4793, %v5331, 0
        %v5657 = vsel %vm4793, %v5332, 0
        %v5660 = vsel %vm4793, %v5333, 0
        %v5663 = vsel %vm4793, %v5334, 0
        %v5666 = vsel %vm4793, %v5335, 0
        %v5669 = vsel %vm4793, %v5336, 0
        %v5672 = vsel %vm4793, %v5337, 0
        %v5675 = vsel %vm4793, %v5338, 0
        %5677 = vmatprep.subr.bf16.mxu0 0
        %5678 = vmatpush1.bf16.msra.mxu0 0
        %5679 = vmatprep.subr.bf16.mxu0 0
        %5680 = vmatpush1.bf16.msra.mxu0 0
        %5681 = vmatprep.subr.bf16.mxu0 0
        %5682 = vmatpush1.bf16.msra.mxu0 0
        %5683 = vmatprep.subr.bf16.mxu0 0
        %5684 = vmatpush1.bf16.msra.mxu0 0
        %5685 = vmatprep.subr.bf16.mxu0 0
        %5686 = vmatpush1.bf16.msra.mxu0 0
        %5687 = vmatprep.subr.bf16.mxu0 0
        %5688 = vmatpush1.bf16.msra.mxu0 0
        %5689 = vmatprep.subr.bf16.mxu0 0
        %5690 = vmatpush1.bf16.msra.mxu0 %v5626
        %5691 = vmatprep.subr.bf16.mxu0 0
        %5692 = vmatpush1.bf16.msra.mxu0 %v5625
        %5693 = vmatprep.subr.bf16.mxu0 0
        %5694 = vmatpush2.bf16.msra.mxu0 0
        %5695 = vmatprep.subr.bf16.mxu0 0
        %5696 = vmatpush2.bf16.msra.mxu0 0
        %5697 = vmatprep.subr.bf16.mxu0 0
        %5698 = vmatpush2.bf16.msra.mxu0 0
        %5699 = vmatprep.subr.bf16.mxu0 0
        %5700 = vmatpush2.bf16.msra.mxu0 0
        %5701 = vmatprep.subr.bf16.mxu0 0
        %5702 = vmatpush2.bf16.msra.mxu0 0
        %5703 = vmatprep.subr.bf16.mxu0 0
        %5704 = vmatpush2.bf16.msra.mxu0 0
        %5705 = vmatprep.subr.bf16.mxu0 0
        %5706 = vmatpush2.bf16.msra.mxu0 0
        %5707 = vmatprep.subr.bf16.mxu0 0
        %5708 = vmatpush2.bf16.msra.mxu0 0
        %5709 = vmatprep.mubr.bf16.mxu0 0
        %5710 = vmatmul.mubr.bf16.gmra.mxu0 %v5630
        %v5711 = vpop.f32.mrf.mxu0
        %v5712 = vadd.f32 %v5491, %v5711
        %v5713 = vpop.f32.mrf.mxu0
        %v5714 = vpop.f32.mrf.mxu0
        %v5715 = vadd.f32 %v5494, %v5714
        %v5716 = vpop.f32.mrf.mxu0
        %5717 = vmatprep.mubr.bf16.mxu0 0
        %5718 = vmatmul.mubr.bf16.gmra.mxu0 %v5633
        %v5719 = vpop.f32.mrf.mxu0
        %v5720 = vadd.f32 %v5499, %v5719
        %v5721 = vpop.f32.mrf.mxu0
        %v5722 = vpop.f32.mrf.mxu0
        %v5723 = vadd.f32 %v5502, %v5722
        %v5724 = vpop.f32.mrf.mxu0
        %5725 = vmatprep.mubr.bf16.mxu0 0
        %5726 = vmatmul.mubr.bf16.gmra.mxu0 %v5636
        %v5727 = vpop.f32.mrf.mxu0
        %v5728 = vadd.f32 %v5507, %v5727
        %v5729 = vpop.f32.mrf.mxu0
        %v5730 = vpop.f32.mrf.mxu0
        %v5731 = vadd.f32 %v5510, %v5730
        %v5732 = vpop.f32.mrf.mxu0
        %5733 = vmatprep.mubr.bf16.mxu0 0
        %5734 = vmatmul.mubr.bf16.gmra.mxu0 %v5639
        %v5735 = vpop.f32.mrf.mxu0
        %v5736 = vadd.f32 %v5515, %v5735
        %v5737 = vpop.f32.mrf.mxu0
        %v5738 = vpop.f32.mrf.mxu0
        %v5739 = vadd.f32 %v5518, %v5738
        %v5740 = vpop.f32.mrf.mxu0
        %5741 = vmatprep.mubr.bf16.mxu0 0
        %5742 = vmatmul.mubr.bf16.gmra.mxu0 %v5642
        %v5743 = vpop.f32.mrf.mxu0
        %v5744 = vadd.f32 %v5523, %v5743
        %v5745 = vpop.f32.mrf.mxu0
        %v5746 = vpop.f32.mrf.mxu0
        %v5747 = vadd.f32 %v5526, %v5746
        %v5748 = vpop.f32.mrf.mxu0
        %5749 = vmatprep.mubr.bf16.mxu0 0
        %5750 = vmatmul.mubr.bf16.gmra.mxu0 %v5645
        %v5751 = vpop.f32.mrf.mxu0
        %v5752 = vadd.f32 %v5531, %v5751
        %v5753 = vpop.f32.mrf.mxu0
        %v5754 = vpop.f32.mrf.mxu0
        %v5755 = vadd.f32 %v5534, %v5754
        %v5756 = vpop.f32.mrf.mxu0
        %5757 = vmatprep.mubr.bf16.mxu0 0
        %5758 = vmatmul.mubr.bf16.gmra.mxu0 %v5648
        %v5759 = vpop.f32.mrf.mxu0
        %v5760 = vadd.f32 %v5539, %v5759
        %v5761 = vpop.f32.mrf.mxu0
        %v5762 = vpop.f32.mrf.mxu0
        %v5763 = vadd.f32 %v5542, %v5762
        %v5764 = vpop.f32.mrf.mxu0
        %5765 = vmatprep.mubr.bf16.mxu0 0
        %5766 = vmatmul.mubr.bf16.gmra.mxu0 %v5651
        %v5767 = vpop.f32.mrf.mxu0
        %v5768 = vadd.f32 %v5547, %v5767
        %v5769 = vpop.f32.mrf.mxu0
        %v5770 = vpop.f32.mrf.mxu0
        %v5771 = vadd.f32 %v5550, %v5770
        %v5772 = vpop.f32.mrf.mxu0
        %5773 = vmatprep.mubr.bf16.mxu0 0
        %5774 = vmatmul.mubr.bf16.gmra.mxu0 %v5654
        %v5775 = vpop.f32.mrf.mxu0
        %v5776 = vadd.f32 %v5555, %v5775
        %v5777 = vpop.f32.mrf.mxu0
        %v5778 = vpop.f32.mrf.mxu0
        %v5779 = vadd.f32 %v5558, %v5778
        %v5780 = vpop.f32.mrf.mxu0
        %5781 = vmatprep.mubr.bf16.mxu0 0
        %5782 = vmatmul.mubr.bf16.gmra.mxu0 %v5657
        %v5783 = vpop.f32.mrf.mxu0
        %v5784 = vadd.f32 %v5563, %v5783
        %v5785 = vpop.f32.mrf.mxu0
        %v5786 = vpop.f32.mrf.mxu0
        %v5787 = vadd.f32 %v5566, %v5786
        %v5788 = vpop.f32.mrf.mxu0
        %5789 = vmatprep.mubr.bf16.mxu0 0
        %5790 = vmatmul.mubr.bf16.gmra.mxu0 %v5660
        %v5791 = vpop.f32.mrf.mxu0
        %v5792 = vadd.f32 %v5571, %v5791
        %v5793 = vpop.f32.mrf.mxu0
        %v5794 = vpop.f32.mrf.mxu0
        %v5795 = vadd.f32 %v5574, %v5794
        %v5796 = vpop.f32.mrf.mxu0
        %5797 = vmatprep.mubr.bf16.mxu0 0
        %5798 = vmatmul.mubr.bf16.gmra.mxu0 %v5663
        %v5799 = vpop.f32.mrf.mxu0
        %v5800 = vadd.f32 %v5579, %v5799
        %v5801 = vpop.f32.mrf.mxu0
        %v5802 = vpop.f32.mrf.mxu0
        %v5803 = vadd.f32 %v5582, %v5802
        %v5804 = vpop.f32.mrf.mxu0
        %5805 = vmatprep.mubr.bf16.mxu0 0
        %5806 = vmatmul.mubr.bf16.gmra.mxu0 %v5666
        %v5807 = vpop.f32.mrf.mxu0
        %v5808 = vadd.f32 %v5587, %v5807
        %v5809 = vpop.f32.mrf.mxu0
        %v5810 = vpop.f32.mrf.mxu0
        %v5811 = vadd.f32 %v5590, %v5810
        %v5812 = vpop.f32.mrf.mxu0
        %5813 = vmatprep.mubr.bf16.mxu0 0
        %5814 = vmatmul.mubr.bf16.gmra.mxu0 %v5669
        %v5815 = vpop.f32.mrf.mxu0
        %v5816 = vadd.f32 %v5595, %v5815
        %v5817 = vpop.f32.mrf.mxu0
        %v5818 = vpop.f32.mrf.mxu0
        %v5819 = vadd.f32 %v5598, %v5818
        %v5820 = vpop.f32.mrf.mxu0
        %5821 = vmatprep.mubr.bf16.mxu0 0
        %5822 = vmatmul.mubr.bf16.gmra.mxu0 %v5672
        %v5823 = vpop.f32.mrf.mxu0
        %v5824 = vadd.f32 %v5603, %v5823
        %v5825 = vpop.f32.mrf.mxu0
        %v5826 = vpop.f32.mrf.mxu0
        %v5827 = vadd.f32 %v5606, %v5826
        %v5828 = vpop.f32.mrf.mxu0
        %5829 = vmatprep.mubr.bf16.mxu0 0
        %5830 = vmatmul.mubr.bf16.gmra.mxu0 %v5675
        %v5831 = vpop.f32.mrf.mxu0
        %v5832 = vadd.f32 %v5611, %v5831
        %v5833 = vpop.f32.mrf.mxu0
        %v5834 = vpop.f32.mrf.mxu0
        %v5835 = vadd.f32 %v5614, %v5834
        %v5836 = vpop.f32.mrf.mxu0
        %5837 = vdwg.mxu0
        %v5838 = vld [vmem:[#allocation2 + $0x2] sm:$0xff]
        %v5839 = vld [vmem:[#allocation2 + $0xa] sm:$0xff]
        %v5840 = vld [vmem:[#allocation2 + $0x1a] sm:$0xff]
        %v5841 = vld [vmem:[#allocation2 + $0x22] sm:$0xff]
        %v5842 = vld [vmem:[#allocation2 + $0x32] sm:$0xff]
        %v5843 = vld [vmem:[#allocation2 + $0x3a] sm:$0xff]
        %v5844 = vld [vmem:[#allocation2 + $0x4a] sm:$0xff]
        %v5845 = vld [vmem:[#allocation2 + $0x52] sm:$0xff]
        %v5846 = vld [vmem:[#allocation2 + $0x62] sm:$0xff]
        %v5847 = vld [vmem:[#allocation2 + $0x6a] sm:$0xff]
        %v5848 = vld [vmem:[#allocation2 + $0x7a] sm:$0xff]
        %v5849 = vld [vmem:[#allocation2 + $0x82] sm:$0xff]
        %v5850 = vld [vmem:[#allocation2 + $0x92] sm:$0xff]
        %v5851 = vld [vmem:[#allocation2 + $0x9a] sm:$0xff]
        %v5852 = vld [vmem:[#allocation2 + $0xaa] sm:$0xff]
        %v5853 = vld [vmem:[#allocation2 + $0xb2] sm:$0xff]
        %v5854 = vld [vmem:[#allocation2 + $0xc2] sm:$0xff]
        %v5855 = vld [vmem:[#allocation2 + $0xca] sm:$0xff]
        %v5856 = vld [vmem:[#allocation2 + $0xda] sm:$0xff]
        %v5857 = vld [vmem:[#allocation2 + $0xe2] sm:$0xff]
        %v5858 = vld [vmem:[#allocation2 + $0xf2] sm:$0xff]
        %v5859 = vld [vmem:[#allocation2 + $0xfa] sm:$0xff]
        %v5860 = vld [vmem:[#allocation2 + $0x10a] sm:$0xff]
        %v5861 = vld [vmem:[#allocation2 + $0x112] sm:$0xff]
        %v5862 = vld [vmem:[#allocation2 + $0x122] sm:$0xff]
        %v5863 = vld [vmem:[#allocation2 + $0x12a] sm:$0xff]
        %v5864 = vld [vmem:[#allocation2 + $0x13a] sm:$0xff]
        %v5865 = vld [vmem:[#allocation2 + $0x142] sm:$0xff]
        %v5866 = vld [vmem:[#allocation2 + $0x152] sm:$0xff]
        %v5867 = vld [vmem:[#allocation2 + $0x15a] sm:$0xff]
        %v5868 = vld [vmem:[#allocation2 + $0x16a] sm:$0xff]
        %v5869 = vld [vmem:[#allocation2 + $0x172] sm:$0xff]
        %v5870 = vpack.c.bf16 %v5839, %v5838
        %v5871 = vpack.c.bf16 %v5841, %v5840
        %v5872 = vpack.c.bf16 %v5843, %v5842
        %v5873 = vpack.c.bf16 %v5845, %v5844
        %v5874 = vpack.c.bf16 %v5847, %v5846
        %v5875 = vpack.c.bf16 %v5849, %v5848
        %v5876 = vpack.c.bf16 %v5851, %v5850
        %v5877 = vpack.c.bf16 %v5853, %v5852
        %v5878 = vpack.c.bf16 %v5855, %v5854
        %v5879 = vpack.c.bf16 %v5857, %v5856
        %v5880 = vpack.c.bf16 %v5859, %v5858
        %v5881 = vpack.c.bf16 %v5861, %v5860
        %v5882 = vpack.c.bf16 %v5863, %v5862
        %v5883 = vpack.c.bf16 %v5865, %v5864
        %v5884 = vpack.c.bf16 %v5867, %v5866
        %v5885 = vpack.c.bf16 %v5869, %v5868
        %s5886 = scalar_lea.vmem %s2, 32
        %v5887 = vld [vmem:[%s5886] sm:$0xf]
        %v5888 = vld [vmem:[%s5886 + $0x4] sm:$0xf]
        %v5889 = vld [vmem:[%s5886 + $0x8] sm:$0xf]
        %v5890 = vld [vmem:[%s5886 + $0xc] sm:$0xf]
        %v5895 = vunpack.c.l.b16 %v5887
        %v5896 = vunpack.c.l.b16 %v5888
        %v5897 = vunpack.c.l.b16 %v5889
        %v5898 = vunpack.c.l.b16 %v5890
        %v5899 = vpack.c.b16 %v5896, %v5895
        %v5900 = vpack.c.b16 %v5898, %v5897
        %v5904 = vsel %vm4793, %v5870, 0
        %v5907 = vsel %vm4793, %v5871, 0
        %v5910 = vsel %vm4793, %v5872, 0
        %v5913 = vsel %vm4793, %v5873, 0
        %v5916 = vsel %vm4793, %v5874, 0
        %v5919 = vsel %vm4793, %v5875, 0
        %v5922 = vsel %vm4793, %v5876, 0
        %v5925 = vsel %vm4793, %v5877, 0
        %v5928 = vsel %vm4793, %v5878, 0
        %v5931 = vsel %vm4793, %v5879, 0
        %v5934 = vsel %vm4793, %v5880, 0
        %v5937 = vsel %vm4793, %v5881, 0
        %v5940 = vsel %vm4793, %v5882, 0
        %v5943 = vsel %vm4793, %v5883, 0
        %v5946 = vsel %vm4793, %v5884, 0
        %v5949 = vsel %vm4793, %v5885, 0
        %5951 = vmatprep.subr.bf16.mxu0 0
        %5952 = vmatpush1.bf16.msra.mxu0 0
        %5953 = vmatprep.subr.bf16.mxu0 0
        %5954 = vmatpush1.bf16.msra.mxu0 0
        %5955 = vmatprep.subr.bf16.mxu0 0
        %5956 = vmatpush1.bf16.msra.mxu0 0
        %5957 = vmatprep.subr.bf16.mxu0 0
        %5958 = vmatpush1.bf16.msra.mxu0 0
        %5959 = vmatprep.subr.bf16.mxu0 0
        %5960 = vmatpush1.bf16.msra.mxu0 0
        %5961 = vmatprep.subr.bf16.mxu0 0
        %5962 = vmatpush1.bf16.msra.mxu0 0
        %5963 = vmatprep.subr.bf16.mxu0 0
        %5964 = vmatpush1.bf16.msra.mxu0 %v5900
        %5965 = vmatprep.subr.bf16.mxu0 0
        %5966 = vmatpush1.bf16.msra.mxu0 %v5899
        %5967 = vmatprep.subr.bf16.mxu0 0
        %5968 = vmatpush2.bf16.msra.mxu0 0
        %5969 = vmatprep.subr.bf16.mxu0 0
        %5970 = vmatpush2.bf16.msra.mxu0 0
        %5971 = vmatprep.subr.bf16.mxu0 0
        %5972 = vmatpush2.bf16.msra.mxu0 0
        %5973 = vmatprep.subr.bf16.mxu0 0
        %5974 = vmatpush2.bf16.msra.mxu0 0
        %5975 = vmatprep.subr.bf16.mxu0 0
        %5976 = vmatpush2.bf16.msra.mxu0 0
        %5977 = vmatprep.subr.bf16.mxu0 0
        %5978 = vmatpush2.bf16.msra.mxu0 0
        %5979 = vmatprep.subr.bf16.mxu0 0
        %5980 = vmatpush2.bf16.msra.mxu0 0
        %5981 = vmatprep.subr.bf16.mxu0 0
        %5982 = vmatpush2.bf16.msra.mxu0 0
        %5983 = vmatprep.mubr.bf16.mxu0 0
        %5984 = vmatmul.mubr.bf16.gmra.mxu0 %v5904
        %v5985 = vpop.f32.mrf.mxu0
        %v5986 = vadd.f32 0.0, %v5985
        %v5987 = vpop.f32.mrf.mxu0
        %v5988 = vpop.f32.mrf.mxu0
        %v5989 = vadd.f32 0.0, %v5988
        %v5990 = vpop.f32.mrf.mxu0
        %5991 = vmatprep.mubr.bf16.mxu0 0
        %5992 = vmatmul.mubr.bf16.gmra.mxu0 %v5907
        %v5993 = vpop.f32.mrf.mxu0
        %v5994 = vadd.f32 0.0, %v5993
        %v5995 = vpop.f32.mrf.mxu0
        %v5996 = vpop.f32.mrf.mxu0
        %v5997 = vadd.f32 0.0, %v5996
        %v5998 = vpop.f32.mrf.mxu0
        %5999 = vmatprep.mubr.bf16.mxu0 0
        %6000 = vmatmul.mubr.bf16.gmra.mxu0 %v5910
        %v6001 = vpop.f32.mrf.mxu0
        %v6002 = vadd.f32 0.0, %v6001
        %v6003 = vpop.f32.mrf.mxu0
        %v6004 = vpop.f32.mrf.mxu0
        %v6005 = vadd.f32 0.0, %v6004
        %v6006 = vpop.f32.mrf.mxu0
        %6007 = vmatprep.mubr.bf16.mxu0 0
        %6008 = vmatmul.mubr.bf16.gmra.mxu0 %v5913
        %v6009 = vpop.f32.mrf.mxu0
        %v6010 = vadd.f32 0.0, %v6009
        %v6011 = vpop.f32.mrf.mxu0
        %v6012 = vpop.f32.mrf.mxu0
        %v6013 = vadd.f32 0.0, %v6012
        %v6014 = vpop.f32.mrf.mxu0
        %6015 = vmatprep.mubr.bf16.mxu0 0
        %6016 = vmatmul.mubr.bf16.gmra.mxu0 %v5916
        %v6017 = vpop.f32.mrf.mxu0
        %v6018 = vadd.f32 0.0, %v6017
        %v6019 = vpop.f32.mrf.mxu0
        %v6020 = vpop.f32.mrf.mxu0
        %v6021 = vadd.f32 0.0, %v6020
        %v6022 = vpop.f32.mrf.mxu0
        %6023 = vmatprep.mubr.bf16.mxu0 0
        %6024 = vmatmul.mubr.bf16.gmra.mxu0 %v5919
        %v6025 = vpop.f32.mrf.mxu0
        %v6026 = vadd.f32 0.0, %v6025
        %v6027 = vpop.f32.mrf.mxu0
        %v6028 = vpop.f32.mrf.mxu0
        %v6029 = vadd.f32 0.0, %v6028
        %v6030 = vpop.f32.mrf.mxu0
        %6031 = vmatprep.mubr.bf16.mxu0 0
        %6032 = vmatmul.mubr.bf16.gmra.mxu0 %v5922
        %v6033 = vpop.f32.mrf.mxu0
        %v6034 = vadd.f32 0.0, %v6033
        %v6035 = vpop.f32.mrf.mxu0
        %v6036 = vpop.f32.mrf.mxu0
        %v6037 = vadd.f32 0.0, %v6036
        %v6038 = vpop.f32.mrf.mxu0
        %6039 = vmatprep.mubr.bf16.mxu0 0
        %6040 = vmatmul.mubr.bf16.gmra.mxu0 %v5925
        %v6041 = vpop.f32.mrf.mxu0
        %v6042 = vadd.f32 0.0, %v6041
        %v6043 = vpop.f32.mrf.mxu0
        %v6044 = vpop.f32.mrf.mxu0
        %v6045 = vadd.f32 0.0, %v6044
        %v6046 = vpop.f32.mrf.mxu0
        %6047 = vmatprep.mubr.bf16.mxu0 0
        %6048 = vmatmul.mubr.bf16.gmra.mxu0 %v5928
        %v6049 = vpop.f32.mrf.mxu0
        %v6050 = vadd.f32 0.0, %v6049
        %v6051 = vpop.f32.mrf.mxu0
        %v6052 = vpop.f32.mrf.mxu0
        %v6053 = vadd.f32 0.0, %v6052
        %v6054 = vpop.f32.mrf.mxu0
        %6055 = vmatprep.mubr.bf16.mxu0 0
        %6056 = vmatmul.mubr.bf16.gmra.mxu0 %v5931
        %v6057 = vpop.f32.mrf.mxu0
        %v6058 = vadd.f32 0.0, %v6057
        %v6059 = vpop.f32.mrf.mxu0
        %v6060 = vpop.f32.mrf.mxu0
        %v6061 = vadd.f32 0.0, %v6060
        %v6062 = vpop.f32.mrf.mxu0
        %6063 = vmatprep.mubr.bf16.mxu0 0
        %6064 = vmatmul.mubr.bf16.gmra.mxu0 %v5934
        %v6065 = vpop.f32.mrf.mxu0
        %v6066 = vadd.f32 0.0, %v6065
        %v6067 = vpop.f32.mrf.mxu0
        %v6068 = vpop.f32.mrf.mxu0
        %v6069 = vadd.f32 0.0, %v6068
        %v6070 = vpop.f32.mrf.mxu0
        %6071 = vmatprep.mubr.bf16.mxu0 0
        %6072 = vmatmul.mubr.bf16.gmra.mxu0 %v5937
        %v6073 = vpop.f32.mrf.mxu0
        %v6074 = vadd.f32 0.0, %v6073
        %v6075 = vpop.f32.mrf.mxu0
        %v6076 = vpop.f32.mrf.mxu0
        %v6077 = vadd.f32 0.0, %v6076
        %v6078 = vpop.f32.mrf.mxu0
        %6079 = vmatprep.mubr.bf16.mxu0 0
        %6080 = vmatmul.mubr.bf16.gmra.mxu0 %v5940
        %v6081 = vpop.f32.mrf.mxu0
        %v6082 = vadd.f32 0.0, %v6081
        %v6083 = vpop.f32.mrf.mxu0
        %v6084 = vpop.f32.mrf.mxu0
        %v6085 = vadd.f32 0.0, %v6084
        %v6086 = vpop.f32.mrf.mxu0
        %6087 = vmatprep.mubr.bf16.mxu0 0
        %6088 = vmatmul.mubr.bf16.gmra.mxu0 %v5943
        %v6089 = vpop.f32.mrf.mxu0
        %v6090 = vadd.f32 0.0, %v6089
        %v6091 = vpop.f32.mrf.mxu0
        %v6092 = vpop.f32.mrf.mxu0
        %v6093 = vadd.f32 0.0, %v6092
        %v6094 = vpop.f32.mrf.mxu0
        %6095 = vmatprep.mubr.bf16.mxu0 0
        %6096 = vmatmul.mubr.bf16.gmra.mxu0 %v5946
        %v6097 = vpop.f32.mrf.mxu0
        %v6098 = vadd.f32 0.0, %v6097
        %v6099 = vpop.f32.mrf.mxu0
        %v6100 = vpop.f32.mrf.mxu0
        %v6101 = vadd.f32 0.0, %v6100
        %v6102 = vpop.f32.mrf.mxu0
        %6103 = vmatprep.mubr.bf16.mxu0 0
        %6104 = vmatmul.mubr.bf16.gmra.mxu0 %v5949
        %v6105 = vpop.f32.mrf.mxu0
        %v6106 = vadd.f32 0.0, %v6105
        %v6107 = vpop.f32.mrf.mxu0
        %v6108 = vpop.f32.mrf.mxu0
        %v6109 = vadd.f32 0.0, %v6108
        %v6110 = vpop.f32.mrf.mxu0
        %6111 = vdwg.mxu0
        %v6112 = vadd.f32 %v5712, %v5986
        %v6113 = vadd.f32 %v5715, %v5989
        %v6114 = vadd.f32 %v5720, %v5994
        %v6115 = vadd.f32 %v5723, %v5997
        %v6116 = vadd.f32 %v5728, %v6002
        %v6117 = vadd.f32 %v5731, %v6005
        %v6118 = vadd.f32 %v5736, %v6010
        %v6119 = vadd.f32 %v5739, %v6013
        %v6120 = vadd.f32 %v5744, %v6018
        %v6121 = vadd.f32 %v5747, %v6021
        %v6122 = vadd.f32 %v5752, %v6026
        %v6123 = vadd.f32 %v5755, %v6029
        %v6124 = vadd.f32 %v5760, %v6034
        %v6125 = vadd.f32 %v5763, %v6037
        %v6126 = vadd.f32 %v5768, %v6042
        %v6127 = vadd.f32 %v5771, %v6045
        %v6128 = vadd.f32 %v5776, %v6050
        %v6129 = vadd.f32 %v5779, %v6053
        %v6130 = vadd.f32 %v5784, %v6058
        %v6131 = vadd.f32 %v5787, %v6061
        %v6132 = vadd.f32 %v5792, %v6066
        %v6133 = vadd.f32 %v5795, %v6069
        %v6134 = vadd.f32 %v5800, %v6074
        %v6135 = vadd.f32 %v5803, %v6077
        %v6136 = vadd.f32 %v5808, %v6082
        %v6137 = vadd.f32 %v5811, %v6085
        %v6138 = vadd.f32 %v5816, %v6090
        %v6139 = vadd.f32 %v5819, %v6093
        %v6140 = vadd.f32 %v5824, %v6098
        %v6141 = vadd.f32 %v5827, %v6101
        %v6142 = vadd.f32 %v5832, %v6106
        %v6143 = vadd.f32 %v5835, %v6109
        %v6144 = vld [vmem:[%s5258] sm:$0xff]
        %v6145 = vld [vmem:[%s5258 + $0x8] sm:$0xff]
        %v6146 = vld [vmem:[%s5258 + $0x18] sm:$0xff]
        %v6147 = vld [vmem:[%s5258 + $0x20] sm:$0xff]
        %v6148 = vld [vmem:[%s5258 + $0x30] sm:$0xff]
        %v6149 = vld [vmem:[%s5258 + $0x38] sm:$0xff]
        %v6150 = vld [vmem:[%s5258 + $0x48] sm:$0xff]
        %v6151 = vld [vmem:[%s5258 + $0x50] sm:$0xff]
        %v6152 = vld [vmem:[%s5258 + $0x60] sm:$0xff]
        %v6153 = vld [vmem:[%s5258 + $0x68] sm:$0xff]
        %v6154 = vld [vmem:[%s5258 + $0x78] sm:$0xff]
        %v6155 = vld [vmem:[%s5258 + $0x80] sm:$0xff]
        %v6156 = vld [vmem:[%s5258 + $0x90] sm:$0xff]
        %v6157 = vld [vmem:[%s5258 + $0x98] sm:$0xff]
        %v6158 = vld [vmem:[%s5258 + $0xa8] sm:$0xff]
        %v6159 = vld [vmem:[%s5258 + $0xb0] sm:$0xff]
        %v6160 = vld [vmem:[%s5258 + $0xc0] sm:$0xff]
        %v6161 = vld [vmem:[%s5258 + $0xc8] sm:$0xff]
        %v6162 = vld [vmem:[%s5258 + $0xd8] sm:$0xff]
        %v6163 = vld [vmem:[%s5258 + $0xe0] sm:$0xff]
        %v6164 = vld [vmem:[%s5258 + $0xf0] sm:$0xff]
        %v6165 = vld [vmem:[%s5258 + $0xf8] sm:$0xff]
        %v6166 = vld [vmem:[%s5258 + $0x108] sm:$0xff]
        %v6167 = vld [vmem:[%s5258 + $0x110] sm:$0xff]
        %v6168 = vld [vmem:[%s5258 + $0x120] sm:$0xff]
        %v6169 = vld [vmem:[%s5258 + $0x128] sm:$0xff]
        %v6170 = vld [vmem:[%s5258 + $0x138] sm:$0xff]
        %v6171 = vld [vmem:[%s5258 + $0x140] sm:$0xff]
        %v6172 = vld [vmem:[%s5258 + $0x150] sm:$0xff]
        %v6173 = vld [vmem:[%s5258 + $0x158] sm:$0xff]
        %v6174 = vld [vmem:[%s5258 + $0x168] sm:$0xff]
        %v6175 = vld [vmem:[%s5258 + $0x170] sm:$0xff]
        %v6176 = vpack.c.bf16 %v6145, %v6144
        %v6177 = vpack.c.bf16 %v6147, %v6146
        %v6178 = vpack.c.bf16 %v6149, %v6148
        %v6179 = vpack.c.bf16 %v6151, %v6150
        %v6180 = vpack.c.bf16 %v6153, %v6152
        %v6181 = vpack.c.bf16 %v6155, %v6154
        %v6182 = vpack.c.bf16 %v6157, %v6156
        %v6183 = vpack.c.bf16 %v6159, %v6158
        %v6184 = vpack.c.bf16 %v6161, %v6160
        %v6185 = vpack.c.bf16 %v6163, %v6162
        %v6186 = vpack.c.bf16 %v6165, %v6164
        %v6187 = vpack.c.bf16 %v6167, %v6166
        %v6188 = vpack.c.bf16 %v6169, %v6168
        %v6189 = vpack.c.bf16 %v6171, %v6170
        %v6190 = vpack.c.bf16 %v6173, %v6172
        %v6191 = vpack.c.bf16 %v6175, %v6174
        %s6192 = scalar_lea.vmem %s2, 48
        %v6193 = vld [vmem:[%s6192] sm:$0xf]
        %v6194 = vld [vmem:[%s6192 + $0x4] sm:$0xf]
        %v6195 = vld [vmem:[%s6192 + $0x8] sm:$0xf]
        %v6196 = vld [vmem:[%s6192 + $0xc] sm:$0xf]
        %v6201 = vunpack.c.l.b16 %v6193
        %v6202 = vunpack.c.l.b16 %v6194
        %v6203 = vunpack.c.l.b16 %v6195
        %v6204 = vunpack.c.l.b16 %v6196
        %v6205 = vpack.c.b16 %v6202, %v6201
        %v6206 = vpack.c.b16 %v6204, %v6203
        %v6210 = vsel %vm4793, %v6176, 0
        %v6213 = vsel %vm4793, %v6177, 0
        %v6216 = vsel %vm4793, %v6178, 0
        %v6219 = vsel %vm4793, %v6179, 0
        %v6222 = vsel %vm4793, %v6180, 0
        %v6225 = vsel %vm4793, %v6181, 0
        %v6228 = vsel %vm4793, %v6182, 0
        %v6231 = vsel %vm4793, %v6183, 0
        %v6234 = vsel %vm4793, %v6184, 0
        %v6237 = vsel %vm4793, %v6185, 0
        %v6240 = vsel %vm4793, %v6186, 0
        %v6243 = vsel %vm4793, %v6187, 0
        %v6246 = vsel %vm4793, %v6188, 0
        %v6249 = vsel %vm4793, %v6189, 0
        %v6252 = vsel %vm4793, %v6190, 0
        %v6255 = vsel %vm4793, %v6191, 0
        %6257 = vmatprep.subr.bf16.mxu0 0
        %6258 = vmatpush1.bf16.msra.mxu0 0
        %6259 = vmatprep.subr.bf16.mxu0 0
        %6260 = vmatpush1.bf16.msra.mxu0 0
        %6261 = vmatprep.subr.bf16.mxu0 0
        %6262 = vmatpush1.bf16.msra.mxu0 0
        %6263 = vmatprep.subr.bf16.mxu0 0
        %6264 = vmatpush1.bf16.msra.mxu0 0
        %6265 = vmatprep.subr.bf16.mxu0 0
        %6266 = vmatpush1.bf16.msra.mxu0 0
        %6267 = vmatprep.subr.bf16.mxu0 0
        %6268 = vmatpush1.bf16.msra.mxu0 0
        %6269 = vmatprep.subr.bf16.mxu0 0
        %6270 = vmatpush1.bf16.msra.mxu0 %v6206
        %6271 = vmatprep.subr.bf16.mxu0 0
        %6272 = vmatpush1.bf16.msra.mxu0 %v6205
        %6273 = vmatprep.subr.bf16.mxu0 0
        %6274 = vmatpush2.bf16.msra.mxu0 0
        %6275 = vmatprep.subr.bf16.mxu0 0
        %6276 = vmatpush2.bf16.msra.mxu0 0
        %6277 = vmatprep.subr.bf16.mxu0 0
        %6278 = vmatpush2.bf16.msra.mxu0 0
        %6279 = vmatprep.subr.bf16.mxu0 0
        %6280 = vmatpush2.bf16.msra.mxu0 0
        %6281 = vmatprep.subr.bf16.mxu0 0
        %6282 = vmatpush2.bf16.msra.mxu0 0
        %6283 = vmatprep.subr.bf16.mxu0 0
        %6284 = vmatpush2.bf16.msra.mxu0 0
        %6285 = vmatprep.subr.bf16.mxu0 0
        %6286 = vmatpush2.bf16.msra.mxu0 0
        %6287 = vmatprep.subr.bf16.mxu0 0
        %6288 = vmatpush2.bf16.msra.mxu0 0
        %6289 = vmatprep.mubr.bf16.mxu0 0
        %6290 = vmatmul.mubr.bf16.gmra.mxu0 %v6210
        %v6291 = vpop.f32.mrf.mxu0
        %v6292 = vadd.f32 0.0, %v6291
        %v6293 = vpop.f32.mrf.mxu0
        %v6294 = vpop.f32.mrf.mxu0
        %v6295 = vadd.f32 0.0, %v6294
        %v6296 = vpop.f32.mrf.mxu0
        %6297 = vmatprep.mubr.bf16.mxu0 0
        %6298 = vmatmul.mubr.bf16.gmra.mxu0 %v6213
        %v6299 = vpop.f32.mrf.mxu0
        %v6300 = vadd.f32 0.0, %v6299
        %v6301 = vpop.f32.mrf.mxu0
        %v6302 = vpop.f32.mrf.mxu0
        %v6303 = vadd.f32 0.0, %v6302
        %v6304 = vpop.f32.mrf.mxu0
        %6305 = vmatprep.mubr.bf16.mxu0 0
        %6306 = vmatmul.mubr.bf16.gmra.mxu0 %v6216
        %v6307 = vpop.f32.mrf.mxu0
        %v6308 = vadd.f32 0.0, %v6307
        %v6309 = vpop.f32.mrf.mxu0
        %v6310 = vpop.f32.mrf.mxu0
        %v6311 = vadd.f32 0.0, %v6310
        %v6312 = vpop.f32.mrf.mxu0
        %6313 = vmatprep.mubr.bf16.mxu0 0
        %6314 = vmatmul.mubr.bf16.gmra.mxu0 %v6219
        %v6315 = vpop.f32.mrf.mxu0
        %v6316 = vadd.f32 0.0, %v6315
        %v6317 = vpop.f32.mrf.mxu0
        %v6318 = vpop.f32.mrf.mxu0
        %v6319 = vadd.f32 0.0, %v6318
        %v6320 = vpop.f32.mrf.mxu0
        %6321 = vmatprep.mubr.bf16.mxu0 0
        %6322 = vmatmul.mubr.bf16.gmra.mxu0 %v6222
        %v6323 = vpop.f32.mrf.mxu0
        %v6324 = vadd.f32 0.0, %v6323
        %v6325 = vpop.f32.mrf.mxu0
        %v6326 = vpop.f32.mrf.mxu0
        %v6327 = vadd.f32 0.0, %v6326
        %v6328 = vpop.f32.mrf.mxu0
        %6329 = vmatprep.mubr.bf16.mxu0 0
        %6330 = vmatmul.mubr.bf16.gmra.mxu0 %v6225
        %v6331 = vpop.f32.mrf.mxu0
        %v6332 = vadd.f32 0.0, %v6331
        %v6333 = vpop.f32.mrf.mxu0
        %v6334 = vpop.f32.mrf.mxu0
        %v6335 = vadd.f32 0.0, %v6334
        %v6336 = vpop.f32.mrf.mxu0
        %6337 = vmatprep.mubr.bf16.mxu0 0
        %6338 = vmatmul.mubr.bf16.gmra.mxu0 %v6228
        %v6339 = vpop.f32.mrf.mxu0
        %v6340 = vadd.f32 0.0, %v6339
        %v6341 = vpop.f32.mrf.mxu0
        %v6342 = vpop.f32.mrf.mxu0
        %v6343 = vadd.f32 0.0, %v6342
        %v6344 = vpop.f32.mrf.mxu0
        %6345 = vmatprep.mubr.bf16.mxu0 0
        %6346 = vmatmul.mubr.bf16.gmra.mxu0 %v6231
        %v6347 = vpop.f32.mrf.mxu0
        %v6348 = vadd.f32 0.0, %v6347
        %v6349 = vpop.f32.mrf.mxu0
        %v6350 = vpop.f32.mrf.mxu0
        %v6351 = vadd.f32 0.0, %v6350
        %v6352 = vpop.f32.mrf.mxu0
        %6353 = vmatprep.mubr.bf16.mxu0 0
        %6354 = vmatmul.mubr.bf16.gmra.mxu0 %v6234
        %v6355 = vpop.f32.mrf.mxu0
        %v6356 = vadd.f32 0.0, %v6355
        %v6357 = vpop.f32.mrf.mxu0
        %v6358 = vpop.f32.mrf.mxu0
        %v6359 = vadd.f32 0.0, %v6358
        %v6360 = vpop.f32.mrf.mxu0
        %6361 = vmatprep.mubr.bf16.mxu0 0
        %6362 = vmatmul.mubr.bf16.gmra.mxu0 %v6237
        %v6363 = vpop.f32.mrf.mxu0
        %v6364 = vadd.f32 0.0, %v6363
        %v6365 = vpop.f32.mrf.mxu0
        %v6366 = vpop.f32.mrf.mxu0
        %v6367 = vadd.f32 0.0, %v6366
        %v6368 = vpop.f32.mrf.mxu0
        %6369 = vmatprep.mubr.bf16.mxu0 0
        %6370 = vmatmul.mubr.bf16.gmra.mxu0 %v6240
        %v6371 = vpop.f32.mrf.mxu0
        %v6372 = vadd.f32 0.0, %v6371
        %v6373 = vpop.f32.mrf.mxu0
        %v6374 = vpop.f32.mrf.mxu0
        %v6375 = vadd.f32 0.0, %v6374
        %v6376 = vpop.f32.mrf.mxu0
        %6377 = vmatprep.mubr.bf16.mxu0 0
        %6378 = vmatmul.mubr.bf16.gmra.mxu0 %v6243
        %v6379 = vpop.f32.mrf.mxu0
        %v6380 = vadd.f32 0.0, %v6379
        %v6381 = vpop.f32.mrf.mxu0
        %v6382 = vpop.f32.mrf.mxu0
        %v6383 = vadd.f32 0.0, %v6382
        %v6384 = vpop.f32.mrf.mxu0
        %6385 = vmatprep.mubr.bf16.mxu0 0
        %6386 = vmatmul.mubr.bf16.gmra.mxu0 %v6246
        %v6387 = vpop.f32.mrf.mxu0
        %v6388 = vadd.f32 0.0, %v6387
        %v6389 = vpop.f32.mrf.mxu0
        %v6390 = vpop.f32.mrf.mxu0
        %v6391 = vadd.f32 0.0, %v6390
        %v6392 = vpop.f32.mrf.mxu0
        %6393 = vmatprep.mubr.bf16.mxu0 0
        %6394 = vmatmul.mubr.bf16.gmra.mxu0 %v6249
        %v6395 = vpop.f32.mrf.mxu0
        %v6396 = vadd.f32 0.0, %v6395
        %v6397 = vpop.f32.mrf.mxu0
        %v6398 = vpop.f32.mrf.mxu0
        %v6399 = vadd.f32 0.0, %v6398
        %v6400 = vpop.f32.mrf.mxu0
        %6401 = vmatprep.mubr.bf16.mxu0 0
        %6402 = vmatmul.mubr.bf16.gmra.mxu0 %v6252
        %v6403 = vpop.f32.mrf.mxu0
        %v6404 = vadd.f32 0.0, %v6403
        %v6405 = vpop.f32.mrf.mxu0
        %v6406 = vpop.f32.mrf.mxu0
        %v6407 = vadd.f32 0.0, %v6406
        %v6408 = vpop.f32.mrf.mxu0
        %6409 = vmatprep.mubr.bf16.mxu0 0
        %6410 = vmatmul.mubr.bf16.gmra.mxu0 %v6255
        %v6411 = vpop.f32.mrf.mxu0
        %v6412 = vadd.f32 0.0, %v6411
        %v6413 = vpop.f32.mrf.mxu0
        %v6414 = vpop.f32.mrf.mxu0
        %v6415 = vadd.f32 0.0, %v6414
        %v6416 = vpop.f32.mrf.mxu0
        %6417 = vdwg.mxu0
        %v6418 = vadd.f32 %v6112, %v6292
        %v6419 = vadd.f32 %v6113, %v6295
        %v6420 = vadd.f32 %v6114, %v6300
        %v6421 = vadd.f32 %v6115, %v6303
        %v6422 = vadd.f32 %v6116, %v6308
        %v6423 = vadd.f32 %v6117, %v6311
        %v6424 = vadd.f32 %v6118, %v6316
        %v6425 = vadd.f32 %v6119, %v6319
        %v6426 = vadd.f32 %v6120, %v6324
        %v6427 = vadd.f32 %v6121, %v6327
        %v6428 = vadd.f32 %v6122, %v6332
        %v6429 = vadd.f32 %v6123, %v6335
        %v6430 = vadd.f32 %v6124, %v6340
        %v6431 = vadd.f32 %v6125, %v6343
        %v6432 = vadd.f32 %v6126, %v6348
        %v6433 = vadd.f32 %v6127, %v6351
        %v6434 = vadd.f32 %v6128, %v6356
        %v6435 = vadd.f32 %v6129, %v6359
        %v6436 = vadd.f32 %v6130, %v6364
        %v6437 = vadd.f32 %v6131, %v6367
        %v6438 = vadd.f32 %v6132, %v6372
        %v6439 = vadd.f32 %v6133, %v6375
        %v6440 = vadd.f32 %v6134, %v6380
        %v6441 = vadd.f32 %v6135, %v6383
        %v6442 = vadd.f32 %v6136, %v6388
        %v6443 = vadd.f32 %v6137, %v6391
        %v6444 = vadd.f32 %v6138, %v6396
        %v6445 = vadd.f32 %v6139, %v6399
        %v6446 = vadd.f32 %v6140, %v6404
        %v6447 = vadd.f32 %v6141, %v6407
        %v6448 = vadd.f32 %v6142, %v6412
        %v6449 = vadd.f32 %v6143, %v6415
        %v6450 = vld [vmem:[%s5258 + $0x1] sm:$0xff]
        %v6451 = vld [vmem:[%s5258 + $0x9] sm:$0xff]
        %v6452 = vld [vmem:[%s5258 + $0x19] sm:$0xff]
        %v6453 = vld [vmem:[%s5258 + $0x21] sm:$0xff]
        %v6454 = vld [vmem:[%s5258 + $0x31] sm:$0xff]
        %v6455 = vld [vmem:[%s5258 + $0x39] sm:$0xff]
        %v6456 = vld [vmem:[%s5258 + $0x49] sm:$0xff]
        %v6457 = vld [vmem:[%s5258 + $0x51] sm:$0xff]
        %v6458 = vld [vmem:[%s5258 + $0x61] sm:$0xff]
        %v6459 = vld [vmem:[%s5258 + $0x69] sm:$0xff]
        %v6460 = vld [vmem:[%s5258 + $0x79] sm:$0xff]
        %v6461 = vld [vmem:[%s5258 + $0x81] sm:$0xff]
        %v6462 = vld [vmem:[%s5258 + $0x91] sm:$0xff]
        %v6463 = vld [vmem:[%s5258 + $0x99] sm:$0xff]
        %v6464 = vld [vmem:[%s5258 + $0xa9] sm:$0xff]
        %v6465 = vld [vmem:[%s5258 + $0xb1] sm:$0xff]
        %v6466 = vld [vmem:[%s5258 + $0xc1] sm:$0xff]
        %v6467 = vld [vmem:[%s5258 + $0xc9] sm:$0xff]
        %v6468 = vld [vmem:[%s5258 + $0xd9] sm:$0xff]
        %v6469 = vld [vmem:[%s5258 + $0xe1] sm:$0xff]
        %v6470 = vld [vmem:[%s5258 + $0xf1] sm:$0xff]
        %v6471 = vld [vmem:[%s5258 + $0xf9] sm:$0xff]
        %v6472 = vld [vmem:[%s5258 + $0x109] sm:$0xff]
        %v6473 = vld [vmem:[%s5258 + $0x111] sm:$0xff]
        %v6474 = vld [vmem:[%s5258 + $0x121] sm:$0xff]
        %v6475 = vld [vmem:[%s5258 + $0x129] sm:$0xff]
        %v6476 = vld [vmem:[%s5258 + $0x139] sm:$0xff]
        %v6477 = vld [vmem:[%s5258 + $0x141] sm:$0xff]
        %v6478 = vld [vmem:[%s5258 + $0x151] sm:$0xff]
        %v6479 = vld [vmem:[%s5258 + $0x159] sm:$0xff]
        %v6480 = vld [vmem:[%s5258 + $0x169] sm:$0xff]
        %v6481 = vld [vmem:[%s5258 + $0x171] sm:$0xff]
        %v6482 = vpack.c.bf16 %v6451, %v6450
        %v6483 = vpack.c.bf16 %v6453, %v6452
        %v6484 = vpack.c.bf16 %v6455, %v6454
        %v6485 = vpack.c.bf16 %v6457, %v6456
        %v6486 = vpack.c.bf16 %v6459, %v6458
        %v6487 = vpack.c.bf16 %v6461, %v6460
        %v6488 = vpack.c.bf16 %v6463, %v6462
        %v6489 = vpack.c.bf16 %v6465, %v6464
        %v6490 = vpack.c.bf16 %v6467, %v6466
        %v6491 = vpack.c.bf16 %v6469, %v6468
        %v6492 = vpack.c.bf16 %v6471, %v6470
        %v6493 = vpack.c.bf16 %v6473, %v6472
        %v6494 = vpack.c.bf16 %v6475, %v6474
        %v6495 = vpack.c.bf16 %v6477, %v6476
        %v6496 = vpack.c.bf16 %v6479, %v6478
        %v6497 = vpack.c.bf16 %v6481, %v6480
        %s6498 = scalar_lea.vmem %s2, 64
        %v6499 = vld [vmem:[%s6498] sm:$0xf]
        %v6500 = vld [vmem:[%s6498 + $0x4] sm:$0xf]
        %v6501 = vld [vmem:[%s6498 + $0x8] sm:$0xf]
        %v6502 = vld [vmem:[%s6498 + $0xc] sm:$0xf]
        %v6507 = vunpack.c.l.b16 %v6499
        %v6508 = vunpack.c.l.b16 %v6500
        %v6509 = vunpack.c.l.b16 %v6501
        %v6510 = vunpack.c.l.b16 %v6502
        %v6511 = vpack.c.b16 %v6508, %v6507
        %v6512 = vpack.c.b16 %v6510, %v6509
        %v6516 = vsel %vm4793, %v6482, 0
        %v6519 = vsel %vm4793, %v6483, 0
        %v6522 = vsel %vm4793, %v6484, 0
        %v6525 = vsel %vm4793, %v6485, 0
        %v6528 = vsel %vm4793, %v6486, 0
        %v6531 = vsel %vm4793, %v6487, 0
        %v6534 = vsel %vm4793, %v6488, 0
        %v6537 = vsel %vm4793, %v6489, 0
        %v6540 = vsel %vm4793, %v6490, 0
        %v6543 = vsel %vm4793, %v6491, 0
        %v6546 = vsel %vm4793, %v6492, 0
        %v6549 = vsel %vm4793, %v6493, 0
        %v6552 = vsel %vm4793, %v6494, 0
        %v6555 = vsel %vm4793, %v6495, 0
        %v6558 = vsel %vm4793, %v6496, 0
        %v6561 = vsel %vm4793, %v6497, 0
        %6563 = vmatprep.subr.bf16.mxu0 0
        %6564 = vmatpush1.bf16.msra.mxu0 0
        %6565 = vmatprep.subr.bf16.mxu0 0
        %6566 = vmatpush1.bf16.msra.mxu0 0
        %6567 = vmatprep.subr.bf16.mxu0 0
        %6568 = vmatpush1.bf16.msra.mxu0 0
        %6569 = vmatprep.subr.bf16.mxu0 0
        %6570 = vmatpush1.bf16.msra.mxu0 0
        %6571 = vmatprep.subr.bf16.mxu0 0
        %6572 = vmatpush1.bf16.msra.mxu0 0
        %6573 = vmatprep.subr.bf16.mxu0 0
        %6574 = vmatpush1.bf16.msra.mxu0 0
        %6575 = vmatprep.subr.bf16.mxu0 0
        %6576 = vmatpush1.bf16.msra.mxu0 %v6512
        %6577 = vmatprep.subr.bf16.mxu0 0
        %6578 = vmatpush1.bf16.msra.mxu0 %v6511
        %6579 = vmatprep.subr.bf16.mxu0 0
        %6580 = vmatpush2.bf16.msra.mxu0 0
        %6581 = vmatprep.subr.bf16.mxu0 0
        %6582 = vmatpush2.bf16.msra.mxu0 0
        %6583 = vmatprep.subr.bf16.mxu0 0
        %6584 = vmatpush2.bf16.msra.mxu0 0
        %6585 = vmatprep.subr.bf16.mxu0 0
        %6586 = vmatpush2.bf16.msra.mxu0 0
        %6587 = vmatprep.subr.bf16.mxu0 0
        %6588 = vmatpush2.bf16.msra.mxu0 0
        %6589 = vmatprep.subr.bf16.mxu0 0
        %6590 = vmatpush2.bf16.msra.mxu0 0
        %6591 = vmatprep.subr.bf16.mxu0 0
        %6592 = vmatpush2.bf16.msra.mxu0 0
        %6593 = vmatprep.subr.bf16.mxu0 0
        %6594 = vmatpush2.bf16.msra.mxu0 0
        %6595 = vmatprep.mubr.bf16.mxu0 0
        %6596 = vmatmul.mubr.bf16.gmra.mxu0 %v6516
        %v6597 = vpop.f32.mrf.mxu0
        %v6598 = vadd.f32 0.0, %v6597
        %v6599 = vpop.f32.mrf.mxu0
        %v6600 = vpop.f32.mrf.mxu0
        %v6601 = vadd.f32 0.0, %v6600
        %v6602 = vpop.f32.mrf.mxu0
        %6603 = vmatprep.mubr.bf16.mxu0 0
        %6604 = vmatmul.mubr.bf16.gmra.mxu0 %v6519
        %v6605 = vpop.f32.mrf.mxu0
        %v6606 = vadd.f32 0.0, %v6605
        %v6607 = vpop.f32.mrf.mxu0
        %v6608 = vpop.f32.mrf.mxu0
        %v6609 = vadd.f32 0.0, %v6608
        %v6610 = vpop.f32.mrf.mxu0
        %6611 = vmatprep.mubr.bf16.mxu0 0
        %6612 = vmatmul.mubr.bf16.gmra.mxu0 %v6522
        %v6613 = vpop.f32.mrf.mxu0
        %v6614 = vadd.f32 0.0, %v6613
        %v6615 = vpop.f32.mrf.mxu0
        %v6616 = vpop.f32.mrf.mxu0
        %v6617 = vadd.f32 0.0, %v6616
        %v6618 = vpop.f32.mrf.mxu0
        %6619 = vmatprep.mubr.bf16.mxu0 0
        %6620 = vmatmul.mubr.bf16.gmra.mxu0 %v6525
        %v6621 = vpop.f32.mrf.mxu0
        %v6622 = vadd.f32 0.0, %v6621
        %v6623 = vpop.f32.mrf.mxu0
        %v6624 = vpop.f32.mrf.mxu0
        %v6625 = vadd.f32 0.0, %v6624
        %v6626 = vpop.f32.mrf.mxu0
        %6627 = vmatprep.mubr.bf16.mxu0 0
        %6628 = vmatmul.mubr.bf16.gmra.mxu0 %v6528
        %v6629 = vpop.f32.mrf.mxu0
        %v6630 = vadd.f32 0.0, %v6629
        %v6631 = vpop.f32.mrf.mxu0
        %v6632 = vpop.f32.mrf.mxu0
        %v6633 = vadd.f32 0.0, %v6632
        %v6634 = vpop.f32.mrf.mxu0
        %6635 = vmatprep.mubr.bf16.mxu0 0
        %6636 = vmatmul.mubr.bf16.gmra.mxu0 %v6531
        %v6637 = vpop.f32.mrf.mxu0
        %v6638 = vadd.f32 0.0, %v6637
        %v6639 = vpop.f32.mrf.mxu0
        %v6640 = vpop.f32.mrf.mxu0
        %v6641 = vadd.f32 0.0, %v6640
        %v6642 = vpop.f32.mrf.mxu0
        %6643 = vmatprep.mubr.bf16.mxu0 0
        %6644 = vmatmul.mubr.bf16.gmra.mxu0 %v6534
        %v6645 = vpop.f32.mrf.mxu0
        %v6646 = vadd.f32 0.0, %v6645
        %v6647 = vpop.f32.mrf.mxu0
        %v6648 = vpop.f32.mrf.mxu0
        %v6649 = vadd.f32 0.0, %v6648
        %v6650 = vpop.f32.mrf.mxu0
        %6651 = vmatprep.mubr.bf16.mxu0 0
        %6652 = vmatmul.mubr.bf16.gmra.mxu0 %v6537
        %v6653 = vpop.f32.mrf.mxu0
        %v6654 = vadd.f32 0.0, %v6653
        %v6655 = vpop.f32.mrf.mxu0
        %v6656 = vpop.f32.mrf.mxu0
        %v6657 = vadd.f32 0.0, %v6656
        %v6658 = vpop.f32.mrf.mxu0
        %6659 = vmatprep.mubr.bf16.mxu0 0
        %6660 = vmatmul.mubr.bf16.gmra.mxu0 %v6540
        %v6661 = vpop.f32.mrf.mxu0
        %v6662 = vadd.f32 0.0, %v6661
        %v6663 = vpop.f32.mrf.mxu0
        %v6664 = vpop.f32.mrf.mxu0
        %v6665 = vadd.f32 0.0, %v6664
        %v6666 = vpop.f32.mrf.mxu0
        %6667 = vmatprep.mubr.bf16.mxu0 0
        %6668 = vmatmul.mubr.bf16.gmra.mxu0 %v6543
        %v6669 = vpop.f32.mrf.mxu0
        %v6670 = vadd.f32 0.0, %v6669
        %v6671 = vpop.f32.mrf.mxu0
        %v6672 = vpop.f32.mrf.mxu0
        %v6673 = vadd.f32 0.0, %v6672
        %v6674 = vpop.f32.mrf.mxu0
        %6675 = vmatprep.mubr.bf16.mxu0 0
        %6676 = vmatmul.mubr.bf16.gmra.mxu0 %v6546
        %v6677 = vpop.f32.mrf.mxu0
        %v6678 = vadd.f32 0.0, %v6677
        %v6679 = vpop.f32.mrf.mxu0
        %v6680 = vpop.f32.mrf.mxu0
        %v6681 = vadd.f32 0.0, %v6680
        %v6682 = vpop.f32.mrf.mxu0
        %6683 = vmatprep.mubr.bf16.mxu0 0
        %6684 = vmatmul.mubr.bf16.gmra.mxu0 %v6549
        %v6685 = vpop.f32.mrf.mxu0
        %v6686 = vadd.f32 0.0, %v6685
        %v6687 = vpop.f32.mrf.mxu0
        %v6688 = vpop.f32.mrf.mxu0
        %v6689 = vadd.f32 0.0, %v6688
        %v6690 = vpop.f32.mrf.mxu0
        %6691 = vmatprep.mubr.bf16.mxu0 0
        %6692 = vmatmul.mubr.bf16.gmra.mxu0 %v6552
        %v6693 = vpop.f32.mrf.mxu0
        %v6694 = vadd.f32 0.0, %v6693
        %v6695 = vpop.f32.mrf.mxu0
        %v6696 = vpop.f32.mrf.mxu0
        %v6697 = vadd.f32 0.0, %v6696
        %v6698 = vpop.f32.mrf.mxu0
        %6699 = vmatprep.mubr.bf16.mxu0 0
        %6700 = vmatmul.mubr.bf16.gmra.mxu0 %v6555
        %v6701 = vpop.f32.mrf.mxu0
        %v6702 = vadd.f32 0.0, %v6701
        %v6703 = vpop.f32.mrf.mxu0
        %v6704 = vpop.f32.mrf.mxu0
        %v6705 = vadd.f32 0.0, %v6704
        %v6706 = vpop.f32.mrf.mxu0
        %6707 = vmatprep.mubr.bf16.mxu0 0
        %6708 = vmatmul.mubr.bf16.gmra.mxu0 %v6558
        %v6709 = vpop.f32.mrf.mxu0
        %v6710 = vadd.f32 0.0, %v6709
        %v6711 = vpop.f32.mrf.mxu0
        %v6712 = vpop.f32.mrf.mxu0
        %v6713 = vadd.f32 0.0, %v6712
        %v6714 = vpop.f32.mrf.mxu0
        %6715 = vmatprep.mubr.bf16.mxu0 0
        %6716 = vmatmul.mubr.bf16.gmra.mxu0 %v6561
        %v6717 = vpop.f32.mrf.mxu0
        %v6718 = vadd.f32 0.0, %v6717
        %v6719 = vpop.f32.mrf.mxu0
        %v6720 = vpop.f32.mrf.mxu0
        %v6721 = vadd.f32 0.0, %v6720
        %v6722 = vpop.f32.mrf.mxu0
        %6723 = vdwg.mxu0
        %v6724 = vadd.f32 %v6418, %v6598
        %v6725 = vadd.f32 %v6419, %v6601
        %v6726 = vadd.f32 %v6420, %v6606
        %v6727 = vadd.f32 %v6421, %v6609
        %v6728 = vadd.f32 %v6422, %v6614
        %v6729 = vadd.f32 %v6423, %v6617
        %v6730 = vadd.f32 %v6424, %v6622
        %v6731 = vadd.f32 %v6425, %v6625
        %v6732 = vadd.f32 %v6426, %v6630
        %v6733 = vadd.f32 %v6427, %v6633
        %v6734 = vadd.f32 %v6428, %v6638
        %v6735 = vadd.f32 %v6429, %v6641
        %v6736 = vadd.f32 %v6430, %v6646
        %v6737 = vadd.f32 %v6431, %v6649
        %v6738 = vadd.f32 %v6432, %v6654
        %v6739 = vadd.f32 %v6433, %v6657
        %v6740 = vadd.f32 %v6434, %v6662
        %v6741 = vadd.f32 %v6435, %v6665
        %v6742 = vadd.f32 %v6436, %v6670
        %v6743 = vadd.f32 %v6437, %v6673
        %v6744 = vadd.f32 %v6438, %v6678
        %v6745 = vadd.f32 %v6439, %v6681
        %v6746 = vadd.f32 %v6440, %v6686
        %v6747 = vadd.f32 %v6441, %v6689
        %v6748 = vadd.f32 %v6442, %v6694
        %v6749 = vadd.f32 %v6443, %v6697
        %v6750 = vadd.f32 %v6444, %v6702
        %v6751 = vadd.f32 %v6445, %v6705
        %v6752 = vadd.f32 %v6446, %v6710
        %v6753 = vadd.f32 %v6447, %v6713
        %v6754 = vadd.f32 %v6448, %v6718
        %v6755 = vadd.f32 %v6449, %v6721
        %v6756 = vld [vmem:[%s5258 + $0x2] sm:$0xff]
        %v6757 = vld [vmem:[%s5258 + $0xa] sm:$0xff]
        %v6758 = vld [vmem:[%s5258 + $0x1a] sm:$0xff]
        %v6759 = vld [vmem:[%s5258 + $0x22] sm:$0xff]
        %v6760 = vld [vmem:[%s5258 + $0x32] sm:$0xff]
        %v6761 = vld [vmem:[%s5258 + $0x3a] sm:$0xff]
        %v6762 = vld [vmem:[%s5258 + $0x4a] sm:$0xff]
        %v6763 = vld [vmem:[%s5258 + $0x52] sm:$0xff]
        %v6764 = vld [vmem:[%s5258 + $0x62] sm:$0xff]
        %v6765 = vld [vmem:[%s5258 + $0x6a] sm:$0xff]
        %v6766 = vld [vmem:[%s5258 + $0x7a] sm:$0xff]
        %v6767 = vld [vmem:[%s5258 + $0x82] sm:$0xff]
        %v6768 = vld [vmem:[%s5258 + $0x92] sm:$0xff]
        %v6769 = vld [vmem:[%s5258 + $0x9a] sm:$0xff]
        %v6770 = vld [vmem:[%s5258 + $0xaa] sm:$0xff]
        %v6771 = vld [vmem:[%s5258 + $0xb2] sm:$0xff]
        %v6772 = vld [vmem:[%s5258 + $0xc2] sm:$0xff]
        %v6773 = vld [vmem:[%s5258 + $0xca] sm:$0xff]
        %v6774 = vld [vmem:[%s5258 + $0xda] sm:$0xff]
        %v6775 = vld [vmem:[%s5258 + $0xe2] sm:$0xff]
        %v6776 = vld [vmem:[%s5258 + $0xf2] sm:$0xff]
        %v6777 = vld [vmem:[%s5258 + $0xfa] sm:$0xff]
        %v6778 = vld [vmem:[%s5258 + $0x10a] sm:$0xff]
        %v6779 = vld [vmem:[%s5258 + $0x112] sm:$0xff]
        %v6780 = vld [vmem:[%s5258 + $0x122] sm:$0xff]
        %v6781 = vld [vmem:[%s5258 + $0x12a] sm:$0xff]
        %v6782 = vld [vmem:[%s5258 + $0x13a] sm:$0xff]
        %v6783 = vld [vmem:[%s5258 + $0x142] sm:$0xff]
        %v6784 = vld [vmem:[%s5258 + $0x152] sm:$0xff]
        %v6785 = vld [vmem:[%s5258 + $0x15a] sm:$0xff]
        %v6786 = vld [vmem:[%s5258 + $0x16a] sm:$0xff]
        %v6787 = vld [vmem:[%s5258 + $0x172] sm:$0xff]
        %v6788 = vpack.c.bf16 %v6757, %v6756
        %v6789 = vpack.c.bf16 %v6759, %v6758
        %v6790 = vpack.c.bf16 %v6761, %v6760
        %v6791 = vpack.c.bf16 %v6763, %v6762
        %v6792 = vpack.c.bf16 %v6765, %v6764
        %v6793 = vpack.c.bf16 %v6767, %v6766
        %v6794 = vpack.c.bf16 %v6769, %v6768
        %v6795 = vpack.c.bf16 %v6771, %v6770
        %v6796 = vpack.c.bf16 %v6773, %v6772
        %v6797 = vpack.c.bf16 %v6775, %v6774
        %v6798 = vpack.c.bf16 %v6777, %v6776
        %v6799 = vpack.c.bf16 %v6779, %v6778
        %v6800 = vpack.c.bf16 %v6781, %v6780
        %v6801 = vpack.c.bf16 %v6783, %v6782
        %v6802 = vpack.c.bf16 %v6785, %v6784
        %v6803 = vpack.c.bf16 %v6787, %v6786
        %s6804 = scalar_lea.vmem %s2, 80
        %v6805 = vld [vmem:[%s6804] sm:$0xf]
        %v6806 = vld [vmem:[%s6804 + $0x4] sm:$0xf]
        %v6807 = vld [vmem:[%s6804 + $0x8] sm:$0xf]
        %v6808 = vld [vmem:[%s6804 + $0xc] sm:$0xf]
        %v6813 = vunpack.c.l.b16 %v6805
        %v6814 = vunpack.c.l.b16 %v6806
        %v6815 = vunpack.c.l.b16 %v6807
        %v6816 = vunpack.c.l.b16 %v6808
        %v6817 = vpack.c.b16 %v6814, %v6813
        %v6818 = vpack.c.b16 %v6816, %v6815
        %v6822 = vsel %vm4793, %v6788, 0
        %v6825 = vsel %vm4793, %v6789, 0
        %v6828 = vsel %vm4793, %v6790, 0
        %v6831 = vsel %vm4793, %v6791, 0
        %v6834 = vsel %vm4793, %v6792, 0
        %v6837 = vsel %vm4793, %v6793, 0
        %v6840 = vsel %vm4793, %v6794, 0
        %v6843 = vsel %vm4793, %v6795, 0
        %v6846 = vsel %vm4793, %v6796, 0
        %v6849 = vsel %vm4793, %v6797, 0
        %v6852 = vsel %vm4793, %v6798, 0
        %v6855 = vsel %vm4793, %v6799, 0
        %v6858 = vsel %vm4793, %v6800, 0
        %v6861 = vsel %vm4793, %v6801, 0
        %v6864 = vsel %vm4793, %v6802, 0
        %v6867 = vsel %vm4793, %v6803, 0
        %6869 = vmatprep.subr.bf16.mxu0 0
        %6870 = vmatpush1.bf16.msra.mxu0 0
        %6871 = vmatprep.subr.bf16.mxu0 0
        %6872 = vmatpush1.bf16.msra.mxu0 0
        %6873 = vmatprep.subr.bf16.mxu0 0
        %6874 = vmatpush1.bf16.msra.mxu0 0
        %6875 = vmatprep.subr.bf16.mxu0 0
        %6876 = vmatpush1.bf16.msra.mxu0 0
        %6877 = vmatprep.subr.bf16.mxu0 0
        %6878 = vmatpush1.bf16.msra.mxu0 0
        %6879 = vmatprep.subr.bf16.mxu0 0
        %6880 = vmatpush1.bf16.msra.mxu0 0
        %6881 = vmatprep.subr.bf16.mxu0 0
        %6882 = vmatpush1.bf16.msra.mxu0 %v6818
        %6883 = vmatprep.subr.bf16.mxu0 0
        %6884 = vmatpush1.bf16.msra.mxu0 %v6817
        %6885 = vmatprep.subr.bf16.mxu0 0
        %6886 = vmatpush2.bf16.msra.mxu0 0
        %6887 = vmatprep.subr.bf16.mxu0 0
        %6888 = vmatpush2.bf16.msra.mxu0 0
        %6889 = vmatprep.subr.bf16.mxu0 0
        %6890 = vmatpush2.bf16.msra.mxu0 0
        %6891 = vmatprep.subr.bf16.mxu0 0
        %6892 = vmatpush2.bf16.msra.mxu0 0
        %6893 = vmatprep.subr.bf16.mxu0 0
        %6894 = vmatpush2.bf16.msra.mxu0 0
        %6895 = vmatprep.subr.bf16.mxu0 0
        %6896 = vmatpush2.bf16.msra.mxu0 0
        %6897 = vmatprep.subr.bf16.mxu0 0
        %6898 = vmatpush2.bf16.msra.mxu0 0
        %6899 = vmatprep.subr.bf16.mxu0 0
        %6900 = vmatpush2.bf16.msra.mxu0 0
        %6901 = vmatprep.mubr.bf16.mxu0 0
        %6902 = vmatmul.mubr.bf16.gmra.mxu0 %v6822
        %v6903 = vpop.f32.mrf.mxu0
        %v6904 = vadd.f32 0.0, %v6903
        %v6905 = vpop.f32.mrf.mxu0
        %v6906 = vpop.f32.mrf.mxu0
        %v6907 = vadd.f32 0.0, %v6906
        %v6908 = vpop.f32.mrf.mxu0
        %6909 = vmatprep.mubr.bf16.mxu0 0
        %6910 = vmatmul.mubr.bf16.gmra.mxu0 %v6825
        %v6911 = vpop.f32.mrf.mxu0
        %v6912 = vadd.f32 0.0, %v6911
        %v6913 = vpop.f32.mrf.mxu0
        %v6914 = vpop.f32.mrf.mxu0
        %v6915 = vadd.f32 0.0, %v6914
        %v6916 = vpop.f32.mrf.mxu0
        %6917 = vmatprep.mubr.bf16.mxu0 0
        %6918 = vmatmul.mubr.bf16.gmra.mxu0 %v6828
        %v6919 = vpop.f32.mrf.mxu0
        %v6920 = vadd.f32 0.0, %v6919
        %v6921 = vpop.f32.mrf.mxu0
        %v6922 = vpop.f32.mrf.mxu0
        %v6923 = vadd.f32 0.0, %v6922
        %v6924 = vpop.f32.mrf.mxu0
        %6925 = vmatprep.mubr.bf16.mxu0 0
        %6926 = vmatmul.mubr.bf16.gmra.mxu0 %v6831
        %v6927 = vpop.f32.mrf.mxu0
        %v6928 = vadd.f32 0.0, %v6927
        %v6929 = vpop.f32.mrf.mxu0
        %v6930 = vpop.f32.mrf.mxu0
        %v6931 = vadd.f32 0.0, %v6930
        %v6932 = vpop.f32.mrf.mxu0
        %6933 = vmatprep.mubr.bf16.mxu0 0
        %6934 = vmatmul.mubr.bf16.gmra.mxu0 %v6834
        %v6935 = vpop.f32.mrf.mxu0
        %v6936 = vadd.f32 0.0, %v6935
        %v6937 = vpop.f32.mrf.mxu0
        %v6938 = vpop.f32.mrf.mxu0
        %v6939 = vadd.f32 0.0, %v6938
        %v6940 = vpop.f32.mrf.mxu0
        %6941 = vmatprep.mubr.bf16.mxu0 0
        %6942 = vmatmul.mubr.bf16.gmra.mxu0 %v6837
        %v6943 = vpop.f32.mrf.mxu0
        %v6944 = vadd.f32 0.0, %v6943
        %v6945 = vpop.f32.mrf.mxu0
        %v6946 = vpop.f32.mrf.mxu0
        %v6947 = vadd.f32 0.0, %v6946
        %v6948 = vpop.f32.mrf.mxu0
        %6949 = vmatprep.mubr.bf16.mxu0 0
        %6950 = vmatmul.mubr.bf16.gmra.mxu0 %v6840
        %v6951 = vpop.f32.mrf.mxu0
        %v6952 = vadd.f32 0.0, %v6951
        %v6953 = vpop.f32.mrf.mxu0
        %v6954 = vpop.f32.mrf.mxu0
        %v6955 = vadd.f32 0.0, %v6954
        %v6956 = vpop.f32.mrf.mxu0
        %6957 = vmatprep.mubr.bf16.mxu0 0
        %6958 = vmatmul.mubr.bf16.gmra.mxu0 %v6843
        %v6959 = vpop.f32.mrf.mxu0
        %v6960 = vadd.f32 0.0, %v6959
        %v6961 = vpop.f32.mrf.mxu0
        %v6962 = vpop.f32.mrf.mxu0
        %v6963 = vadd.f32 0.0, %v6962
        %v6964 = vpop.f32.mrf.mxu0
        %6965 = vmatprep.mubr.bf16.mxu0 0
        %6966 = vmatmul.mubr.bf16.gmra.mxu0 %v6846
        %v6967 = vpop.f32.mrf.mxu0
        %v6968 = vadd.f32 0.0, %v6967
        %v6969 = vpop.f32.mrf.mxu0
        %v6970 = vpop.f32.mrf.mxu0
        %v6971 = vadd.f32 0.0, %v6970
        %v6972 = vpop.f32.mrf.mxu0
        %6973 = vmatprep.mubr.bf16.mxu0 0
        %6974 = vmatmul.mubr.bf16.gmra.mxu0 %v6849
        %v6975 = vpop.f32.mrf.mxu0
        %v6976 = vadd.f32 0.0, %v6975
        %v6977 = vpop.f32.mrf.mxu0
        %v6978 = vpop.f32.mrf.mxu0
        %v6979 = vadd.f32 0.0, %v6978
        %v6980 = vpop.f32.mrf.mxu0
        %6981 = vmatprep.mubr.bf16.mxu0 0
        %6982 = vmatmul.mubr.bf16.gmra.mxu0 %v6852
        %v6983 = vpop.f32.mrf.mxu0
        %v6984 = vadd.f32 0.0, %v6983
        %v6985 = vpop.f32.mrf.mxu0
        %v6986 = vpop.f32.mrf.mxu0
        %v6987 = vadd.f32 0.0, %v6986
        %v6988 = vpop.f32.mrf.mxu0
        %6989 = vmatprep.mubr.bf16.mxu0 0
        %6990 = vmatmul.mubr.bf16.gmra.mxu0 %v6855
        %v6991 = vpop.f32.mrf.mxu0
        %v6992 = vadd.f32 0.0, %v6991
        %v6993 = vpop.f32.mrf.mxu0
        %v6994 = vpop.f32.mrf.mxu0
        %v6995 = vadd.f32 0.0, %v6994
        %v6996 = vpop.f32.mrf.mxu0
        %6997 = vmatprep.mubr.bf16.mxu0 0
        %6998 = vmatmul.mubr.bf16.gmra.mxu0 %v6858
        %v6999 = vpop.f32.mrf.mxu0
        %v7000 = vadd.f32 0.0, %v6999
        %v7001 = vpop.f32.mrf.mxu0
        %v7002 = vpop.f32.mrf.mxu0
        %v7003 = vadd.f32 0.0, %v7002
        %v7004 = vpop.f32.mrf.mxu0
        %7005 = vmatprep.mubr.bf16.mxu0 0
        %7006 = vmatmul.mubr.bf16.gmra.mxu0 %v6861
        %v7007 = vpop.f32.mrf.mxu0
        %v7008 = vadd.f32 0.0, %v7007
        %v7009 = vpop.f32.mrf.mxu0
        %v7010 = vpop.f32.mrf.mxu0
        %v7011 = vadd.f32 0.0, %v7010
        %v7012 = vpop.f32.mrf.mxu0
        %7013 = vmatprep.mubr.bf16.mxu0 0
        %7014 = vmatmul.mubr.bf16.gmra.mxu0 %v6864
        %v7015 = vpop.f32.mrf.mxu0
        %v7016 = vadd.f32 0.0, %v7015
        %v7017 = vpop.f32.mrf.mxu0
        %v7018 = vpop.f32.mrf.mxu0
        %v7019 = vadd.f32 0.0, %v7018
        %v7020 = vpop.f32.mrf.mxu0
        %7021 = vmatprep.mubr.bf16.mxu0 0
        %7022 = vmatmul.mubr.bf16.gmra.mxu0 %v6867
        %v7023 = vpop.f32.mrf.mxu0
        %v7024 = vadd.f32 0.0, %v7023
        %v7025 = vpop.f32.mrf.mxu0
        %v7026 = vpop.f32.mrf.mxu0
        %v7027 = vadd.f32 0.0, %v7026
        %v7028 = vpop.f32.mrf.mxu0
        %7029 = vdwg.mxu0
        %v7030 = vadd.f32 %v6724, %v6904
        %v7031 = vadd.f32 %v6725, %v6907
        %v7032 = vadd.f32 %v6726, %v6912
        %v7033 = vadd.f32 %v6727, %v6915
        %v7034 = vadd.f32 %v6728, %v6920
        %v7035 = vadd.f32 %v6729, %v6923
        %v7036 = vadd.f32 %v6730, %v6928
        %v7037 = vadd.f32 %v6731, %v6931
        %v7038 = vadd.f32 %v6732, %v6936
        %v7039 = vadd.f32 %v6733, %v6939
        %v7040 = vadd.f32 %v6734, %v6944
        %v7041 = vadd.f32 %v6735, %v6947
        %v7042 = vadd.f32 %v6736, %v6952
        %v7043 = vadd.f32 %v6737, %v6955
        %v7044 = vadd.f32 %v6738, %v6960
        %v7045 = vadd.f32 %v6739, %v6963
        %v7046 = vadd.f32 %v6740, %v6968
        %v7047 = vadd.f32 %v6741, %v6971
        %v7048 = vadd.f32 %v6742, %v6976
        %v7049 = vadd.f32 %v6743, %v6979
        %v7050 = vadd.f32 %v6744, %v6984
        %v7051 = vadd.f32 %v6745, %v6987
        %v7052 = vadd.f32 %v6746, %v6992
        %v7053 = vadd.f32 %v6747, %v6995
        %v7054 = vadd.f32 %v6748, %v7000
        %v7055 = vadd.f32 %v6749, %v7003
        %v7056 = vadd.f32 %v6750, %v7008
        %v7057 = vadd.f32 %v6751, %v7011
        %v7058 = vadd.f32 %v6752, %v7016
        %v7059 = vadd.f32 %v6753, %v7019
        %v7060 = vadd.f32 %v6754, %v7024
        %v7061 = vadd.f32 %v6755, %v7027
        %s7062 = scalar_lea.vmem [#allocation2], 48
        %v7063 = vld [vmem:[%s7062] sm:$0xff]
        %v7064 = vld [vmem:[%s7062 + $0x8] sm:$0xff]
        %v7065 = vld [vmem:[%s7062 + $0x18] sm:$0xff]
        %v7066 = vld [vmem:[%s7062 + $0x20] sm:$0xff]
        %v7067 = vld [vmem:[%s7062 + $0x30] sm:$0xff]
        %v7068 = vld [vmem:[%s7062 + $0x38] sm:$0xff]
        %v7069 = vld [vmem:[%s7062 + $0x48] sm:$0xff]
        %v7070 = vld [vmem:[%s7062 + $0x50] sm:$0xff]
        %v7071 = vld [vmem:[%s7062 + $0x60] sm:$0xff]
        %v7072 = vld [vmem:[%s7062 + $0x68] sm:$0xff]
        %v7073 = vld [vmem:[%s7062 + $0x78] sm:$0xff]
        %v7074 = vld [vmem:[%s7062 + $0x80] sm:$0xff]
        %v7075 = vld [vmem:[%s7062 + $0x90] sm:$0xff]
        %v7076 = vld [vmem:[%s7062 + $0x98] sm:$0xff]
        %v7077 = vld [vmem:[%s7062 + $0xa8] sm:$0xff]
        %v7078 = vld [vmem:[%s7062 + $0xb0] sm:$0xff]
        %v7079 = vld [vmem:[%s7062 + $0xc0] sm:$0xff]
        %v7080 = vld [vmem:[%s7062 + $0xc8] sm:$0xff]
        %v7081 = vld [vmem:[%s7062 + $0xd8] sm:$0xff]
        %v7082 = vld [vmem:[%s7062 + $0xe0] sm:$0xff]
        %v7083 = vld [vmem:[%s7062 + $0xf0] sm:$0xff]
        %v7084 = vld [vmem:[%s7062 + $0xf8] sm:$0xff]
        %v7085 = vld [vmem:[%s7062 + $0x108] sm:$0xff]
        %v7086 = vld [vmem:[%s7062 + $0x110] sm:$0xff]
        %v7087 = vld [vmem:[%s7062 + $0x120] sm:$0xff]
        %v7088 = vld [vmem:[%s7062 + $0x128] sm:$0xff]
        %v7089 = vld [vmem:[%s7062 + $0x138] sm:$0xff]
        %v7090 = vld [vmem:[%s7062 + $0x140] sm:$0xff]
        %v7091 = vld [vmem:[%s7062 + $0x150] sm:$0xff]
        %v7092 = vld [vmem:[%s7062 + $0x158] sm:$0xff]
        %v7093 = vld [vmem:[%s7062 + $0x168] sm:$0xff]
        %v7094 = vld [vmem:[%s7062 + $0x170] sm:$0xff]
        %v7095 = vpack.c.bf16 %v7064, %v7063
        %v7096 = vpack.c.bf16 %v7066, %v7065
        %v7097 = vpack.c.bf16 %v7068, %v7067
        %v7098 = vpack.c.bf16 %v7070, %v7069
        %v7099 = vpack.c.bf16 %v7072, %v7071
        %v7100 = vpack.c.bf16 %v7074, %v7073
        %v7101 = vpack.c.bf16 %v7076, %v7075
        %v7102 = vpack.c.bf16 %v7078, %v7077
        %v7103 = vpack.c.bf16 %v7080, %v7079
        %v7104 = vpack.c.bf16 %v7082, %v7081
        %v7105 = vpack.c.bf16 %v7084, %v7083
        %v7106 = vpack.c.bf16 %v7086, %v7085
        %v7107 = vpack.c.bf16 %v7088, %v7087
        %v7108 = vpack.c.bf16 %v7090, %v7089
        %v7109 = vpack.c.bf16 %v7092, %v7091
        %v7110 = vpack.c.bf16 %v7094, %v7093
        %s7111 = scalar_lea.vmem %s2, 96
        %v7112 = vld [vmem:[%s7111] sm:$0xf]
        %v7113 = vld [vmem:[%s7111 + $0x4] sm:$0xf]
        %v7114 = vld [vmem:[%s7111 + $0x8] sm:$0xf]
        %v7115 = vld [vmem:[%s7111 + $0xc] sm:$0xf]
        %v7120 = vunpack.c.l.b16 %v7112
        %v7121 = vunpack.c.l.b16 %v7113
        %v7122 = vunpack.c.l.b16 %v7114
        %v7123 = vunpack.c.l.b16 %v7115
        %v7124 = vpack.c.b16 %v7121, %v7120
        %v7125 = vpack.c.b16 %v7123, %v7122
        %v7129 = vsel %vm4793, %v7095, 0
        %v7132 = vsel %vm4793, %v7096, 0
        %v7135 = vsel %vm4793, %v7097, 0
        %v7138 = vsel %vm4793, %v7098, 0
        %v7141 = vsel %vm4793, %v7099, 0
        %v7144 = vsel %vm4793, %v7100, 0
        %v7147 = vsel %vm4793, %v7101, 0
        %v7150 = vsel %vm4793, %v7102, 0
        %v7153 = vsel %vm4793, %v7103, 0
        %v7156 = vsel %vm4793, %v7104, 0
        %v7159 = vsel %vm4793, %v7105, 0
        %v7162 = vsel %vm4793, %v7106, 0
        %v7165 = vsel %vm4793, %v7107, 0
        %v7168 = vsel %vm4793, %v7108, 0
        %v7171 = vsel %vm4793, %v7109, 0
        %v7174 = vsel %vm4793, %v7110, 0
        %7176 = vmatprep.subr.bf16.mxu0 0
        %7177 = vmatpush1.bf16.msra.mxu0 0
        %7178 = vmatprep.subr.bf16.mxu0 0
        %7179 = vmatpush1.bf16.msra.mxu0 0
        %7180 = vmatprep.subr.bf16.mxu0 0
        %7181 = vmatpush1.bf16.msra.mxu0 0
        %7182 = vmatprep.subr.bf16.mxu0 0
        %7183 = vmatpush1.bf16.msra.mxu0 0
        %7184 = vmatprep.subr.bf16.mxu0 0
        %7185 = vmatpush1.bf16.msra.mxu0 0
        %7186 = vmatprep.subr.bf16.mxu0 0
        %7187 = vmatpush1.bf16.msra.mxu0 0
        %7188 = vmatprep.subr.bf16.mxu0 0
        %7189 = vmatpush1.bf16.msra.mxu0 %v7125
        %7190 = vmatprep.subr.bf16.mxu0 0
        %7191 = vmatpush1.bf16.msra.mxu0 %v7124
        %7192 = vmatprep.subr.bf16.mxu0 0
        %7193 = vmatpush2.bf16.msra.mxu0 0
        %7194 = vmatprep.subr.bf16.mxu0 0
        %7195 = vmatpush2.bf16.msra.mxu0 0
        %7196 = vmatprep.subr.bf16.mxu0 0
        %7197 = vmatpush2.bf16.msra.mxu0 0
        %7198 = vmatprep.subr.bf16.mxu0 0
        %7199 = vmatpush2.bf16.msra.mxu0 0
        %7200 = vmatprep.subr.bf16.mxu0 0
        %7201 = vmatpush2.bf16.msra.mxu0 0
        %7202 = vmatprep.subr.bf16.mxu0 0
        %7203 = vmatpush2.bf16.msra.mxu0 0
        %7204 = vmatprep.subr.bf16.mxu0 0
        %7205 = vmatpush2.bf16.msra.mxu0 0
        %7206 = vmatprep.subr.bf16.mxu0 0
        %7207 = vmatpush2.bf16.msra.mxu0 0
        %7208 = vmatprep.mubr.bf16.mxu0 0
        %7209 = vmatmul.mubr.bf16.gmra.mxu0 %v7129
        %v7210 = vpop.f32.mrf.mxu0
        %v7211 = vadd.f32 0.0, %v7210
        %v7212 = vpop.f32.mrf.mxu0
        %v7213 = vpop.f32.mrf.mxu0
        %v7214 = vadd.f32 0.0, %v7213
        %v7215 = vpop.f32.mrf.mxu0
        %7216 = vmatprep.mubr.bf16.mxu0 0
        %7217 = vmatmul.mubr.bf16.gmra.mxu0 %v7132
        %v7218 = vpop.f32.mrf.mxu0
        %v7219 = vadd.f32 0.0, %v7218
        %v7220 = vpop.f32.mrf.mxu0
        %v7221 = vpop.f32.mrf.mxu0
        %v7222 = vadd.f32 0.0, %v7221
        %v7223 = vpop.f32.mrf.mxu0
        %7224 = vmatprep.mubr.bf16.mxu0 0
        %7225 = vmatmul.mubr.bf16.gmra.mxu0 %v7135
        %v7226 = vpop.f32.mrf.mxu0
        %v7227 = vadd.f32 0.0, %v7226
        %v7228 = vpop.f32.mrf.mxu0
        %v7229 = vpop.f32.mrf.mxu0
        %v7230 = vadd.f32 0.0, %v7229
        %v7231 = vpop.f32.mrf.mxu0
        %7232 = vmatprep.mubr.bf16.mxu0 0
        %7233 = vmatmul.mubr.bf16.gmra.mxu0 %v7138
        %v7234 = vpop.f32.mrf.mxu0
        %v7235 = vadd.f32 0.0, %v7234
        %v7236 = vpop.f32.mrf.mxu0
        %v7237 = vpop.f32.mrf.mxu0
        %v7238 = vadd.f32 0.0, %v7237
        %v7239 = vpop.f32.mrf.mxu0
        %7240 = vmatprep.mubr.bf16.mxu0 0
        %7241 = vmatmul.mubr.bf16.gmra.mxu0 %v7141
        %v7242 = vpop.f32.mrf.mxu0
        %v7243 = vadd.f32 0.0, %v7242
        %v7244 = vpop.f32.mrf.mxu0
        %v7245 = vpop.f32.mrf.mxu0
        %v7246 = vadd.f32 0.0, %v7245
        %v7247 = vpop.f32.mrf.mxu0
        %7248 = vmatprep.mubr.bf16.mxu0 0
        %7249 = vmatmul.mubr.bf16.gmra.mxu0 %v7144
        %v7250 = vpop.f32.mrf.mxu0
        %v7251 = vadd.f32 0.0, %v7250
        %v7252 = vpop.f32.mrf.mxu0
        %v7253 = vpop.f32.mrf.mxu0
        %v7254 = vadd.f32 0.0, %v7253
        %v7255 = vpop.f32.mrf.mxu0
        %7256 = vmatprep.mubr.bf16.mxu0 0
        %7257 = vmatmul.mubr.bf16.gmra.mxu0 %v7147
        %v7258 = vpop.f32.mrf.mxu0
        %v7259 = vadd.f32 0.0, %v7258
        %v7260 = vpop.f32.mrf.mxu0
        %v7261 = vpop.f32.mrf.mxu0
        %v7262 = vadd.f32 0.0, %v7261
        %v7263 = vpop.f32.mrf.mxu0
        %7264 = vmatprep.mubr.bf16.mxu0 0
        %7265 = vmatmul.mubr.bf16.gmra.mxu0 %v7150
        %v7266 = vpop.f32.mrf.mxu0
        %v7267 = vadd.f32 0.0, %v7266
        %v7268 = vpop.f32.mrf.mxu0
        %v7269 = vpop.f32.mrf.mxu0
        %v7270 = vadd.f32 0.0, %v7269
        %v7271 = vpop.f32.mrf.mxu0
        %7272 = vmatprep.mubr.bf16.mxu0 0
        %7273 = vmatmul.mubr.bf16.gmra.mxu0 %v7153
        %v7274 = vpop.f32.mrf.mxu0
        %v7275 = vadd.f32 0.0, %v7274
        %v7276 = vpop.f32.mrf.mxu0
        %v7277 = vpop.f32.mrf.mxu0
        %v7278 = vadd.f32 0.0, %v7277
        %v7279 = vpop.f32.mrf.mxu0
        %7280 = vmatprep.mubr.bf16.mxu0 0
        %7281 = vmatmul.mubr.bf16.gmra.mxu0 %v7156
        %v7282 = vpop.f32.mrf.mxu0
        %v7283 = vadd.f32 0.0, %v7282
        %v7284 = vpop.f32.mrf.mxu0
        %v7285 = vpop.f32.mrf.mxu0
        %v7286 = vadd.f32 0.0, %v7285
        %v7287 = vpop.f32.mrf.mxu0
        %7288 = vmatprep.mubr.bf16.mxu0 0
        %7289 = vmatmul.mubr.bf16.gmra.mxu0 %v7159
        %v7290 = vpop.f32.mrf.mxu0
        %v7291 = vadd.f32 0.0, %v7290
        %v7292 = vpop.f32.mrf.mxu0
        %v7293 = vpop.f32.mrf.mxu0
        %v7294 = vadd.f32 0.0, %v7293
        %v7295 = vpop.f32.mrf.mxu0
        %7296 = vmatprep.mubr.bf16.mxu0 0
        %7297 = vmatmul.mubr.bf16.gmra.mxu0 %v7162
        %v7298 = vpop.f32.mrf.mxu0
        %v7299 = vadd.f32 0.0, %v7298
        %v7300 = vpop.f32.mrf.mxu0
        %v7301 = vpop.f32.mrf.mxu0
        %v7302 = vadd.f32 0.0, %v7301
        %v7303 = vpop.f32.mrf.mxu0
        %7304 = vmatprep.mubr.bf16.mxu0 0
        %7305 = vmatmul.mubr.bf16.gmra.mxu0 %v7165
        %v7306 = vpop.f32.mrf.mxu0
        %v7307 = vadd.f32 0.0, %v7306
        %v7308 = vpop.f32.mrf.mxu0
        %v7309 = vpop.f32.mrf.mxu0
        %v7310 = vadd.f32 0.0, %v7309
        %v7311 = vpop.f32.mrf.mxu0
        %7312 = vmatprep.mubr.bf16.mxu0 0
        %7313 = vmatmul.mubr.bf16.gmra.mxu0 %v7168
        %v7314 = vpop.f32.mrf.mxu0
        %v7315 = vadd.f32 0.0, %v7314
        %v7316 = vpop.f32.mrf.mxu0
        %v7317 = vpop.f32.mrf.mxu0
        %v7318 = vadd.f32 0.0, %v7317
        %v7319 = vpop.f32.mrf.mxu0
        %7320 = vmatprep.mubr.bf16.mxu0 0
        %7321 = vmatmul.mubr.bf16.gmra.mxu0 %v7171
        %v7322 = vpop.f32.mrf.mxu0
        %v7323 = vadd.f32 0.0, %v7322
        %v7324 = vpop.f32.mrf.mxu0
        %v7325 = vpop.f32.mrf.mxu0
        %v7326 = vadd.f32 0.0, %v7325
        %v7327 = vpop.f32.mrf.mxu0
        %7328 = vmatprep.mubr.bf16.mxu0 0
        %7329 = vmatmul.mubr.bf16.gmra.mxu0 %v7174
        %v7330 = vpop.f32.mrf.mxu0
        %v7331 = vadd.f32 0.0, %v7330
        %v7332 = vpop.f32.mrf.mxu0
        %v7333 = vpop.f32.mrf.mxu0
        %v7334 = vadd.f32 0.0, %v7333
        %v7335 = vpop.f32.mrf.mxu0
        %7336 = vdwg.mxu0
        %v7337 = vadd.f32 %v7030, %v7211
        %v7338 = vadd.f32 %v7031, %v7214
        %v7339 = vadd.f32 %v7032, %v7219
        %v7340 = vadd.f32 %v7033, %v7222
        %v7341 = vadd.f32 %v7034, %v7227
        %v7342 = vadd.f32 %v7035, %v7230
        %v7343 = vadd.f32 %v7036, %v7235
        %v7344 = vadd.f32 %v7037, %v7238
        %v7345 = vadd.f32 %v7038, %v7243
        %v7346 = vadd.f32 %v7039, %v7246
        %v7347 = vadd.f32 %v7040, %v7251
        %v7348 = vadd.f32 %v7041, %v7254
        %v7349 = vadd.f32 %v7042, %v7259
        %v7350 = vadd.f32 %v7043, %v7262
        %v7351 = vadd.f32 %v7044, %v7267
        %v7352 = vadd.f32 %v7045, %v7270
        %v7353 = vadd.f32 %v7046, %v7275
        %v7354 = vadd.f32 %v7047, %v7278
        %v7355 = vadd.f32 %v7048, %v7283
        %v7356 = vadd.f32 %v7049, %v7286
        %v7357 = vadd.f32 %v7050, %v7291
        %v7358 = vadd.f32 %v7051, %v7294
        %v7359 = vadd.f32 %v7052, %v7299
        %v7360 = vadd.f32 %v7053, %v7302
        %v7361 = vadd.f32 %v7054, %v7307
        %v7362 = vadd.f32 %v7055, %v7310
        %v7363 = vadd.f32 %v7056, %v7315
        %v7364 = vadd.f32 %v7057, %v7318
        %v7365 = vadd.f32 %v7058, %v7323
        %v7366 = vadd.f32 %v7059, %v7326
        %v7367 = vadd.f32 %v7060, %v7331
        %v7368 = vadd.f32 %v7061, %v7334
        %v7369 = vld [vmem:[%s7062 + $0x1] sm:$0xff]
        %v7370 = vld [vmem:[%s7062 + $0x9] sm:$0xff]
        %v7371 = vld [vmem:[%s7062 + $0x19] sm:$0xff]
        %v7372 = vld [vmem:[%s7062 + $0x21] sm:$0xff]
        %v7373 = vld [vmem:[%s7062 + $0x31] sm:$0xff]
        %v7374 = vld [vmem:[%s7062 + $0x39] sm:$0xff]
        %v7375 = vld [vmem:[%s7062 + $0x49] sm:$0xff]
        %v7376 = vld [vmem:[%s7062 + $0x51] sm:$0xff]
        %v7377 = vld [vmem:[%s7062 + $0x61] sm:$0xff]
        %v7378 = vld [vmem:[%s7062 + $0x69] sm:$0xff]
        %v7379 = vld [vmem:[%s7062 + $0x79] sm:$0xff]
        %v7380 = vld [vmem:[%s7062 + $0x81] sm:$0xff]
        %v7381 = vld [vmem:[%s7062 + $0x91] sm:$0xff]
        %v7382 = vld [vmem:[%s7062 + $0x99] sm:$0xff]
        %v7383 = vld [vmem:[%s7062 + $0xa9] sm:$0xff]
        %v7384 = vld [vmem:[%s7062 + $0xb1] sm:$0xff]
        %v7385 = vld [vmem:[%s7062 + $0xc1] sm:$0xff]
        %v7386 = vld [vmem:[%s7062 + $0xc9] sm:$0xff]
        %v7387 = vld [vmem:[%s7062 + $0xd9] sm:$0xff]
        %v7388 = vld [vmem:[%s7062 + $0xe1] sm:$0xff]
        %v7389 = vld [vmem:[%s7062 + $0xf1] sm:$0xff]
        %v7390 = vld [vmem:[%s7062 + $0xf9] sm:$0xff]
        %v7391 = vld [vmem:[%s7062 + $0x109] sm:$0xff]
        %v7392 = vld [vmem:[%s7062 + $0x111] sm:$0xff]
        %v7393 = vld [vmem:[%s7062 + $0x121] sm:$0xff]
        %v7394 = vld [vmem:[%s7062 + $0x129] sm:$0xff]
        %v7395 = vld [vmem:[%s7062 + $0x139] sm:$0xff]
        %v7396 = vld [vmem:[%s7062 + $0x141] sm:$0xff]
        %v7397 = vld [vmem:[%s7062 + $0x151] sm:$0xff]
        %v7398 = vld [vmem:[%s7062 + $0x159] sm:$0xff]
        %v7399 = vld [vmem:[%s7062 + $0x169] sm:$0xff]
        %v7400 = vld [vmem:[%s7062 + $0x171] sm:$0xff]
        %v7401 = vpack.c.bf16 %v7370, %v7369
        %v7402 = vpack.c.bf16 %v7372, %v7371
        %v7403 = vpack.c.bf16 %v7374, %v7373
        %v7404 = vpack.c.bf16 %v7376, %v7375
        %v7405 = vpack.c.bf16 %v7378, %v7377
        %v7406 = vpack.c.bf16 %v7380, %v7379
        %v7407 = vpack.c.bf16 %v7382, %v7381
        %v7408 = vpack.c.bf16 %v7384, %v7383
        %v7409 = vpack.c.bf16 %v7386, %v7385
        %v7410 = vpack.c.bf16 %v7388, %v7387
        %v7411 = vpack.c.bf16 %v7390, %v7389
        %v7412 = vpack.c.bf16 %v7392, %v7391
        %v7413 = vpack.c.bf16 %v7394, %v7393
        %v7414 = vpack.c.bf16 %v7396, %v7395
        %v7415 = vpack.c.bf16 %v7398, %v7397
        %v7416 = vpack.c.bf16 %v7400, %v7399
        %s7417 = scalar_lea.vmem %s2, 112
        %v7418 = vld [vmem:[%s7417] sm:$0xf]
        %v7419 = vld [vmem:[%s7417 + $0x4] sm:$0xf]
        %v7420 = vld [vmem:[%s7417 + $0x8] sm:$0xf]
        %v7421 = vld [vmem:[%s7417 + $0xc] sm:$0xf]
        %v7426 = vunpack.c.l.b16 %v7418
        %v7427 = vunpack.c.l.b16 %v7419
        %v7428 = vunpack.c.l.b16 %v7420
        %v7429 = vunpack.c.l.b16 %v7421
        %v7430 = vpack.c.b16 %v7427, %v7426
        %v7431 = vpack.c.b16 %v7429, %v7428
        %v7435 = vsel %vm4793, %v7401, 0
        %v7438 = vsel %vm4793, %v7402, 0
        %v7441 = vsel %vm4793, %v7403, 0
        %v7444 = vsel %vm4793, %v7404, 0
        %v7447 = vsel %vm4793, %v7405, 0
        %v7450 = vsel %vm4793, %v7406, 0
        %v7453 = vsel %vm4793, %v7407, 0
        %v7456 = vsel %vm4793, %v7408, 0
        %v7459 = vsel %vm4793, %v7409, 0
        %v7462 = vsel %vm4793, %v7410, 0
        %v7465 = vsel %vm4793, %v7411, 0
        %v7468 = vsel %vm4793, %v7412, 0
        %v7471 = vsel %vm4793, %v7413, 0
        %v7474 = vsel %vm4793, %v7414, 0
        %v7477 = vsel %vm4793, %v7415, 0
        %v7480 = vsel %vm4793, %v7416, 0
        %7482 = vmatprep.subr.bf16.mxu0 0
        %7483 = vmatpush1.bf16.msra.mxu0 0
        %7484 = vmatprep.subr.bf16.mxu0 0
        %7485 = vmatpush1.bf16.msra.mxu0 0
        %7486 = vmatprep.subr.bf16.mxu0 0
        %7487 = vmatpush1.bf16.msra.mxu0 0
        %7488 = vmatprep.subr.bf16.mxu0 0
        %7489 = vmatpush1.bf16.msra.mxu0 0
        %7490 = vmatprep.subr.bf16.mxu0 0
        %7491 = vmatpush1.bf16.msra.mxu0 0
        %7492 = vmatprep.subr.bf16.mxu0 0
        %7493 = vmatpush1.bf16.msra.mxu0 0
        %7494 = vmatprep.subr.bf16.mxu0 0
        %7495 = vmatpush1.bf16.msra.mxu0 %v7431
        %7496 = vmatprep.subr.bf16.mxu0 0
        %7497 = vmatpush1.bf16.msra.mxu0 %v7430
        %7498 = vmatprep.subr.bf16.mxu0 0
        %7499 = vmatpush2.bf16.msra.mxu0 0
        %7500 = vmatprep.subr.bf16.mxu0 0
        %7501 = vmatpush2.bf16.msra.mxu0 0
        %7502 = vmatprep.subr.bf16.mxu0 0
        %7503 = vmatpush2.bf16.msra.mxu0 0
        %7504 = vmatprep.subr.bf16.mxu0 0
        %7505 = vmatpush2.bf16.msra.mxu0 0
        %7506 = vmatprep.subr.bf16.mxu0 0
        %7507 = vmatpush2.bf16.msra.mxu0 0
        %7508 = vmatprep.subr.bf16.mxu0 0
        %7509 = vmatpush2.bf16.msra.mxu0 0
        %7510 = vmatprep.subr.bf16.mxu0 0
        %7511 = vmatpush2.bf16.msra.mxu0 0
        %7512 = vmatprep.subr.bf16.mxu0 0
        %7513 = vmatpush2.bf16.msra.mxu0 0
        %7514 = vmatprep.mubr.bf16.mxu0 0
        %7515 = vmatmul.mubr.bf16.gmra.mxu0 %v7435
        %v7516 = vpop.f32.mrf.mxu0
        %v7517 = vadd.f32 0.0, %v7516
        %v7518 = vpop.f32.mrf.mxu0
        %v7519 = vpop.f32.mrf.mxu0
        %v7520 = vadd.f32 0.0, %v7519
        %v7521 = vpop.f32.mrf.mxu0
        %7522 = vmatprep.mubr.bf16.mxu0 0
        %7523 = vmatmul.mubr.bf16.gmra.mxu0 %v7438
        %v7524 = vpop.f32.mrf.mxu0
        %v7525 = vadd.f32 0.0, %v7524
        %v7526 = vpop.f32.mrf.mxu0
        %v7527 = vpop.f32.mrf.mxu0
        %v7528 = vadd.f32 0.0, %v7527
        %v7529 = vpop.f32.mrf.mxu0
        %7530 = vmatprep.mubr.bf16.mxu0 0
        %7531 = vmatmul.mubr.bf16.gmra.mxu0 %v7441
        %v7532 = vpop.f32.mrf.mxu0
        %v7533 = vadd.f32 0.0, %v7532
        %v7534 = vpop.f32.mrf.mxu0
        %v7535 = vpop.f32.mrf.mxu0
        %v7536 = vadd.f32 0.0, %v7535
        %v7537 = vpop.f32.mrf.mxu0
        %7538 = vmatprep.mubr.bf16.mxu0 0
        %7539 = vmatmul.mubr.bf16.gmra.mxu0 %v7444
        %v7540 = vpop.f32.mrf.mxu0
        %v7541 = vadd.f32 0.0, %v7540
        %v7542 = vpop.f32.mrf.mxu0
        %v7543 = vpop.f32.mrf.mxu0
        %v7544 = vadd.f32 0.0, %v7543
        %v7545 = vpop.f32.mrf.mxu0
        %7546 = vmatprep.mubr.bf16.mxu0 0
        %7547 = vmatmul.mubr.bf16.gmra.mxu0 %v7447
        %v7548 = vpop.f32.mrf.mxu0
        %v7549 = vadd.f32 0.0, %v7548
        %v7550 = vpop.f32.mrf.mxu0
        %v7551 = vpop.f32.mrf.mxu0
        %v7552 = vadd.f32 0.0, %v7551
        %v7553 = vpop.f32.mrf.mxu0
        %7554 = vmatprep.mubr.bf16.mxu0 0
        %7555 = vmatmul.mubr.bf16.gmra.mxu0 %v7450
        %v7556 = vpop.f32.mrf.mxu0
        %v7557 = vadd.f32 0.0, %v7556
        %v7558 = vpop.f32.mrf.mxu0
        %v7559 = vpop.f32.mrf.mxu0
        %v7560 = vadd.f32 0.0, %v7559
        %v7561 = vpop.f32.mrf.mxu0
        %7562 = vmatprep.mubr.bf16.mxu0 0
        %7563 = vmatmul.mubr.bf16.gmra.mxu0 %v7453
        %v7564 = vpop.f32.mrf.mxu0
        %v7565 = vadd.f32 0.0, %v7564
        %v7566 = vpop.f32.mrf.mxu0
        %v7567 = vpop.f32.mrf.mxu0
        %v7568 = vadd.f32 0.0, %v7567
        %v7569 = vpop.f32.mrf.mxu0
        %7570 = vmatprep.mubr.bf16.mxu0 0
        %7571 = vmatmul.mubr.bf16.gmra.mxu0 %v7456
        %v7572 = vpop.f32.mrf.mxu0
        %v7573 = vadd.f32 0.0, %v7572
        %v7574 = vpop.f32.mrf.mxu0
        %v7575 = vpop.f32.mrf.mxu0
        %v7576 = vadd.f32 0.0, %v7575
        %v7577 = vpop.f32.mrf.mxu0
        %7578 = vmatprep.mubr.bf16.mxu0 0
        %7579 = vmatmul.mubr.bf16.gmra.mxu0 %v7459
        %v7580 = vpop.f32.mrf.mxu0
        %v7581 = vadd.f32 0.0, %v7580
        %v7582 = vpop.f32.mrf.mxu0
        %v7583 = vpop.f32.mrf.mxu0
        %v7584 = vadd.f32 0.0, %v7583
        %v7585 = vpop.f32.mrf.mxu0
        %7586 = vmatprep.mubr.bf16.mxu0 0
        %7587 = vmatmul.mubr.bf16.gmra.mxu0 %v7462
        %v7588 = vpop.f32.mrf.mxu0
        %v7589 = vadd.f32 0.0, %v7588
        %v7590 = vpop.f32.mrf.mxu0
        %v7591 = vpop.f32.mrf.mxu0
        %v7592 = vadd.f32 0.0, %v7591
        %v7593 = vpop.f32.mrf.mxu0
        %7594 = vmatprep.mubr.bf16.mxu0 0
        %7595 = vmatmul.mubr.bf16.gmra.mxu0 %v7465
        %v7596 = vpop.f32.mrf.mxu0
        %v7597 = vadd.f32 0.0, %v7596
        %v7598 = vpop.f32.mrf.mxu0
        %v7599 = vpop.f32.mrf.mxu0
        %v7600 = vadd.f32 0.0, %v7599
        %v7601 = vpop.f32.mrf.mxu0
        %7602 = vmatprep.mubr.bf16.mxu0 0
        %7603 = vmatmul.mubr.bf16.gmra.mxu0 %v7468
        %v7604 = vpop.f32.mrf.mxu0
        %v7605 = vadd.f32 0.0, %v7604
        %v7606 = vpop.f32.mrf.mxu0
        %v7607 = vpop.f32.mrf.mxu0
        %v7608 = vadd.f32 0.0, %v7607
        %v7609 = vpop.f32.mrf.mxu0
        %7610 = vmatprep.mubr.bf16.mxu0 0
        %7611 = vmatmul.mubr.bf16.gmra.mxu0 %v7471
        %v7612 = vpop.f32.mrf.mxu0
        %v7613 = vadd.f32 0.0, %v7612
        %v7614 = vpop.f32.mrf.mxu0
        %v7615 = vpop.f32.mrf.mxu0
        %v7616 = vadd.f32 0.0, %v7615
        %v7617 = vpop.f32.mrf.mxu0
        %7618 = vmatprep.mubr.bf16.mxu0 0
        %7619 = vmatmul.mubr.bf16.gmra.mxu0 %v7474
        %v7620 = vpop.f32.mrf.mxu0
        %v7621 = vadd.f32 0.0, %v7620
        %v7622 = vpop.f32.mrf.mxu0
        %v7623 = vpop.f32.mrf.mxu0
        %v7624 = vadd.f32 0.0, %v7623
        %v7625 = vpop.f32.mrf.mxu0
        %7626 = vmatprep.mubr.bf16.mxu0 0
        %7627 = vmatmul.mubr.bf16.gmra.mxu0 %v7477
        %v7628 = vpop.f32.mrf.mxu0
        %v7629 = vadd.f32 0.0, %v7628
        %v7630 = vpop.f32.mrf.mxu0
        %v7631 = vpop.f32.mrf.mxu0
        %v7632 = vadd.f32 0.0, %v7631
        %v7633 = vpop.f32.mrf.mxu0
        %7634 = vmatprep.mubr.bf16.mxu0 0
        %7635 = vmatmul.mubr.bf16.gmra.mxu0 %v7480
        %v7636 = vpop.f32.mrf.mxu0
        %v7637 = vadd.f32 0.0, %v7636
        %v7638 = vpop.f32.mrf.mxu0
        %v7639 = vpop.f32.mrf.mxu0
        %v7640 = vadd.f32 0.0, %v7639
        %v7641 = vpop.f32.mrf.mxu0
        %7642 = vdwg.mxu0
        %v7643 = vadd.f32 %v7337, %v7517
        %v7644 = vadd.f32 %v7338, %v7520
        %v7645 = vadd.f32 %v7339, %v7525
        %v7646 = vadd.f32 %v7340, %v7528
        %v7647 = vadd.f32 %v7341, %v7533
        %v7648 = vadd.f32 %v7342, %v7536
        %v7649 = vadd.f32 %v7343, %v7541
        %v7650 = vadd.f32 %v7344, %v7544
        %v7651 = vadd.f32 %v7345, %v7549
        %v7652 = vadd.f32 %v7346, %v7552
        %v7653 = vadd.f32 %v7347, %v7557
        %v7654 = vadd.f32 %v7348, %v7560
        %v7655 = vadd.f32 %v7349, %v7565
        %v7656 = vadd.f32 %v7350, %v7568
        %v7657 = vadd.f32 %v7351, %v7573
        %v7658 = vadd.f32 %v7352, %v7576
        %v7659 = vadd.f32 %v7353, %v7581
        %v7660 = vadd.f32 %v7354, %v7584
        %v7661 = vadd.f32 %v7355, %v7589
        %v7662 = vadd.f32 %v7356, %v7592
        %v7663 = vadd.f32 %v7357, %v7597
        %v7664 = vadd.f32 %v7358, %v7600
        %v7665 = vadd.f32 %v7359, %v7605
        %v7666 = vadd.f32 %v7360, %v7608
        %v7667 = vadd.f32 %v7361, %v7613
        %v7668 = vadd.f32 %v7362, %v7616
        %v7669 = vadd.f32 %v7363, %v7621
        %v7670 = vadd.f32 %v7364, %v7624
        %v7671 = vadd.f32 %v7365, %v7629
        %v7672 = vadd.f32 %v7366, %v7632
        %v7673 = vadd.f32 %v7367, %v7637
        %v7674 = vadd.f32 %v7368, %v7640
        %v7675 = vld [vmem:[%s7062 + $0x2] sm:$0xff]
        %v7676 = vld [vmem:[%s7062 + $0xa] sm:$0xff]
        %v7677 = vld [vmem:[%s7062 + $0x1a] sm:$0xff]
        %v7678 = vld [vmem:[%s7062 + $0x22] sm:$0xff]
        %v7679 = vld [vmem:[%s7062 + $0x32] sm:$0xff]
        %v7680 = vld [vmem:[%s7062 + $0x3a] sm:$0xff]
        %v7681 = vld [vmem:[%s7062 + $0x4a] sm:$0xff]
        %v7682 = vld [vmem:[%s7062 + $0x52] sm:$0xff]
        %v7683 = vld [vmem:[%s7062 + $0x62] sm:$0xff]
        %v7684 = vld [vmem:[%s7062 + $0x6a] sm:$0xff]
        %v7685 = vld [vmem:[%s7062 + $0x7a] sm:$0xff]
        %v7686 = vld [vmem:[%s7062 + $0x82] sm:$0xff]
        %v7687 = vld [vmem:[%s7062 + $0x92] sm:$0xff]
        %v7688 = vld [vmem:[%s7062 + $0x9a] sm:$0xff]
        %v7689 = vld [vmem:[%s7062 + $0xaa] sm:$0xff]
        %v7690 = vld [vmem:[%s7062 + $0xb2] sm:$0xff]
        %v7691 = vld [vmem:[%s7062 + $0xc2] sm:$0xff]
        %v7692 = vld [vmem:[%s7062 + $0xca] sm:$0xff]
        %v7693 = vld [vmem:[%s7062 + $0xda] sm:$0xff]
        %v7694 = vld [vmem:[%s7062 + $0xe2] sm:$0xff]
        %v7695 = vld [vmem:[%s7062 + $0xf2] sm:$0xff]
        %v7696 = vld [vmem:[%s7062 + $0xfa] sm:$0xff]
        %v7697 = vld [vmem:[%s7062 + $0x10a] sm:$0xff]
        %v7698 = vld [vmem:[%s7062 + $0x112] sm:$0xff]
        %v7699 = vld [vmem:[%s7062 + $0x122] sm:$0xff]
        %v7700 = vld [vmem:[%s7062 + $0x12a] sm:$0xff]
        %v7701 = vld [vmem:[%s7062 + $0x13a] sm:$0xff]
        %v7702 = vld [vmem:[%s7062 + $0x142] sm:$0xff]
        %v7703 = vld [vmem:[%s7062 + $0x152] sm:$0xff]
        %v7704 = vld [vmem:[%s7062 + $0x15a] sm:$0xff]
        %v7705 = vld [vmem:[%s7062 + $0x16a] sm:$0xff]
        %v7706 = vld [vmem:[%s7062 + $0x172] sm:$0xff]
        %v7707 = vpack.c.bf16 %v7676, %v7675
        %v7708 = vpack.c.bf16 %v7678, %v7677
        %v7709 = vpack.c.bf16 %v7680, %v7679
        %v7710 = vpack.c.bf16 %v7682, %v7681
        %v7711 = vpack.c.bf16 %v7684, %v7683
        %v7712 = vpack.c.bf16 %v7686, %v7685
        %v7713 = vpack.c.bf16 %v7688, %v7687
        %v7714 = vpack.c.bf16 %v7690, %v7689
        %v7715 = vpack.c.bf16 %v7692, %v7691
        %v7716 = vpack.c.bf16 %v7694, %v7693
        %v7717 = vpack.c.bf16 %v7696, %v7695
        %v7718 = vpack.c.bf16 %v7698, %v7697
        %v7719 = vpack.c.bf16 %v7700, %v7699
        %v7720 = vpack.c.bf16 %v7702, %v7701
        %v7721 = vpack.c.bf16 %v7704, %v7703
        %v7722 = vpack.c.bf16 %v7706, %v7705
        %s7723 = scalar_lea.vmem %s2, 128
        %v7724 = vld [vmem:[%s7723] sm:$0xf]
        %v7725 = vld [vmem:[%s7723 + $0x4] sm:$0xf]
        %v7726 = vld [vmem:[%s7723 + $0x8] sm:$0xf]
        %v7727 = vld [vmem:[%s7723 + $0xc] sm:$0xf]
        %v7732 = vunpack.c.l.b16 %v7724
        %v7733 = vunpack.c.l.b16 %v7725
        %v7734 = vunpack.c.l.b16 %v7726
        %v7735 = vunpack.c.l.b16 %v7727
        %v7736 = vpack.c.b16 %v7733, %v7732
        %v7737 = vpack.c.b16 %v7735, %v7734
        %v7741 = vsel %vm4793, %v7707, 0
        %v7744 = vsel %vm4793, %v7708, 0
        %v7747 = vsel %vm4793, %v7709, 0
        %v7750 = vsel %vm4793, %v7710, 0
        %v7753 = vsel %vm4793, %v7711, 0
        %v7756 = vsel %vm4793, %v7712, 0
        %v7759 = vsel %vm4793, %v7713, 0
        %v7762 = vsel %vm4793, %v7714, 0
        %v7765 = vsel %vm4793, %v7715, 0
        %v7768 = vsel %vm4793, %v7716, 0
        %v7771 = vsel %vm4793, %v7717, 0
        %v7774 = vsel %vm4793, %v7718, 0
        %v7777 = vsel %vm4793, %v7719, 0
        %v7780 = vsel %vm4793, %v7720, 0
        %v7783 = vsel %vm4793, %v7721, 0
        %v7786 = vsel %vm4793, %v7722, 0
        %7788 = vmatprep.subr.bf16.mxu0 0
        %7789 = vmatpush1.bf16.msra.mxu0 0
        %7790 = vmatprep.subr.bf16.mxu0 0
        %7791 = vmatpush1.bf16.msra.mxu0 0
        %7792 = vmatprep.subr.bf16.mxu0 0
        %7793 = vmatpush1.bf16.msra.mxu0 0
        %7794 = vmatprep.subr.bf16.mxu0 0
        %7795 = vmatpush1.bf16.msra.mxu0 0
        %7796 = vmatprep.subr.bf16.mxu0 0
        %7797 = vmatpush1.bf16.msra.mxu0 0
        %7798 = vmatprep.subr.bf16.mxu0 0
        %7799 = vmatpush1.bf16.msra.mxu0 0
        %7800 = vmatprep.subr.bf16.mxu0 0
        %7801 = vmatpush1.bf16.msra.mxu0 %v7737
        %7802 = vmatprep.subr.bf16.mxu0 0
        %7803 = vmatpush1.bf16.msra.mxu0 %v7736
        %7804 = vmatprep.subr.bf16.mxu0 0
        %7805 = vmatpush2.bf16.msra.mxu0 0
        %7806 = vmatprep.subr.bf16.mxu0 0
        %7807 = vmatpush2.bf16.msra.mxu0 0
        %7808 = vmatprep.subr.bf16.mxu0 0
        %7809 = vmatpush2.bf16.msra.mxu0 0
        %7810 = vmatprep.subr.bf16.mxu0 0
        %7811 = vmatpush2.bf16.msra.mxu0 0
        %7812 = vmatprep.subr.bf16.mxu0 0
        %7813 = vmatpush2.bf16.msra.mxu0 0
        %7814 = vmatprep.subr.bf16.mxu0 0
        %7815 = vmatpush2.bf16.msra.mxu0 0
        %7816 = vmatprep.subr.bf16.mxu0 0
        %7817 = vmatpush2.bf16.msra.mxu0 0
        %7818 = vmatprep.subr.bf16.mxu0 0
        %7819 = vmatpush2.bf16.msra.mxu0 0
        %7820 = vmatprep.mubr.bf16.mxu0 0
        %7821 = vmatmul.mubr.bf16.gmra.mxu0 %v7741
        %v7822 = vpop.f32.mrf.mxu0
        %v7823 = vadd.f32 0.0, %v7822
        %v7824 = vpop.f32.mrf.mxu0
        %v7825 = vpop.f32.mrf.mxu0
        %v7826 = vadd.f32 0.0, %v7825
        %v7827 = vpop.f32.mrf.mxu0
        %7828 = vmatprep.mubr.bf16.mxu0 0
        %7829 = vmatmul.mubr.bf16.gmra.mxu0 %v7744
        %v7830 = vpop.f32.mrf.mxu0
        %v7831 = vadd.f32 0.0, %v7830
        %v7832 = vpop.f32.mrf.mxu0
        %v7833 = vpop.f32.mrf.mxu0
        %v7834 = vadd.f32 0.0, %v7833
        %v7835 = vpop.f32.mrf.mxu0
        %7836 = vmatprep.mubr.bf16.mxu0 0
        %7837 = vmatmul.mubr.bf16.gmra.mxu0 %v7747
        %v7838 = vpop.f32.mrf.mxu0
        %v7839 = vadd.f32 0.0, %v7838
        %v7840 = vpop.f32.mrf.mxu0
        %v7841 = vpop.f32.mrf.mxu0
        %v7842 = vadd.f32 0.0, %v7841
        %v7843 = vpop.f32.mrf.mxu0
        %7844 = vmatprep.mubr.bf16.mxu0 0
        %7845 = vmatmul.mubr.bf16.gmra.mxu0 %v7750
        %v7846 = vpop.f32.mrf.mxu0
        %v7847 = vadd.f32 0.0, %v7846
        %v7848 = vpop.f32.mrf.mxu0
        %v7849 = vpop.f32.mrf.mxu0
        %v7850 = vadd.f32 0.0, %v7849
        %v7851 = vpop.f32.mrf.mxu0
        %7852 = vmatprep.mubr.bf16.mxu0 0
        %7853 = vmatmul.mubr.bf16.gmra.mxu0 %v7753
        %v7854 = vpop.f32.mrf.mxu0
        %v7855 = vadd.f32 0.0, %v7854
        %v7856 = vpop.f32.mrf.mxu0
        %v7857 = vpop.f32.mrf.mxu0
        %v7858 = vadd.f32 0.0, %v7857
        %v7859 = vpop.f32.mrf.mxu0
        %7860 = vmatprep.mubr.bf16.mxu0 0
        %7861 = vmatmul.mubr.bf16.gmra.mxu0 %v7756
        %v7862 = vpop.f32.mrf.mxu0
        %v7863 = vadd.f32 0.0, %v7862
        %v7864 = vpop.f32.mrf.mxu0
        %v7865 = vpop.f32.mrf.mxu0
        %v7866 = vadd.f32 0.0, %v7865
        %v7867 = vpop.f32.mrf.mxu0
        %7868 = vmatprep.mubr.bf16.mxu0 0
        %7869 = vmatmul.mubr.bf16.gmra.mxu0 %v7759
        %v7870 = vpop.f32.mrf.mxu0
        %v7871 = vadd.f32 0.0, %v7870
        %v7872 = vpop.f32.mrf.mxu0
        %v7873 = vpop.f32.mrf.mxu0
        %v7874 = vadd.f32 0.0, %v7873
        %v7875 = vpop.f32.mrf.mxu0
        %7876 = vmatprep.mubr.bf16.mxu0 0
        %7877 = vmatmul.mubr.bf16.gmra.mxu0 %v7762
        %v7878 = vpop.f32.mrf.mxu0
        %v7879 = vadd.f32 0.0, %v7878
        %v7880 = vpop.f32.mrf.mxu0
        %v7881 = vpop.f32.mrf.mxu0
        %v7882 = vadd.f32 0.0, %v7881
        %v7883 = vpop.f32.mrf.mxu0
        %7884 = vmatprep.mubr.bf16.mxu0 0
        %7885 = vmatmul.mubr.bf16.gmra.mxu0 %v7765
        %v7886 = vpop.f32.mrf.mxu0
        %v7887 = vadd.f32 0.0, %v7886
        %v7888 = vpop.f32.mrf.mxu0
        %v7889 = vpop.f32.mrf.mxu0
        %v7890 = vadd.f32 0.0, %v7889
        %v7891 = vpop.f32.mrf.mxu0
        %7892 = vmatprep.mubr.bf16.mxu0 0
        %7893 = vmatmul.mubr.bf16.gmra.mxu0 %v7768
        %v7894 = vpop.f32.mrf.mxu0
        %v7895 = vadd.f32 0.0, %v7894
        %v7896 = vpop.f32.mrf.mxu0
        %v7897 = vpop.f32.mrf.mxu0
        %v7898 = vadd.f32 0.0, %v7897
        %v7899 = vpop.f32.mrf.mxu0
        %7900 = vmatprep.mubr.bf16.mxu0 0
        %7901 = vmatmul.mubr.bf16.gmra.mxu0 %v7771
        %v7902 = vpop.f32.mrf.mxu0
        %v7903 = vadd.f32 0.0, %v7902
        %v7904 = vpop.f32.mrf.mxu0
        %v7905 = vpop.f32.mrf.mxu0
        %v7906 = vadd.f32 0.0, %v7905
        %v7907 = vpop.f32.mrf.mxu0
        %7908 = vmatprep.mubr.bf16.mxu0 0
        %7909 = vmatmul.mubr.bf16.gmra.mxu0 %v7774
        %v7910 = vpop.f32.mrf.mxu0
        %v7911 = vadd.f32 0.0, %v7910
        %v7912 = vpop.f32.mrf.mxu0
        %v7913 = vpop.f32.mrf.mxu0
        %v7914 = vadd.f32 0.0, %v7913
        %v7915 = vpop.f32.mrf.mxu0
        %7916 = vmatprep.mubr.bf16.mxu0 0
        %7917 = vmatmul.mubr.bf16.gmra.mxu0 %v7777
        %v7918 = vpop.f32.mrf.mxu0
        %v7919 = vadd.f32 0.0, %v7918
        %v7920 = vpop.f32.mrf.mxu0
        %v7921 = vpop.f32.mrf.mxu0
        %v7922 = vadd.f32 0.0, %v7921
        %v7923 = vpop.f32.mrf.mxu0
        %7924 = vmatprep.mubr.bf16.mxu0 0
        %7925 = vmatmul.mubr.bf16.gmra.mxu0 %v7780
        %v7926 = vpop.f32.mrf.mxu0
        %v7927 = vadd.f32 0.0, %v7926
        %v7928 = vpop.f32.mrf.mxu0
        %v7929 = vpop.f32.mrf.mxu0
        %v7930 = vadd.f32 0.0, %v7929
        %v7931 = vpop.f32.mrf.mxu0
        %7932 = vmatprep.mubr.bf16.mxu0 0
        %7933 = vmatmul.mubr.bf16.gmra.mxu0 %v7783
        %v7934 = vpop.f32.mrf.mxu0
        %v7935 = vadd.f32 0.0, %v7934
        %v7936 = vpop.f32.mrf.mxu0
        %v7937 = vpop.f32.mrf.mxu0
        %v7938 = vadd.f32 0.0, %v7937
        %v7939 = vpop.f32.mrf.mxu0
        %7940 = vmatprep.mubr.bf16.mxu0 0
        %7941 = vmatmul.mubr.bf16.gmra.mxu0 %v7786
        %v7942 = vpop.f32.mrf.mxu0
        %v7943 = vadd.f32 0.0, %v7942
        %v7944 = vpop.f32.mrf.mxu0
        %v7945 = vpop.f32.mrf.mxu0
        %v7946 = vadd.f32 0.0, %v7945
        %v7947 = vpop.f32.mrf.mxu0
        %7948 = vdwg.mxu0
        %v7949 = vadd.f32 %v7643, %v7823
        %v7950 = vadd.f32 %v7644, %v7826
        %v7951 = vadd.f32 %v7645, %v7831
        %v7952 = vadd.f32 %v7646, %v7834
        %v7953 = vadd.f32 %v7647, %v7839
        %v7954 = vadd.f32 %v7648, %v7842
        %v7955 = vadd.f32 %v7649, %v7847
        %v7956 = vadd.f32 %v7650, %v7850
        %v7957 = vadd.f32 %v7651, %v7855
        %v7958 = vadd.f32 %v7652, %v7858
        %v7959 = vadd.f32 %v7653, %v7863
        %v7960 = vadd.f32 %v7654, %v7866
        %v7961 = vadd.f32 %v7655, %v7871
        %v7962 = vadd.f32 %v7656, %v7874
        %v7963 = vadd.f32 %v7657, %v7879
        %v7964 = vadd.f32 %v7658, %v7882
        %v7965 = vadd.f32 %v7659, %v7887
        %v7966 = vadd.f32 %v7660, %v7890
        %v7967 = vadd.f32 %v7661, %v7895
        %v7968 = vadd.f32 %v7662, %v7898
        %v7969 = vadd.f32 %v7663, %v7903
        %v7970 = vadd.f32 %v7664, %v7906
        %v7971 = vadd.f32 %v7665, %v7911
        %v7972 = vadd.f32 %v7666, %v7914
        %v7973 = vadd.f32 %v7667, %v7919
        %v7974 = vadd.f32 %v7668, %v7922
        %v7975 = vadd.f32 %v7669, %v7927
        %v7976 = vadd.f32 %v7670, %v7930
        %v7977 = vadd.f32 %v7671, %v7935
        %v7978 = vadd.f32 %v7672, %v7938
        %v7979 = vadd.f32 %v7673, %v7943
        %v7980 = vadd.f32 %v7674, %v7946
        %v7981 = vld [vmem:[%s3 + $0x3] sm:$0x1]
        %v7982 = vlaneseq
        %v7983 = vshrl.u32 %v7982, 7
        %v7984 = vsub.s32 0, %v7983
        %v7985 = vrot.slane %v7981, %v7984
        %v7986 = vadd.f32 %v7949, %v7985
        %v7987 = vadd.f32 %v7950, %v7985
        %v7988 = vadd.f32 %v7951, %v7985
        %v7989 = vadd.f32 %v7952, %v7985
        %v7990 = vadd.f32 %v7953, %v7985
        %v7991 = vadd.f32 %v7954, %v7985
        %v7992 = vadd.f32 %v7955, %v7985
        %v7993 = vadd.f32 %v7956, %v7985
        %v7994 = vadd.f32 %v7957, %v7985
        %v7995 = vadd.f32 %v7958, %v7985
        %v7996 = vadd.f32 %v7959, %v7985
        %v7997 = vadd.f32 %v7960, %v7985
        %v7998 = vadd.f32 %v7961, %v7985
        %v7999 = vadd.f32 %v7962, %v7985
        %v8000 = vadd.f32 %v7963, %v7985
        %v8001 = vadd.f32 %v7964, %v7985
        %v8002 = vadd.f32 %v7965, %v7985
        %v8003 = vadd.f32 %v7966, %v7985
        %v8004 = vadd.f32 %v7967, %v7985
        %v8005 = vadd.f32 %v7968, %v7985
        %v8006 = vadd.f32 %v7969, %v7985
        %v8007 = vadd.f32 %v7970, %v7985
        %v8008 = vadd.f32 %v7971, %v7985
        %v8009 = vadd.f32 %v7972, %v7985
        %v8010 = vadd.f32 %v7973, %v7985
        %v8011 = vadd.f32 %v7974, %v7985
        %v8012 = vadd.f32 %v7975, %v7985
        %v8013 = vadd.f32 %v7976, %v7985
        %v8014 = vadd.f32 %v7977, %v7985
        %v8015 = vadd.f32 %v7978, %v7985
        %v8016 = vadd.f32 %v7979, %v7985
        %v8017 = vadd.f32 %v7980, %v7985
        %v8018 = vsel %vm4793, %v7986, 0.0
        %v8019 = vsel %vm4793, %v7987, 0.0
        %v8020 = vadd.f32 %v8018, %v8019
        %v8021 = vsel %vm4793, %v7988, 0.0
        %v8022 = vadd.f32 %v8020, %v8021
        %v8023 = vsel %vm4793, %v7989, 0.0
        %v8024 = vadd.f32 %v8022, %v8023
        %v8025 = vsel %vm4793, %v7990, 0.0
        %v8026 = vadd.f32 %v8024, %v8025
        %v8027 = vsel %vm4793, %v7991, 0.0
        %v8028 = vadd.f32 %v8026, %v8027
        %v8029 = vsel %vm4793, %v7992, 0.0
        %v8030 = vadd.f32 %v8028, %v8029
        %v8031 = vsel %vm4793, %v7993, 0.0
        %v8032 = vadd.f32 %v8030, %v8031
        %v8033 = vsel %vm4793, %v7994, 0.0
        %v8034 = vadd.f32 %v8032, %v8033
        %v8035 = vsel %vm4793, %v7995, 0.0
        %v8036 = vadd.f32 %v8034, %v8035
        %v8037 = vsel %vm4793, %v7996, 0.0
        %v8038 = vadd.f32 %v8036, %v8037
        %v8039 = vsel %vm4793, %v7997, 0.0
        %v8040 = vadd.f32 %v8038, %v8039
        %v8041 = vsel %vm4793, %v7998, 0.0
        %v8042 = vadd.f32 %v8040, %v8041
        %v8043 = vsel %vm4793, %v7999, 0.0
        %v8044 = vadd.f32 %v8042, %v8043
        %v8045 = vsel %vm4793, %v8000, 0.0
        %v8046 = vadd.f32 %v8044, %v8045
        %v8047 = vsel %vm4793, %v8001, 0.0
        %v8048 = vadd.f32 %v8046, %v8047
        %v8049 = vsel %vm4793, %v8002, 0.0
        %v8050 = vadd.f32 %v8048, %v8049
        %v8051 = vsel %vm4793, %v8003, 0.0
        %v8052 = vadd.f32 %v8050, %v8051
        %v8053 = vsel %vm4793, %v8004, 0.0
        %v8054 = vadd.f32 %v8052, %v8053
        %v8055 = vsel %vm4793, %v8005, 0.0
        %v8056 = vadd.f32 %v8054, %v8055
        %v8057 = vsel %vm4793, %v8006, 0.0
        %v8058 = vadd.f32 %v8056, %v8057
        %v8059 = vsel %vm4793, %v8007, 0.0
        %v8060 = vadd.f32 %v8058, %v8059
        %v8061 = vsel %vm4793, %v8008, 0.0
        %v8062 = vadd.f32 %v8060, %v8061
        %v8063 = vsel %vm4793, %v8009, 0.0
        %v8064 = vadd.f32 %v8062, %v8063
        %v8065 = vsel %vm4793, %v8010, 0.0
        %v8066 = vadd.f32 %v8064, %v8065
        %v8067 = vsel %vm4793, %v8011, 0.0
        %v8068 = vadd.f32 %v8066, %v8067
        %v8069 = vsel %vm4793, %v8012, 0.0
        %v8070 = vadd.f32 %v8068, %v8069
        %v8071 = vsel %vm4793, %v8013, 0.0
        %v8072 = vadd.f32 %v8070, %v8071
        %v8073 = vsel %vm4793, %v8014, 0.0
        %v8074 = vadd.f32 %v8072, %v8073
        %v8075 = vsel %vm4793, %v8015, 0.0
        %v8076 = vadd.f32 %v8074, %v8075
        %v8077 = vsel %vm4793, %v8016, 0.0
        %v8078 = vadd.f32 %v8076, %v8077
        %v8079 = vsel %vm4793, %v8017, 0.0
        %v8080 = vadd.f32 %v8078, %v8079
        %v8081 = vrot.slane %v8080, 4
        %v8082 = vadd.f32 %v8080, %v8081
        %v8083 = vrot.slane %v8082, 2
        %v8084 = vadd.f32 %v8082, %v8083
        %v8085 = vrot.slane %v8084, 1
        %v8086 = vadd.f32 %v8084, %v8085
        %v8087 = vmul.f32 %v8086, %v4863
        %v8088 = vsub.f32 %v7986, %v8087
        %v8089 = vsub.f32 %v7987, %v8087
        %v8090 = vsub.f32 %v7988, %v8087
        %v8091 = vsub.f32 %v7989, %v8087
        %v8092 = vsub.f32 %v7990, %v8087
        %v8093 = vsub.f32 %v7991, %v8087
        %v8094 = vsub.f32 %v7992, %v8087
        %v8095 = vsub.f32 %v7993, %v8087
        %v8096 = vsub.f32 %v7994, %v8087
        %v8097 = vsub.f32 %v7995, %v8087
        %v8098 = vsub.f32 %v7996, %v8087
        %v8099 = vsub.f32 %v7997, %v8087
        %v8100 = vsub.f32 %v7998, %v8087
        %v8101 = vsub.f32 %v7999, %v8087
        %v8102 = vsub.f32 %v8000, %v8087
        %v8103 = vsub.f32 %v8001, %v8087
        %v8104 = vsub.f32 %v8002, %v8087
        %v8105 = vsub.f32 %v8003, %v8087
        %v8106 = vsub.f32 %v8004, %v8087
        %v8107 = vsub.f32 %v8005, %v8087
        %v8108 = vsub.f32 %v8006, %v8087
        %v8109 = vsub.f32 %v8007, %v8087
        %v8110 = vsub.f32 %v8008, %v8087
        %v8111 = vsub.f32 %v8009, %v8087
        %v8112 = vsub.f32 %v8010, %v8087
        %v8113 = vsub.f32 %v8011, %v8087
        %v8114 = vsub.f32 %v8012, %v8087
        %v8115 = vsub.f32 %v8013, %v8087
        %v8116 = vsub.f32 %v8014, %v8087
        %v8117 = vsub.f32 %v8015, %v8087
        %v8118 = vsub.f32 %v8016, %v8087
        %v8119 = vsub.f32 %v8017, %v8087
        %v8120 = vmul.f32 %v8088, %v8088
        %v8121 = vmul.f32 %v8089, %v8089
        %v8122 = vmul.f32 %v8090, %v8090
        %v8123 = vmul.f32 %v8091, %v8091
        %v8124 = vmul.f32 %v8092, %v8092
        %v8125 = vmul.f32 %v8093, %v8093
        %v8126 = vmul.f32 %v8094, %v8094
        %v8127 = vmul.f32 %v8095, %v8095
        %v8128 = vmul.f32 %v8096, %v8096
        %v8129 = vmul.f32 %v8097, %v8097
        %v8130 = vmul.f32 %v8098, %v8098
        %v8131 = vmul.f32 %v8099, %v8099
        %v8132 = vmul.f32 %v8100, %v8100
        %v8133 = vmul.f32 %v8101, %v8101
        %v8134 = vmul.f32 %v8102, %v8102
        %v8135 = vmul.f32 %v8103, %v8103
        %v8136 = vmul.f32 %v8104, %v8104
        %v8137 = vmul.f32 %v8105, %v8105
        %v8138 = vmul.f32 %v8106, %v8106
        %v8139 = vmul.f32 %v8107, %v8107
        %v8140 = vmul.f32 %v8108, %v8108
        %v8141 = vmul.f32 %v8109, %v8109
        %v8142 = vmul.f32 %v8110, %v8110
        %v8143 = vmul.f32 %v8111, %v8111
        %v8144 = vmul.f32 %v8112, %v8112
        %v8145 = vmul.f32 %v8113, %v8113
        %v8146 = vmul.f32 %v8114, %v8114
        %v8147 = vmul.f32 %v8115, %v8115
        %v8148 = vmul.f32 %v8116, %v8116
        %v8149 = vmul.f32 %v8117, %v8117
        %v8150 = vmul.f32 %v8118, %v8118
        %v8151 = vmul.f32 %v8119, %v8119
        %v8152 = vsel %vm4793, %v8120, 0.0
        %v8153 = vsel %vm4793, %v8121, 0.0
        %v8154 = vadd.f32 %v8152, %v8153
        %v8155 = vsel %vm4793, %v8122, 0.0
        %v8156 = vadd.f32 %v8154, %v8155
        %v8157 = vsel %vm4793, %v8123, 0.0
        %v8158 = vadd.f32 %v8156, %v8157
        %v8159 = vsel %vm4793, %v8124, 0.0
        %v8160 = vadd.f32 %v8158, %v8159
        %v8161 = vsel %vm4793, %v8125, 0.0
        %v8162 = vadd.f32 %v8160, %v8161
        %v8163 = vsel %vm4793, %v8126, 0.0
        %v8164 = vadd.f32 %v8162, %v8163
        %v8165 = vsel %vm4793, %v8127, 0.0
        %v8166 = vadd.f32 %v8164, %v8165
        %v8167 = vsel %vm4793, %v8128, 0.0
        %v8168 = vadd.f32 %v8166, %v8167
        %v8169 = vsel %vm4793, %v8129, 0.0
        %v8170 = vadd.f32 %v8168, %v8169
        %v8171 = vsel %vm4793, %v8130, 0.0
        %v8172 = vadd.f32 %v8170, %v8171
        %v8173 = vsel %vm4793, %v8131, 0.0
        %v8174 = vadd.f32 %v8172, %v8173
        %v8175 = vsel %vm4793, %v8132, 0.0
        %v8176 = vadd.f32 %v8174, %v8175
        %v8177 = vsel %vm4793, %v8133, 0.0
        %v8178 = vadd.f32 %v8176, %v8177
        %v8179 = vsel %vm4793, %v8134, 0.0
        %v8180 = vadd.f32 %v8178, %v8179
        %v8181 = vsel %vm4793, %v8135, 0.0
        %v8182 = vadd.f32 %v8180, %v8181
        %v8183 = vsel %vm4793, %v8136, 0.0
        %v8184 = vadd.f32 %v8182, %v8183
        %v8185 = vsel %vm4793, %v8137, 0.0
        %v8186 = vadd.f32 %v8184, %v8185
        %v8187 = vsel %vm4793, %v8138, 0.0
        %v8188 = vadd.f32 %v8186, %v8187
        %v8189 = vsel %vm4793, %v8139, 0.0
        %v8190 = vadd.f32 %v8188, %v8189
        %v8191 = vsel %vm4793, %v8140, 0.0
        %v8192 = vadd.f32 %v8190, %v8191
        %v8193 = vsel %vm4793, %v8141, 0.0
        %v8194 = vadd.f32 %v8192, %v8193
        %v8195 = vsel %vm4793, %v8142, 0.0
        %v8196 = vadd.f32 %v8194, %v8195
        %v8197 = vsel %vm4793, %v8143, 0.0
        %v8198 = vadd.f32 %v8196, %v8197
        %v8199 = vsel %vm4793, %v8144, 0.0
        %v8200 = vadd.f32 %v8198, %v8199
        %v8201 = vsel %vm4793, %v8145, 0.0
        %v8202 = vadd.f32 %v8200, %v8201
        %v8203 = vsel %vm4793, %v8146, 0.0
        %v8204 = vadd.f32 %v8202, %v8203
        %v8205 = vsel %vm4793, %v8147, 0.0
        %v8206 = vadd.f32 %v8204, %v8205
        %v8207 = vsel %vm4793, %v8148, 0.0
        %v8208 = vadd.f32 %v8206, %v8207
        %v8209 = vsel %vm4793, %v8149, 0.0
        %v8210 = vadd.f32 %v8208, %v8209
        %v8211 = vsel %vm4793, %v8150, 0.0
        %v8212 = vadd.f32 %v8210, %v8211
        %v8213 = vsel %vm4793, %v8151, 0.0
        %v8214 = vadd.f32 %v8212, %v8213
        %v8215 = vrot.slane %v8214, 4
        %v8216 = vadd.f32 %v8214, %v8215
        %v8217 = vrot.slane %v8216, 2
        %v8218 = vadd.f32 %v8216, %v8217
        %v8219 = vrot.slane %v8218, 1
        %v8220 = vadd.f32 %v8218, %v8219
        %v8221 = vmul.f32 %v8220, %v4863
        %v8222 = vadd.f32 %v8221, 1e-05
        %v8223 = vrsqrt.pop %v8222
        %v8224 = vmul.f32 %v8088, %v8223
        %v8225 = vmul.f32 %v8089, %v8223
        %v8226 = vmul.f32 %v8090, %v8223
        %v8227 = vmul.f32 %v8091, %v8223
        %v8228 = vmul.f32 %v8092, %v8223
        %v8229 = vmul.f32 %v8093, %v8223
        %v8230 = vmul.f32 %v8094, %v8223
        %v8231 = vmul.f32 %v8095, %v8223
        %v8232 = vmul.f32 %v8096, %v8223
        %v8233 = vmul.f32 %v8097, %v8223
        %v8234 = vmul.f32 %v8098, %v8223
        %v8235 = vmul.f32 %v8099, %v8223
        %v8236 = vmul.f32 %v8100, %v8223
        %v8237 = vmul.f32 %v8101, %v8223
        %v8238 = vmul.f32 %v8102, %v8223
        %v8239 = vmul.f32 %v8103, %v8223
        %v8240 = vmul.f32 %v8104, %v8223
        %v8241 = vmul.f32 %v8105, %v8223
        %v8242 = vmul.f32 %v8106, %v8223
        %v8243 = vmul.f32 %v8107, %v8223
        %v8244 = vmul.f32 %v8108, %v8223
        %v8245 = vmul.f32 %v8109, %v8223
        %v8246 = vmul.f32 %v8110, %v8223
        %v8247 = vmul.f32 %v8111, %v8223
        %v8248 = vmul.f32 %v8112, %v8223
        %v8249 = vmul.f32 %v8113, %v8223
        %v8250 = vmul.f32 %v8114, %v8223
        %v8251 = vmul.f32 %v8115, %v8223
        %v8252 = vmul.f32 %v8116, %v8223
        %v8253 = vmul.f32 %v8117, %v8223
        %v8254 = vmul.f32 %v8118, %v8223
        %v8255 = vmul.f32 %v8119, %v8223
        %v8256 = vld [vmem:[%s3 + $0x4] sm:$0x1]
        %v8257 = vlaneseq
        %v8258 = vshrl.u32 %v8257, 7
        %v8259 = vsub.s32 0, %v8258
        %v8260 = vrot.slane %v8256, %v8259
        %v8261 = vmul.f32 %v8224, %v8260
        %v8262 = vmul.f32 %v8225, %v8260
        %v8263 = vmul.f32 %v8226, %v8260
        %v8264 = vmul.f32 %v8227, %v8260
        %v8265 = vmul.f32 %v8228, %v8260
        %v8266 = vmul.f32 %v8229, %v8260
        %v8267 = vmul.f32 %v8230, %v8260
        %v8268 = vmul.f32 %v8231, %v8260
        %v8269 = vmul.f32 %v8232, %v8260
        %v8270 = vmul.f32 %v8233, %v8260
        %v8271 = vmul.f32 %v8234, %v8260
        %v8272 = vmul.f32 %v8235, %v8260
        %v8273 = vmul.f32 %v8236, %v8260
        %v8274 = vmul.f32 %v8237, %v8260
        %v8275 = vmul.f32 %v8238, %v8260
        %v8276 = vmul.f32 %v8239, %v8260
        %v8277 = vmul.f32 %v8240, %v8260
        %v8278 = vmul.f32 %v8241, %v8260
        %v8279 = vmul.f32 %v8242, %v8260
        %v8280 = vmul.f32 %v8243, %v8260
        %v8281 = vmul.f32 %v8244, %v8260
        %v8282 = vmul.f32 %v8245, %v8260
        %v8283 = vmul.f32 %v8246, %v8260
        %v8284 = vmul.f32 %v8247, %v8260
        %v8285 = vmul.f32 %v8248, %v8260
        %v8286 = vmul.f32 %v8249, %v8260
        %v8287 = vmul.f32 %v8250, %v8260
        %v8288 = vmul.f32 %v8251, %v8260
        %v8289 = vmul.f32 %v8252, %v8260
        %v8290 = vmul.f32 %v8253, %v8260
        %v8291 = vmul.f32 %v8254, %v8260
        %v8292 = vmul.f32 %v8255, %v8260
        %v8293 = vld [vmem:[%s3 + $0x5] sm:$0x1]
        %v8294 = vlaneseq
        %v8295 = vshrl.u32 %v8294, 7
        %v8296 = vsub.s32 0, %v8295
        %v8297 = vrot.slane %v8293, %v8296
        %v8298 = vadd.f32 %v8261, %v8297
        %v8299 = vadd.f32 %v8262, %v8297
        %v8300 = vadd.f32 %v8263, %v8297
        %v8301 = vadd.f32 %v8264, %v8297
        %v8302 = vadd.f32 %v8265, %v8297
        %v8303 = vadd.f32 %v8266, %v8297
        %v8304 = vadd.f32 %v8267, %v8297
        %v8305 = vadd.f32 %v8268, %v8297
        %v8306 = vadd.f32 %v8269, %v8297
        %v8307 = vadd.f32 %v8270, %v8297
        %v8308 = vadd.f32 %v8271, %v8297
        %v8309 = vadd.f32 %v8272, %v8297
        %v8310 = vadd.f32 %v8273, %v8297
        %v8311 = vadd.f32 %v8274, %v8297
        %v8312 = vadd.f32 %v8275, %v8297
        %v8313 = vadd.f32 %v8276, %v8297
        %v8314 = vadd.f32 %v8277, %v8297
        %v8315 = vadd.f32 %v8278, %v8297
        %v8316 = vadd.f32 %v8279, %v8297
        %v8317 = vadd.f32 %v8280, %v8297
        %v8318 = vadd.f32 %v8281, %v8297
        %v8319 = vadd.f32 %v8282, %v8297
        %v8320 = vadd.f32 %v8283, %v8297
        %v8321 = vadd.f32 %v8284, %v8297
        %v8322 = vadd.f32 %v8285, %v8297
        %v8323 = vadd.f32 %v8286, %v8297
        %v8324 = vadd.f32 %v8287, %v8297
        %v8325 = vadd.f32 %v8288, %v8297
        %v8326 = vadd.f32 %v8289, %v8297
        %v8327 = vadd.f32 %v8290, %v8297
        %v8328 = vadd.f32 %v8291, %v8297
        %v8329 = vadd.f32 %v8292, %v8297
        %vm8330 = vcmp.ge.f32.partialorder %v8298, 0.0
        %vm8331 = vcmp.ge.f32.partialorder %v8299, 0.0
        %vm8332 = vcmp.ge.f32.partialorder %v8300, 0.0
        %vm8333 = vcmp.ge.f32.partialorder %v8301, 0.0
        %vm8334 = vcmp.ge.f32.partialorder %v8302, 0.0
        %vm8335 = vcmp.ge.f32.partialorder %v8303, 0.0
        %vm8336 = vcmp.ge.f32.partialorder %v8304, 0.0
        %vm8337 = vcmp.ge.f32.partialorder %v8305, 0.0
        %vm8338 = vcmp.ge.f32.partialorder %v8306, 0.0
        %vm8339 = vcmp.ge.f32.partialorder %v8307, 0.0
        %vm8340 = vcmp.ge.f32.partialorder %v8308, 0.0
        %vm8341 = vcmp.ge.f32.partialorder %v8309, 0.0
        %vm8342 = vcmp.ge.f32.partialorder %v8310, 0.0
        %vm8343 = vcmp.ge.f32.partialorder %v8311, 0.0
        %vm8344 = vcmp.ge.f32.partialorder %v8312, 0.0
        %vm8345 = vcmp.ge.f32.partialorder %v8313, 0.0
        %vm8346 = vcmp.ge.f32.partialorder %v8314, 0.0
        %vm8347 = vcmp.ge.f32.partialorder %v8315, 0.0
        %vm8348 = vcmp.ge.f32.partialorder %v8316, 0.0
        %vm8349 = vcmp.ge.f32.partialorder %v8317, 0.0
        %vm8350 = vcmp.ge.f32.partialorder %v8318, 0.0
        %vm8351 = vcmp.ge.f32.partialorder %v8319, 0.0
        %vm8352 = vcmp.ge.f32.partialorder %v8320, 0.0
        %vm8353 = vcmp.ge.f32.partialorder %v8321, 0.0
        %vm8354 = vcmp.ge.f32.partialorder %v8322, 0.0
        %vm8355 = vcmp.ge.f32.partialorder %v8323, 0.0
        %vm8356 = vcmp.ge.f32.partialorder %v8324, 0.0
        %vm8357 = vcmp.ge.f32.partialorder %v8325, 0.0
        %vm8358 = vcmp.ge.f32.partialorder %v8326, 0.0
        %vm8359 = vcmp.ge.f32.partialorder %v8327, 0.0
        %vm8360 = vcmp.ge.f32.partialorder %v8328, 0.0
        %vm8361 = vcmp.ge.f32.partialorder %v8329, 0.0
        %v8362 = vmul.f32 %v8298, 0.01
        %v8363 = vmul.f32 %v8299, 0.01
        %v8364 = vmul.f32 %v8300, 0.01
        %v8365 = vmul.f32 %v8301, 0.01
        %v8366 = vmul.f32 %v8302, 0.01
        %v8367 = vmul.f32 %v8303, 0.01
        %v8368 = vmul.f32 %v8304, 0.01
        %v8369 = vmul.f32 %v8305, 0.01
        %v8370 = vmul.f32 %v8306, 0.01
        %v8371 = vmul.f32 %v8307, 0.01
        %v8372 = vmul.f32 %v8308, 0.01
        %v8373 = vmul.f32 %v8309, 0.01
        %v8374 = vmul.f32 %v8310, 0.01
        %v8375 = vmul.f32 %v8311, 0.01
        %v8376 = vmul.f32 %v8312, 0.01
        %v8377 = vmul.f32 %v8313, 0.01
        %v8378 = vmul.f32 %v8314, 0.01
        %v8379 = vmul.f32 %v8315, 0.01
        %v8380 = vmul.f32 %v8316, 0.01
        %v8381 = vmul.f32 %v8317, 0.01
        %v8382 = vmul.f32 %v8318, 0.01
        %v8383 = vmul.f32 %v8319, 0.01
        %v8384 = vmul.f32 %v8320, 0.01
        %v8385 = vmul.f32 %v8321, 0.01
        %v8386 = vmul.f32 %v8322, 0.01
        %v8387 = vmul.f32 %v8323, 0.01
        %v8388 = vmul.f32 %v8324, 0.01
        %v8389 = vmul.f32 %v8325, 0.01
        %v8390 = vmul.f32 %v8326, 0.01
        %v8391 = vmul.f32 %v8327, 0.01
        %v8392 = vmul.f32 %v8328, 0.01
        %v8393 = vmul.f32 %v8329, 0.01
        %v8394 = vsel %vm8330, %v8298, %v8362
        %v8395 = vsel %vm8331, %v8299, %v8363
        %v8396 = vsel %vm8332, %v8300, %v8364
        %v8397 = vsel %vm8333, %v8301, %v8365
        %v8398 = vsel %vm8334, %v8302, %v8366
        %v8399 = vsel %vm8335, %v8303, %v8367
        %v8400 = vsel %vm8336, %v8304, %v8368
        %v8401 = vsel %vm8337, %v8305, %v8369
        %v8402 = vsel %vm8338, %v8306, %v8370
        %v8403 = vsel %vm8339, %v8307, %v8371
        %v8404 = vsel %vm8340, %v8308, %v8372
        %v8405 = vsel %vm8341, %v8309, %v8373
        %v8406 = vsel %vm8342, %v8310, %v8374
        %v8407 = vsel %vm8343, %v8311, %v8375
        %v8408 = vsel %vm8344, %v8312, %v8376
        %v8409 = vsel %vm8345, %v8313, %v8377
        %v8410 = vsel %vm8346, %v8314, %v8378
        %v8411 = vsel %vm8347, %v8315, %v8379
        %v8412 = vsel %vm8348, %v8316, %v8380
        %v8413 = vsel %vm8349, %v8317, %v8381
        %v8414 = vsel %vm8350, %v8318, %v8382
        %v8415 = vsel %vm8351, %v8319, %v8383
        %v8416 = vsel %vm8352, %v8320, %v8384
        %v8417 = vsel %vm8353, %v8321, %v8385
        %v8418 = vsel %vm8354, %v8322, %v8386
        %v8419 = vsel %vm8355, %v8323, %v8387
        %v8420 = vsel %vm8356, %v8324, %v8388
        %v8421 = vsel %vm8357, %v8325, %v8389
        %v8422 = vsel %vm8358, %v8326, %v8390
        %v8423 = vsel %vm8359, %v8327, %v8391
        %v8424 = vsel %vm8360, %v8328, %v8392
        %v8425 = vsel %vm8361, %v8329, %v8393
        %8426 = vst.msk [vmem:[%s190] sm:$0xff] %vm4793, %v8394
        %8427 = vst.msk [vmem:[%s190 + $0x8] sm:$0xff] %vm4793, %v8395
        %8428 = vst.msk [vmem:[%s190 + $0x10] sm:$0xff] %vm4793, %v8396
        %8429 = vst.msk [vmem:[%s190 + $0x18] sm:$0xff] %vm4793, %v8397
        %8430 = vst.msk [vmem:[%s190 + $0x20] sm:$0xff] %vm4793, %v8398
        %8431 = vst.msk [vmem:[%s190 + $0x28] sm:$0xff] %vm4793, %v8399
        %8432 = vst.msk [vmem:[%s190 + $0x30] sm:$0xff] %vm4793, %v8400
        %8433 = vst.msk [vmem:[%s190 + $0x38] sm:$0xff] %vm4793, %v8401
        %8434 = vst.msk [vmem:[%s190 + $0x40] sm:$0xff] %vm4793, %v8402
        %8435 = vst.msk [vmem:[%s190 + $0x48] sm:$0xff] %vm4793, %v8403
        %8436 = vst.msk [vmem:[%s190 + $0x50] sm:$0xff] %vm4793, %v8404
        %8437 = vst.msk [vmem:[%s190 + $0x58] sm:$0xff] %vm4793, %v8405
        %8438 = vst.msk [vmem:[%s190 + $0x60] sm:$0xff] %vm4793, %v8406
        %8439 = vst.msk [vmem:[%s190 + $0x68] sm:$0xff] %vm4793, %v8407
        %8440 = vst.msk [vmem:[%s190 + $0x70] sm:$0xff] %vm4793, %v8408
        %8441 = vst.msk [vmem:[%s190 + $0x78] sm:$0xff] %vm4793, %v8409
        %8442 = vst.msk [vmem:[%s190 + $0x80] sm:$0xff] %vm4793, %v8410
        %8443 = vst.msk [vmem:[%s190 + $0x88] sm:$0xff] %vm4793, %v8411
        %8444 = vst.msk [vmem:[%s190 + $0x90] sm:$0xff] %vm4793, %v8412
        %8445 = vst.msk [vmem:[%s190 + $0x98] sm:$0xff] %vm4793, %v8413
        %8446 = vst.msk [vmem:[%s190 + $0xa0] sm:$0xff] %vm4793, %v8414
        %8447 = vst.msk [vmem:[%s190 + $0xa8] sm:$0xff] %vm4793, %v8415
        %8448 = vst.msk [vmem:[%s190 + $0xb0] sm:$0xff] %vm4793, %v8416
        %8449 = vst.msk [vmem:[%s190 + $0xb8] sm:$0xff] %vm4793, %v8417
        %8450 = vst.msk [vmem:[%s190 + $0xc0] sm:$0xff] %vm4793, %v8418
        %8451 = vst.msk [vmem:[%s190 + $0xc8] sm:$0xff] %vm4793, %v8419
        %8452 = vst.msk [vmem:[%s190 + $0xd0] sm:$0xff] %vm4793, %v8420
        %8453 = vst.msk [vmem:[%s190 + $0xd8] sm:$0xff] %vm4793, %v8421
        %8454 = vst.msk [vmem:[%s190 + $0xe0] sm:$0xff] %vm4793, %v8422
        %8455 = vst.msk [vmem:[%s190 + $0xe8] sm:$0xff] %vm4793, %v8423
        %8456 = vst.msk [vmem:[%s190 + $0xf0] sm:$0xff] %vm4793, %v8424
        %8457 = vst.msk [vmem:[%s190 + $0xf8] sm:$0xff] %vm4793, %v8425
        %s8458 = sand.u32 %s115, 1
        %s8459 = scalar_lea.sflag [#allocation4], %s8458
        %s8460 = sand.u32 %s115, 1
        %s8461 = smul.addr %s8460, 256
        %s8462 = scalar_lea.vmem [#allocation3], %s8461
        // Predicated region
        $region37: #{stacked_conv2d_nchw.1} parent=35 // pred_check
          %p8463 = pneg %p125
        $region38: #{stacked_conv2d_nchw.1} parent=35 // pred_check_branch
          %8465 = sbr.rel (%p8463) target = $region40
        $region39: #{stacked_conv2d_nchw.1} parent=35 // pred_region
          %s8467 = ssub.s32 4096, 4096
          %8468 = vsyncadd %s8459, %s8467
          %s8469 = smul.addr %s18, 32
          %s8470 = smul.addr %s8469, 128
          %s8471 = scalar_lea.hbm %s4, %s8470
          %s8472 = sshll.u32 %s8462, 4
          %s8473 = int_to_ptr.vmem [resolvable:$true] %s8472
          %8478 = dma.vmem_to_hbm [thread:$0]  %s8473, 4096, %s8471, %s8459, 128, 128, 8
        $region40: #{stacked_conv2d_nchw.1} parent=35 // pred_fallthru
          _
      $region36: #{stacked_conv2d_nchw.1} parent=5 // pred_fallthru
        _
      %p8479 = scmp.le.s32.totalorder 2, %s13
      // Predicated region
      $region41: #{stacked_conv2d_nchw.1} parent=5 // pred_check
        %p8480 = pneg %p8479
      $region42: #{stacked_conv2d_nchw.1} parent=5 // pred_check_branch
        %8482 = sbr.rel (%p8480) target = $region44
      $region43: #{stacked_conv2d_nchw.1} parent=5 // pred_region
        %s8483 = ssub.s32 %s13, 2
        // Predicated region
        $region45: #{stacked_conv2d_nchw.1} parent=43 // pred_check
          %p8484 = pneg %p131
        $region46: #{stacked_conv2d_nchw.1} parent=43 // pred_check_branch
          %8486 = sbr.rel (%p8484) target = $region48
        $region47: #{stacked_conv2d_nchw.1} parent=43 // pred_region
          %s8487 = sand.u32 %s116, 1
          %s8488 = scalar_lea.sflag [#allocation4], %s8487
          %s8489 = sand.u32 %s116, 1
          %s8490 = smul.addr %s8489, 256
          %s8491 = scalar_lea.vmem [#allocation3], %s8490
          %8492 = dma.done %s8488, 4096
        $region48: #{stacked_conv2d_nchw.1} parent=43 // pred_fallthru
          _
      $region44: #{stacked_conv2d_nchw.1} parent=5 // pred_fallthru
        _
    $region6: #{stacked_conv2d_nchw.1} parent=1 // loop_footer
      %s17 = sadd.s32 1, %s13
    $region7: #{stacked_conv2d_nchw.1} parent=1 // loop_footer_branch
      %12 = sbr.rel target = $region3
    $region8: #{stacked_conv2d_nchw.1} parent=1 // loop_exit
      _
    %8493 = vsyncpa [#allocation4], 1
    %s8494 = scalar_lea.sflag [#allocation4], 1
    %8495 = vsyncpa %s8494, 1

</llo_original>
